<compile_context>
chip_gen: v7x
topology: tpu7x:2x2x1
jax: 0.10.0
libtpu: 0.0.40
codegen_flags: <defaults>
</compile_context>

<pallas_src>
import functools

import jax
import jax.numpy as jnp
import numpy as np
from jax import lax
from jax.experimental import pallas as pl
from jax.experimental.pallas import tpu as pltpu


def _layernorm(x, w, b, eps=1e-6):
    mu = jnp.mean(x, axis=-1, keepdims=True)
    var = jnp.mean((x - mu) ** 2, axis=-1, keepdims=True)
    return (x - mu) * lax.rsqrt(var + eps) * w + b


def clr_kernel(cls_ref, tok_ref, vec_ref, wqkv_ref, bqkv_ref, wo_ref,
               w1_ref, b1_ref, w2_ref, out_ref, attw_ref, xbuf,
               *opt_scratch, num_heads, head_batched, act_dtype):
    Bb, S, C = xbuf.shape                      # block_b samples per grid step
    R = Bb * S                                 # flattened row count for matmuls
    H = num_heads
    dh = C // H
    cdt = wqkv_ref.dtype                       # MXU compute dtype (bf16 or f32)
    scale = 1.0 / (dh ** 0.5)

    # Packed per-channel vectors (one DMA); static sublane-row slices.
    ln1_w = vec_ref[0:1, :]
    ln1_b = vec_ref[1:2, :]
    bo = vec_ref[2:3, :]
    ln2_w = vec_ref[3:4, :]
    ln2_b = vec_ref[4:5, :]
    b2 = vec_ref[5:6, :]
    clr_w = vec_ref[6:7, :]
    clr_b = vec_ref[7:8, :]

    # ---- assemble [cls ; tokens] directly in VMEM (no host-side concat) ----
    xbuf[:, 0:1, :] = cls_ref[...].astype(jnp.float32)
    xbuf[:, 1:, :] = tok_ref[...].astype(jnp.float32)
    x = xbuf[...].reshape(R, C)                # f32 residual stream, rows batched

    # ---- self attention (clr_layer, part 1): fused QKV ----
    h = _layernorm(x, ln1_w, ln1_b)                                  # f32 vector math
    qkv = jnp.dot(h.astype(cdt), wqkv_ref[...],
                  preferred_element_type=jnp.float32) + bqkv_ref[...]  # (R, 3C) f32
    q = (qkv[:, 0:C] * scale).astype(cdt)      # fold 1/sqrt(dh) once into q
    k = qkv[:, C:2 * C].astype(cdt)
    v = qkv[:, 2 * C:3 * C].astype(cdt)

    if head_batched:
        # One batched attention over (block_b * H) instead of an unrolled
        # per-head loop: removes 3H lane slices, H masked ctx stores and H
        # masked probability stores per grid step.
        def to_heads(t):                       # (R, C) -> (Bb*H, S, dh)
            return t.reshape(Bb, S, H, dh).transpose(0, 2, 1, 3).reshape(Bb * H, S, dh)

        q3, k3, v3 = to_heads(q), to_heads(k), to_heads(v)
        scores = jnp.einsum('bqd,bkd->bqk', q3, k3,
                            preferred_element_type=jnp.float32)       # (Bb*H, S, S)
        m = jnp.max(scores, axis=-1, keepdims=True)
        e = jnp.exp(scores - m)
        denom = jnp.sum(e, axis=-1, keepdims=True)
        probs = e * pl.reciprocal(denom, approx=True)                 # divide on EUP
        attw_ref[...] = probs.reshape(Bb, H, S, S).astype(attw_ref.dtype)
        ctx = jnp.einsum('bqk,bkd->bqd', probs.astype(cdt), v3,
                         preferred_element_type=jnp.float32)          # (Bb*H, S, dh)
        ctx_flat = ctx.reshape(Bb, H, S, dh).transpose(0, 2, 1, 3).reshape(R, C)
    else:
        # Fallback: previous (proven) statically unrolled per-head loop.
        ctxbuf = opt_scratch[0]
        for hd in range(H):
            lo, hi = hd * dh, (hd + 1) * dh
            qh = q[:, lo:hi].reshape(Bb, S, dh)
            kh = k[:, lo:hi].reshape(Bb, S, dh)
            vh = v[:, lo:hi].reshape(Bb, S, dh)
            scores = jnp.einsum('bqd,bkd->bqk', qh, kh,
                                preferred_element_type=jnp.float32)
            m = jnp.max(scores, axis=-1, keepdims=True)
            e = jnp.exp(scores - m)
            denom = jnp.sum(e, axis=-1, keepdims=True)
            probs = e * pl.reciprocal(denom, approx=True)
            attw_ref[:, hd, :, :] = probs.astype(attw_ref.dtype)
            ctxh = jnp.einsum('bqk,bkd->bqd', probs.astype(cdt), vh,
                              preferred_element_type=jnp.float32)
            ctxbuf[:, lo:hi] = ctxh.reshape(R, dh)
        ctx_flat = ctxbuf[...]

    attn_out = jnp.dot(ctx_flat.astype(cdt), wo_ref[...],
                       preferred_element_type=jnp.float32) + bo
    x = x + attn_out

    # ---- MLP (clr_layer, part 2) ----
    h = _layernorm(x, ln2_w, ln2_b)
    h = jnp.dot(h.astype(cdt), w1_ref[...],
                preferred_element_type=jnp.float32) + b1_ref[...]
    # TODO(synk): PyTorch F.gelu defaults to the exact erf form; tanh approximation used here.
    h = jax.nn.gelu(h.astype(act_dtype), approximate=True)            # bf16 on v6e/v7x only
    h = jnp.dot(h.astype(cdt), w2_ref[...],
                preferred_element_type=jnp.float32) + b2
    x = x + h

    # ---- clr_norm (final LayerNorm, eps=1e-6) ----
    out = _layernorm(x, clr_w, clr_b)
    out_ref[...] = out.reshape(Bb, S, C).astype(out_ref.dtype)


# ----------------------------- host-side helpers -----------------------------

def prepare_clr_params(params, compute_dtype=jnp.bfloat16):
    """One-time parameter prep (fuse QKV, pack small vectors, cast weights)."""
    f32 = jnp.float32
    wqkv = jnp.concatenate([params["wq"], params["wk"], params["wv"]],
                           axis=1).astype(compute_dtype)
    bqkv = jnp.concatenate([params["bq"], params["bk"], params["bv"]],
                           axis=1).astype(f32)
    vec_c = jnp.concatenate([params["ln1_w"], params["ln1_b"], params["bo"],
                             params["ln2_w"], params["ln2_b"], params["b2"],
                             params["clr_w"], params["clr_b"]], axis=0).astype(f32)
    return {
        "vec_c": vec_c,                         # (8, C): ln1_w, ln1_b, bo, ln2_w, ln2_b, b2, clr_w, clr_b
        "wqkv": wqkv,                           # (C, 3C) compute dtype
        "bqkv": bqkv,                           # (1, 3C) f32
        "wo": params["wo"].astype(compute_dtype),
        "w1": params["w1"].astype(compute_dtype),
        "b1": params["b1"].astype(f32),
        "w2": params["w2"].astype(compute_dtype),
    }


def _chip_info():
    """Generation-aware knobs: grid-step minimum, MXU row fill target, VMEM budget."""
    kind = ""
    try:
        kind = jax.devices()[0].device_kind.lower()
    except Exception:
        pass
    if "v7" in kind or "7x" in kind:
        # 2 TCs / chip, 64 MiB physical VMEM -> leave headroom, keep >=2 grid steps.
        return dict(min_steps=2, row_target=256, vmem_budget=48 * 2**20, fast_bf16_vpu=True)
    if "v6" in kind:
        return dict(min_steps=1, row_target=256, vmem_budget=96 * 2**20, fast_bf16_vpu=True)
    if ("v5e" in kind) or ("v5 lite" in kind) or ("v5litepod" in kind):
        return dict(min_steps=1, row_target=128, vmem_budget=80 * 2**20, fast_bf16_vpu=False)
    if ("v4" in kind) or ("v5p" in kind) or ("v5" in kind):
        # megacore chips: keep >=2 steps so both cores get work.
        return dict(min_steps=2, row_target=128, vmem_budget=80 * 2**20, fast_bf16_vpu=False)
    return dict(min_steps=1, row_target=128, vmem_budget=32 * 2**20, fast_bf16_vpu=False)


def _est_vmem_bytes(d, S, C, M, H, out_itemsize, cdt_bytes):
    R = d * S
    weights = (4 * C * C + 2 * C * M) * cdt_bytes + (11 * C + M) * 4
    io = 2 * (R * C * 4 + R * C * out_itemsize + d * H * S * S * 4)       # double-buffered blocks
    acts = 4 * (3 * R * C + 3 * R * C + R * M + 2 * d * H * S * S) \
        + cdt_bytes * (4 * R * C + R * M)
    return int(1.25 * (weights + io + acts))


def _pick_block_b(B, S, C, M, H, out_itemsize, *, min_steps, row_target, budget, cdt_bytes):
    divisors = [d for d in range(1, B + 1) if B % d == 0]
    max_rows = 4096

    def ok(d, steps):
        return (d * S <= max_rows and (B // d) >= steps and
                _est_vmem_bytes(d, S, C, M, H, out_itemsize, cdt_bytes) <= 0.75 * budget)

    cands = [d for d in divisors if ok(d, min_steps)]
    if not cands:
        cands = [d for d in divisors if ok(d, 1)] or [1]
    full = [d for d in cands if d * S >= row_target]
    # smallest block that fills an MXU row pass, else the largest that fits.
    return min(full) if full else max(cands)


def cross_layer_refinement(x_tokens, cls_tok, params, num_heads, *,
                           compute_dtype=jnp.bfloat16, block_b=None):
    """x_tokens: (B, K, C) stacked selected tokens, cls_tok: (B, 1, C)."""
    B, K, C = x_tokens.shape
    S = K + 1
    H = num_heads

    prepped = params if ("wqkv" in params) else prepare_clr_params(params, compute_dtype)
    cdt = prepped["wqkv"].dtype
    M = prepped["w1"].shape[1]

    info = _chip_info()
    if block_b is None:
        block_b = _pick_block_b(B, S, C, M, H, x_tokens.dtype.itemsize,
                                min_steps=info["min_steps"], row_target=info["row_target"],
                                budget=info["vmem_budget"],
                                cdt_bytes=jnp.dtype(cdt).itemsize)
    assert B % block_b == 0

    # bf16 GELU only on chips with a bf16 VPU/EUP (v6e/v7x); f32 elsewhere.
    act_dtype = cdt if info["fast_bf16_vpu"] else jnp.float32

    weight_list = [prepped["vec_c"], prepped["wqkv"], prepped["bqkv"], prepped["wo"],
                   prepped["w1"], prepped["b1"], prepped["w2"]]

    def run(head_batched, single_buffer):
        def wspec(p):
            n = p.ndim
            kw = {}
            if single_buffer:
                # Grid-invariant weight: same block every step -> no point
                # double-buffering it; single buffer halves its VMEM residency.
                kw["pipeline_mode"] = pl.Buffered(1)
            return pl.BlockSpec(p.shape, lambda b, _n=n: (0,) * _n, **kw)

        scratch = [pltpu.VMEM((block_b, S, C), jnp.float32)]         # assembled sequence
        if not head_batched:
            scratch.append(pltpu.VMEM((block_b * S, C), jnp.float32))  # per-head ctx slab

        kernel = functools.partial(clr_kernel, num_heads=H,
                                   head_batched=head_batched, act_dtype=act_dtype)
        return pl.pallas_call(
            kernel,
            out_shape=(
                jax.ShapeDtypeStruct((B, S, C), x_tokens.dtype),
                jax.ShapeDtypeStruct((B, H, S, S), jnp.float32),
            ),
            grid=(B // block_b,),
            in_specs=[pl.BlockSpec((block_b, 1, C), lambda b: (b, 0, 0)),   # cls
                      pl.BlockSpec((block_b, K, C), lambda b: (b, 0, 0))]   # tokens
                     + [wspec(p) for p in weight_list],
            out_specs=(
                pl.BlockSpec((block_b, S, C), lambda b: (b, 0, 0)),
                pl.BlockSpec((block_b, H, S, S), lambda b: (b, 0, 0, 0)),
            ),
            scratch_shapes=scratch,
            compiler_params=pltpu.CompilerParams(
                dimension_semantics=("parallel",),
                vmem_limit_bytes=int(info["vmem_budget"])),
        )(cls_tok, x_tokens, *weight_list)

    # Prefer the fully consolidated form; degrade gracefully if a specific
    # feature (single-buffered weights / head-batched relayout) does not lower
    # on the installed toolchain. The last configuration is the previously
    # validated kernel structure.
    last_err = None
    for head_batched, single_buffer in ((True, True), (True, False), (False, False)):
        try:
            res = run(head_batched, single_buffer)
            jax.block_until_ready(res)
            return res
        except Exception as err:        # noqa: BLE001 - fall back on lowering issues
            last_err = err
    raise last_err


# --------------------------------- reference ---------------------------------

def reference(x_tokens, cls_tok, params, num_heads):
    seq = jnp.concatenate((cls_tok, x_tokens), axis=1)
    B, S, C = seq.shape
    dh = C // num_heads
    h = _layernorm(seq, params["ln1_w"], params["ln1_b"])
    q = h @ params["wq"] + params["bq"]
    k = h @ params["wk"] + params["bk"]
    v = h @ params["wv"] + params["bv"]

    def split(t):
        return t.reshape(B, S, num_heads, dh).transpose(0, 2, 1, 3)

    q, k, v = split(q), split(k), split(v)
    scores = jnp.einsum("bhqd,bhkd->bhqk", q, k) / jnp.sqrt(jnp.float32(dh))
    probs = jax.nn.softmax(scores, axis=-1)
    ctx = jnp.einsum("bhqk,bhkd->bhqd", probs, v)
    ctx = ctx.transpose(0, 2, 1, 3).reshape(B, S, C)
    x = seq + ctx @ params["wo"] + params["bo"]
    h = _layernorm(x, params["ln2_w"], params["ln2_b"])
    h = jax.nn.gelu(h @ params["w1"] + params["b1"], approximate=True)
    x = x + h @ params["w2"] + params["b2"]
    out = _layernorm(x, params["clr_w"], params["clr_b"])
    return out, probs


if __name__ == "__main__":
    B, K, C, H, M = 2, 7, 32, 4, 64     # batch, selected tokens, hidden, heads, mlp dim
    S = K + 1

    key = jax.random.PRNGKey(0)
    ks = jax.random.split(key, 10)

    def w(k, shape, scale=0.05):
        return (scale * jax.random.normal(k, shape)).astype(jnp.float32)

    params = {
        "ln1_w": jnp.ones((1, C), jnp.float32), "ln1_b": jnp.zeros((1, C), jnp.float32),
        "wq": w(ks[0], (C, C)), "bq": jnp.zeros((1, C), jnp.float32),
        "wk": w(ks[1], (C, C)), "bk": jnp.zeros((1, C), jnp.float32),
        "wv": w(ks[2], (C, C)), "bv": jnp.zeros((1, C), jnp.float32),
        "wo": w(ks[3], (C, C)), "bo": jnp.zeros((1, C), jnp.float32),
        "ln2_w": jnp.ones((1, C), jnp.float32), "ln2_b": jnp.zeros((1, C), jnp.float32),
        "w1": w(ks[4], (C, M)), "b1": jnp.zeros((1, M), jnp.float32),
        "w2": w(ks[5], (M, C)), "b2": jnp.zeros((1, C), jnp.float32),
        "clr_w": jnp.ones((1, C), jnp.float32), "clr_b": jnp.zeros((1, C), jnp.float32),
    }

    # Mirror the PyTorch stacking glue: [torch.stack(tok) for tok in x]; stack; squeeze(1).
    tok = w(ks[6], (B, K, C), scale=1.0)
    x_list = [[tok[b, kk] for kk in range(K)] for b in range(B)]
    x_tokens = jnp.stack([jnp.stack(t) for t in x_list])        # (B, K, C)
    cls_tok = w(ks[7], (B, 1, C), scale=1.0)

    ref_out, ref_w = reference(x_tokens, cls_tok, params, H)

    # f32 compute path: tight structural check (slack only for the EUP
    # approximate-reciprocal softmax normalization).
    prepped_f32 = prepare_clr_params(params, compute_dtype=jnp.float32)   # hoisted, one-time
    out32, w32 = cross_layer_refinement(x_tokens, cls_tok, prepped_f32, H)
    jax.block_until_ready((out32, w32))
    np.testing.assert_allclose(np.asarray(out32), np.asarray(ref_out), atol=5e-3, rtol=5e-3)
    np.testing.assert_allclose(np.asarray(w32), np.asarray(ref_w), atol=5e-3, rtol=5e-3)

    # bf16 MXU path (default / fast): looser tolerance for bf16 matmul inputs.
    prepped_bf16 = prepare_clr_params(params, compute_dtype=jnp.bfloat16)  # hoisted, one-time
    out_bf, w_bf = cross_layer_refinement(x_tokens, cls_tok, prepped_bf16, H)
    jax.block_until_ready((out_bf, w_bf))
    np.testing.assert_allclose(np.asarray(out_bf), np.asarray(ref_out), atol=5e-2, rtol=5e-2)
    np.testing.assert_allclose(np.asarray(w_bf), np.asarray(ref_w), atol=1e-2, rtol=1e-2)

    print("KERNEL_OK")
</pallas_src>

<mosaic_0001>
module attributes {stable_mosaic.version = 11 : i64} {
  func.func @clr_kernel(%arg0: i32, %arg1: memref<2x1x32xf32, #tpu.memory_space<vmem>>, %arg2: memref<2x7x32xf32, #tpu.memory_space<vmem>>, %arg3: memref<8x32xf32, #tpu.memory_space<vmem>>, %arg4: memref<32x96xf32, #tpu.memory_space<vmem>>, %arg5: memref<1x96xf32, #tpu.memory_space<vmem>>, %arg6: memref<32x32xf32, #tpu.memory_space<vmem>>, %arg7: memref<32x64xf32, #tpu.memory_space<vmem>>, %arg8: memref<1x64xf32, #tpu.memory_space<vmem>>, %arg9: memref<64x32xf32, #tpu.memory_space<vmem>>, %arg10: memref<2x8x32xf32, #tpu.memory_space<vmem>>, %arg11: memref<2x4x8x8xf32, #tpu.memory_space<vmem>>, %arg12: memref<2x8x32xf32, #tpu.memory_space<vmem>>) attributes {dimension_semantics = [#tpu.dimension_semantics<parallel>], iteration_bounds = array<i64: 1>, scalar_prefetch = 0 : i64, scratch_operands = 1 : i64, tpu.core_type = #tpu.core_type<tc>, window_params = [{transform_indices = @transform_0, window_bounds = array<i64: 2, 1, 32>}, {transform_indices = @transform_1, window_bounds = array<i64: 2, 7, 32>}, {pipeline_mode = #tpu.pipeline_mode<synchronous>, transform_indices = @transform_2, window_bounds = array<i64: 8, 32>}, {pipeline_mode = #tpu.pipeline_mode<synchronous>, transform_indices = @transform_3, window_bounds = array<i64: 32, 96>}, {pipeline_mode = #tpu.pipeline_mode<synchronous>, transform_indices = @transform_4, window_bounds = array<i64: 1, 96>}, {pipeline_mode = #tpu.pipeline_mode<synchronous>, transform_indices = @transform_5, window_bounds = array<i64: 32, 32>}, {pipeline_mode = #tpu.pipeline_mode<synchronous>, transform_indices = @transform_6, window_bounds = array<i64: 32, 64>}, {pipeline_mode = #tpu.pipeline_mode<synchronous>, transform_indices = @transform_7, window_bounds = array<i64: 1, 64>}, {pipeline_mode = #tpu.pipeline_mode<synchronous>, transform_indices = @transform_8, window_bounds = array<i64: 64, 32>}, {transform_indices = @transform_9, window_bounds = array<i64: 2, 8, 32>}, {transform_indices = @transform_10, window_bounds = array<i64: 2, 4, 8, 8>}]} {
    %c0 = arith.constant 0 : index
    %c0_0 = arith.constant 0 : index
    %0 = vector.load %arg3[%c0, %c0_0] : memref<8x32xf32, #tpu.memory_space<vmem>>, vector<1x32xf32>
    %c1 = arith.constant 1 : index
    %c0_1 = arith.constant 0 : index
    %1 = vector.load %arg3[%c1, %c0_1] : memref<8x32xf32, #tpu.memory_space<vmem>>, vector<1x32xf32>
    %c2 = arith.constant 2 : index
    %c0_2 = arith.constant 0 : index
    %2 = vector.load %arg3[%c2, %c0_2] : memref<8x32xf32, #tpu.memory_space<vmem>>, vector<1x32xf32>
    %c3 = arith.constant 3 : index
    %c0_3 = arith.constant 0 : index
    %3 = vector.load %arg3[%c3, %c0_3] : memref<8x32xf32, #tpu.memory_space<vmem>>, vector<1x32xf32>
    %c4 = arith.constant 4 : index
    %c0_4 = arith.constant 0 : index
    %4 = vector.load %arg3[%c4, %c0_4] : memref<8x32xf32, #tpu.memory_space<vmem>>, vector<1x32xf32>
    %c5 = arith.constant 5 : index
    %c0_5 = arith.constant 0 : index
    %5 = vector.load %arg3[%c5, %c0_5] : memref<8x32xf32, #tpu.memory_space<vmem>>, vector<1x32xf32>
    %c6 = arith.constant 6 : index
    %c0_6 = arith.constant 0 : index
    %6 = vector.load %arg3[%c6, %c0_6] : memref<8x32xf32, #tpu.memory_space<vmem>>, vector<1x32xf32>
    %c7 = arith.constant 7 : index
    %c0_7 = arith.constant 0 : index
    %7 = vector.load %arg3[%c7, %c0_7] : memref<8x32xf32, #tpu.memory_space<vmem>>, vector<1x32xf32>
    %c0_8 = arith.constant 0 : index
    %c0_9 = arith.constant 0 : index
    %c0_10 = arith.constant 0 : index
    %8 = vector.load %arg1[%c0_8, %c0_9, %c0_10] : memref<2x1x32xf32, #tpu.memory_space<vmem>>, vector<2x1x32xf32>
    %c0_11 = arith.constant 0 : index
    %c0_12 = arith.constant 0 : index
    %c0_13 = arith.constant 0 : index
    %9 = vector.load %arg12[%c0_11, %c0_12, %c0_13] : memref<2x8x32xf32, #tpu.memory_space<vmem>>, vector<2x1x32xf32>
    tpu.vector_store %arg12[%c0_11, %c0_12, %c0_13], %8 {strides = array<i32>} : memref<2x8x32xf32, #tpu.memory_space<vmem>>, vector<2x1x32xf32>,
    %c0_14 = arith.constant 0 : index
    %c0_15 = arith.constant 0 : index
    %c0_16 = arith.constant 0 : index
    %10 = vector.load %arg2[%c0_14, %c0_15, %c0_16] : memref<2x7x32xf32, #tpu.memory_space<vmem>>, vector<2x7x32xf32>
    %c0_17 = arith.constant 0 : index
    %c1_18 = arith.constant 1 : index
    %c0_19 = arith.constant 0 : index
    %11 = vector.load %arg12[%c0_17, %c1_18, %c0_19] : memref<2x8x32xf32, #tpu.memory_space<vmem>>, vector<2x7x32xf32>
    tpu.vector_store %arg12[%c0_17, %c1_18, %c0_19], %10 {strides = array<i32>} : memref<2x8x32xf32, #tpu.memory_space<vmem>>, vector<2x7x32xf32>,
    %c0_20 = arith.constant 0 : index
    %c0_21 = arith.constant 0 : index
    %c0_22 = arith.constant 0 : index
    %12 = vector.load %arg12[%c0_20, %c0_21, %c0_22] : memref<2x8x32xf32, #tpu.memory_space<vmem>>, vector<2x8x32xf32>
    %13 = vector.shape_cast %12 : vector<2x8x32xf32> to vector<16x32xf32>
    %cst = arith.constant dense<0.000000e+00> : vector<16xf32>
    %14 = vector.multi_reduction <add>, %13, %cst [1] : vector<16x32xf32> to vector<16xf32>
    %15 = vector.shape_cast %14 : vector<16xf32> to vector<16x1xf32>
    %cst_23 = arith.constant 3.200000e+01 : f32
    %16 = vector.broadcast %cst_23 : f32 to vector<16x1xf32>
    %17 = arith.divf %15, %16 : vector<16x1xf32>
    %18 = vector.broadcast %17 : vector<16x1xf32> to vector<16x32xf32>
    %19 = arith.subf %13, %18 : vector<16x32xf32>
    %20 = arith.mulf %19, %19 : vector<16x32xf32>
    %cst_24 = arith.constant dense<0.000000e+00> : vector<16xf32>
    %21 = vector.multi_reduction <add>, %20, %cst_24 [1] : vector<16x32xf32> to vector<16xf32>
    %22 = vector.shape_cast %21 : vector<16xf32> to vector<16x1xf32>
    %cst_25 = arith.constant 3.200000e+01 : f32
    %23 = vector.broadcast %cst_25 : f32 to vector<16x1xf32>
    %24 = arith.divf %22, %23 : vector<16x1xf32>
    %25 = vector.broadcast %17 : vector<16x1xf32> to vector<16x32xf32>
    %26 = arith.subf %13, %25 : vector<16x32xf32>
    %cst_26 = arith.constant 9.99999997E-7 : f32
    %27 = vector.broadcast %cst_26 : f32 to vector<16x1xf32>
    %28 = arith.addf %24, %27 : vector<16x1xf32>
    %29 = math.rsqrt %28 : vector<16x1xf32>
    %30 = vector.broadcast %29 : vector<16x1xf32> to vector<16x32xf32>
    %31 = arith.mulf %26, %30 : vector<16x32xf32>
    %32 = vector.broadcast %0 : vector<1x32xf32> to vector<16x32xf32>
    %33 = arith.mulf %31, %32 : vector<16x32xf32>
    %34 = vector.broadcast %1 : vector<1x32xf32> to vector<16x32xf32>
    %35 = arith.addf %33, %34 : vector<16x32xf32>
    %c0_27 = arith.constant 0 : index
    %c0_28 = arith.constant 0 : index
    %36 = vector.load %arg4[%c0_27, %c0_28] : memref<32x96xf32, #tpu.memory_space<vmem>>, vector<32x96xf32>
    %cst_29 = arith.constant dense<0.000000e+00> : vector<16x96xf32>
    %37 = tpu.matmul %35, %36, %cst_29 {dimension_numbers = #tpu.dot_dimension_numbers<[1], [0], [0], [1], [0, 0, 1, 1], [], []>} : vector<16x32xf32>, vector<32x96xf32>, vector<16x96xf32> -> vector<16x96xf32>
    %c0_30 = arith.constant 0 : index
    %c0_31 = arith.constant 0 : index
    %38 = vector.load %arg5[%c0_30, %c0_31] : memref<1x96xf32, #tpu.memory_space<vmem>>, vector<1x96xf32>
    %39 = vector.broadcast %38 : vector<1x96xf32> to vector<16x96xf32>
    %40 = arith.addf %37, %39 : vector<16x96xf32>
    %41 = vector.extract_strided_slice %40 {offsets = [0, 0], sizes = [16, 32], strides = [1, 1]} : vector<16x96xf32> to vector<16x32xf32>
    %cst_32 = arith.constant 0.353553385 : f32
    %42 = vector.broadcast %cst_32 : f32 to vector<16x32xf32>
    %43 = arith.mulf %41, %42 : vector<16x32xf32>
    %44 = vector.extract_strided_slice %40 {offsets = [0, 32], sizes = [16, 32], strides = [1, 1]} : vector<16x96xf32> to vector<16x32xf32>
    %45 = vector.extract_strided_slice %40 {offsets = [0, 64], sizes = [16, 32], strides = [1, 1]} : vector<16x96xf32> to vector<16x32xf32>
    %46 = vector.shape_cast %43 : vector<16x32xf32> to vector<2x8x4x8xf32>
    %47 = tpu.transpose %46, [0, 2, 1, 3] : vector<2x8x4x8xf32> -> vector<2x4x8x8xf32>
    %48 = vector.shape_cast %47 : vector<2x4x8x8xf32> to vector<8x8x8xf32>
    %49 = vector.shape_cast %44 : vector<16x32xf32> to vector<2x8x4x8xf32>
    %50 = tpu.transpose %49, [0, 2, 1, 3] : vector<2x8x4x8xf32> -> vector<2x4x8x8xf32>
    %51 = vector.shape_cast %50 : vector<2x4x8x8xf32> to vector<8x8x8xf32>
    %52 = vector.shape_cast %45 : vector<16x32xf32> to vector<2x8x4x8xf32>
    %53 = tpu.transpose %52, [0, 2, 1, 3] : vector<2x8x4x8xf32> -> vector<2x4x8x8xf32>
    %54 = vector.shape_cast %53 : vector<2x4x8x8xf32> to vector<8x8x8xf32>
    "tpu.trace_start"() <{level = 10 : i32, message = "bqd,bkd->bqk"}> : () -> ()
    %cst_33 = arith.constant dense<0.000000e+00> : vector<8x8x8xf32>
    %55 = tpu.matmul %48, %51, %cst_33 {dimension_numbers = #tpu.dot_dimension_numbers<[2], [2], [1], [1], [0, 0, 0, 1, 1, 1], [0], [0]>} : vector<8x8x8xf32>, vector<8x8x8xf32>, vector<8x8x8xf32> -> vector<8x8x8xf32>
    "tpu.trace_stop"() : () -> ()
    %cst_34 = arith.constant dense<0xFF800000> : vector<8x8xf32>
    %56 = vector.multi_reduction <maximumf>, %55, %cst_34 [2] : vector<8x8x8xf32> to vector<8x8xf32>
    %57 = vector.shape_cast %56 : vector<8x8xf32> to vector<8x8x1xf32>
    %58 = vector.broadcast %57 : vector<8x8x1xf32> to vector<8x8x8xf32>
    %59 = arith.subf %55, %58 : vector<8x8x8xf32>
    %60 = math.exp %59 : vector<8x8x8xf32>
    %cst_35 = arith.constant dense<0.000000e+00> : vector<8x8xf32>
    %61 = vector.multi_reduction <add>, %60, %cst_35 [2] : vector<8x8x8xf32> to vector<8x8xf32>
    %62 = vector.shape_cast %61 : vector<8x8xf32> to vector<8x8x1xf32>
    %63 = tpu.reciprocal %62 {approx = true} : vector<8x8x1xf32> -> vector<8x8x1xf32>
    %64 = vector.broadcast %63 : vector<8x8x1xf32> to vector<8x8x8xf32>
    %65 = arith.mulf %60, %64 : vector<8x8x8xf32>
    %66 = vector.shape_cast %65 : vector<8x8x8xf32> to vector<2x4x8x8xf32>
    %c0_36 = arith.constant 0 : index
    %c0_37 = arith.constant 0 : index
    %c0_38 = arith.constant 0 : index
    %c0_39 = arith.constant 0 : index
    %67 = vector.load %arg11[%c0_36, %c0_37, %c0_38, %c0_39] : memref<2x4x8x8xf32, #tpu.memory_space<vmem>>, vector<2x4x8x8xf32>
    tpu.vector_store %arg11[%c0_36, %c0_37, %c0_38, %c0_39], %66 {strides = array<i32>} : memref<2x4x8x8xf32, #tpu.memory_space<vmem>>, vector<2x4x8x8xf32>,
    "tpu.trace_start"() <{level = 10 : i32, message = "bqk,bkd->bqd"}> : () -> ()
    %cst_40 = arith.constant dense<0.000000e+00> : vector<8x8x8xf32>
    %68 = tpu.matmul %65, %54, %cst_40 {dimension_numbers = #tpu.dot_dimension_numbers<[2], [1], [1], [2], [0, 0, 0, 1, 1, 2], [0], [0]>} : vector<8x8x8xf32>, vector<8x8x8xf32>, vector<8x8x8xf32> -> vector<8x8x8xf32>
    "tpu.trace_stop"() : () -> ()
    %69 = vector.shape_cast %68 : vector<8x8x8xf32> to vector<2x4x8x8xf32>
    %70 = tpu.transpose %69, [0, 2, 1, 3] : vector<2x4x8x8xf32> -> vector<2x8x4x8xf32>
    %71 = vector.shape_cast %70 : vector<2x8x4x8xf32> to vector<16x32xf32>
    %c0_41 = arith.constant 0 : index
    %c0_42 = arith.constant 0 : index
    %72 = vector.load %arg6[%c0_41, %c0_42] : memref<32x32xf32, #tpu.memory_space<vmem>>, vector<32x32xf32>
    %cst_43 = arith.constant dense<0.000000e+00> : vector<16x32xf32>
    %73 = tpu.matmul %71, %72, %cst_43 {dimension_numbers = #tpu.dot_dimension_numbers<[1], [0], [0], [1], [0, 0, 1, 1], [], []>} : vector<16x32xf32>, vector<32x32xf32>, vector<16x32xf32> -> vector<16x32xf32>
    %74 = vector.broadcast %2 : vector<1x32xf32> to vector<16x32xf32>
    %75 = arith.addf %73, %74 : vector<16x32xf32>
    %76 = arith.addf %13, %75 : vector<16x32xf32>
    %cst_44 = arith.constant dense<0.000000e+00> : vector<16xf32>
    %77 = vector.multi_reduction <add>, %76, %cst_44 [1] : vector<16x32xf32> to vector<16xf32>
    %78 = vector.shape_cast %77 : vector<16xf32> to vector<16x1xf32>
    %cst_45 = arith.constant 3.200000e+01 : f32
    %79 = vector.broadcast %cst_45 : f32 to vector<16x1xf32>
    %80 = arith.divf %78, %79 : vector<16x1xf32>
    %81 = vector.broadcast %80 : vector<16x1xf32> to vector<16x32xf32>
    %82 = arith.subf %76, %81 : vector<16x32xf32>
    %83 = arith.mulf %82, %82 : vector<16x32xf32>
    %cst_46 = arith.constant dense<0.000000e+00> : vector<16xf32>
    %84 = vector.multi_reduction <add>, %83, %cst_46 [1] : vector<16x32xf32> to vector<16xf32>
    %85 = vector.shape_cast %84 : vector<16xf32> to vector<16x1xf32>
    %cst_47 = arith.constant 3.200000e+01 : f32
    %86 = vector.broadcast %cst_47 : f32 to vector<16x1xf32>
    %87 = arith.divf %85, %86 : vector<16x1xf32>
    %88 = vector.broadcast %80 : vector<16x1xf32> to vector<16x32xf32>
    %89 = arith.subf %76, %88 : vector<16x32xf32>
    %cst_48 = arith.constant 9.99999997E-7 : f32
    %90 = vector.broadcast %cst_48 : f32 to vector<16x1xf32>
    %91 = arith.addf %87, %90 : vector<16x1xf32>
    %92 = math.rsqrt %91 : vector<16x1xf32>
    %93 = vector.broadcast %92 : vector<16x1xf32> to vector<16x32xf32>
    %94 = arith.mulf %89, %93 : vector<16x32xf32>
    %95 = vector.broadcast %3 : vector<1x32xf32> to vector<16x32xf32>
    %96 = arith.mulf %94, %95 : vector<16x32xf32>
    %97 = vector.broadcast %4 : vector<1x32xf32> to vector<16x32xf32>
    %98 = arith.addf %96, %97 : vector<16x32xf32>
    %c0_49 = arith.constant 0 : index
    %c0_50 = arith.constant 0 : index
    %99 = vector.load %arg7[%c0_49, %c0_50] : memref<32x64xf32, #tpu.memory_space<vmem>>, vector<32x64xf32>
    %cst_51 = arith.constant dense<0.000000e+00> : vector<16x64xf32>
    %100 = tpu.matmul %98, %99, %cst_51 {dimension_numbers = #tpu.dot_dimension_numbers<[1], [0], [0], [1], [0, 0, 1, 1], [], []>} : vector<16x32xf32>, vector<32x64xf32>, vector<16x64xf32> -> vector<16x64xf32>
    %c0_52 = arith.constant 0 : index
    %c0_53 = arith.constant 0 : index
    %101 = vector.load %arg8[%c0_52, %c0_53] : memref<1x64xf32, #tpu.memory_space<vmem>>, vector<1x64xf32>
    %102 = vector.broadcast %101 : vector<1x64xf32> to vector<16x64xf32>
    %103 = arith.addf %100, %102 : vector<16x64xf32>
    %104 = arith.mulf %103, %103 : vector<16x64xf32>
    %105 = arith.mulf %103, %104 : vector<16x64xf32>
    %cst_54 = arith.constant 4.471500e-02 : f32
    %106 = vector.broadcast %cst_54 : f32 to vector<16x64xf32>
    %107 = arith.mulf %106, %105 : vector<16x64xf32>
    %108 = arith.addf %103, %107 : vector<16x64xf32>
    %cst_55 = arith.constant 0.797884583 : f32
    %109 = vector.broadcast %cst_55 : f32 to vector<16x64xf32>
    %110 = arith.mulf %109, %108 : vector<16x64xf32>
    %111 = math.tanh %110 : vector<16x64xf32>
    %cst_56 = arith.constant 1.000000e+00 : f32
    %112 = vector.broadcast %cst_56 : f32 to vector<16x64xf32>
    %113 = arith.addf %112, %111 : vector<16x64xf32>
    %cst_57 = arith.constant 5.000000e-01 : f32
    %114 = vector.broadcast %cst_57 : f32 to vector<16x64xf32>
    %115 = arith.mulf %114, %113 : vector<16x64xf32>
    %116 = arith.mulf %103, %115 : vector<16x64xf32>
    %c0_58 = arith.constant 0 : index
    %c0_59 = arith.constant 0 : index
    %117 = vector.load %arg9[%c0_58, %c0_59] : memref<64x32xf32, #tpu.memory_space<vmem>>, vector<64x32xf32>
    %cst_60 = arith.constant dense<0.000000e+00> : vector<16x32xf32>
    %118 = tpu.matmul %116, %117, %cst_60 {dimension_numbers = #tpu.dot_dimension_numbers<[1], [0], [0], [1], [0, 0, 1, 1], [], []>} : vector<16x64xf32>, vector<64x32xf32>, vector<16x32xf32> -> vector<16x32xf32>
    %119 = vector.broadcast %5 : vector<1x32xf32> to vector<16x32xf32>
    %120 = arith.addf %118, %119 : vector<16x32xf32>
    %121 = arith.addf %76, %120 : vector<16x32xf32>
    %cst_61 = arith.constant dense<0.000000e+00> : vector<16xf32>
    %122 = vector.multi_reduction <add>, %121, %cst_61 [1] : vector<16x32xf32> to vector<16xf32>
    %123 = vector.shape_cast %122 : vector<16xf32> to vector<16x1xf32>
    %cst_62 = arith.constant 3.200000e+01 : f32
    %124 = vector.broadcast %cst_62 : f32 to vector<16x1xf32>
    %125 = arith.divf %123, %124 : vector<16x1xf32>
    %126 = vector.broadcast %125 : vector<16x1xf32> to vector<16x32xf32>
    %127 = arith.subf %121, %126 : vector<16x32xf32>
    %128 = arith.mulf %127, %127 : vector<16x32xf32>
    %cst_63 = arith.constant dense<0.000000e+00> : vector<16xf32>
    %129 = vector.multi_reduction <add>, %128, %cst_63 [1] : vector<16x32xf32> to vector<16xf32>
    %130 = vector.shape_cast %129 : vector<16xf32> to vector<16x1xf32>
    %cst_64 = arith.constant 3.200000e+01 : f32
    %131 = vector.broadcast %cst_64 : f32 to vector<16x1xf32>
    %132 = arith.divf %130, %131 : vector<16x1xf32>
    %133 = vector.broadcast %125 : vector<16x1xf32> to vector<16x32xf32>
    %134 = arith.subf %121, %133 : vector<16x32xf32>
    %cst_65 = arith.constant 9.99999997E-7 : f32
    %135 = vector.broadcast %cst_65 : f32 to vector<16x1xf32>
    %136 = arith.addf %132, %135 : vector<16x1xf32>
    %137 = math.rsqrt %136 : vector<16x1xf32>
    %138 = vector.broadcast %137 : vector<16x1xf32> to vector<16x32xf32>
    %139 = arith.mulf %134, %138 : vector<16x32xf32>
    %140 = vector.broadcast %6 : vector<1x32xf32> to vector<16x32xf32>
    %141 = arith.mulf %139, %140 : vector<16x32xf32>
    %142 = vector.broadcast %7 : vector<1x32xf32> to vector<16x32xf32>
    %143 = arith.addf %141, %142 : vector<16x32xf32>
    %144 = vector.shape_cast %143 : vector<16x32xf32> to vector<2x8x32xf32>
    %c0_66 = arith.constant 0 : index
    %c0_67 = arith.constant 0 : index
    %c0_68 = arith.constant 0 : index
    %145 = vector.load %arg10[%c0_66, %c0_67, %c0_68] : memref<2x8x32xf32, #tpu.memory_space<vmem>>, vector<2x8x32xf32>
    tpu.vector_store %arg10[%c0_66, %c0_67, %c0_68], %144 {strides = array<i32>} : memref<2x8x32xf32, #tpu.memory_space<vmem>>, vector<2x8x32xf32>,
    return
  }
  func.func @transform_0(%arg0: i32) -> (i32, i32, i32) {
    %c0_i32 = arith.constant 0 : i32
    %c0_i32_0 = arith.constant 0 : i32
    %c0_i32_1 = arith.constant 0 : i32
    return %arg0, %c0_i32, %c0_i32_0 : i32, i32, i32
  }
  func.func @transform_1(%arg0: i32) -> (i32, i32, i32) {
    %c0_i32 = arith.constant 0 : i32
    %c0_i32_0 = arith.constant 0 : i32
    %c0_i32_1 = arith.constant 0 : i32
    return %arg0, %c0_i32, %c0_i32_0 : i32, i32, i32
  }
  func.func @transform_2(%arg0: i32) -> (i32, i32) {
    %c0_i32 = arith.constant 0 : i32
    %c0_i32_0 = arith.constant 0 : i32
    %c0_i32_1 = arith.constant 0 : i32
    return %c0_i32, %c0_i32_0 : i32, i32
  }
  func.func @transform_3(%arg0: i32) -> (i32, i32) {
    %c0_i32 = arith.constant 0 : i32
    %c0_i32_0 = arith.constant 0 : i32
    %c0_i32_1 = arith.constant 0 : i32
    return %c0_i32, %c0_i32_0 : i32, i32
  }
  func.func @transform_4(%arg0: i32) -> (i32, i32) {
    %c0_i32 = arith.constant 0 : i32
    %c0_i32_0 = arith.constant 0 : i32
    %c0_i32_1 = arith.constant 0 : i32
    return %c0_i32, %c0_i32_0 : i32, i32
  }
  func.func @transform_5(%arg0: i32) -> (i32, i32) {
    %c0_i32 = arith.constant 0 : i32
    %c0_i32_0 = arith.constant 0 : i32
    %c0_i32_1 = arith.constant 0 : i32
    return %c0_i32, %c0_i32_0 : i32, i32
  }
  func.func @transform_6(%arg0: i32) -> (i32, i32) {
    %c0_i32 = arith.constant 0 : i32
    %c0_i32_0 = arith.constant 0 : i32
    %c0_i32_1 = arith.constant 0 : i32
    return %c0_i32, %c0_i32_0 : i32, i32
  }
  func.func @transform_7(%arg0: i32) -> (i32, i32) {
    %c0_i32 = arith.constant 0 : i32
    %c0_i32_0 = arith.constant 0 : i32
    %c0_i32_1 = arith.constant 0 : i32
    return %c0_i32, %c0_i32_0 : i32, i32
  }
  func.func @transform_8(%arg0: i32) -> (i32, i32) {
    %c0_i32 = arith.constant 0 : i32
    %c0_i32_0 = arith.constant 0 : i32
    %c0_i32_1 = arith.constant 0 : i32
    return %c0_i32, %c0_i32_0 : i32, i32
  }
  func.func @transform_9(%arg0: i32) -> (i32, i32, i32) {
    %c0_i32 = arith.constant 0 : i32
    %c0_i32_0 = arith.constant 0 : i32
    %c0_i32_1 = arith.constant 0 : i32
    return %arg0, %c0_i32, %c0_i32_0 : i32, i32, i32
  }
  func.func @transform_10(%arg0: i32) -> (i32, i32, i32, i32) {
    %c0_i32 = arith.constant 0 : i32
    %c0_i32_0 = arith.constant 0 : i32
    %c0_i32_1 = arith.constant 0 : i32
    %c0_i32_2 = arith.constant 0 : i32
    return %arg0, %c0_i32, %c0_i32_0, %c0_i32_1 : i32, i32, i32, i32
  }
}

module attributes {stable_mosaic.version = 11 : i64} {
  func.func @clr_kernel(%arg0: i32, %arg1: memref<2x1x32xf32, #tpu.memory_space<vmem>>, %arg2: memref<2x7x32xf32, #tpu.memory_space<vmem>>, %arg3: memref<8x32xf32, #tpu.memory_space<vmem>>, %arg4: memref<32x96xf32, #tpu.memory_space<vmem>>, %arg5: memref<1x96xf32, #tpu.memory_space<vmem>>, %arg6: memref<32x32xf32, #tpu.memory_space<vmem>>, %arg7: memref<32x64xf32, #tpu.memory_space<vmem>>, %arg8: memref<1x64xf32, #tpu.memory_space<vmem>>, %arg9: memref<64x32xf32, #tpu.memory_space<vmem>>, %arg10: memref<2x8x32xf32, #tpu.memory_space<vmem>>, %arg11: memref<2x4x8x8xf32, #tpu.memory_space<vmem>>, %arg12: memref<2x8x32xf32, #tpu.memory_space<vmem>>) attributes {dimension_semantics = [#tpu.dimension_semantics<parallel>], iteration_bounds = array<i64: 1>, scalar_prefetch = 0 : i64, scratch_operands = 1 : i64, tpu.core_type = #tpu.core_type<tc>, window_params = [{transform_indices = @transform_0, window_bounds = array<i64: 2, 1, 32>}, {transform_indices = @transform_1, window_bounds = array<i64: 2, 7, 32>}, {pipeline_mode = #tpu.pipeline_mode<synchronous>, transform_indices = @transform_2, window_bounds = array<i64: 8, 32>}, {pipeline_mode = #tpu.pipeline_mode<synchronous>, transform_indices = @transform_3, window_bounds = array<i64: 32, 96>}, {pipeline_mode = #tpu.pipeline_mode<synchronous>, transform_indices = @transform_4, window_bounds = array<i64: 1, 96>}, {pipeline_mode = #tpu.pipeline_mode<synchronous>, transform_indices = @transform_5, window_bounds = array<i64: 32, 32>}, {pipeline_mode = #tpu.pipeline_mode<synchronous>, transform_indices = @transform_6, window_bounds = array<i64: 32, 64>}, {pipeline_mode = #tpu.pipeline_mode<synchronous>, transform_indices = @transform_7, window_bounds = array<i64: 1, 64>}, {pipeline_mode = #tpu.pipeline_mode<synchronous>, transform_indices = @transform_8, window_bounds = array<i64: 64, 32>}, {transform_indices = @transform_9, window_bounds = array<i64: 2, 8, 32>}, {transform_indices = @transform_10, window_bounds = array<i64: 2, 4, 8, 8>}]} {
    %c0 = arith.constant 0 : index
    %c0_0 = arith.constant 0 : index
    %0 = vector.load %arg3[%c0, %c0_0] : memref<8x32xf32, #tpu.memory_space<vmem>>, vector<1x32xf32>
    %c1 = arith.constant 1 : index
    %c0_1 = arith.constant 0 : index
    %1 = vector.load %arg3[%c1, %c0_1] : memref<8x32xf32, #tpu.memory_space<vmem>>, vector<1x32xf32>
    %c2 = arith.constant 2 : index
    %c0_2 = arith.constant 0 : index
    %2 = vector.load %arg3[%c2, %c0_2] : memref<8x32xf32, #tpu.memory_space<vmem>>, vector<1x32xf32>
    %c3 = arith.constant 3 : index
    %c0_3 = arith.constant 0 : index
    %3 = vector.load %arg3[%c3, %c0_3] : memref<8x32xf32, #tpu.memory_space<vmem>>, vector<1x32xf32>
    %c4 = arith.constant 4 : index
    %c0_4 = arith.constant 0 : index
    %4 = vector.load %arg3[%c4, %c0_4] : memref<8x32xf32, #tpu.memory_space<vmem>>, vector<1x32xf32>
    %c5 = arith.constant 5 : index
    %c0_5 = arith.constant 0 : index
    %5 = vector.load %arg3[%c5, %c0_5] : memref<8x32xf32, #tpu.memory_space<vmem>>, vector<1x32xf32>
    %c6 = arith.constant 6 : index
    %c0_6 = arith.constant 0 : index
    %6 = vector.load %arg3[%c6, %c0_6] : memref<8x32xf32, #tpu.memory_space<vmem>>, vector<1x32xf32>
    %c7 = arith.constant 7 : index
    %c0_7 = arith.constant 0 : index
    %7 = vector.load %arg3[%c7, %c0_7] : memref<8x32xf32, #tpu.memory_space<vmem>>, vector<1x32xf32>
    %c0_8 = arith.constant 0 : index
    %c0_9 = arith.constant 0 : index
    %c0_10 = arith.constant 0 : index
    %8 = vector.load %arg1[%c0_8, %c0_9, %c0_10] : memref<2x1x32xf32, #tpu.memory_space<vmem>>, vector<2x1x32xf32>
    %c0_11 = arith.constant 0 : index
    %c0_12 = arith.constant 0 : index
    %c0_13 = arith.constant 0 : index
    %9 = vector.load %arg12[%c0_11, %c0_12, %c0_13] : memref<2x8x32xf32, #tpu.memory_space<vmem>>, vector<2x1x32xf32>
    tpu.vector_store %arg12[%c0_11, %c0_12, %c0_13], %8 {strides = array<i32>} : memref<2x8x32xf32, #tpu.memory_space<vmem>>, vector<2x1x32xf32>,
    %c0_14 = arith.constant 0 : index
    %c0_15 = arith.constant 0 : index
    %c0_16 = arith.constant 0 : index
    %10 = vector.load %arg2[%c0_14, %c0_15, %c0_16] : memref<2x7x32xf32, #tpu.memory_space<vmem>>, vector<2x7x32xf32>
    %c0_17 = arith.constant 0 : index
    %c1_18 = arith.constant 1 : index
    %c0_19 = arith.constant 0 : index
    %11 = vector.load %arg12[%c0_17, %c1_18, %c0_19] : memref<2x8x32xf32, #tpu.memory_space<vmem>>, vector<2x7x32xf32>
    tpu.vector_store %arg12[%c0_17, %c1_18, %c0_19], %10 {strides = array<i32>} : memref<2x8x32xf32, #tpu.memory_space<vmem>>, vector<2x7x32xf32>,
    %c0_20 = arith.constant 0 : index
    %c0_21 = arith.constant 0 : index
    %c0_22 = arith.constant 0 : index
    %12 = vector.load %arg12[%c0_20, %c0_21, %c0_22] : memref<2x8x32xf32, #tpu.memory_space<vmem>>, vector<2x8x32xf32>
    %13 = vector.shape_cast %12 : vector<2x8x32xf32> to vector<16x32xf32>
    %cst = arith.constant dense<0.000000e+00> : vector<16xf32>
    %14 = vector.multi_reduction <add>, %13, %cst [1] : vector<16x32xf32> to vector<16xf32>
    %15 = vector.shape_cast %14 : vector<16xf32> to vector<16x1xf32>
    %cst_23 = arith.constant 3.200000e+01 : f32
    %16 = vector.broadcast %cst_23 : f32 to vector<16x1xf32>
    %17 = arith.divf %15, %16 : vector<16x1xf32>
    %18 = vector.broadcast %17 : vector<16x1xf32> to vector<16x32xf32>
    %19 = arith.subf %13, %18 : vector<16x32xf32>
    %20 = arith.mulf %19, %19 : vector<16x32xf32>
    %cst_24 = arith.constant dense<0.000000e+00> : vector<16xf32>
    %21 = vector.multi_reduction <add>, %20, %cst_24 [1] : vector<16x32xf32> to vector<16xf32>
    %22 = vector.shape_cast %21 : vector<16xf32> to vector<16x1xf32>
    %cst_25 = arith.constant 3.200000e+01 : f32
    %23 = vector.broadcast %cst_25 : f32 to vector<16x1xf32>
    %24 = arith.divf %22, %23 : vector<16x1xf32>
    %25 = vector.broadcast %17 : vector<16x1xf32> to vector<16x32xf32>
    %26 = arith.subf %13, %25 : vector<16x32xf32>
    %cst_26 = arith.constant 9.99999997E-7 : f32
    %27 = vector.broadcast %cst_26 : f32 to vector<16x1xf32>
    %28 = arith.addf %24, %27 : vector<16x1xf32>
    %29 = math.rsqrt %28 : vector<16x1xf32>
    %30 = vector.broadcast %29 : vector<16x1xf32> to vector<16x32xf32>
    %31 = arith.mulf %26, %30 : vector<16x32xf32>
    %32 = vector.broadcast %0 : vector<1x32xf32> to vector<16x32xf32>
    %33 = arith.mulf %31, %32 : vector<16x32xf32>
    %34 = vector.broadcast %1 : vector<1x32xf32> to vector<16x32xf32>
    %35 = arith.addf %33, %34 : vector<16x32xf32>
    %c0_27 = arith.constant 0 : index
    %c0_28 = arith.constant 0 : index
    %36 = vector.load %arg4[%c0_27, %c0_28] : memref<32x96xf32, #tpu.memory_space<vmem>>, vector<32x96xf32>
    %cst_29 = arith.constant dense<0.000000e+00> : vector<16x96xf32>
    %37 = tpu.matmul %35, %36, %cst_29 {dimension_numbers = #tpu.dot_dimension_numbers<[1], [0], [0], [1], [0, 0, 1, 1], [], []>} : vector<16x32xf32>, vector<32x96xf32>, vector<16x96xf32> -> vector<16x96xf32>
    %c0_30 = arith.constant 0 : index
    %c0_31 = arith.constant 0 : index
    %38 = vector.load %arg5[%c0_30, %c0_31] : memref<1x96xf32, #tpu.memory_space<vmem>>, vector<1x96xf32>
    %39 = vector.broadcast %38 : vector<1x96xf32> to vector<16x96xf32>
    %40 = arith.addf %37, %39 : vector<16x96xf32>
    %41 = vector.extract_strided_slice %40 {offsets = [0, 0], sizes = [16, 32], strides = [1, 1]} : vector<16x96xf32> to vector<16x32xf32>
    %cst_32 = arith.constant 0.353553385 : f32
    %42 = vector.broadcast %cst_32 : f32 to vector<16x32xf32>
    %43 = arith.mulf %41, %42 : vector<16x32xf32>
    %44 = vector.extract_strided_slice %40 {offsets = [0, 32], sizes = [16, 32], strides = [1, 1]} : vector<16x96xf32> to vector<16x32xf32>
    %45 = vector.extract_strided_slice %40 {offsets = [0, 64], sizes = [16, 32], strides = [1, 1]} : vector<16x96xf32> to vector<16x32xf32>
    %46 = vector.shape_cast %43 : vector<16x32xf32> to vector<2x8x4x8xf32>
    %47 = tpu.transpose %46, [0, 2, 1, 3] : vector<2x8x4x8xf32> -> vector<2x4x8x8xf32>
    %48 = vector.shape_cast %47 : vector<2x4x8x8xf32> to vector<8x8x8xf32>
    %49 = vector.shape_cast %44 : vector<16x32xf32> to vector<2x8x4x8xf32>
    %50 = tpu.transpose %49, [0, 2, 1, 3] : vector<2x8x4x8xf32> -> vector<2x4x8x8xf32>
    %51 = vector.shape_cast %50 : vector<2x4x8x8xf32> to vector<8x8x8xf32>
    %52 = vector.shape_cast %45 : vector<16x32xf32> to vector<2x8x4x8xf32>
    %53 = tpu.transpose %52, [0, 2, 1, 3] : vector<2x8x4x8xf32> -> vector<2x4x8x8xf32>
    %54 = vector.shape_cast %53 : vector<2x4x8x8xf32> to vector<8x8x8xf32>
    "tpu.trace_start"() <{level = 10 : i32, message = "bqd,bkd->bqk"}> : () -> ()
    %cst_33 = arith.constant dense<0.000000e+00> : vector<8x8x8xf32>
    %55 = tpu.matmul %48, %51, %cst_33 {dimension_numbers = #tpu.dot_dimension_numbers<[2], [2], [1], [1], [0, 0, 0, 1, 1, 1], [0], [0]>} : vector<8x8x8xf32>, vector<8x8x8xf32>, vector<8x8x8xf32> -> vector<8x8x8xf32>
    "tpu.trace_stop"() : () -> ()
    %cst_34 = arith.constant dense<0xFF800000> : vector<8x8xf32>
    %56 = vector.multi_reduction <maximumf>, %55, %cst_34 [2] : vector<8x8x8xf32> to vector<8x8xf32>
    %57 = vector.shape_cast %56 : vector<8x8xf32> to vector<8x8x1xf32>
    %58 = vector.broadcast %57 : vector<8x8x1xf32> to vector<8x8x8xf32>
    %59 = arith.subf %55, %58 : vector<8x8x8xf32>
    %60 = math.exp %59 : vector<8x8x8xf32>
    %cst_35 = arith.constant dense<0.000000e+00> : vector<8x8xf32>
    %61 = vector.multi_reduction <add>, %60, %cst_35 [2] : vector<8x8x8xf32> to vector<8x8xf32>
    %62 = vector.shape_cast %61 : vector<8x8xf32> to vector<8x8x1xf32>
    %63 = tpu.reciprocal %62 {approx = true} : vector<8x8x1xf32> -> vector<8x8x1xf32>
    %64 = vector.broadcast %63 : vector<8x8x1xf32> to vector<8x8x8xf32>
    %65 = arith.mulf %60, %64 : vector<8x8x8xf32>
    %66 = vector.shape_cast %65 : vector<8x8x8xf32> to vector<2x4x8x8xf32>
    %c0_36 = arith.constant 0 : index
    %c0_37 = arith.constant 0 : index
    %c0_38 = arith.constant 0 : index
    %c0_39 = arith.constant 0 : index
    %67 = vector.load %arg11[%c0_36, %c0_37, %c0_38, %c0_39] : memref<2x4x8x8xf32, #tpu.memory_space<vmem>>, vector<2x4x8x8xf32>
    tpu.vector_store %arg11[%c0_36, %c0_37, %c0_38, %c0_39], %66 {strides = array<i32>} : memref<2x4x8x8xf32, #tpu.memory_space<vmem>>, vector<2x4x8x8xf32>,
    "tpu.trace_start"() <{level = 10 : i32, message = "bqk,bkd->bqd"}> : () -> ()
    %cst_40 = arith.constant dense<0.000000e+00> : vector<8x8x8xf32>
    %68 = tpu.matmul %65, %54, %cst_40 {dimension_numbers = #tpu.dot_dimension_numbers<[2], [1], [1], [2], [0, 0, 0, 1, 1, 2], [0], [0]>} : vector<8x8x8xf32>, vector<8x8x8xf32>, vector<8x8x8xf32> -> vector<8x8x8xf32>
    "tpu.trace_stop"() : () -> ()
    %69 = vector.shape_cast %68 : vector<8x8x8xf32> to vector<2x4x8x8xf32>
    %70 = tpu.transpose %69, [0, 2, 1, 3] : vector<2x4x8x8xf32> -> vector<2x8x4x8xf32>
    %71 = vector.shape_cast %70 : vector<2x8x4x8xf32> to vector<16x32xf32>
    %c0_41 = arith.constant 0 : index
    %c0_42 = arith.constant 0 : index
    %72 = vector.load %arg6[%c0_41, %c0_42] : memref<32x32xf32, #tpu.memory_space<vmem>>, vector<32x32xf32>
    %cst_43 = arith.constant dense<0.000000e+00> : vector<16x32xf32>
    %73 = tpu.matmul %71, %72, %cst_43 {dimension_numbers = #tpu.dot_dimension_numbers<[1], [0], [0], [1], [0, 0, 1, 1], [], []>} : vector<16x32xf32>, vector<32x32xf32>, vector<16x32xf32> -> vector<16x32xf32>
    %74 = vector.broadcast %2 : vector<1x32xf32> to vector<16x32xf32>
    %75 = arith.addf %73, %74 : vector<16x32xf32>
    %76 = arith.addf %13, %75 : vector<16x32xf32>
    %cst_44 = arith.constant dense<0.000000e+00> : vector<16xf32>
    %77 = vector.multi_reduction <add>, %76, %cst_44 [1] : vector<16x32xf32> to vector<16xf32>
    %78 = vector.shape_cast %77 : vector<16xf32> to vector<16x1xf32>
    %cst_45 = arith.constant 3.200000e+01 : f32
    %79 = vector.broadcast %cst_45 : f32 to vector<16x1xf32>
    %80 = arith.divf %78, %79 : vector<16x1xf32>
    %81 = vector.broadcast %80 : vector<16x1xf32> to vector<16x32xf32>
    %82 = arith.subf %76, %81 : vector<16x32xf32>
    %83 = arith.mulf %82, %82 : vector<16x32xf32>
    %cst_46 = arith.constant dense<0.000000e+00> : vector<16xf32>
    %84 = vector.multi_reduction <add>, %83, %cst_46 [1] : vector<16x32xf32> to vector<16xf32>
    %85 = vector.shape_cast %84 : vector<16xf32> to vector<16x1xf32>
    %cst_47 = arith.constant 3.200000e+01 : f32
    %86 = vector.broadcast %cst_47 : f32 to vector<16x1xf32>
    %87 = arith.divf %85, %86 : vector<16x1xf32>
    %88 = vector.broadcast %80 : vector<16x1xf32> to vector<16x32xf32>
    %89 = arith.subf %76, %88 : vector<16x32xf32>
    %cst_48 = arith.constant 9.99999997E-7 : f32
    %90 = vector.broadcast %cst_48 : f32 to vector<16x1xf32>
    %91 = arith.addf %87, %90 : vector<16x1xf32>
    %92 = math.rsqrt %91 : vector<16x1xf32>
    %93 = vector.broadcast %92 : vector<16x1xf32> to vector<16x32xf32>
    %94 = arith.mulf %89, %93 : vector<16x32xf32>
    %95 = vector.broadcast %3 : vector<1x32xf32> to vector<16x32xf32>
    %96 = arith.mulf %94, %95 : vector<16x32xf32>
    %97 = vector.broadcast %4 : vector<1x32xf32> to vector<16x32xf32>
    %98 = arith.addf %96, %97 : vector<16x32xf32>
    %c0_49 = arith.constant 0 : index
    %c0_50 = arith.constant 0 : index
    %99 = vector.load %arg7[%c0_49, %c0_50] : memref<32x64xf32, #tpu.memory_space<vmem>>, vector<32x64xf32>
    %cst_51 = arith.constant dense<0.000000e+00> : vector<16x64xf32>
    %100 = tpu.matmul %98, %99, %cst_51 {dimension_numbers = #tpu.dot_dimension_numbers<[1], [0], [0], [1], [0, 0, 1, 1], [], []>} : vector<16x32xf32>, vector<32x64xf32>, vector<16x64xf32> -> vector<16x64xf32>
    %c0_52 = arith.constant 0 : index
    %c0_53 = arith.constant 0 : index
    %101 = vector.load %arg8[%c0_52, %c0_53] : memref<1x64xf32, #tpu.memory_space<vmem>>, vector<1x64xf32>
    %102 = vector.broadcast %101 : vector<1x64xf32> to vector<16x64xf32>
    %103 = arith.addf %100, %102 : vector<16x64xf32>
    %104 = arith.mulf %103, %103 : vector<16x64xf32>
    %105 = arith.mulf %103, %104 : vector<16x64xf32>
    %cst_54 = arith.constant 4.471500e-02 : f32
    %106 = vector.broadcast %cst_54 : f32 to vector<16x64xf32>
    %107 = arith.mulf %106, %105 : vector<16x64xf32>
    %108 = arith.addf %103, %107 : vector<16x64xf32>
    %cst_55 = arith.constant 0.797884583 : f32
    %109 = vector.broadcast %cst_55 : f32 to vector<16x64xf32>
    %110 = arith.mulf %109, %108 : vector<16x64xf32>
    %111 = math.tanh %110 : vector<16x64xf32>
    %cst_56 = arith.constant 1.000000e+00 : f32
    %112 = vector.broadcast %cst_56 : f32 to vector<16x64xf32>
    %113 = arith.addf %112, %111 : vector<16x64xf32>
    %cst_57 = arith.constant 5.000000e-01 : f32
    %114 = vector.broadcast %cst_57 : f32 to vector<16x64xf32>
    %115 = arith.mulf %114, %113 : vector<16x64xf32>
    %116 = arith.mulf %103, %115 : vector<16x64xf32>
    %c0_58 = arith.constant 0 : index
    %c0_59 = arith.constant 0 : index
    %117 = vector.load %arg9[%c0_58, %c0_59] : memref<64x32xf32, #tpu.memory_space<vmem>>, vector<64x32xf32>
    %cst_60 = arith.constant dense<0.000000e+00> : vector<16x32xf32>
    %118 = tpu.matmul %116, %117, %cst_60 {dimension_numbers = #tpu.dot_dimension_numbers<[1], [0], [0], [1], [0, 0, 1, 1], [], []>} : vector<16x64xf32>, vector<64x32xf32>, vector<16x32xf32> -> vector<16x32xf32>
    %119 = vector.broadcast %5 : vector<1x32xf32> to vector<16x32xf32>
    %120 = arith.addf %118, %119 : vector<16x32xf32>
    %121 = arith.addf %76, %120 : vector<16x32xf32>
    %cst_61 = arith.constant dense<0.000000e+00> : vector<16xf32>
    %122 = vector.multi_reduction <add>, %121, %cst_61 [1] : vector<16x32xf32> to vector<16xf32>
    %123 = vector.shape_cast %122 : vector<16xf32> to vector<16x1xf32>
    %cst_62 = arith.constant 3.200000e+01 : f32
    %124 = vector.broadcast %cst_62 : f32 to vector<16x1xf32>
    %125 = arith.divf %123, %124 : vector<16x1xf32>
    %126 = vector.broadcast %125 : vector<16x1xf32> to vector<16x32xf32>
    %127 = arith.subf %121, %126 : vector<16x32xf32>
    %128 = arith.mulf %127, %127 : vector<16x32xf32>
    %cst_63 = arith.constant dense<0.000000e+00> : vector<16xf32>
    %129 = vector.multi_reduction <add>, %128, %cst_63 [1] : vector<16x32xf32> to vector<16xf32>
    %130 = vector.shape_cast %129 : vector<16xf32> to vector<16x1xf32>
    %cst_64 = arith.constant 3.200000e+01 : f32
    %131 = vector.broadcast %cst_64 : f32 to vector<16x1xf32>
    %132 = arith.divf %130, %131 : vector<16x1xf32>
    %133 = vector.broadcast %125 : vector<16x1xf32> to vector<16x32xf32>
    %134 = arith.subf %121, %133 : vector<16x32xf32>
    %cst_65 = arith.constant 9.99999997E-7 : f32
    %135 = vector.broadcast %cst_65 : f32 to vector<16x1xf32>
    %136 = arith.addf %132, %135 : vector<16x1xf32>
    %137 = math.rsqrt %136 : vector<16x1xf32>
    %138 = vector.broadcast %137 : vector<16x1xf32> to vector<16x32xf32>
    %139 = arith.mulf %134, %138 : vector<16x32xf32>
    %140 = vector.broadcast %6 : vector<1x32xf32> to vector<16x32xf32>
    %141 = arith.mulf %139, %140 : vector<16x32xf32>
    %142 = vector.broadcast %7 : vector<1x32xf32> to vector<16x32xf32>
    %143 = arith.addf %141, %142 : vector<16x32xf32>
    %144 = vector.shape_cast %143 : vector<16x32xf32> to vector<2x8x32xf32>
    %c0_66 = arith.constant 0 : index
    %c0_67 = arith.constant 0 : index
    %c0_68 = arith.constant 0 : index
    %145 = vector.load %arg10[%c0_66, %c0_67, %c0_68] : memref<2x8x32xf32, #tpu.memory_space<vmem>>, vector<2x8x32xf32>
    tpu.vector_store %arg10[%c0_66, %c0_67, %c0_68], %144 {strides = array<i32>} : memref<2x8x32xf32, #tpu.memory_space<vmem>>, vector<2x8x32xf32>,
    return
  }
  func.func @transform_0(%arg0: i32) -> (i32, i32, i32) {
    %c0_i32 = arith.constant 0 : i32
    %c0_i32_0 = arith.constant 0 : i32
    %c0_i32_1 = arith.constant 0 : i32
    return %arg0, %c0_i32, %c0_i32_0 : i32, i32, i32
  }
  func.func @transform_1(%arg0: i32) -> (i32, i32, i32) {
    %c0_i32 = arith.constant 0 : i32
    %c0_i32_0 = arith.constant 0 : i32
    %c0_i32_1 = arith.constant 0 : i32
    return %arg0, %c0_i32, %c0_i32_0 : i32, i32, i32
  }
  func.func @transform_2(%arg0: i32) -> (i32, i32) {
    %c0_i32 = arith.constant 0 : i32
    %c0_i32_0 = arith.constant 0 : i32
    %c0_i32_1 = arith.constant 0 : i32
    return %c0_i32, %c0_i32_0 : i32, i32
  }
  func.func @transform_3(%arg0: i32) -> (i32, i32) {
    %c0_i32 = arith.constant 0 : i32
    %c0_i32_0 = arith.constant 0 : i32
    %c0_i32_1 = arith.constant 0 : i32
    return %c0_i32, %c0_i32_0 : i32, i32
  }
  func.func @transform_4(%arg0: i32) -> (i32, i32) {
    %c0_i32 = arith.constant 0 : i32
    %c0_i32_0 = arith.constant 0 : i32
    %c0_i32_1 = arith.constant 0 : i32
    return %c0_i32, %c0_i32_0 : i32, i32
  }
  func.func @transform_5(%arg0: i32) -> (i32, i32) {
    %c0_i32 = arith.constant 0 : i32
    %c0_i32_0 = arith.constant 0 : i32
    %c0_i32_1 = arith.constant 0 : i32
    return %c0_i32, %c0_i32_0 : i32, i32
  }
  func.func @transform_6(%arg0: i32) -> (i32, i32) {
    %c0_i32 = arith.constant 0 : i32
    %c0_i32_0 = arith.constant 0 : i32
    %c0_i32_1 = arith.constant 0 : i32
    return %c0_i32, %c0_i32_0 : i32, i32
  }
  func.func @transform_7(%arg0: i32) -> (i32, i32) {
    %c0_i32 = arith.constant 0 : i32
    %c0_i32_0 = arith.constant 0 : i32
    %c0_i32_1 = arith.constant 0 : i32
    return %c0_i32, %c0_i32_0 : i32, i32
  }
  func.func @transform_8(%arg0: i32) -> (i32, i32) {
    %c0_i32 = arith.constant 0 : i32
    %c0_i32_0 = arith.constant 0 : i32
    %c0_i32_1 = arith.constant 0 : i32
    return %c0_i32, %c0_i32_0 : i32, i32
  }
  func.func @transform_9(%arg0: i32) -> (i32, i32, i32) {
    %c0_i32 = arith.constant 0 : i32
    %c0_i32_0 = arith.constant 0 : i32
    %c0_i32_1 = arith.constant 0 : i32
    return %arg0, %c0_i32, %c0_i32_0 : i32, i32, i32
  }
  func.func @transform_10(%arg0: i32) -> (i32, i32, i32, i32) {
    %c0_i32 = arith.constant 0 : i32
    %c0_i32_0 = arith.constant 0 : i32
    %c0_i32_1 = arith.constant 0 : i32
    %c0_i32_2 = arith.constant 0 : i32
    return %arg0, %c0_i32, %c0_i32_0, %c0_i32_1 : i32, i32, i32, i32
  }
}

module attributes {stable_mosaic.version = 11 : i64} {
  func.func @clr_kernel(%arg0: i32, %arg1: memref<2x1x32xf32, #tpu.memory_space<vmem>>, %arg2: memref<2x7x32xf32, #tpu.memory_space<vmem>>, %arg3: memref<8x32xf32, #tpu.memory_space<vmem>>, %arg4: memref<32x96xf32, #tpu.memory_space<vmem>>, %arg5: memref<1x96xf32, #tpu.memory_space<vmem>>, %arg6: memref<32x32xf32, #tpu.memory_space<vmem>>, %arg7: memref<32x64xf32, #tpu.memory_space<vmem>>, %arg8: memref<1x64xf32, #tpu.memory_space<vmem>>, %arg9: memref<64x32xf32, #tpu.memory_space<vmem>>, %arg10: memref<2x8x32xf32, #tpu.memory_space<vmem>>, %arg11: memref<2x4x8x8xf32, #tpu.memory_space<vmem>>, %arg12: memref<2x8x32xf32, #tpu.memory_space<vmem>>, %arg13: memref<16x32xf32, #tpu.memory_space<vmem>>) attributes {dimension_semantics = [#tpu.dimension_semantics<parallel>], iteration_bounds = array<i64: 1>, scalar_prefetch = 0 : i64, scratch_operands = 2 : i64, tpu.core_type = #tpu.core_type<tc>, window_params = [{transform_indices = @transform_0, window_bounds = array<i64: 2, 1, 32>}, {transform_indices = @transform_1, window_bounds = array<i64: 2, 7, 32>}, {pipeline_mode = #tpu.pipeline_mode<synchronous>, transform_indices = @transform_2, window_bounds = array<i64: 8, 32>}, {pipeline_mode = #tpu.pipeline_mode<synchronous>, transform_indices = @transform_3, window_bounds = array<i64: 32, 96>}, {pipeline_mode = #tpu.pipeline_mode<synchronous>, transform_indices = @transform_4, window_bounds = array<i64: 1, 96>}, {pipeline_mode = #tpu.pipeline_mode<synchronous>, transform_indices = @transform_5, window_bounds = array<i64: 32, 32>}, {pipeline_mode = #tpu.pipeline_mode<synchronous>, transform_indices = @transform_6, window_bounds = array<i64: 32, 64>}, {pipeline_mode = #tpu.pipeline_mode<synchronous>, transform_indices = @transform_7, window_bounds = array<i64: 1, 64>}, {pipeline_mode = #tpu.pipeline_mode<synchronous>, transform_indices = @transform_8, window_bounds = array<i64: 64, 32>}, {transform_indices = @transform_9, window_bounds = array<i64: 2, 8, 32>}, {transform_indices = @transform_10, window_bounds = array<i64: 2, 4, 8, 8>}]} {
    %c0 = arith.constant 0 : index
    %c0_0 = arith.constant 0 : index
    %0 = vector.load %arg3[%c0, %c0_0] : memref<8x32xf32, #tpu.memory_space<vmem>>, vector<1x32xf32>
    %c1 = arith.constant 1 : index
    %c0_1 = arith.constant 0 : index
    %1 = vector.load %arg3[%c1, %c0_1] : memref<8x32xf32, #tpu.memory_space<vmem>>, vector<1x32xf32>
    %c2 = arith.constant 2 : index
    %c0_2 = arith.constant 0 : index
    %2 = vector.load %arg3[%c2, %c0_2] : memref<8x32xf32, #tpu.memory_space<vmem>>, vector<1x32xf32>
    %c3 = arith.constant 3 : index
    %c0_3 = arith.constant 0 : index
    %3 = vector.load %arg3[%c3, %c0_3] : memref<8x32xf32, #tpu.memory_space<vmem>>, vector<1x32xf32>
    %c4 = arith.constant 4 : index
    %c0_4 = arith.constant 0 : index
    %4 = vector.load %arg3[%c4, %c0_4] : memref<8x32xf32, #tpu.memory_space<vmem>>, vector<1x32xf32>
    %c5 = arith.constant 5 : index
    %c0_5 = arith.constant 0 : index
    %5 = vector.load %arg3[%c5, %c0_5] : memref<8x32xf32, #tpu.memory_space<vmem>>, vector<1x32xf32>
    %c6 = arith.constant 6 : index
    %c0_6 = arith.constant 0 : index
    %6 = vector.load %arg3[%c6, %c0_6] : memref<8x32xf32, #tpu.memory_space<vmem>>, vector<1x32xf32>
    %c7 = arith.constant 7 : index
    %c0_7 = arith.constant 0 : index
    %7 = vector.load %arg3[%c7, %c0_7] : memref<8x32xf32, #tpu.memory_space<vmem>>, vector<1x32xf32>
    %c0_8 = arith.constant 0 : index
    %c0_9 = arith.constant 0 : index
    %c0_10 = arith.constant 0 : index
    %8 = vector.load %arg1[%c0_8, %c0_9, %c0_10] : memref<2x1x32xf32, #tpu.memory_space<vmem>>, vector<2x1x32xf32>
    %c0_11 = arith.constant 0 : index
    %c0_12 = arith.constant 0 : index
    %c0_13 = arith.constant 0 : index
    %9 = vector.load %arg12[%c0_11, %c0_12, %c0_13] : memref<2x8x32xf32, #tpu.memory_space<vmem>>, vector<2x1x32xf32>
    tpu.vector_store %arg12[%c0_11, %c0_12, %c0_13], %8 {strides = array<i32>} : memref<2x8x32xf32, #tpu.memory_space<vmem>>, vector<2x1x32xf32>,
    %c0_14 = arith.constant 0 : index
    %c0_15 = arith.constant 0 : index
    %c0_16 = arith.constant 0 : index
    %10 = vector.load %arg2[%c0_14, %c0_15, %c0_16] : memref<2x7x32xf32, #tpu.memory_space<vmem>>, vector<2x7x32xf32>
    %c0_17 = arith.constant 0 : index
    %c1_18 = arith.constant 1 : index
    %c0_19 = arith.constant 0 : index
    %11 = vector.load %arg12[%c0_17, %c1_18, %c0_19] : memref<2x8x32xf32, #tpu.memory_space<vmem>>, vector<2x7x32xf32>
    tpu.vector_store %arg12[%c0_17, %c1_18, %c0_19], %10 {strides = array<i32>} : memref<2x8x32xf32, #tpu.memory_space<vmem>>, vector<2x7x32xf32>,
    %c0_20 = arith.constant 0 : index
    %c0_21 = arith.constant 0 : index
    %c0_22 = arith.constant 0 : index
    %12 = vector.load %arg12[%c0_20, %c0_21, %c0_22] : memref<2x8x32xf32, #tpu.memory_space<vmem>>, vector<2x8x32xf32>
    %13 = vector.shape_cast %12 : vector<2x8x32xf32> to vector<16x32xf32>
    %cst = arith.constant dense<0.000000e+00> : vector<16xf32>
    %14 = vector.multi_reduction <add>, %13, %cst [1] : vector<16x32xf32> to vector<16xf32>
    %15 = vector.shape_cast %14 : vector<16xf32> to vector<16x1xf32>
    %cst_23 = arith.constant 3.200000e+01 : f32
    %16 = vector.broadcast %cst_23 : f32 to vector<16x1xf32>
    %17 = arith.divf %15, %16 : vector<16x1xf32>
    %18 = vector.broadcast %17 : vector<16x1xf32> to vector<16x32xf32>
    %19 = arith.subf %13, %18 : vector<16x32xf32>
    %20 = arith.mulf %19, %19 : vector<16x32xf32>
    %cst_24 = arith.constant dense<0.000000e+00> : vector<16xf32>
    %21 = vector.multi_reduction <add>, %20, %cst_24 [1] : vector<16x32xf32> to vector<16xf32>
    %22 = vector.shape_cast %21 : vector<16xf32> to vector<16x1xf32>
    %cst_25 = arith.constant 3.200000e+01 : f32
    %23 = vector.broadcast %cst_25 : f32 to vector<16x1xf32>
    %24 = arith.divf %22, %23 : vector<16x1xf32>
    %25 = vector.broadcast %17 : vector<16x1xf32> to vector<16x32xf32>
    %26 = arith.subf %13, %25 : vector<16x32xf32>
    %cst_26 = arith.constant 9.99999997E-7 : f32
    %27 = vector.broadcast %cst_26 : f32 to vector<16x1xf32>
    %28 = arith.addf %24, %27 : vector<16x1xf32>
    %29 = math.rsqrt %28 : vector<16x1xf32>
    %30 = vector.broadcast %29 : vector<16x1xf32> to vector<16x32xf32>
    %31 = arith.mulf %26, %30 : vector<16x32xf32>
    %32 = vector.broadcast %0 : vector<1x32xf32> to vector<16x32xf32>
    %33 = arith.mulf %31, %32 : vector<16x32xf32>
    %34 = vector.broadcast %1 : vector<1x32xf32> to vector<16x32xf32>
    %35 = arith.addf %33, %34 : vector<16x32xf32>
    %c0_27 = arith.constant 0 : index
    %c0_28 = arith.constant 0 : index
    %36 = vector.load %arg4[%c0_27, %c0_28] : memref<32x96xf32, #tpu.memory_space<vmem>>, vector<32x96xf32>
    %cst_29 = arith.constant dense<0.000000e+00> : vector<16x96xf32>
    %37 = tpu.matmul %35, %36, %cst_29 {dimension_numbers = #tpu.dot_dimension_numbers<[1], [0], [0], [1], [0, 0, 1, 1], [], []>} : vector<16x32xf32>, vector<32x96xf32>, vector<16x96xf32> -> vector<16x96xf32>
    %c0_30 = arith.constant 0 : index
    %c0_31 = arith.constant 0 : index
    %38 = vector.load %arg5[%c0_30, %c0_31] : memref<1x96xf32, #tpu.memory_space<vmem>>, vector<1x96xf32>
    %39 = vector.broadcast %38 : vector<1x96xf32> to vector<16x96xf32>
    %40 = arith.addf %37, %39 : vector<16x96xf32>
    %41 = vector.extract_strided_slice %40 {offsets = [0, 0], sizes = [16, 32], strides = [1, 1]} : vector<16x96xf32> to vector<16x32xf32>
    %cst_32 = arith.constant 0.353553385 : f32
    %42 = vector.broadcast %cst_32 : f32 to vector<16x32xf32>
    %43 = arith.mulf %41, %42 : vector<16x32xf32>
    %44 = vector.extract_strided_slice %40 {offsets = [0, 32], sizes = [16, 32], strides = [1, 1]} : vector<16x96xf32> to vector<16x32xf32>
    %45 = vector.extract_strided_slice %40 {offsets = [0, 64], sizes = [16, 32], strides = [1, 1]} : vector<16x96xf32> to vector<16x32xf32>
    %46 = vector.extract_strided_slice %43 {offsets = [0, 0], sizes = [16, 8], strides = [1, 1]} : vector<16x32xf32> to vector<16x8xf32>
    %47 = vector.shape_cast %46 : vector<16x8xf32> to vector<2x8x8xf32>
    %48 = vector.extract_strided_slice %44 {offsets = [0, 0], sizes = [16, 8], strides = [1, 1]} : vector<16x32xf32> to vector<16x8xf32>
    %49 = vector.shape_cast %48 : vector<16x8xf32> to vector<2x8x8xf32>
    %50 = vector.extract_strided_slice %45 {offsets = [0, 0], sizes = [16, 8], strides = [1, 1]} : vector<16x32xf32> to vector<16x8xf32>
    %51 = vector.shape_cast %50 : vector<16x8xf32> to vector<2x8x8xf32>
    "tpu.trace_start"() <{level = 10 : i32, message = "bqd,bkd->bqk"}> : () -> ()
    %cst_33 = arith.constant dense<0.000000e+00> : vector<2x8x8xf32>
    %52 = tpu.matmul %47, %49, %cst_33 {dimension_numbers = #tpu.dot_dimension_numbers<[2], [2], [1], [1], [0, 0, 0, 1, 1, 1], [0], [0]>} : vector<2x8x8xf32>, vector<2x8x8xf32>, vector<2x8x8xf32> -> vector<2x8x8xf32>
    "tpu.trace_stop"() : () -> ()
    %cst_34 = arith.constant dense<0xFF800000> : vector<2x8xf32>
    %53 = vector.multi_reduction <maximumf>, %52, %cst_34 [2] : vector<2x8x8xf32> to vector<2x8xf32>
    %54 = vector.shape_cast %53 : vector<2x8xf32> to vector<2x8x1xf32>
    %55 = vector.broadcast %54 : vector<2x8x1xf32> to vector<2x8x8xf32>
    %56 = arith.subf %52, %55 : vector<2x8x8xf32>
    %57 = math.exp %56 : vector<2x8x8xf32>
    %cst_35 = arith.constant dense<0.000000e+00> : vector<2x8xf32>
    %58 = vector.multi_reduction <add>, %57, %cst_35 [2] : vector<2x8x8xf32> to vector<2x8xf32>
    %59 = vector.shape_cast %58 : vector<2x8xf32> to vector<2x8x1xf32>
    %60 = tpu.reciprocal %59 {approx = true} : vector<2x8x1xf32> -> vector<2x8x1xf32>
    %61 = vector.broadcast %60 : vector<2x8x1xf32> to vector<2x8x8xf32>
    %62 = arith.mulf %57, %61 : vector<2x8x8xf32>
    %c0_36 = arith.constant 0 : index
    %c0_37 = arith.constant 0 : index
    %c0_38 = arith.constant 0 : index
    %c0_39 = arith.constant 0 : index
    %63 = vector.load %arg11[%c0_36, %c0_37, %c0_38, %c0_39] : memref<2x4x8x8xf32, #tpu.memory_space<vmem>>, vector<2x1x8x8xf32>
    %64 = vector.shape_cast %63 : vector<2x1x8x8xf32> to vector<2x8x8xf32>
    %65 = vector.shape_cast %62 : vector<2x8x8xf32> to vector<2x1x8x8xf32>
    tpu.vector_store %arg11[%c0_36, %c0_37, %c0_38, %c0_39], %65 {strides = array<i32>} : memref<2x4x8x8xf32, #tpu.memory_space<vmem>>, vector<2x1x8x8xf32>,
    "tpu.trace_start"() <{level = 10 : i32, message = "bqk,bkd->bqd"}> : () -> ()
    %cst_40 = arith.constant dense<0.000000e+00> : vector<2x8x8xf32>
    %66 = tpu.matmul %62, %51, %cst_40 {dimension_numbers = #tpu.dot_dimension_numbers<[2], [1], [1], [2], [0, 0, 0, 1, 1, 2], [0], [0]>} : vector<2x8x8xf32>, vector<2x8x8xf32>, vector<2x8x8xf32> -> vector<2x8x8xf32>
    "tpu.trace_stop"() : () -> ()
    %67 = vector.shape_cast %66 : vector<2x8x8xf32> to vector<16x8xf32>
    %c0_41 = arith.constant 0 : index
    %c0_42 = arith.constant 0 : index
    %68 = vector.load %arg13[%c0_41, %c0_42] : memref<16x32xf32, #tpu.memory_space<vmem>>, vector<16x8xf32>
    tpu.vector_store %arg13[%c0_41, %c0_42], %67 {strides = array<i32>} : memref<16x32xf32, #tpu.memory_space<vmem>>, vector<16x8xf32>,
    %69 = vector.extract_strided_slice %43 {offsets = [0, 8], sizes = [16, 8], strides = [1, 1]} : vector<16x32xf32> to vector<16x8xf32>
    %70 = vector.shape_cast %69 : vector<16x8xf32> to vector<2x8x8xf32>
    %71 = vector.extract_strided_slice %44 {offsets = [0, 8], sizes = [16, 8], strides = [1, 1]} : vector<16x32xf32> to vector<16x8xf32>
    %72 = vector.shape_cast %71 : vector<16x8xf32> to vector<2x8x8xf32>
    %73 = vector.extract_strided_slice %45 {offsets = [0, 8], sizes = [16, 8], strides = [1, 1]} : vector<16x32xf32> to vector<16x8xf32>
    %74 = vector.shape_cast %73 : vector<16x8xf32> to vector<2x8x8xf32>
    "tpu.trace_start"() <{level = 10 : i32, message = "bqd,bkd->bqk"}> : () -> ()
    %cst_43 = arith.constant dense<0.000000e+00> : vector<2x8x8xf32>
    %75 = tpu.matmul %70, %72, %cst_43 {dimension_numbers = #tpu.dot_dimension_numbers<[2], [2], [1], [1], [0, 0, 0, 1, 1, 1], [0], [0]>} : vector<2x8x8xf32>, vector<2x8x8xf32>, vector<2x8x8xf32> -> vector<2x8x8xf32>
    "tpu.trace_stop"() : () -> ()
    %cst_44 = arith.constant dense<0xFF800000> : vector<2x8xf32>
    %76 = vector.multi_reduction <maximumf>, %75, %cst_44 [2] : vector<2x8x8xf32> to vector<2x8xf32>
    %77 = vector.shape_cast %76 : vector<2x8xf32> to vector<2x8x1xf32>
    %78 = vector.broadcast %77 : vector<2x8x1xf32> to vector<2x8x8xf32>
    %79 = arith.subf %75, %78 : vector<2x8x8xf32>
    %80 = math.exp %79 : vector<2x8x8xf32>
    %cst_45 = arith.constant dense<0.000000e+00> : vector<2x8xf32>
    %81 = vector.multi_reduction <add>, %80, %cst_45 [2] : vector<2x8x8xf32> to vector<2x8xf32>
    %82 = vector.shape_cast %81 : vector<2x8xf32> to vector<2x8x1xf32>
    %83 = tpu.reciprocal %82 {approx = true} : vector<2x8x1xf32> -> vector<2x8x1xf32>
    %84 = vector.broadcast %83 : vector<2x8x1xf32> to vector<2x8x8xf32>
    %85 = arith.mulf %80, %84 : vector<2x8x8xf32>
    %c0_46 = arith.constant 0 : index
    %c1_47 = arith.constant 1 : index
    %c0_48 = arith.constant 0 : index
    %c0_49 = arith.constant 0 : index
    %86 = vector.load %arg11[%c0_46, %c1_47, %c0_48, %c0_49] : memref<2x4x8x8xf32, #tpu.memory_space<vmem>>, vector<2x1x8x8xf32>
    %87 = vector.shape_cast %86 : vector<2x1x8x8xf32> to vector<2x8x8xf32>
    %88 = vector.shape_cast %85 : vector<2x8x8xf32> to vector<2x1x8x8xf32>
    tpu.vector_store %arg11[%c0_46, %c1_47, %c0_48, %c0_49], %88 {strides = array<i32>} : memref<2x4x8x8xf32, #tpu.memory_space<vmem>>, vector<2x1x8x8xf32>,
    "tpu.trace_start"() <{level = 10 : i32, message = "bqk,bkd->bqd"}> : () -> ()
    %cst_50 = arith.constant dense<0.000000e+00> : vector<2x8x8xf32>
    %89 = tpu.matmul %85, %74, %cst_50 {dimension_numbers = #tpu.dot_dimension_numbers<[2], [1], [1], [2], [0, 0, 0, 1, 1, 2], [0], [0]>} : vector<2x8x8xf32>, vector<2x8x8xf32>, vector<2x8x8xf32> -> vector<2x8x8xf32>
    "tpu.trace_stop"() : () -> ()
    %90 = vector.shape_cast %89 : vector<2x8x8xf32> to vector<16x8xf32>
    %c0_51 = arith.constant 0 : index
    %c8 = arith.constant 8 : index
    %91 = vector.load %arg13[%c0_51, %c8] : memref<16x32xf32, #tpu.memory_space<vmem>>, vector<16x8xf32>
    tpu.vector_store %arg13[%c0_51, %c8], %90 {strides = array<i32>} : memref<16x32xf32, #tpu.memory_space<vmem>>, vector<16x8xf32>,
    %92 = vector.extract_strided_slice %43 {offsets = [0, 16], sizes = [16, 8], strides = [1, 1]} : vector<16x32xf32> to vector<16x8xf32>
    %93 = vector.shape_cast %92 : vector<16x8xf32> to vector<2x8x8xf32>
    %94 = vector.extract_strided_slice %44 {offsets = [0, 16], sizes = [16, 8], strides = [1, 1]} : vector<16x32xf32> to vector<16x8xf32>
    %95 = vector.shape_cast %94 : vector<16x8xf32> to vector<2x8x8xf32>
    %96 = vector.extract_strided_slice %45 {offsets = [0, 16], sizes = [16, 8], strides = [1, 1]} : vector<16x32xf32> to vector<16x8xf32>
    %97 = vector.shape_cast %96 : vector<16x8xf32> to vector<2x8x8xf32>
    "tpu.trace_start"() <{level = 10 : i32, message = "bqd,bkd->bqk"}> : () -> ()
    %cst_52 = arith.constant dense<0.000000e+00> : vector<2x8x8xf32>
    %98 = tpu.matmul %93, %95, %cst_52 {dimension_numbers = #tpu.dot_dimension_numbers<[2], [2], [1], [1], [0, 0, 0, 1, 1, 1], [0], [0]>} : vector<2x8x8xf32>, vector<2x8x8xf32>, vector<2x8x8xf32> -> vector<2x8x8xf32>
    "tpu.trace_stop"() : () -> ()
    %cst_53 = arith.constant dense<0xFF800000> : vector<2x8xf32>
    %99 = vector.multi_reduction <maximumf>, %98, %cst_53 [2] : vector<2x8x8xf32> to vector<2x8xf32>
    %100 = vector.shape_cast %99 : vector<2x8xf32> to vector<2x8x1xf32>
    %101 = vector.broadcast %100 : vector<2x8x1xf32> to vector<2x8x8xf32>
    %102 = arith.subf %98, %101 : vector<2x8x8xf32>
    %103 = math.exp %102 : vector<2x8x8xf32>
    %cst_54 = arith.constant dense<0.000000e+00> : vector<2x8xf32>
    %104 = vector.multi_reduction <add>, %103, %cst_54 [2] : vector<2x8x8xf32> to vector<2x8xf32>
    %105 = vector.shape_cast %104 : vector<2x8xf32> to vector<2x8x1xf32>
    %106 = tpu.reciprocal %105 {approx = true} : vector<2x8x1xf32> -> vector<2x8x1xf32>
    %107 = vector.broadcast %106 : vector<2x8x1xf32> to vector<2x8x8xf32>
    %108 = arith.mulf %103, %107 : vector<2x8x8xf32>
    %c0_55 = arith.constant 0 : index
    %c2_56 = arith.constant 2 : index
    %c0_57 = arith.constant 0 : index
    %c0_58 = arith.constant 0 : index
    %109 = vector.load %arg11[%c0_55, %c2_56, %c0_57, %c0_58] : memref<2x4x8x8xf32, #tpu.memory_space<vmem>>, vector<2x1x8x8xf32>
    %110 = vector.shape_cast %109 : vector<2x1x8x8xf32> to vector<2x8x8xf32>
    %111 = vector.shape_cast %108 : vector<2x8x8xf32> to vector<2x1x8x8xf32>
    tpu.vector_store %arg11[%c0_55, %c2_56, %c0_57, %c0_58], %111 {strides = array<i32>} : memref<2x4x8x8xf32, #tpu.memory_space<vmem>>, vector<2x1x8x8xf32>,
    "tpu.trace_start"() <{level = 10 : i32, message = "bqk,bkd->bqd"}> : () -> ()
    %cst_59 = arith.constant dense<0.000000e+00> : vector<2x8x8xf32>
    %112 = tpu.matmul %108, %97, %cst_59 {dimension_numbers = #tpu.dot_dimension_numbers<[2], [1], [1], [2], [0, 0, 0, 1, 1, 2], [0], [0]>} : vector<2x8x8xf32>, vector<2x8x8xf32>, vector<2x8x8xf32> -> vector<2x8x8xf32>
    "tpu.trace_stop"() : () -> ()
    %113 = vector.shape_cast %112 : vector<2x8x8xf32> to vector<16x8xf32>
    %c0_60 = arith.constant 0 : index
    %c16 = arith.constant 16 : index
    %114 = vector.load %arg13[%c0_60, %c16] : memref<16x32xf32, #tpu.memory_space<vmem>>, vector<16x8xf32>
    tpu.vector_store %arg13[%c0_60, %c16], %113 {strides = array<i32>} : memref<16x32xf32, #tpu.memory_space<vmem>>, vector<16x8xf32>,
    %115 = vector.extract_strided_slice %43 {offsets = [0, 24], sizes = [16, 8], strides = [1, 1]} : vector<16x32xf32> to vector<16x8xf32>
    %116 = vector.shape_cast %115 : vector<16x8xf32> to vector<2x8x8xf32>
    %117 = vector.extract_strided_slice %44 {offsets = [0, 24], sizes = [16, 8], strides = [1, 1]} : vector<16x32xf32> to vector<16x8xf32>
    %118 = vector.shape_cast %117 : vector<16x8xf32> to vector<2x8x8xf32>
    %119 = vector.extract_strided_slice %45 {offsets = [0, 24], sizes = [16, 8], strides = [1, 1]} : vector<16x32xf32> to vector<16x8xf32>
    %120 = vector.shape_cast %119 : vector<16x8xf32> to vector<2x8x8xf32>
    "tpu.trace_start"() <{level = 10 : i32, message = "bqd,bkd->bqk"}> : () -> ()
    %cst_61 = arith.constant dense<0.000000e+00> : vector<2x8x8xf32>
    %121 = tpu.matmul %116, %118, %cst_61 {dimension_numbers = #tpu.dot_dimension_numbers<[2], [2], [1], [1], [0, 0, 0, 1, 1, 1], [0], [0]>} : vector<2x8x8xf32>, vector<2x8x8xf32>, vector<2x8x8xf32> -> vector<2x8x8xf32>
    "tpu.trace_stop"() : () -> ()
    %cst_62 = arith.constant dense<0xFF800000> : vector<2x8xf32>
    %122 = vector.multi_reduction <maximumf>, %121, %cst_62 [2] : vector<2x8x8xf32> to vector<2x8xf32>
    %123 = vector.shape_cast %122 : vector<2x8xf32> to vector<2x8x1xf32>
    %124 = vector.broadcast %123 : vector<2x8x1xf32> to vector<2x8x8xf32>
    %125 = arith.subf %121, %124 : vector<2x8x8xf32>
    %126 = math.exp %125 : vector<2x8x8xf32>
    %cst_63 = arith.constant dense<0.000000e+00> : vector<2x8xf32>
    %127 = vector.multi_reduction <add>, %126, %cst_63 [2] : vector<2x8x8xf32> to vector<2x8xf32>
    %128 = vector.shape_cast %127 : vector<2x8xf32> to vector<2x8x1xf32>
    %129 = tpu.reciprocal %128 {approx = true} : vector<2x8x1xf32> -> vector<2x8x1xf32>
    %130 = vector.broadcast %129 : vector<2x8x1xf32> to vector<2x8x8xf32>
    %131 = arith.mulf %126, %130 : vector<2x8x8xf32>
    %c0_64 = arith.constant 0 : index
    %c3_65 = arith.constant 3 : index
    %c0_66 = arith.constant 0 : index
    %c0_67 = arith.constant 0 : index
    %132 = vector.load %arg11[%c0_64, %c3_65, %c0_66, %c0_67] : memref<2x4x8x8xf32, #tpu.memory_space<vmem>>, vector<2x1x8x8xf32>
    %133 = vector.shape_cast %132 : vector<2x1x8x8xf32> to vector<2x8x8xf32>
    %134 = vector.shape_cast %131 : vector<2x8x8xf32> to vector<2x1x8x8xf32>
    tpu.vector_store %arg11[%c0_64, %c3_65, %c0_66, %c0_67], %134 {strides = array<i32>} : memref<2x4x8x8xf32, #tpu.memory_space<vmem>>, vector<2x1x8x8xf32>,
    "tpu.trace_start"() <{level = 10 : i32, message = "bqk,bkd->bqd"}> : () -> ()
    %cst_68 = arith.constant dense<0.000000e+00> : vector<2x8x8xf32>
    %135 = tpu.matmul %131, %120, %cst_68 {dimension_numbers = #tpu.dot_dimension_numbers<[2], [1], [1], [2], [0, 0, 0, 1, 1, 2], [0], [0]>} : vector<2x8x8xf32>, vector<2x8x8xf32>, vector<2x8x8xf32> -> vector<2x8x8xf32>
    "tpu.trace_stop"() : () -> ()
    %136 = vector.shape_cast %135 : vector<2x8x8xf32> to vector<16x8xf32>
    %c0_69 = arith.constant 0 : index
    %c24 = arith.constant 24 : index
    %137 = vector.load %arg13[%c0_69, %c24] : memref<16x32xf32, #tpu.memory_space<vmem>>, vector<16x8xf32>
    tpu.vector_store %arg13[%c0_69, %c24], %136 {strides = array<i32>} : memref<16x32xf32, #tpu.memory_space<vmem>>, vector<16x8xf32>,
    %c0_70 = arith.constant 0 : index
    %c0_71 = arith.constant 0 : index
    %138 = vector.load %arg13[%c0_70, %c0_71] : memref<16x32xf32, #tpu.memory_space<vmem>>, vector<16x32xf32>
    %c0_72 = arith.constant 0 : index
    %c0_73 = arith.constant 0 : index
    %139 = vector.load %arg6[%c0_72, %c0_73] : memref<32x32xf32, #tpu.memory_space<vmem>>, vector<32x32xf32>
    %cst_74 = arith.constant dense<0.000000e+00> : vector<16x32xf32>
    %140 = tpu.matmul %138, %139, %cst_74 {dimension_numbers = #tpu.dot_dimension_numbers<[1], [0], [0], [1], [0, 0, 1, 1], [], []>} : vector<16x32xf32>, vector<32x32xf32>, vector<16x32xf32> -> vector<16x32xf32>
    %141 = vector.broadcast %2 : vector<1x32xf32> to vector<16x32xf32>
    %142 = arith.addf %140, %141 : vector<16x32xf32>
    %143 = arith.addf %13, %142 : vector<16x32xf32>
    %cst_75 = arith.constant dense<0.000000e+00> : vector<16xf32>
    %144 = vector.multi_reduction <add>, %143, %cst_75 [1] : vector<16x32xf32> to vector<16xf32>
    %145 = vector.shape_cast %144 : vector<16xf32> to vector<16x1xf32>
    %cst_76 = arith.constant 3.200000e+01 : f32
    %146 = vector.broadcast %cst_76 : f32 to vector<16x1xf32>
    %147 = arith.divf %145, %146 : vector<16x1xf32>
    %148 = vector.broadcast %147 : vector<16x1xf32> to vector<16x32xf32>
    %149 = arith.subf %143, %148 : vector<16x32xf32>
    %150 = arith.mulf %149, %149 : vector<16x32xf32>
    %cst_77 = arith.constant dense<0.000000e+00> : vector<16xf32>
    %151 = vector.multi_reduction <add>, %150, %cst_77 [1] : vector<16x32xf32> to vector<16xf32>
    %152 = vector.shape_cast %151 : vector<16xf32> to vector<16x1xf32>
    %cst_78 = arith.constant 3.200000e+01 : f32
    %153 = vector.broadcast %cst_78 : f32 to vector<16x1xf32>
    %154 = arith.divf %152, %153 : vector<16x1xf32>
    %155 = vector.broadcast %147 : vector<16x1xf32> to vector<16x32xf32>
    %156 = arith.subf %143, %155 : vector<16x32xf32>
    %cst_79 = arith.constant 9.99999997E-7 : f32
    %157 = vector.broadcast %cst_79 : f32 to vector<16x1xf32>
    %158 = arith.addf %154, %157 : vector<16x1xf32>
    %159 = math.rsqrt %158 : vector<16x1xf32>
    %160 = vector.broadcast %159 : vector<16x1xf32> to vector<16x32xf32>
    %161 = arith.mulf %156, %160 : vector<16x32xf32>
    %162 = vector.broadcast %3 : vector<1x32xf32> to vector<16x32xf32>
    %163 = arith.mulf %161, %162 : vector<16x32xf32>
    %164 = vector.broadcast %4 : vector<1x32xf32> to vector<16x32xf32>
    %165 = arith.addf %163, %164 : vector<16x32xf32>
    %c0_80 = arith.constant 0 : index
    %c0_81 = arith.constant 0 : index
    %166 = vector.load %arg7[%c0_80, %c0_81] : memref<32x64xf32, #tpu.memory_space<vmem>>, vector<32x64xf32>
    %cst_82 = arith.constant dense<0.000000e+00> : vector<16x64xf32>
    %167 = tpu.matmul %165, %166, %cst_82 {dimension_numbers = #tpu.dot_dimension_numbers<[1], [0], [0], [1], [0, 0, 1, 1], [], []>} : vector<16x32xf32>, vector<32x64xf32>, vector<16x64xf32> -> vector<16x64xf32>
    %c0_83 = arith.constant 0 : index
    %c0_84 = arith.constant 0 : index
    %168 = vector.load %arg8[%c0_83, %c0_84] : memref<1x64xf32, #tpu.memory_space<vmem>>, vector<1x64xf32>
    %169 = vector.broadcast %168 : vector<1x64xf32> to vector<16x64xf32>
    %170 = arith.addf %167, %169 : vector<16x64xf32>
    %171 = arith.mulf %170, %170 : vector<16x64xf32>
    %172 = arith.mulf %170, %171 : vector<16x64xf32>
    %cst_85 = arith.constant 4.471500e-02 : f32
    %173 = vector.broadcast %cst_85 : f32 to vector<16x64xf32>
    %174 = arith.mulf %173, %172 : vector<16x64xf32>
    %175 = arith.addf %170, %174 : vector<16x64xf32>
    %cst_86 = arith.constant 0.797884583 : f32
    %176 = vector.broadcast %cst_86 : f32 to vector<16x64xf32>
    %177 = arith.mulf %176, %175 : vector<16x64xf32>
    %178 = math.tanh %177 : vector<16x64xf32>
    %cst_87 = arith.constant 1.000000e+00 : f32
    %179 = vector.broadcast %cst_87 : f32 to vector<16x64xf32>
    %180 = arith.addf %179, %178 : vector<16x64xf32>
    %cst_88 = arith.constant 5.000000e-01 : f32
    %181 = vector.broadcast %cst_88 : f32 to vector<16x64xf32>
    %182 = arith.mulf %181, %180 : vector<16x64xf32>
    %183 = arith.mulf %170, %182 : vector<16x64xf32>
    %c0_89 = arith.constant 0 : index
    %c0_90 = arith.constant 0 : index
    %184 = vector.load %arg9[%c0_89, %c0_90] : memref<64x32xf32, #tpu.memory_space<vmem>>, vector<64x32xf32>
    %cst_91 = arith.constant dense<0.000000e+00> : vector<16x32xf32>
    %185 = tpu.matmul %183, %184, %cst_91 {dimension_numbers = #tpu.dot_dimension_numbers<[1], [0], [0], [1], [0, 0, 1, 1], [], []>} : vector<16x64xf32>, vector<64x32xf32>, vector<16x32xf32> -> vector<16x32xf32>
    %186 = vector.broadcast %5 : vector<1x32xf32> to vector<16x32xf32>
    %187 = arith.addf %185, %186 : vector<16x32xf32>
    %188 = arith.addf %143, %187 : vector<16x32xf32>
    %cst_92 = arith.constant dense<0.000000e+00> : vector<16xf32>
    %189 = vector.multi_reduction <add>, %188, %cst_92 [1] : vector<16x32xf32> to vector<16xf32>
    %190 = vector.shape_cast %189 : vector<16xf32> to vector<16x1xf32>
    %cst_93 = arith.constant 3.200000e+01 : f32
    %191 = vector.broadcast %cst_93 : f32 to vector<16x1xf32>
    %192 = arith.divf %190, %191 : vector<16x1xf32>
    %193 = vector.broadcast %192 : vector<16x1xf32> to vector<16x32xf32>
    %194 = arith.subf %188, %193 : vector<16x32xf32>
    %195 = arith.mulf %194, %194 : vector<16x32xf32>
    %cst_94 = arith.constant dense<0.000000e+00> : vector<16xf32>
    %196 = vector.multi_reduction <add>, %195, %cst_94 [1] : vector<16x32xf32> to vector<16xf32>
    %197 = vector.shape_cast %196 : vector<16xf32> to vector<16x1xf32>
    %cst_95 = arith.constant 3.200000e+01 : f32
    %198 = vector.broadcast %cst_95 : f32 to vector<16x1xf32>
    %199 = arith.divf %197, %198 : vector<16x1xf32>
    %200 = vector.broadcast %192 : vector<16x1xf32> to vector<16x32xf32>
    %201 = arith.subf %188, %200 : vector<16x32xf32>
    %cst_96 = arith.constant 9.99999997E-7 : f32
    %202 = vector.broadcast %cst_96 : f32 to vector<16x1xf32>
    %203 = arith.addf %199, %202 : vector<16x1xf32>
    %204 = math.rsqrt %203 : vector<16x1xf32>
    %205 = vector.broadcast %204 : vector<16x1xf32> to vector<16x32xf32>
    %206 = arith.mulf %201, %205 : vector<16x32xf32>
    %207 = vector.broadcast %6 : vector<1x32xf32> to vector<16x32xf32>
    %208 = arith.mulf %206, %207 : vector<16x32xf32>
    %209 = vector.broadcast %7 : vector<1x32xf32> to vector<16x32xf32>
    %210 = arith.addf %208, %209 : vector<16x32xf32>
    %211 = vector.shape_cast %210 : vector<16x32xf32> to vector<2x8x32xf32>
    %c0_97 = arith.constant 0 : index
    %c0_98 = arith.constant 0 : index
    %c0_99 = arith.constant 0 : index
    %212 = vector.load %arg10[%c0_97, %c0_98, %c0_99] : memref<2x8x32xf32, #tpu.memory_space<vmem>>, vector<2x8x32xf32>
    tpu.vector_store %arg10[%c0_97, %c0_98, %c0_99], %211 {strides = array<i32>} : memref<2x8x32xf32, #tpu.memory_space<vmem>>, vector<2x8x32xf32>,
    return
  }
  func.func @transform_0(%arg0: i32) -> (i32, i32, i32) {
    %c0_i32 = arith.constant 0 : i32
    %c0_i32_0 = arith.constant 0 : i32
    %c0_i32_1 = arith.constant 0 : i32
    return %arg0, %c0_i32, %c0_i32_0 : i32, i32, i32
  }
  func.func @transform_1(%arg0: i32) -> (i32, i32, i32) {
    %c0_i32 = arith.constant 0 : i32
    %c0_i32_0 = arith.constant 0 : i32
    %c0_i32_1 = arith.constant 0 : i32
    return %arg0, %c0_i32, %c0_i32_0 : i32, i32, i32
  }
  func.func @transform_2(%arg0: i32) -> (i32, i32) {
    %c0_i32 = arith.constant 0 : i32
    %c0_i32_0 = arith.constant 0 : i32
    %c0_i32_1 = arith.constant 0 : i32
    return %c0_i32, %c0_i32_0 : i32, i32
  }
  func.func @transform_3(%arg0: i32) -> (i32, i32) {
    %c0_i32 = arith.constant 0 : i32
    %c0_i32_0 = arith.constant 0 : i32
    %c0_i32_1 = arith.constant 0 : i32
    return %c0_i32, %c0_i32_0 : i32, i32
  }
  func.func @transform_4(%arg0: i32) -> (i32, i32) {
    %c0_i32 = arith.constant 0 : i32
    %c0_i32_0 = arith.constant 0 : i32
    %c0_i32_1 = arith.constant 0 : i32
    return %c0_i32, %c0_i32_0 : i32, i32
  }
  func.func @transform_5(%arg0: i32) -> (i32, i32) {
    %c0_i32 = arith.constant 0 : i32
    %c0_i32_0 = arith.constant 0 : i32
    %c0_i32_1 = arith.constant 0 : i32
    return %c0_i32, %c0_i32_0 : i32, i32
  }
  func.func @transform_6(%arg0: i32) -> (i32, i32) {
    %c0_i32 = arith.constant 0 : i32
    %c0_i32_0 = arith.constant 0 : i32
    %c0_i32_1 = arith.constant 0 : i32
    return %c0_i32, %c0_i32_0 : i32, i32
  }
  func.func @transform_7(%arg0: i32) -> (i32, i32) {
    %c0_i32 = arith.constant 0 : i32
    %c0_i32_0 = arith.constant 0 : i32
    %c0_i32_1 = arith.constant 0 : i32
    return %c0_i32, %c0_i32_0 : i32, i32
  }
  func.func @transform_8(%arg0: i32) -> (i32, i32) {
    %c0_i32 = arith.constant 0 : i32
    %c0_i32_0 = arith.constant 0 : i32
    %c0_i32_1 = arith.constant 0 : i32
    return %c0_i32, %c0_i32_0 : i32, i32
  }
  func.func @transform_9(%arg0: i32) -> (i32, i32, i32) {
    %c0_i32 = arith.constant 0 : i32
    %c0_i32_0 = arith.constant 0 : i32
    %c0_i32_1 = arith.constant 0 : i32
    return %arg0, %c0_i32, %c0_i32_0 : i32, i32, i32
  }
  func.func @transform_10(%arg0: i32) -> (i32, i32, i32, i32) {
    %c0_i32 = arith.constant 0 : i32
    %c0_i32_0 = arith.constant 0 : i32
    %c0_i32_1 = arith.constant 0 : i32
    %c0_i32_2 = arith.constant 0 : i32
    return %arg0, %c0_i32, %c0_i32_0, %c0_i32_1 : i32, i32, i32, i32
  }
}

</mosaic_0001>

<llo_original>
// kernel: tpu_custom_call.1
$region0: #{tpu_custom_call.1}
  #allocation0 [shape = 'u32[]', space=smem, size = 0x4, offset = 0x4, fixed_abs, tag = 'smem constant byte address 0x4 - core index']
  #allocation1 [shape = 'u32[144,128]{1,0:T(1,128)}', space=vmem, size = 0x12000, scoped, tag = 'internal scratch']
  #allocation2 [shape = 'f32[2,8,32]{2,1,0:T(8,128)}', space=vmem, size = 0x2000, scoped, tag = 'scratch operand']
  %s0 = inlined_call_operand.vmem [shape: f32[2,1,32], index: 0, kind: input, shape index: {}]
  %s1 = inlined_call_operand.vmem [shape: f32[2,7,32], index: 1, kind: input, shape index: {}]
  %s2 = inlined_call_operand.vmem [shape: f32[8,32], index: 2, kind: input, shape index: {}]
  %s3 = inlined_call_operand.vmem [shape: f32[32,96], index: 3, kind: input, shape index: {}]
  %s4 = inlined_call_operand.vmem [shape: f32[1,96], index: 4, kind: input, shape index: {}]
  %s5 = inlined_call_operand.vmem [shape: f32[32,32], index: 5, kind: input, shape index: {}]
  %s6 = inlined_call_operand.vmem [shape: f32[32,64], index: 6, kind: input, shape index: {}]
  %s7 = inlined_call_operand.vmem [shape: f32[1,64], index: 7, kind: input, shape index: {}]
  %s8 = inlined_call_operand.vmem [shape: f32[64,32], index: 8, kind: input, shape index: {}]
  %s9 = inlined_call_operand.hbm [shape: f32[2,8,32], index: 9, kind: output, shape index: {0}]
  %s10 = inlined_call_operand.hbm [shape: f32[2,4,8,8], index: 10, kind: output, shape index: {1}]
  %11 = xla_tuple %s9, %s10
  %s12 = sld [smem:[#allocation0]]
  $region54: #{tpu_custom_call.1} parent=0
    _
  %s14 = ssub.s32 1, %s12
  %s15 = scalar_select 0, %s14, %s12
  $region1: #{tpu_custom_call.1} parent=0
    #allocation3 [shape = 'u8[8192]{0}', space=vmem, size = 0x2000, scoped, tag = 'output window, operand 0, single buffered']
    #allocation4 [shape = 's32[1]{0}', space=sflag, size = 0x4, scoped, tag = 'scoped memory for tpu_custom_call.1']
    #allocation5 [shape = 'u8[32768]{0}', space=vmem, size = 0x8000, scoped, tag = 'output window, operand 1, single buffered']
    #allocation6 [shape = 's32[1]{0}', space=sflag, size = 0x4, scoped, tag = 'scoped memory for tpu_custom_call.1']
    %16 = vsyncpa [#allocation4], 0
    %17 = vsyncpa [#allocation6], 0
    // Predicated region
    $region2: #{tpu_custom_call.1} parent=1 // pred_check
      _
    $region3: #{tpu_custom_call.1} parent=1 // pred_check_branch
      %19 = sbr.rel (0) target = $region5
    $region4: #{tpu_custom_call.1} parent=1 // pred_region
      _
    $region5: #{tpu_custom_call.1} parent=1 // pred_fallthru
      _
    // Predicated region
    $region6: #{tpu_custom_call.1} parent=1 // pred_check
      _
    $region7: #{tpu_custom_call.1} parent=1 // pred_check_branch
      %21 = sbr.rel (0) target = $region9
    $region8: #{tpu_custom_call.1} parent=1 // pred_region
      _
    $region9: #{tpu_custom_call.1} parent=1 // pred_fallthru
      _
    // Predicated region
    $region10: #{tpu_custom_call.1} parent=1 // pred_check
      _
    $region11: #{tpu_custom_call.1} parent=1 // pred_check_branch
      %23 = sbr.rel (0) target = $region13
    $region12: #{tpu_custom_call.1} parent=1 // pred_region
      _
    $region13: #{tpu_custom_call.1} parent=1 // pred_fallthru
      _
    // Predicated region
    $region14: #{tpu_custom_call.1} parent=1 // pred_check
      _
    $region15: #{tpu_custom_call.1} parent=1 // pred_check_branch
      %25 = sbr.rel (0) target = $region17
    $region16: #{tpu_custom_call.1} parent=1 // pred_region
      _
    $region17: #{tpu_custom_call.1} parent=1 // pred_fallthru
      _
    // Predicated region
    $region18: #{tpu_custom_call.1} parent=1 // pred_check
      _
    $region19: #{tpu_custom_call.1} parent=1 // pred_check_branch
      %27 = sbr.rel (0) target = $region21
    $region20: #{tpu_custom_call.1} parent=1 // pred_region
      _
    $region21: #{tpu_custom_call.1} parent=1 // pred_fallthru
      _
    // Predicated region
    $region22: #{tpu_custom_call.1} parent=1 // pred_check
      _
    $region23: #{tpu_custom_call.1} parent=1 // pred_check_branch
      %29 = sbr.rel (0) target = $region25
    $region24: #{tpu_custom_call.1} parent=1 // pred_region
      _
    $region25: #{tpu_custom_call.1} parent=1 // pred_fallthru
      _
    // Predicated region
    $region26: #{tpu_custom_call.1} parent=1 // pred_check
      _
    $region27: #{tpu_custom_call.1} parent=1 // pred_check_branch
      %31 = sbr.rel (0) target = $region29
    $region28: #{tpu_custom_call.1} parent=1 // pred_region
      _
    $region29: #{tpu_custom_call.1} parent=1 // pred_fallthru
      _
    // Predicated region
    $region30: #{tpu_custom_call.1} parent=1 // pred_check
      _
    $region31: #{tpu_custom_call.1} parent=1 // pred_check_branch
      %33 = sbr.rel (0) target = $region33
    $region32: #{tpu_custom_call.1} parent=1 // pred_region
      _
    $region33: #{tpu_custom_call.1} parent=1 // pred_fallthru
      _
    // Predicated region
    $region34: #{tpu_custom_call.1} parent=1 // pred_check
      _
    $region35: #{tpu_custom_call.1} parent=1 // pred_check_branch
      %35 = sbr.rel (0) target = $region37
    $region36: #{tpu_custom_call.1} parent=1 // pred_region
      _
    $region37: #{tpu_custom_call.1} parent=1 // pred_fallthru
      _
    %v36 = vld [vmem:[%s2] sm:$0x1]
    %v37 = vld [vmem:[%s2 + $0x1] sm:$0x1]
    %v38 = vld [vmem:[%s2 + $0x2] sm:$0x1]
    %v39 = vld [vmem:[%s2 + $0x3] sm:$0x1]
    %v40 = vld [vmem:[%s2 + $0x4] sm:$0x1]
    %v41 = vld [vmem:[%s2 + $0x5] sm:$0x1]
    %v42 = vld [vmem:[%s2 + $0x6] sm:$0x1]
    %v43 = vld [vmem:[%s2 + $0x7] sm:$0x1]
    %v44 = vld [vmem:[%s0] sm:$0x1]
    %v45 = vld [vmem:[%s0 + $0x1] sm:$0x1]
    %vm46 = vcmask 253952
    %47 = vst.msk [vmem:[#allocation2] sm:$0x1] %vm46, %v44
    %48 = vst.msk [vmem:[#allocation2 + $0x8] sm:$0x1] %vm46, %v45
    %v49 = vld [vmem:[%s1] sm:$0x7f]
    %v50 = vld [vmem:[%s1 + $0x8] sm:$0x7f]
    %vm51 = vcmask 260096
    %52 = vst.msk [vmem:[#allocation2 + $0x1] sm:$0x7f] %vm51, %v49
    %53 = vst.msk [vmem:[#allocation2 + $0x9] sm:$0x7f] %vm51, %v50
    %v54 = vld [vmem:[#allocation2] sm:$0xff]
    %v55 = vld [vmem:[#allocation2 + $0x8] sm:$0xff]
    %vm56 = vcmask 261120
    %v57 = vsel %vm56, %v54, 0.0
    %58 = vadd.xlane.f32.xlu0 %v57
    %v59 = vpop.xlane.xlu0 %58
    %v60 = vsel %vm56, %v55, 0.0
    %61 = vadd.xlane.f32.xlu0 %v60
    %v62 = vpop.xlane.xlu0 %61
    %v63 = vrcp.pop 32.0
    %v64 = vmul.f32 %v59, %v63
    %v65 = vmul.f32 %v62, %v63
    %v66 = vsub.f32 %v54, %v64
    %v67 = vsub.f32 %v55, %v65
    %v68 = vmul.f32 %v66, %v66
    %v69 = vmul.f32 %v67, %v67
    %v70 = vsel %vm56, %v68, 0.0
    %71 = vadd.xlane.f32.xlu0 %v70
    %v72 = vpop.xlane.xlu0 %71
    %v73 = vsel %vm56, %v69, 0.0
    %74 = vadd.xlane.f32.xlu0 %v73
    %v75 = vpop.xlane.xlu0 %74
    %v76 = vmul.f32 %v72, %v63
    %v77 = vmul.f32 %v75, %v63
    %v78 = vadd.f32 %v76, 1e-06
    %v79 = vadd.f32 %v77, 1e-06
    %v80 = vrsqrt.pop %v78
    %v81 = vrsqrt.pop %v79
    %v82 = vmul.f32 %v66, %v80
    %v83 = vmul.f32 %v67, %v81
    %v84 = vlaneseq
    %v85 = vshrl.u32 %v84, 7
    %v86 = vsub.s32 0, %v85
    %v87 = vrot.slane %v36, %v86
    %v88 = vmul.f32 %v82, %v87
    %v89 = vmul.f32 %v83, %v87
    %v90 = vlaneseq
    %v91 = vshrl.u32 %v90, 7
    %v92 = vsub.s32 0, %v91
    %v93 = vrot.slane %v37, %v92
    %v94 = vadd.f32 %v88, %v93
    %v95 = vadd.f32 %v89, %v93
    %v96 = vld [vmem:[%s3] sm:$0xff]
    %v97 = vld [vmem:[%s3 + $0x8] sm:$0xff]
    %v98 = vld [vmem:[%s3 + $0x10] sm:$0xff]
    %v99 = vld [vmem:[%s3 + $0x18] sm:$0xff]
    %v100 = vld [vmem:[%s4] sm:$0x1]
    %v102 = vlaneseq
    %v103 = vshrl.u32 %v102, 7
    %v104 = vsub.s32 0, %v103
    %v105 = vrot.slane %v100, %v104
    %v108 = vsel %vm56, %v94, 0
    %v111 = vsel %vm56, %v95, 0
    %113 = vmatprep.subr.mxu0 0.0
    %114 = vmatpush1.msra.mxu0 %v96
    %115 = vmatprep.subr.mxu0 0.0
    %116 = vmatpush1.msra.mxu0 %v97
    %117 = vmatprep.subr.mxu0 0.0
    %118 = vmatpush1.msra.mxu0 %v98
    %119 = vmatprep.subr.mxu0 0.0
    %120 = vmatpush1.msra.mxu0 %v99
    %121 = vmatprep.subr.mxu0 0.0
    %122 = vmatpush1.msra.mxu0 0.0
    %123 = vmatprep.subr.mxu0 0.0
    %124 = vmatpush1.msra.mxu0 0.0
    %125 = vmatprep.subr.mxu0 0.0
    %126 = vmatpush1.msra.mxu0 0.0
    %127 = vmatprep.subr.mxu0 0.0
    %128 = vmatpush1.msra.mxu0 0.0
    %129 = vmatprep.subr.mxu0 0.0
    %130 = vmatpush1.msra.mxu0 0.0
    %131 = vmatprep.subr.mxu0 0.0
    %132 = vmatpush1.msra.mxu0 0.0
    %133 = vmatprep.subr.mxu0 0.0
    %134 = vmatpush1.msra.mxu0 0.0
    %135 = vmatprep.subr.mxu0 0.0
    %136 = vmatpush1.msra.mxu0 0.0
    %137 = vmatprep.subr.mxu0 0.0
    %138 = vmatpush1.msra.mxu0 0.0
    %139 = vmatprep.subr.mxu0 0.0
    %140 = vmatpush1.msra.mxu0 0.0
    %141 = vmatprep.subr.mxu0 0.0
    %142 = vmatpush1.msra.mxu0 0.0
    %143 = vmatprep.subr.mxu0 0.0
    %144 = vmatpush1.msra.mxu0 0.0
    %145 = vmatprep.subr.mxu0 0.0
    %146 = vmatpush1.msra.mxu0 0.0
    %147 = vmatprep.subr.mxu0 0.0
    %148 = vmatpush1.msra.mxu0 0.0
    %149 = vmatprep.subr.mxu0 0.0
    %150 = vmatpush1.msra.mxu0 0.0
    %151 = vmatprep.subr.mxu0 0.0
    %152 = vmatpush1.msra.mxu0 0.0
    %153 = vmatprep.subr.mxu0 0.0
    %154 = vmatpush1.msra.mxu0 0.0
    %155 = vmatprep.subr.mxu0 0.0
    %156 = vmatpush1.msra.mxu0 0.0
    %157 = vmatprep.subr.mxu0 0.0
    %158 = vmatpush1.msra.mxu0 0.0
    %159 = vmatprep.subr.mxu0 0.0
    %160 = vmatpush1.msra.mxu0 0.0
    %161 = vmatprep.subr.mxu0 0.0
    %162 = vmatpush1.msra.mxu0 0.0
    %163 = vmatprep.subr.mxu0 0.0
    %164 = vmatpush1.msra.mxu0 0.0
    %165 = vmatprep.subr.mxu0 0.0
    %166 = vmatpush1.msra.mxu0 0.0
    %167 = vmatprep.subr.mxu0 0.0
    %168 = vmatpush1.msra.mxu0 0.0
    %169 = vmatprep.subr.mxu0 0.0
    %170 = vmatpush1.msra.mxu0 0.0
    %171 = vmatprep.subr.mxu0 0.0
    %172 = vmatpush1.msra.mxu0 0.0
    %173 = vmatprep.subr.mxu0 0.0
    %174 = vmatpush1.msra.mxu0 0.0
    %175 = vmatprep.subr.mxu0 0.0
    %176 = vmatpush1.msra.mxu0 0.0
    %177 = vmatprep.mubr.f32.mxu0 0.0
    %178 = vmatmul.mubr.f32.gmra.mrb[0].mxu0 %v108
    %v179 = vpop.f32.mrb[0].mxu0
    %v180 = vadd.f32 %v105, %v179
    %v181 = vpop.f32.mrb[0].mxu0
    %182 = vmatprep.mubr.f32.mxu0 0.0
    %183 = vmatmul.mubr.f32.gmra.mrb[0].mxu0 %v111
    %v184 = vpop.f32.mrb[0].mxu0
    %v185 = vadd.f32 %v105, %v184
    %v186 = vpop.f32.mrb[0].mxu0
    %187 = vdwg.mxu0
    %v188 = vmul.f32 %v180, 0.35355338
    %v189 = vmul.f32 %v185, 0.35355338
    %192 = vrot.lane.b32.xlu0 %v188, 120
    %v193 = vpop.permute.xlu0 %192
    %194 = vrot.lane.b32.xlu0 %v189, 120
    %v195 = vpop.permute.xlu0 %194
    %198 = vrot.lane.b32.xlu0 %v188, 112
    %v199 = vpop.permute.xlu0 %198
    %200 = vrot.lane.b32.xlu0 %v189, 112
    %v201 = vpop.permute.xlu0 %200
    %204 = vrot.lane.b32.xlu0 %v188, 104
    %v205 = vpop.permute.xlu0 %204
    %206 = vrot.lane.b32.xlu0 %v189, 104
    %v207 = vpop.permute.xlu0 %206
    %v210 = vcombine.low %v188, %v199
    %v211 = vcombine.high %v188, %v199
    %v213 = vunpack.c.l.s4 1983009808
    %v214 = vunpack.c.0.s8 %v213
    %v215 = vlaneseq
    %v216 = vshrl.u32 %v215, 7
    %v217 = vsub.s32 %v214, %v216
    %v218 = vrot.slane %v210, %v217
    %v220 = vunpack.c.l.s4 1983009808
    %v221 = vunpack.c.0.s8 %v220
    %v222 = vlaneseq
    %v223 = vshrl.u32 %v222, 7
    %v224 = vsub.s32 %v221, %v223
    %v225 = vrot.slane %v211, %v224
    %v226 = vcombine.low %v193, %v205
    %v227 = vcombine.high %v193, %v205
    %v229 = vunpack.c.l.s4 1983009808
    %v230 = vunpack.c.0.s8 %v229
    %v231 = vlaneseq
    %v232 = vshrl.u32 %v231, 7
    %v233 = vsub.s32 %v230, %v232
    %v234 = vrot.slane %v226, %v233
    %v236 = vunpack.c.l.s4 1983009808
    %v237 = vunpack.c.0.s8 %v236
    %v238 = vlaneseq
    %v239 = vshrl.u32 %v238, 7
    %v240 = vsub.s32 %v237, %v239
    %v241 = vrot.slane %v227, %v240
    %v242 = vcombine.low %v218, %v234
    %v243 = vcombine.high %v218, %v234
    %v245 = vunpack.c.l.s4 1934713408
    %v246 = vunpack.c.0.s8 %v245
    %v247 = vlaneseq
    %v248 = vshrl.u32 %v247, 7
    %v249 = vsub.s32 %v246, %v248
    %v250 = vrot.slane %v242, %v249
    %v252 = vunpack.c.l.s4 1934713408
    %v253 = vunpack.c.0.s8 %v252
    %v254 = vlaneseq
    %v255 = vshrl.u32 %v254, 7
    %v256 = vsub.s32 %v253, %v255
    %v257 = vrot.slane %v243, %v256
    %v258 = vcombine.low %v225, %v241
    %v259 = vcombine.high %v225, %v241
    %v261 = vunpack.c.l.s4 1934713408
    %v262 = vunpack.c.0.s8 %v261
    %v263 = vlaneseq
    %v264 = vshrl.u32 %v263, 7
    %v265 = vsub.s32 %v262, %v264
    %v266 = vrot.slane %v258, %v265
    %v268 = vunpack.c.l.s4 1934713408
    %v269 = vunpack.c.0.s8 %v268
    %v270 = vlaneseq
    %v271 = vshrl.u32 %v270, 7
    %v272 = vsub.s32 %v269, %v271
    %v273 = vrot.slane %v259, %v272
    %v274 = vcombine.high %v250, 0.0
    %v275 = vcombine.high %v257, 0.0
    %v276 = vcombine.high %v266, 0.0
    %v277 = vcombine.high %v273, 0.0
    %v278 = vcombine.low %v189, %v201
    %v279 = vcombine.high %v189, %v201
    %v281 = vunpack.c.l.s4 1983009808
    %v282 = vunpack.c.0.s8 %v281
    %v283 = vlaneseq
    %v284 = vshrl.u32 %v283, 7
    %v285 = vsub.s32 %v282, %v284
    %v286 = vrot.slane %v278, %v285
    %v288 = vunpack.c.l.s4 1983009808
    %v289 = vunpack.c.0.s8 %v288
    %v290 = vlaneseq
    %v291 = vshrl.u32 %v290, 7
    %v292 = vsub.s32 %v289, %v291
    %v293 = vrot.slane %v279, %v292
    %v294 = vcombine.low %v195, %v207
    %v295 = vcombine.high %v195, %v207
    %v297 = vunpack.c.l.s4 1983009808
    %v298 = vunpack.c.0.s8 %v297
    %v299 = vlaneseq
    %v300 = vshrl.u32 %v299, 7
    %v301 = vsub.s32 %v298, %v300
    %v302 = vrot.slane %v294, %v301
    %v304 = vunpack.c.l.s4 1983009808
    %v305 = vunpack.c.0.s8 %v304
    %v306 = vlaneseq
    %v307 = vshrl.u32 %v306, 7
    %v308 = vsub.s32 %v305, %v307
    %v309 = vrot.slane %v295, %v308
    %v310 = vcombine.low %v286, %v302
    %v311 = vcombine.high %v286, %v302
    %v313 = vunpack.c.l.s4 1934713408
    %v314 = vunpack.c.0.s8 %v313
    %v315 = vlaneseq
    %v316 = vshrl.u32 %v315, 7
    %v317 = vsub.s32 %v314, %v316
    %v318 = vrot.slane %v310, %v317
    %v320 = vunpack.c.l.s4 1934713408
    %v321 = vunpack.c.0.s8 %v320
    %v322 = vlaneseq
    %v323 = vshrl.u32 %v322, 7
    %v324 = vsub.s32 %v321, %v323
    %v325 = vrot.slane %v311, %v324
    %v326 = vcombine.low %v293, %v309
    %v327 = vcombine.high %v293, %v309
    %v329 = vunpack.c.l.s4 1934713408
    %v330 = vunpack.c.0.s8 %v329
    %v331 = vlaneseq
    %v332 = vshrl.u32 %v331, 7
    %v333 = vsub.s32 %v330, %v332
    %v334 = vrot.slane %v326, %v333
    %v336 = vunpack.c.l.s4 1934713408
    %v337 = vunpack.c.0.s8 %v336
    %v338 = vlaneseq
    %v339 = vshrl.u32 %v338, 7
    %v340 = vsub.s32 %v337, %v339
    %v341 = vrot.slane %v327, %v340
    %v342 = vcombine.high %v318, 0.0
    %v343 = vcombine.high %v325, 0.0
    %v344 = vcombine.high %v334, 0.0
    %v345 = vcombine.high %v341, 0.0
    %v346 = vcombine.low %v250, %v257
    %v348 = vunpack.c.l.s4 1983009808
    %v349 = vunpack.c.0.s8 %v348
    %v350 = vlaneseq
    %v351 = vshrl.u32 %v350, 7
    %v352 = vsub.s32 %v349, %v351
    %v353 = vrot.slane %v346, %v352
    %v354 = vcombine.low %v274, %v275
    %v356 = vunpack.c.l.s4 1983009808
    %v357 = vunpack.c.0.s8 %v356
    %v358 = vlaneseq
    %v359 = vshrl.u32 %v358, 7
    %v360 = vsub.s32 %v357, %v359
    %v361 = vrot.slane %v354, %v360
    %v362 = vcombine.low %v266, %v273
    %v364 = vunpack.c.l.s4 1983009808
    %v365 = vunpack.c.0.s8 %v364
    %v366 = vlaneseq
    %v367 = vshrl.u32 %v366, 7
    %v368 = vsub.s32 %v365, %v367
    %v369 = vrot.slane %v362, %v368
    %v370 = vcombine.low %v276, %v277
    %v372 = vunpack.c.l.s4 1983009808
    %v373 = vunpack.c.0.s8 %v372
    %v374 = vlaneseq
    %v375 = vshrl.u32 %v374, 7
    %v376 = vsub.s32 %v373, %v375
    %v377 = vrot.slane %v370, %v376
    %v378 = vcombine.low %v353, %v361
    %v379 = vcombine.high %v353, %v361
    %v381 = vunpack.c.l.s4 1934713408
    %v382 = vunpack.c.0.s8 %v381
    %v383 = vlaneseq
    %v384 = vshrl.u32 %v383, 7
    %v385 = vsub.s32 %v382, %v384
    %v386 = vrot.slane %v378, %v385
    %v388 = vunpack.c.l.s4 1934713408
    %v389 = vunpack.c.0.s8 %v388
    %v390 = vlaneseq
    %v391 = vshrl.u32 %v390, 7
    %v392 = vsub.s32 %v389, %v391
    %v393 = vrot.slane %v379, %v392
    %v394 = vcombine.low %v369, %v377
    %v395 = vcombine.high %v369, %v377
    %v397 = vunpack.c.l.s4 1934713408
    %v398 = vunpack.c.0.s8 %v397
    %v399 = vlaneseq
    %v400 = vshrl.u32 %v399, 7
    %v401 = vsub.s32 %v398, %v400
    %v402 = vrot.slane %v394, %v401
    %v404 = vunpack.c.l.s4 1934713408
    %v405 = vunpack.c.0.s8 %v404
    %v406 = vlaneseq
    %v407 = vshrl.u32 %v406, 7
    %v408 = vsub.s32 %v405, %v407
    %v409 = vrot.slane %v395, %v408
    %v410 = vcombine.low %v386, %v402
    %v411 = vcombine.high %v386, %v402
    %v412 = vcombine.low %v393, %v409
    %v413 = vcombine.high %v393, %v409
    %v414 = vcombine.low %v318, %v325
    %v416 = vunpack.c.l.s4 1983009808
    %v417 = vunpack.c.0.s8 %v416
    %v418 = vlaneseq
    %v419 = vshrl.u32 %v418, 7
    %v420 = vsub.s32 %v417, %v419
    %v421 = vrot.slane %v414, %v420
    %v422 = vcombine.low %v342, %v343
    %v424 = vunpack.c.l.s4 1983009808
    %v425 = vunpack.c.0.s8 %v424
    %v426 = vlaneseq
    %v427 = vshrl.u32 %v426, 7
    %v428 = vsub.s32 %v425, %v427
    %v429 = vrot.slane %v422, %v428
    %v430 = vcombine.low %v334, %v341
    %v432 = vunpack.c.l.s4 1983009808
    %v433 = vunpack.c.0.s8 %v432
    %v434 = vlaneseq
    %v435 = vshrl.u32 %v434, 7
    %v436 = vsub.s32 %v433, %v435
    %v437 = vrot.slane %v430, %v436
    %v438 = vcombine.low %v344, %v345
    %v440 = vunpack.c.l.s4 1983009808
    %v441 = vunpack.c.0.s8 %v440
    %v442 = vlaneseq
    %v443 = vshrl.u32 %v442, 7
    %v444 = vsub.s32 %v441, %v443
    %v445 = vrot.slane %v438, %v444
    %v446 = vcombine.low %v421, %v429
    %v447 = vcombine.high %v421, %v429
    %v449 = vunpack.c.l.s4 1934713408
    %v450 = vunpack.c.0.s8 %v449
    %v451 = vlaneseq
    %v452 = vshrl.u32 %v451, 7
    %v453 = vsub.s32 %v450, %v452
    %v454 = vrot.slane %v446, %v453
    %v456 = vunpack.c.l.s4 1934713408
    %v457 = vunpack.c.0.s8 %v456
    %v458 = vlaneseq
    %v459 = vshrl.u32 %v458, 7
    %v460 = vsub.s32 %v457, %v459
    %v461 = vrot.slane %v447, %v460
    %v462 = vcombine.low %v437, %v445
    %v463 = vcombine.high %v437, %v445
    %v465 = vunpack.c.l.s4 1934713408
    %v466 = vunpack.c.0.s8 %v465
    %v467 = vlaneseq
    %v468 = vshrl.u32 %v467, 7
    %v469 = vsub.s32 %v466, %v468
    %v470 = vrot.slane %v462, %v469
    %v472 = vunpack.c.l.s4 1934713408
    %v473 = vunpack.c.0.s8 %v472
    %v474 = vlaneseq
    %v475 = vshrl.u32 %v474, 7
    %v476 = vsub.s32 %v473, %v475
    %v477 = vrot.slane %v463, %v476
    %v478 = vcombine.low %v454, %v470
    %v479 = vcombine.high %v454, %v470
    %v480 = vcombine.low %v461, %v477
    %v481 = vcombine.high %v461, %v477
    %484 = vrot.lane.b32.xlu0 %v180, 120
    %v485 = vpop.permute.xlu0 %484
    %486 = vrot.lane.b32.xlu0 %v185, 120
    %v487 = vpop.permute.xlu0 %486
    %488 = vrot.lane.b32.xlu0 %v180, 112
    %v489 = vpop.permute.xlu0 %488
    %490 = vrot.lane.b32.xlu0 %v185, 112
    %v491 = vpop.permute.xlu0 %490
    %492 = vrot.lane.b32.xlu0 %v180, 104
    %v493 = vpop.permute.xlu0 %492
    %494 = vrot.lane.b32.xlu0 %v185, 104
    %v495 = vpop.permute.xlu0 %494
    %496 = vrot.lane.b32.xlu0 %v180, 96
    %v497 = vpop.permute.xlu0 %496
    %498 = vrot.lane.b32.xlu0 %v185, 96
    %v499 = vpop.permute.xlu0 %498
    %500 = vrot.lane.b32.xlu0 %v485, 96
    %v501 = vpop.permute.xlu0 %500
    %502 = vrot.lane.b32.xlu0 %v487, 96
    %v503 = vpop.permute.xlu0 %502
    %504 = vrot.lane.b32.xlu0 %v489, 96
    %v505 = vpop.permute.xlu0 %504
    %506 = vrot.lane.b32.xlu0 %v491, 96
    %v507 = vpop.permute.xlu0 %506
    %508 = vrot.lane.b32.xlu0 %v493, 96
    %v509 = vpop.permute.xlu0 %508
    %510 = vrot.lane.b32.xlu0 %v495, 96
    %v511 = vpop.permute.xlu0 %510
    %v520 = vcombine.low %v497, %v505
    %v521 = vcombine.high %v497, %v505
    %v523 = vunpack.c.l.s4 1983009808
    %v524 = vunpack.c.0.s8 %v523
    %v525 = vlaneseq
    %v526 = vshrl.u32 %v525, 7
    %v527 = vsub.s32 %v524, %v526
    %v528 = vrot.slane %v520, %v527
    %v530 = vunpack.c.l.s4 1983009808
    %v531 = vunpack.c.0.s8 %v530
    %v532 = vlaneseq
    %v533 = vshrl.u32 %v532, 7
    %v534 = vsub.s32 %v531, %v533
    %v535 = vrot.slane %v521, %v534
    %v536 = vcombine.low %v501, %v509
    %v537 = vcombine.high %v501, %v509
    %v539 = vunpack.c.l.s4 1983009808
    %v540 = vunpack.c.0.s8 %v539
    %v541 = vlaneseq
    %v542 = vshrl.u32 %v541, 7
    %v543 = vsub.s32 %v540, %v542
    %v544 = vrot.slane %v536, %v543
    %v546 = vunpack.c.l.s4 1983009808
    %v547 = vunpack.c.0.s8 %v546
    %v548 = vlaneseq
    %v549 = vshrl.u32 %v548, 7
    %v550 = vsub.s32 %v547, %v549
    %v551 = vrot.slane %v537, %v550
    %v552 = vcombine.low %v528, %v544
    %v553 = vcombine.high %v528, %v544
    %v555 = vunpack.c.l.s4 1934713408
    %v556 = vunpack.c.0.s8 %v555
    %v557 = vlaneseq
    %v558 = vshrl.u32 %v557, 7
    %v559 = vsub.s32 %v556, %v558
    %v560 = vrot.slane %v552, %v559
    %v562 = vunpack.c.l.s4 1934713408
    %v563 = vunpack.c.0.s8 %v562
    %v564 = vlaneseq
    %v565 = vshrl.u32 %v564, 7
    %v566 = vsub.s32 %v563, %v565
    %v567 = vrot.slane %v553, %v566
    %v568 = vcombine.low %v535, %v551
    %v569 = vcombine.high %v535, %v551
    %v571 = vunpack.c.l.s4 1934713408
    %v572 = vunpack.c.0.s8 %v571
    %v573 = vlaneseq
    %v574 = vshrl.u32 %v573, 7
    %v575 = vsub.s32 %v572, %v574
    %v576 = vrot.slane %v568, %v575
    %v578 = vunpack.c.l.s4 1934713408
    %v579 = vunpack.c.0.s8 %v578
    %v580 = vlaneseq
    %v581 = vshrl.u32 %v580, 7
    %v582 = vsub.s32 %v579, %v581
    %v583 = vrot.slane %v569, %v582
    %v584 = vcombine.high %v560, 0.0
    %v585 = vcombine.high %v567, 0.0
    %v586 = vcombine.high %v576, 0.0
    %v587 = vcombine.high %v583, 0.0
    %v588 = vcombine.low %v499, %v507
    %v589 = vcombine.high %v499, %v507
    %v591 = vunpack.c.l.s4 1983009808
    %v592 = vunpack.c.0.s8 %v591
    %v593 = vlaneseq
    %v594 = vshrl.u32 %v593, 7
    %v595 = vsub.s32 %v592, %v594
    %v596 = vrot.slane %v588, %v595
    %v598 = vunpack.c.l.s4 1983009808
    %v599 = vunpack.c.0.s8 %v598
    %v600 = vlaneseq
    %v601 = vshrl.u32 %v600, 7
    %v602 = vsub.s32 %v599, %v601
    %v603 = vrot.slane %v589, %v602
    %v604 = vcombine.low %v503, %v511
    %v605 = vcombine.high %v503, %v511
    %v607 = vunpack.c.l.s4 1983009808
    %v608 = vunpack.c.0.s8 %v607
    %v609 = vlaneseq
    %v610 = vshrl.u32 %v609, 7
    %v611 = vsub.s32 %v608, %v610
    %v612 = vrot.slane %v604, %v611
    %v614 = vunpack.c.l.s4 1983009808
    %v615 = vunpack.c.0.s8 %v614
    %v616 = vlaneseq
    %v617 = vshrl.u32 %v616, 7
    %v618 = vsub.s32 %v615, %v617
    %v619 = vrot.slane %v605, %v618
    %v620 = vcombine.low %v596, %v612
    %v621 = vcombine.high %v596, %v612
    %v623 = vunpack.c.l.s4 1934713408
    %v624 = vunpack.c.0.s8 %v623
    %v625 = vlaneseq
    %v626 = vshrl.u32 %v625, 7
    %v627 = vsub.s32 %v624, %v626
    %v628 = vrot.slane %v620, %v627
    %v630 = vunpack.c.l.s4 1934713408
    %v631 = vunpack.c.0.s8 %v630
    %v632 = vlaneseq
    %v633 = vshrl.u32 %v632, 7
    %v634 = vsub.s32 %v631, %v633
    %v635 = vrot.slane %v621, %v634
    %v636 = vcombine.low %v603, %v619
    %v637 = vcombine.high %v603, %v619
    %v639 = vunpack.c.l.s4 1934713408
    %v640 = vunpack.c.0.s8 %v639
    %v641 = vlaneseq
    %v642 = vshrl.u32 %v641, 7
    %v643 = vsub.s32 %v640, %v642
    %v644 = vrot.slane %v636, %v643
    %v646 = vunpack.c.l.s4 1934713408
    %v647 = vunpack.c.0.s8 %v646
    %v648 = vlaneseq
    %v649 = vshrl.u32 %v648, 7
    %v650 = vsub.s32 %v647, %v649
    %v651 = vrot.slane %v637, %v650
    %v652 = vcombine.high %v628, 0.0
    %v653 = vcombine.high %v635, 0.0
    %v654 = vcombine.high %v644, 0.0
    %v655 = vcombine.high %v651, 0.0
    %v656 = vcombine.low %v560, %v567
    %v658 = vunpack.c.l.s4 1983009808
    %v659 = vunpack.c.0.s8 %v658
    %v660 = vlaneseq
    %v661 = vshrl.u32 %v660, 7
    %v662 = vsub.s32 %v659, %v661
    %v663 = vrot.slane %v656, %v662
    %v664 = vcombine.low %v584, %v585
    %v666 = vunpack.c.l.s4 1983009808
    %v667 = vunpack.c.0.s8 %v666
    %v668 = vlaneseq
    %v669 = vshrl.u32 %v668, 7
    %v670 = vsub.s32 %v667, %v669
    %v671 = vrot.slane %v664, %v670
    %v672 = vcombine.low %v576, %v583
    %v674 = vunpack.c.l.s4 1983009808
    %v675 = vunpack.c.0.s8 %v674
    %v676 = vlaneseq
    %v677 = vshrl.u32 %v676, 7
    %v678 = vsub.s32 %v675, %v677
    %v679 = vrot.slane %v672, %v678
    %v680 = vcombine.low %v586, %v587
    %v682 = vunpack.c.l.s4 1983009808
    %v683 = vunpack.c.0.s8 %v682
    %v684 = vlaneseq
    %v685 = vshrl.u32 %v684, 7
    %v686 = vsub.s32 %v683, %v685
    %v687 = vrot.slane %v680, %v686
    %v688 = vcombine.low %v663, %v671
    %v689 = vcombine.high %v663, %v671
    %v691 = vunpack.c.l.s4 1934713408
    %v692 = vunpack.c.0.s8 %v691
    %v693 = vlaneseq
    %v694 = vshrl.u32 %v693, 7
    %v695 = vsub.s32 %v692, %v694
    %v696 = vrot.slane %v688, %v695
    %v698 = vunpack.c.l.s4 1934713408
    %v699 = vunpack.c.0.s8 %v698
    %v700 = vlaneseq
    %v701 = vshrl.u32 %v700, 7
    %v702 = vsub.s32 %v699, %v701
    %v703 = vrot.slane %v689, %v702
    %v704 = vcombine.low %v679, %v687
    %v705 = vcombine.high %v679, %v687
    %v707 = vunpack.c.l.s4 1934713408
    %v708 = vunpack.c.0.s8 %v707
    %v709 = vlaneseq
    %v710 = vshrl.u32 %v709, 7
    %v711 = vsub.s32 %v708, %v710
    %v712 = vrot.slane %v704, %v711
    %v714 = vunpack.c.l.s4 1934713408
    %v715 = vunpack.c.0.s8 %v714
    %v716 = vlaneseq
    %v717 = vshrl.u32 %v716, 7
    %v718 = vsub.s32 %v715, %v717
    %v719 = vrot.slane %v705, %v718
    %v720 = vcombine.low %v696, %v712
    %v721 = vcombine.high %v696, %v712
    %v722 = vcombine.low %v703, %v719
    %v723 = vcombine.high %v703, %v719
    %v724 = vcombine.low %v628, %v635
    %v726 = vunpack.c.l.s4 1983009808
    %v727 = vunpack.c.0.s8 %v726
    %v728 = vlaneseq
    %v729 = vshrl.u32 %v728, 7
    %v730 = vsub.s32 %v727, %v729
    %v731 = vrot.slane %v724, %v730
    %v732 = vcombine.low %v652, %v653
    %v734 = vunpack.c.l.s4 1983009808
    %v735 = vunpack.c.0.s8 %v734
    %v736 = vlaneseq
    %v737 = vshrl.u32 %v736, 7
    %v738 = vsub.s32 %v735, %v737
    %v739 = vrot.slane %v732, %v738
    %v740 = vcombine.low %v644, %v651
    %v742 = vunpack.c.l.s4 1983009808
    %v743 = vunpack.c.0.s8 %v742
    %v744 = vlaneseq
    %v745 = vshrl.u32 %v744, 7
    %v746 = vsub.s32 %v743, %v745
    %v747 = vrot.slane %v740, %v746
    %v748 = vcombine.low %v654, %v655
    %v750 = vunpack.c.l.s4 1983009808
    %v751 = vunpack.c.0.s8 %v750
    %v752 = vlaneseq
    %v753 = vshrl.u32 %v752, 7
    %v754 = vsub.s32 %v751, %v753
    %v755 = vrot.slane %v748, %v754
    %v756 = vcombine.low %v731, %v739
    %v757 = vcombine.high %v731, %v739
    %v759 = vunpack.c.l.s4 1934713408
    %v760 = vunpack.c.0.s8 %v759
    %v761 = vlaneseq
    %v762 = vshrl.u32 %v761, 7
    %v763 = vsub.s32 %v760, %v762
    %v764 = vrot.slane %v756, %v763
    %v766 = vunpack.c.l.s4 1934713408
    %v767 = vunpack.c.0.s8 %v766
    %v768 = vlaneseq
    %v769 = vshrl.u32 %v768, 7
    %v770 = vsub.s32 %v767, %v769
    %v771 = vrot.slane %v757, %v770
    %v772 = vcombine.low %v747, %v755
    %v773 = vcombine.high %v747, %v755
    %v775 = vunpack.c.l.s4 1934713408
    %v776 = vunpack.c.0.s8 %v775
    %v777 = vlaneseq
    %v778 = vshrl.u32 %v777, 7
    %v779 = vsub.s32 %v776, %v778
    %v780 = vrot.slane %v772, %v779
    %v782 = vunpack.c.l.s4 1934713408
    %v783 = vunpack.c.0.s8 %v782
    %v784 = vlaneseq
    %v785 = vshrl.u32 %v784, 7
    %v786 = vsub.s32 %v783, %v785
    %v787 = vrot.slane %v773, %v786
    %v788 = vcombine.low %v764, %v780
    %v789 = vcombine.high %v764, %v780
    %v790 = vcombine.low %v771, %v787
    %v791 = vcombine.high %v771, %v787
    %792 = vrot.lane.b32.xlu0 %v180, 64
    %v793 = vpop.permute.xlu0 %792
    %794 = vrot.lane.b32.xlu0 %v185, 64
    %v795 = vpop.permute.xlu0 %794
    %796 = vrot.lane.b32.xlu0 %v485, 64
    %v797 = vpop.permute.xlu0 %796
    %798 = vrot.lane.b32.xlu0 %v487, 64
    %v799 = vpop.permute.xlu0 %798
    %800 = vrot.lane.b32.xlu0 %v489, 64
    %v801 = vpop.permute.xlu0 %800
    %802 = vrot.lane.b32.xlu0 %v491, 64
    %v803 = vpop.permute.xlu0 %802
    %804 = vrot.lane.b32.xlu0 %v493, 64
    %v805 = vpop.permute.xlu0 %804
    %806 = vrot.lane.b32.xlu0 %v495, 64
    %v807 = vpop.permute.xlu0 %806
    %v816 = vcombine.low %v793, %v801
    %v817 = vcombine.high %v793, %v801
    %v819 = vunpack.c.l.s4 1983009808
    %v820 = vunpack.c.0.s8 %v819
    %v821 = vlaneseq
    %v822 = vshrl.u32 %v821, 7
    %v823 = vsub.s32 %v820, %v822
    %v824 = vrot.slane %v816, %v823
    %v826 = vunpack.c.l.s4 1983009808
    %v827 = vunpack.c.0.s8 %v826
    %v828 = vlaneseq
    %v829 = vshrl.u32 %v828, 7
    %v830 = vsub.s32 %v827, %v829
    %v831 = vrot.slane %v817, %v830
    %v832 = vcombine.low %v797, %v805
    %v833 = vcombine.high %v797, %v805
    %v835 = vunpack.c.l.s4 1983009808
    %v836 = vunpack.c.0.s8 %v835
    %v837 = vlaneseq
    %v838 = vshrl.u32 %v837, 7
    %v839 = vsub.s32 %v836, %v838
    %v840 = vrot.slane %v832, %v839
    %v842 = vunpack.c.l.s4 1983009808
    %v843 = vunpack.c.0.s8 %v842
    %v844 = vlaneseq
    %v845 = vshrl.u32 %v844, 7
    %v846 = vsub.s32 %v843, %v845
    %v847 = vrot.slane %v833, %v846
    %v848 = vcombine.low %v824, %v840
    %v849 = vcombine.high %v824, %v840
    %v851 = vunpack.c.l.s4 1934713408
    %v852 = vunpack.c.0.s8 %v851
    %v853 = vlaneseq
    %v854 = vshrl.u32 %v853, 7
    %v855 = vsub.s32 %v852, %v854
    %v856 = vrot.slane %v848, %v855
    %v858 = vunpack.c.l.s4 1934713408
    %v859 = vunpack.c.0.s8 %v858
    %v860 = vlaneseq
    %v861 = vshrl.u32 %v860, 7
    %v862 = vsub.s32 %v859, %v861
    %v863 = vrot.slane %v849, %v862
    %v864 = vcombine.low %v831, %v847
    %v865 = vcombine.high %v831, %v847
    %v867 = vunpack.c.l.s4 1934713408
    %v868 = vunpack.c.0.s8 %v867
    %v869 = vlaneseq
    %v870 = vshrl.u32 %v869, 7
    %v871 = vsub.s32 %v868, %v870
    %v872 = vrot.slane %v864, %v871
    %v874 = vunpack.c.l.s4 1934713408
    %v875 = vunpack.c.0.s8 %v874
    %v876 = vlaneseq
    %v877 = vshrl.u32 %v876, 7
    %v878 = vsub.s32 %v875, %v877
    %v879 = vrot.slane %v865, %v878
    %v880 = vcombine.high %v856, 0.0
    %v881 = vcombine.high %v863, 0.0
    %v882 = vcombine.high %v872, 0.0
    %v883 = vcombine.high %v879, 0.0
    %v884 = vcombine.low %v795, %v803
    %v885 = vcombine.high %v795, %v803
    %v887 = vunpack.c.l.s4 1983009808
    %v888 = vunpack.c.0.s8 %v887
    %v889 = vlaneseq
    %v890 = vshrl.u32 %v889, 7
    %v891 = vsub.s32 %v888, %v890
    %v892 = vrot.slane %v884, %v891
    %v894 = vunpack.c.l.s4 1983009808
    %v895 = vunpack.c.0.s8 %v894
    %v896 = vlaneseq
    %v897 = vshrl.u32 %v896, 7
    %v898 = vsub.s32 %v895, %v897
    %v899 = vrot.slane %v885, %v898
    %v900 = vcombine.low %v799, %v807
    %v901 = vcombine.high %v799, %v807
    %v903 = vunpack.c.l.s4 1983009808
    %v904 = vunpack.c.0.s8 %v903
    %v905 = vlaneseq
    %v906 = vshrl.u32 %v905, 7
    %v907 = vsub.s32 %v904, %v906
    %v908 = vrot.slane %v900, %v907
    %v910 = vunpack.c.l.s4 1983009808
    %v911 = vunpack.c.0.s8 %v910
    %v912 = vlaneseq
    %v913 = vshrl.u32 %v912, 7
    %v914 = vsub.s32 %v911, %v913
    %v915 = vrot.slane %v901, %v914
    %v916 = vcombine.low %v892, %v908
    %v917 = vcombine.high %v892, %v908
    %v919 = vunpack.c.l.s4 1934713408
    %v920 = vunpack.c.0.s8 %v919
    %v921 = vlaneseq
    %v922 = vshrl.u32 %v921, 7
    %v923 = vsub.s32 %v920, %v922
    %v924 = vrot.slane %v916, %v923
    %v926 = vunpack.c.l.s4 1934713408
    %v927 = vunpack.c.0.s8 %v926
    %v928 = vlaneseq
    %v929 = vshrl.u32 %v928, 7
    %v930 = vsub.s32 %v927, %v929
    %v931 = vrot.slane %v917, %v930
    %v932 = vcombine.low %v899, %v915
    %v933 = vcombine.high %v899, %v915
    %v935 = vunpack.c.l.s4 1934713408
    %v936 = vunpack.c.0.s8 %v935
    %v937 = vlaneseq
    %v938 = vshrl.u32 %v937, 7
    %v939 = vsub.s32 %v936, %v938
    %v940 = vrot.slane %v932, %v939
    %v942 = vunpack.c.l.s4 1934713408
    %v943 = vunpack.c.0.s8 %v942
    %v944 = vlaneseq
    %v945 = vshrl.u32 %v944, 7
    %v946 = vsub.s32 %v943, %v945
    %v947 = vrot.slane %v933, %v946
    %v948 = vcombine.high %v924, 0.0
    %v949 = vcombine.high %v931, 0.0
    %v950 = vcombine.high %v940, 0.0
    %v951 = vcombine.high %v947, 0.0
    %v952 = vcombine.low %v856, %v863
    %v954 = vunpack.c.l.s4 1983009808
    %v955 = vunpack.c.0.s8 %v954
    %v956 = vlaneseq
    %v957 = vshrl.u32 %v956, 7
    %v958 = vsub.s32 %v955, %v957
    %v959 = vrot.slane %v952, %v958
    %v960 = vcombine.low %v880, %v881
    %v962 = vunpack.c.l.s4 1983009808
    %v963 = vunpack.c.0.s8 %v962
    %v964 = vlaneseq
    %v965 = vshrl.u32 %v964, 7
    %v966 = vsub.s32 %v963, %v965
    %v967 = vrot.slane %v960, %v966
    %v968 = vcombine.low %v872, %v879
    %v970 = vunpack.c.l.s4 1983009808
    %v971 = vunpack.c.0.s8 %v970
    %v972 = vlaneseq
    %v973 = vshrl.u32 %v972, 7
    %v974 = vsub.s32 %v971, %v973
    %v975 = vrot.slane %v968, %v974
    %v976 = vcombine.low %v882, %v883
    %v978 = vunpack.c.l.s4 1983009808
    %v979 = vunpack.c.0.s8 %v978
    %v980 = vlaneseq
    %v981 = vshrl.u32 %v980, 7
    %v982 = vsub.s32 %v979, %v981
    %v983 = vrot.slane %v976, %v982
    %v984 = vcombine.low %v959, %v967
    %v985 = vcombine.high %v959, %v967
    %v987 = vunpack.c.l.s4 1934713408
    %v988 = vunpack.c.0.s8 %v987
    %v989 = vlaneseq
    %v990 = vshrl.u32 %v989, 7
    %v991 = vsub.s32 %v988, %v990
    %v992 = vrot.slane %v984, %v991
    %v994 = vunpack.c.l.s4 1934713408
    %v995 = vunpack.c.0.s8 %v994
    %v996 = vlaneseq
    %v997 = vshrl.u32 %v996, 7
    %v998 = vsub.s32 %v995, %v997
    %v999 = vrot.slane %v985, %v998
    %v1000 = vcombine.low %v975, %v983
    %v1001 = vcombine.high %v975, %v983
    %v1003 = vunpack.c.l.s4 1934713408
    %v1004 = vunpack.c.0.s8 %v1003
    %v1005 = vlaneseq
    %v1006 = vshrl.u32 %v1005, 7
    %v1007 = vsub.s32 %v1004, %v1006
    %v1008 = vrot.slane %v1000, %v1007
    %v1010 = vunpack.c.l.s4 1934713408
    %v1011 = vunpack.c.0.s8 %v1010
    %v1012 = vlaneseq
    %v1013 = vshrl.u32 %v1012, 7
    %v1014 = vsub.s32 %v1011, %v1013
    %v1015 = vrot.slane %v1001, %v1014
    %v1016 = vcombine.low %v992, %v1008
    %v1017 = vcombine.high %v992, %v1008
    %v1018 = vcombine.low %v999, %v1015
    %v1019 = vcombine.high %v999, %v1015
    %v1020 = vcombine.low %v924, %v931
    %v1022 = vunpack.c.l.s4 1983009808
    %v1023 = vunpack.c.0.s8 %v1022
    %v1024 = vlaneseq
    %v1025 = vshrl.u32 %v1024, 7
    %v1026 = vsub.s32 %v1023, %v1025
    %v1027 = vrot.slane %v1020, %v1026
    %v1028 = vcombine.low %v948, %v949
    %v1030 = vunpack.c.l.s4 1983009808
    %v1031 = vunpack.c.0.s8 %v1030
    %v1032 = vlaneseq
    %v1033 = vshrl.u32 %v1032, 7
    %v1034 = vsub.s32 %v1031, %v1033
    %v1035 = vrot.slane %v1028, %v1034
    %v1036 = vcombine.low %v940, %v947
    %v1038 = vunpack.c.l.s4 1983009808
    %v1039 = vunpack.c.0.s8 %v1038
    %v1040 = vlaneseq
    %v1041 = vshrl.u32 %v1040, 7
    %v1042 = vsub.s32 %v1039, %v1041
    %v1043 = vrot.slane %v1036, %v1042
    %v1044 = vcombine.low %v950, %v951
    %v1046 = vunpack.c.l.s4 1983009808
    %v1047 = vunpack.c.0.s8 %v1046
    %v1048 = vlaneseq
    %v1049 = vshrl.u32 %v1048, 7
    %v1050 = vsub.s32 %v1047, %v1049
    %v1051 = vrot.slane %v1044, %v1050
    %v1052 = vcombine.low %v1027, %v1035
    %v1053 = vcombine.high %v1027, %v1035
    %v1055 = vunpack.c.l.s4 1934713408
    %v1056 = vunpack.c.0.s8 %v1055
    %v1057 = vlaneseq
    %v1058 = vshrl.u32 %v1057, 7
    %v1059 = vsub.s32 %v1056, %v1058
    %v1060 = vrot.slane %v1052, %v1059
    %v1062 = vunpack.c.l.s4 1934713408
    %v1063 = vunpack.c.0.s8 %v1062
    %v1064 = vlaneseq
    %v1065 = vshrl.u32 %v1064, 7
    %v1066 = vsub.s32 %v1063, %v1065
    %v1067 = vrot.slane %v1053, %v1066
    %v1068 = vcombine.low %v1043, %v1051
    %v1069 = vcombine.high %v1043, %v1051
    %v1071 = vunpack.c.l.s4 1934713408
    %v1072 = vunpack.c.0.s8 %v1071
    %v1073 = vlaneseq
    %v1074 = vshrl.u32 %v1073, 7
    %v1075 = vsub.s32 %v1072, %v1074
    %v1076 = vrot.slane %v1068, %v1075
    %v1078 = vunpack.c.l.s4 1934713408
    %v1079 = vunpack.c.0.s8 %v1078
    %v1080 = vlaneseq
    %v1081 = vshrl.u32 %v1080, 7
    %v1082 = vsub.s32 %v1079, %v1081
    %v1083 = vrot.slane %v1069, %v1082
    %v1084 = vcombine.low %v1060, %v1076
    %v1085 = vcombine.high %v1060, %v1076
    %v1086 = vcombine.low %v1067, %v1083
    %v1087 = vcombine.high %v1067, %v1083
    %vm1088 = vcmask 64512
    %v1090 = vsel %vm1088, %v410, 0
    %v1093 = vsel %vm1088, %v720, 0
    %1095 = vmatprep.subr.mxu0 0.0
    %1096 = vmatpush1.xpose.msra.mxu0 %v1093
    %1097 = vmatprep.subr.mxu0 0.0
    %1098 = vmatpush1.xpose.msra.mxu0 0.0
    %1099 = vmatprep.subr.mxu0 0.0
    %1100 = vmatpush1.xpose.msra.mxu0 0.0
    %1101 = vmatprep.subr.mxu0 0.0
    %1102 = vmatpush1.xpose.msra.mxu0 0.0
    %1103 = vmatprep.subr.mxu0 0.0
    %1104 = vmatpush1.xpose.msra.mxu0 0.0
    %1105 = vmatprep.subr.mxu0 0.0
    %1106 = vmatpush1.xpose.msra.mxu0 0.0
    %1107 = vmatprep.subr.mxu0 0.0
    %1108 = vmatpush1.xpose.msra.mxu0 0.0
    %1109 = vmatprep.subr.mxu0 0.0
    %1110 = vmatpush1.xpose.msra.mxu0 0.0
    %1111 = vmatprep.subr.mxu0 0.0
    %1112 = vmatpush1.xpose.msra.mxu0 0.0
    %1113 = vmatprep.subr.mxu0 0.0
    %1114 = vmatpush1.xpose.msra.mxu0 0.0
    %1115 = vmatprep.subr.mxu0 0.0
    %1116 = vmatpush1.xpose.msra.mxu0 0.0
    %1117 = vmatprep.subr.mxu0 0.0
    %1118 = vmatpush1.xpose.msra.mxu0 0.0
    %1119 = vmatprep.subr.mxu0 0.0
    %1120 = vmatpush1.xpose.msra.mxu0 0.0
    %1121 = vmatprep.subr.mxu0 0.0
    %1122 = vmatpush1.xpose.msra.mxu0 0.0
    %1123 = vmatprep.subr.mxu0 0.0
    %1124 = vmatpush1.xpose.msra.mxu0 0.0
    %1125 = vmatprep.subr.mxu0 0.0
    %1126 = vmatpush1.xpose.msra.mxu0 0.0
    %1127 = vmatprep.subr.mxu0 0.0
    %1128 = vmatpush1.xpose.msra.mxu0 0.0
    %1129 = vmatprep.subr.mxu0 0.0
    %1130 = vmatpush1.xpose.msra.mxu0 0.0
    %1131 = vmatprep.subr.mxu0 0.0
    %1132 = vmatpush1.xpose.msra.mxu0 0.0
    %1133 = vmatprep.subr.mxu0 0.0
    %1134 = vmatpush1.xpose.msra.mxu0 0.0
    %1135 = vmatprep.subr.mxu0 0.0
    %1136 = vmatpush1.xpose.msra.mxu0 0.0
    %1137 = vmatprep.subr.mxu0 0.0
    %1138 = vmatpush1.xpose.msra.mxu0 0.0
    %1139 = vmatprep.subr.mxu0 0.0
    %1140 = vmatpush1.xpose.msra.mxu0 0.0
    %1141 = vmatprep.subr.mxu0 0.0
    %1142 = vmatpush1.xpose.msra.mxu0 0.0
    %1143 = vmatprep.subr.mxu0 0.0
    %1144 = vmatpush1.xpose.msra.mxu0 0.0
    %1145 = vmatprep.subr.mxu0 0.0
    %1146 = vmatpush1.xpose.msra.mxu0 0.0
    %1147 = vmatprep.subr.mxu0 0.0
    %1148 = vmatpush1.xpose.msra.mxu0 0.0
    %1149 = vmatprep.subr.mxu0 0.0
    %1150 = vmatpush1.xpose.msra.mxu0 0.0
    %1151 = vmatprep.subr.mxu0 0.0
    %1152 = vmatpush1.xpose.msra.mxu0 0.0
    %1153 = vmatprep.subr.mxu0 0.0
    %1154 = vmatpush1.xpose.msra.mxu0 0.0
    %1155 = vmatprep.subr.mxu0 0.0
    %1156 = vmatpush1.xpose.msra.mxu0 0.0
    %1157 = vmatprep.subr.mxu0 0.0
    %1158 = vmatpush1.xpose.msra.mxu0 0.0
    %1159 = vmatprep.mubr.f32.mxu0 0.0
    %1160 = vmatmul.mubr.f32.gmra.mrb[0].mxu0 %v1090
    %v1161 = vpop.f32.mrb[0].mxu0
    %v1162 = vadd.f32 0.0, %v1161
    %v1163 = vpop.f32.mrb[0].mxu0
    %1164 = vdwg.mxu0
    %v1166 = vsel %vm1088, %v411, 0
    %v1169 = vsel %vm1088, %v721, 0
    %1171 = vmatprep.subr.mxu0 0.0
    %1172 = vmatpush1.xpose.msra.mxu0 %v1169
    %1173 = vmatprep.subr.mxu0 0.0
    %1174 = vmatpush1.xpose.msra.mxu0 0.0
    %1175 = vmatprep.subr.mxu0 0.0
    %1176 = vmatpush1.xpose.msra.mxu0 0.0
    %1177 = vmatprep.subr.mxu0 0.0
    %1178 = vmatpush1.xpose.msra.mxu0 0.0
    %1179 = vmatprep.subr.mxu0 0.0
    %1180 = vmatpush1.xpose.msra.mxu0 0.0
    %1181 = vmatprep.subr.mxu0 0.0
    %1182 = vmatpush1.xpose.msra.mxu0 0.0
    %1183 = vmatprep.subr.mxu0 0.0
    %1184 = vmatpush1.xpose.msra.mxu0 0.0
    %1185 = vmatprep.subr.mxu0 0.0
    %1186 = vmatpush1.xpose.msra.mxu0 0.0
    %1187 = vmatprep.subr.mxu0 0.0
    %1188 = vmatpush1.xpose.msra.mxu0 0.0
    %1189 = vmatprep.subr.mxu0 0.0
    %1190 = vmatpush1.xpose.msra.mxu0 0.0
    %1191 = vmatprep.subr.mxu0 0.0
    %1192 = vmatpush1.xpose.msra.mxu0 0.0
    %1193 = vmatprep.subr.mxu0 0.0
    %1194 = vmatpush1.xpose.msra.mxu0 0.0
    %1195 = vmatprep.subr.mxu0 0.0
    %1196 = vmatpush1.xpose.msra.mxu0 0.0
    %1197 = vmatprep.subr.mxu0 0.0
    %1198 = vmatpush1.xpose.msra.mxu0 0.0
    %1199 = vmatprep.subr.mxu0 0.0
    %1200 = vmatpush1.xpose.msra.mxu0 0.0
    %1201 = vmatprep.subr.mxu0 0.0
    %1202 = vmatpush1.xpose.msra.mxu0 0.0
    %1203 = vmatprep.subr.mxu0 0.0
    %1204 = vmatpush1.xpose.msra.mxu0 0.0
    %1205 = vmatprep.subr.mxu0 0.0
    %1206 = vmatpush1.xpose.msra.mxu0 0.0
    %1207 = vmatprep.subr.mxu0 0.0
    %1208 = vmatpush1.xpose.msra.mxu0 0.0
    %1209 = vmatprep.subr.mxu0 0.0
    %1210 = vmatpush1.xpose.msra.mxu0 0.0
    %1211 = vmatprep.subr.mxu0 0.0
    %1212 = vmatpush1.xpose.msra.mxu0 0.0
    %1213 = vmatprep.subr.mxu0 0.0
    %1214 = vmatpush1.xpose.msra.mxu0 0.0
    %1215 = vmatprep.subr.mxu0 0.0
    %1216 = vmatpush1.xpose.msra.mxu0 0.0
    %1217 = vmatprep.subr.mxu0 0.0
    %1218 = vmatpush1.xpose.msra.mxu0 0.0
    %1219 = vmatprep.subr.mxu0 0.0
    %1220 = vmatpush1.xpose.msra.mxu0 0.0
    %1221 = vmatprep.subr.mxu0 0.0
    %1222 = vmatpush1.xpose.msra.mxu0 0.0
    %1223 = vmatprep.subr.mxu0 0.0
    %1224 = vmatpush1.xpose.msra.mxu0 0.0
    %1225 = vmatprep.subr.mxu0 0.0
    %1226 = vmatpush1.xpose.msra.mxu0 0.0
    %1227 = vmatprep.subr.mxu0 0.0
    %1228 = vmatpush1.xpose.msra.mxu0 0.0
    %1229 = vmatprep.subr.mxu0 0.0
    %1230 = vmatpush1.xpose.msra.mxu0 0.0
    %1231 = vmatprep.subr.mxu0 0.0
    %1232 = vmatpush1.xpose.msra.mxu0 0.0
    %1233 = vmatprep.subr.mxu0 0.0
    %1234 = vmatpush1.xpose.msra.mxu0 0.0
    %1235 = vmatprep.mubr.f32.mxu0 0.0
    %1236 = vmatmul.mubr.f32.gmra.mrb[0].mxu0 %v1166
    %v1237 = vpop.f32.mrb[0].mxu0
    %v1238 = vadd.f32 0.0, %v1237
    %v1239 = vpop.f32.mrb[0].mxu0
    %1240 = vdwg.mxu0
    %v1242 = vsel %vm1088, %v412, 0
    %v1245 = vsel %vm1088, %v722, 0
    %1247 = vmatprep.subr.mxu0 0.0
    %1248 = vmatpush1.xpose.msra.mxu0 %v1245
    %1249 = vmatprep.subr.mxu0 0.0
    %1250 = vmatpush1.xpose.msra.mxu0 0.0
    %1251 = vmatprep.subr.mxu0 0.0
    %1252 = vmatpush1.xpose.msra.mxu0 0.0
    %1253 = vmatprep.subr.mxu0 0.0
    %1254 = vmatpush1.xpose.msra.mxu0 0.0
    %1255 = vmatprep.subr.mxu0 0.0
    %1256 = vmatpush1.xpose.msra.mxu0 0.0
    %1257 = vmatprep.subr.mxu0 0.0
    %1258 = vmatpush1.xpose.msra.mxu0 0.0
    %1259 = vmatprep.subr.mxu0 0.0
    %1260 = vmatpush1.xpose.msra.mxu0 0.0
    %1261 = vmatprep.subr.mxu0 0.0
    %1262 = vmatpush1.xpose.msra.mxu0 0.0
    %1263 = vmatprep.subr.mxu0 0.0
    %1264 = vmatpush1.xpose.msra.mxu0 0.0
    %1265 = vmatprep.subr.mxu0 0.0
    %1266 = vmatpush1.xpose.msra.mxu0 0.0
    %1267 = vmatprep.subr.mxu0 0.0
    %1268 = vmatpush1.xpose.msra.mxu0 0.0
    %1269 = vmatprep.subr.mxu0 0.0
    %1270 = vmatpush1.xpose.msra.mxu0 0.0
    %1271 = vmatprep.subr.mxu0 0.0
    %1272 = vmatpush1.xpose.msra.mxu0 0.0
    %1273 = vmatprep.subr.mxu0 0.0
    %1274 = vmatpush1.xpose.msra.mxu0 0.0
    %1275 = vmatprep.subr.mxu0 0.0
    %1276 = vmatpush1.xpose.msra.mxu0 0.0
    %1277 = vmatprep.subr.mxu0 0.0
    %1278 = vmatpush1.xpose.msra.mxu0 0.0
    %1279 = vmatprep.subr.mxu0 0.0
    %1280 = vmatpush1.xpose.msra.mxu0 0.0
    %1281 = vmatprep.subr.mxu0 0.0
    %1282 = vmatpush1.xpose.msra.mxu0 0.0
    %1283 = vmatprep.subr.mxu0 0.0
    %1284 = vmatpush1.xpose.msra.mxu0 0.0
    %1285 = vmatprep.subr.mxu0 0.0
    %1286 = vmatpush1.xpose.msra.mxu0 0.0
    %1287 = vmatprep.subr.mxu0 0.0
    %1288 = vmatpush1.xpose.msra.mxu0 0.0
    %1289 = vmatprep.subr.mxu0 0.0
    %1290 = vmatpush1.xpose.msra.mxu0 0.0
    %1291 = vmatprep.subr.mxu0 0.0
    %1292 = vmatpush1.xpose.msra.mxu0 0.0
    %1293 = vmatprep.subr.mxu0 0.0
    %1294 = vmatpush1.xpose.msra.mxu0 0.0
    %1295 = vmatprep.subr.mxu0 0.0
    %1296 = vmatpush1.xpose.msra.mxu0 0.0
    %1297 = vmatprep.subr.mxu0 0.0
    %1298 = vmatpush1.xpose.msra.mxu0 0.0
    %1299 = vmatprep.subr.mxu0 0.0
    %1300 = vmatpush1.xpose.msra.mxu0 0.0
    %1301 = vmatprep.subr.mxu0 0.0
    %1302 = vmatpush1.xpose.msra.mxu0 0.0
    %1303 = vmatprep.subr.mxu0 0.0
    %1304 = vmatpush1.xpose.msra.mxu0 0.0
    %1305 = vmatprep.subr.mxu0 0.0
    %1306 = vmatpush1.xpose.msra.mxu0 0.0
    %1307 = vmatprep.subr.mxu0 0.0
    %1308 = vmatpush1.xpose.msra.mxu0 0.0
    %1309 = vmatprep.subr.mxu0 0.0
    %1310 = vmatpush1.xpose.msra.mxu0 0.0
    %1311 = vmatprep.mubr.f32.mxu0 0.0
    %1312 = vmatmul.mubr.f32.gmra.mrb[0].mxu0 %v1242
    %v1313 = vpop.f32.mrb[0].mxu0
    %v1314 = vadd.f32 0.0, %v1313
    %v1315 = vpop.f32.mrb[0].mxu0
    %1316 = vdwg.mxu0
    %v1318 = vsel %vm1088, %v413, 0
    %v1321 = vsel %vm1088, %v723, 0
    %1323 = vmatprep.subr.mxu0 0.0
    %1324 = vmatpush1.xpose.msra.mxu0 %v1321
    %1325 = vmatprep.subr.mxu0 0.0
    %1326 = vmatpush1.xpose.msra.mxu0 0.0
    %1327 = vmatprep.subr.mxu0 0.0
    %1328 = vmatpush1.xpose.msra.mxu0 0.0
    %1329 = vmatprep.subr.mxu0 0.0
    %1330 = vmatpush1.xpose.msra.mxu0 0.0
    %1331 = vmatprep.subr.mxu0 0.0
    %1332 = vmatpush1.xpose.msra.mxu0 0.0
    %1333 = vmatprep.subr.mxu0 0.0
    %1334 = vmatpush1.xpose.msra.mxu0 0.0
    %1335 = vmatprep.subr.mxu0 0.0
    %1336 = vmatpush1.xpose.msra.mxu0 0.0
    %1337 = vmatprep.subr.mxu0 0.0
    %1338 = vmatpush1.xpose.msra.mxu0 0.0
    %1339 = vmatprep.subr.mxu0 0.0
    %1340 = vmatpush1.xpose.msra.mxu0 0.0
    %1341 = vmatprep.subr.mxu0 0.0
    %1342 = vmatpush1.xpose.msra.mxu0 0.0
    %1343 = vmatprep.subr.mxu0 0.0
    %1344 = vmatpush1.xpose.msra.mxu0 0.0
    %1345 = vmatprep.subr.mxu0 0.0
    %1346 = vmatpush1.xpose.msra.mxu0 0.0
    %1347 = vmatprep.subr.mxu0 0.0
    %1348 = vmatpush1.xpose.msra.mxu0 0.0
    %1349 = vmatprep.subr.mxu0 0.0
    %1350 = vmatpush1.xpose.msra.mxu0 0.0
    %1351 = vmatprep.subr.mxu0 0.0
    %1352 = vmatpush1.xpose.msra.mxu0 0.0
    %1353 = vmatprep.subr.mxu0 0.0
    %1354 = vmatpush1.xpose.msra.mxu0 0.0
    %1355 = vmatprep.subr.mxu0 0.0
    %1356 = vmatpush1.xpose.msra.mxu0 0.0
    %1357 = vmatprep.subr.mxu0 0.0
    %1358 = vmatpush1.xpose.msra.mxu0 0.0
    %1359 = vmatprep.subr.mxu0 0.0
    %1360 = vmatpush1.xpose.msra.mxu0 0.0
    %1361 = vmatprep.subr.mxu0 0.0
    %1362 = vmatpush1.xpose.msra.mxu0 0.0
    %1363 = vmatprep.subr.mxu0 0.0
    %1364 = vmatpush1.xpose.msra.mxu0 0.0
    %1365 = vmatprep.subr.mxu0 0.0
    %1366 = vmatpush1.xpose.msra.mxu0 0.0
    %1367 = vmatprep.subr.mxu0 0.0
    %1368 = vmatpush1.xpose.msra.mxu0 0.0
    %1369 = vmatprep.subr.mxu0 0.0
    %1370 = vmatpush1.xpose.msra.mxu0 0.0
    %1371 = vmatprep.subr.mxu0 0.0
    %1372 = vmatpush1.xpose.msra.mxu0 0.0
    %1373 = vmatprep.subr.mxu0 0.0
    %1374 = vmatpush1.xpose.msra.mxu0 0.0
    %1375 = vmatprep.subr.mxu0 0.0
    %1376 = vmatpush1.xpose.msra.mxu0 0.0
    %1377 = vmatprep.subr.mxu0 0.0
    %1378 = vmatpush1.xpose.msra.mxu0 0.0
    %1379 = vmatprep.subr.mxu0 0.0
    %1380 = vmatpush1.xpose.msra.mxu0 0.0
    %1381 = vmatprep.subr.mxu0 0.0
    %1382 = vmatpush1.xpose.msra.mxu0 0.0
    %1383 = vmatprep.subr.mxu0 0.0
    %1384 = vmatpush1.xpose.msra.mxu0 0.0
    %1385 = vmatprep.subr.mxu0 0.0
    %1386 = vmatpush1.xpose.msra.mxu0 0.0
    %1387 = vmatprep.mubr.f32.mxu0 0.0
    %1388 = vmatmul.mubr.f32.gmra.mrb[0].mxu0 %v1318
    %v1389 = vpop.f32.mrb[0].mxu0
    %v1390 = vadd.f32 0.0, %v1389
    %v1391 = vpop.f32.mrb[0].mxu0
    %1392 = vdwg.mxu0
    %v1394 = vsel %vm1088, %v478, 0
    %v1397 = vsel %vm1088, %v788, 0
    %1399 = vmatprep.subr.mxu0 0.0
    %1400 = vmatpush1.xpose.msra.mxu0 %v1397
    %1401 = vmatprep.subr.mxu0 0.0
    %1402 = vmatpush1.xpose.msra.mxu0 0.0
    %1403 = vmatprep.subr.mxu0 0.0
    %1404 = vmatpush1.xpose.msra.mxu0 0.0
    %1405 = vmatprep.subr.mxu0 0.0
    %1406 = vmatpush1.xpose.msra.mxu0 0.0
    %1407 = vmatprep.subr.mxu0 0.0
    %1408 = vmatpush1.xpose.msra.mxu0 0.0
    %1409 = vmatprep.subr.mxu0 0.0
    %1410 = vmatpush1.xpose.msra.mxu0 0.0
    %1411 = vmatprep.subr.mxu0 0.0
    %1412 = vmatpush1.xpose.msra.mxu0 0.0
    %1413 = vmatprep.subr.mxu0 0.0
    %1414 = vmatpush1.xpose.msra.mxu0 0.0
    %1415 = vmatprep.subr.mxu0 0.0
    %1416 = vmatpush1.xpose.msra.mxu0 0.0
    %1417 = vmatprep.subr.mxu0 0.0
    %1418 = vmatpush1.xpose.msra.mxu0 0.0
    %1419 = vmatprep.subr.mxu0 0.0
    %1420 = vmatpush1.xpose.msra.mxu0 0.0
    %1421 = vmatprep.subr.mxu0 0.0
    %1422 = vmatpush1.xpose.msra.mxu0 0.0
    %1423 = vmatprep.subr.mxu0 0.0
    %1424 = vmatpush1.xpose.msra.mxu0 0.0
    %1425 = vmatprep.subr.mxu0 0.0
    %1426 = vmatpush1.xpose.msra.mxu0 0.0
    %1427 = vmatprep.subr.mxu0 0.0
    %1428 = vmatpush1.xpose.msra.mxu0 0.0
    %1429 = vmatprep.subr.mxu0 0.0
    %1430 = vmatpush1.xpose.msra.mxu0 0.0
    %1431 = vmatprep.subr.mxu0 0.0
    %1432 = vmatpush1.xpose.msra.mxu0 0.0
    %1433 = vmatprep.subr.mxu0 0.0
    %1434 = vmatpush1.xpose.msra.mxu0 0.0
    %1435 = vmatprep.subr.mxu0 0.0
    %1436 = vmatpush1.xpose.msra.mxu0 0.0
    %1437 = vmatprep.subr.mxu0 0.0
    %1438 = vmatpush1.xpose.msra.mxu0 0.0
    %1439 = vmatprep.subr.mxu0 0.0
    %1440 = vmatpush1.xpose.msra.mxu0 0.0
    %1441 = vmatprep.subr.mxu0 0.0
    %1442 = vmatpush1.xpose.msra.mxu0 0.0
    %1443 = vmatprep.subr.mxu0 0.0
    %1444 = vmatpush1.xpose.msra.mxu0 0.0
    %1445 = vmatprep.subr.mxu0 0.0
    %1446 = vmatpush1.xpose.msra.mxu0 0.0
    %1447 = vmatprep.subr.mxu0 0.0
    %1448 = vmatpush1.xpose.msra.mxu0 0.0
    %1449 = vmatprep.subr.mxu0 0.0
    %1450 = vmatpush1.xpose.msra.mxu0 0.0
    %1451 = vmatprep.subr.mxu0 0.0
    %1452 = vmatpush1.xpose.msra.mxu0 0.0
    %1453 = vmatprep.subr.mxu0 0.0
    %1454 = vmatpush1.xpose.msra.mxu0 0.0
    %1455 = vmatprep.subr.mxu0 0.0
    %1456 = vmatpush1.xpose.msra.mxu0 0.0
    %1457 = vmatprep.subr.mxu0 0.0
    %1458 = vmatpush1.xpose.msra.mxu0 0.0
    %1459 = vmatprep.subr.mxu0 0.0
    %1460 = vmatpush1.xpose.msra.mxu0 0.0
    %1461 = vmatprep.subr.mxu0 0.0
    %1462 = vmatpush1.xpose.msra.mxu0 0.0
    %1463 = vmatprep.mubr.f32.mxu0 0.0
    %1464 = vmatmul.mubr.f32.gmra.mrb[0].mxu0 %v1394
    %v1465 = vpop.f32.mrb[0].mxu0
    %v1466 = vadd.f32 0.0, %v1465
    %v1467 = vpop.f32.mrb[0].mxu0
    %1468 = vdwg.mxu0
    %v1470 = vsel %vm1088, %v479, 0
    %v1473 = vsel %vm1088, %v789, 0
    %1475 = vmatprep.subr.mxu0 0.0
    %1476 = vmatpush1.xpose.msra.mxu0 %v1473
    %1477 = vmatprep.subr.mxu0 0.0
    %1478 = vmatpush1.xpose.msra.mxu0 0.0
    %1479 = vmatprep.subr.mxu0 0.0
    %1480 = vmatpush1.xpose.msra.mxu0 0.0
    %1481 = vmatprep.subr.mxu0 0.0
    %1482 = vmatpush1.xpose.msra.mxu0 0.0
    %1483 = vmatprep.subr.mxu0 0.0
    %1484 = vmatpush1.xpose.msra.mxu0 0.0
    %1485 = vmatprep.subr.mxu0 0.0
    %1486 = vmatpush1.xpose.msra.mxu0 0.0
    %1487 = vmatprep.subr.mxu0 0.0
    %1488 = vmatpush1.xpose.msra.mxu0 0.0
    %1489 = vmatprep.subr.mxu0 0.0
    %1490 = vmatpush1.xpose.msra.mxu0 0.0
    %1491 = vmatprep.subr.mxu0 0.0
    %1492 = vmatpush1.xpose.msra.mxu0 0.0
    %1493 = vmatprep.subr.mxu0 0.0
    %1494 = vmatpush1.xpose.msra.mxu0 0.0
    %1495 = vmatprep.subr.mxu0 0.0
    %1496 = vmatpush1.xpose.msra.mxu0 0.0
    %1497 = vmatprep.subr.mxu0 0.0
    %1498 = vmatpush1.xpose.msra.mxu0 0.0
    %1499 = vmatprep.subr.mxu0 0.0
    %1500 = vmatpush1.xpose.msra.mxu0 0.0
    %1501 = vmatprep.subr.mxu0 0.0
    %1502 = vmatpush1.xpose.msra.mxu0 0.0
    %1503 = vmatprep.subr.mxu0 0.0
    %1504 = vmatpush1.xpose.msra.mxu0 0.0
    %1505 = vmatprep.subr.mxu0 0.0
    %1506 = vmatpush1.xpose.msra.mxu0 0.0
    %1507 = vmatprep.subr.mxu0 0.0
    %1508 = vmatpush1.xpose.msra.mxu0 0.0
    %1509 = vmatprep.subr.mxu0 0.0
    %1510 = vmatpush1.xpose.msra.mxu0 0.0
    %1511 = vmatprep.subr.mxu0 0.0
    %1512 = vmatpush1.xpose.msra.mxu0 0.0
    %1513 = vmatprep.subr.mxu0 0.0
    %1514 = vmatpush1.xpose.msra.mxu0 0.0
    %1515 = vmatprep.subr.mxu0 0.0
    %1516 = vmatpush1.xpose.msra.mxu0 0.0
    %1517 = vmatprep.subr.mxu0 0.0
    %1518 = vmatpush1.xpose.msra.mxu0 0.0
    %1519 = vmatprep.subr.mxu0 0.0
    %1520 = vmatpush1.xpose.msra.mxu0 0.0
    %1521 = vmatprep.subr.mxu0 0.0
    %1522 = vmatpush1.xpose.msra.mxu0 0.0
    %1523 = vmatprep.subr.mxu0 0.0
    %1524 = vmatpush1.xpose.msra.mxu0 0.0
    %1525 = vmatprep.subr.mxu0 0.0
    %1526 = vmatpush1.xpose.msra.mxu0 0.0
    %1527 = vmatprep.subr.mxu0 0.0
    %1528 = vmatpush1.xpose.msra.mxu0 0.0
    %1529 = vmatprep.subr.mxu0 0.0
    %1530 = vmatpush1.xpose.msra.mxu0 0.0
    %1531 = vmatprep.subr.mxu0 0.0
    %1532 = vmatpush1.xpose.msra.mxu0 0.0
    %1533 = vmatprep.subr.mxu0 0.0
    %1534 = vmatpush1.xpose.msra.mxu0 0.0
    %1535 = vmatprep.subr.mxu0 0.0
    %1536 = vmatpush1.xpose.msra.mxu0 0.0
    %1537 = vmatprep.subr.mxu0 0.0
    %1538 = vmatpush1.xpose.msra.mxu0 0.0
    %1539 = vmatprep.mubr.f32.mxu0 0.0
    %1540 = vmatmul.mubr.f32.gmra.mrb[0].mxu0 %v1470
    %v1541 = vpop.f32.mrb[0].mxu0
    %v1542 = vadd.f32 0.0, %v1541
    %v1543 = vpop.f32.mrb[0].mxu0
    %1544 = vdwg.mxu0
    %v1546 = vsel %vm1088, %v480, 0
    %v1549 = vsel %vm1088, %v790, 0
    %1551 = vmatprep.subr.mxu0 0.0
    %1552 = vmatpush1.xpose.msra.mxu0 %v1549
    %1553 = vmatprep.subr.mxu0 0.0
    %1554 = vmatpush1.xpose.msra.mxu0 0.0
    %1555 = vmatprep.subr.mxu0 0.0
    %1556 = vmatpush1.xpose.msra.mxu0 0.0
    %1557 = vmatprep.subr.mxu0 0.0
    %1558 = vmatpush1.xpose.msra.mxu0 0.0
    %1559 = vmatprep.subr.mxu0 0.0
    %1560 = vmatpush1.xpose.msra.mxu0 0.0
    %1561 = vmatprep.subr.mxu0 0.0
    %1562 = vmatpush1.xpose.msra.mxu0 0.0
    %1563 = vmatprep.subr.mxu0 0.0
    %1564 = vmatpush1.xpose.msra.mxu0 0.0
    %1565 = vmatprep.subr.mxu0 0.0
    %1566 = vmatpush1.xpose.msra.mxu0 0.0
    %1567 = vmatprep.subr.mxu0 0.0
    %1568 = vmatpush1.xpose.msra.mxu0 0.0
    %1569 = vmatprep.subr.mxu0 0.0
    %1570 = vmatpush1.xpose.msra.mxu0 0.0
    %1571 = vmatprep.subr.mxu0 0.0
    %1572 = vmatpush1.xpose.msra.mxu0 0.0
    %1573 = vmatprep.subr.mxu0 0.0
    %1574 = vmatpush1.xpose.msra.mxu0 0.0
    %1575 = vmatprep.subr.mxu0 0.0
    %1576 = vmatpush1.xpose.msra.mxu0 0.0
    %1577 = vmatprep.subr.mxu0 0.0
    %1578 = vmatpush1.xpose.msra.mxu0 0.0
    %1579 = vmatprep.subr.mxu0 0.0
    %1580 = vmatpush1.xpose.msra.mxu0 0.0
    %1581 = vmatprep.subr.mxu0 0.0
    %1582 = vmatpush1.xpose.msra.mxu0 0.0
    %1583 = vmatprep.subr.mxu0 0.0
    %1584 = vmatpush1.xpose.msra.mxu0 0.0
    %1585 = vmatprep.subr.mxu0 0.0
    %1586 = vmatpush1.xpose.msra.mxu0 0.0
    %1587 = vmatprep.subr.mxu0 0.0
    %1588 = vmatpush1.xpose.msra.mxu0 0.0
    %1589 = vmatprep.subr.mxu0 0.0
    %1590 = vmatpush1.xpose.msra.mxu0 0.0
    %1591 = vmatprep.subr.mxu0 0.0
    %1592 = vmatpush1.xpose.msra.mxu0 0.0
    %1593 = vmatprep.subr.mxu0 0.0
    %1594 = vmatpush1.xpose.msra.mxu0 0.0
    %1595 = vmatprep.subr.mxu0 0.0
    %1596 = vmatpush1.xpose.msra.mxu0 0.0
    %1597 = vmatprep.subr.mxu0 0.0
    %1598 = vmatpush1.xpose.msra.mxu0 0.0
    %1599 = vmatprep.subr.mxu0 0.0
    %1600 = vmatpush1.xpose.msra.mxu0 0.0
    %1601 = vmatprep.subr.mxu0 0.0
    %1602 = vmatpush1.xpose.msra.mxu0 0.0
    %1603 = vmatprep.subr.mxu0 0.0
    %1604 = vmatpush1.xpose.msra.mxu0 0.0
    %1605 = vmatprep.subr.mxu0 0.0
    %1606 = vmatpush1.xpose.msra.mxu0 0.0
    %1607 = vmatprep.subr.mxu0 0.0
    %1608 = vmatpush1.xpose.msra.mxu0 0.0
    %1609 = vmatprep.subr.mxu0 0.0
    %1610 = vmatpush1.xpose.msra.mxu0 0.0
    %1611 = vmatprep.subr.mxu0 0.0
    %1612 = vmatpush1.xpose.msra.mxu0 0.0
    %1613 = vmatprep.subr.mxu0 0.0
    %1614 = vmatpush1.xpose.msra.mxu0 0.0
    %1615 = vmatprep.mubr.f32.mxu0 0.0
    %1616 = vmatmul.mubr.f32.gmra.mrb[0].mxu0 %v1546
    %v1617 = vpop.f32.mrb[0].mxu0
    %v1618 = vadd.f32 0.0, %v1617
    %v1619 = vpop.f32.mrb[0].mxu0
    %1620 = vdwg.mxu0
    %v1622 = vsel %vm1088, %v481, 0
    %v1625 = vsel %vm1088, %v791, 0
    %1627 = vmatprep.subr.mxu0 0.0
    %1628 = vmatpush1.xpose.msra.mxu0 %v1625
    %1629 = vmatprep.subr.mxu0 0.0
    %1630 = vmatpush1.xpose.msra.mxu0 0.0
    %1631 = vmatprep.subr.mxu0 0.0
    %1632 = vmatpush1.xpose.msra.mxu0 0.0
    %1633 = vmatprep.subr.mxu0 0.0
    %1634 = vmatpush1.xpose.msra.mxu0 0.0
    %1635 = vmatprep.subr.mxu0 0.0
    %1636 = vmatpush1.xpose.msra.mxu0 0.0
    %1637 = vmatprep.subr.mxu0 0.0
    %1638 = vmatpush1.xpose.msra.mxu0 0.0
    %1639 = vmatprep.subr.mxu0 0.0
    %1640 = vmatpush1.xpose.msra.mxu0 0.0
    %1641 = vmatprep.subr.mxu0 0.0
    %1642 = vmatpush1.xpose.msra.mxu0 0.0
    %1643 = vmatprep.subr.mxu0 0.0
    %1644 = vmatpush1.xpose.msra.mxu0 0.0
    %1645 = vmatprep.subr.mxu0 0.0
    %1646 = vmatpush1.xpose.msra.mxu0 0.0
    %1647 = vmatprep.subr.mxu0 0.0
    %1648 = vmatpush1.xpose.msra.mxu0 0.0
    %1649 = vmatprep.subr.mxu0 0.0
    %1650 = vmatpush1.xpose.msra.mxu0 0.0
    %1651 = vmatprep.subr.mxu0 0.0
    %1652 = vmatpush1.xpose.msra.mxu0 0.0
    %1653 = vmatprep.subr.mxu0 0.0
    %1654 = vmatpush1.xpose.msra.mxu0 0.0
    %1655 = vmatprep.subr.mxu0 0.0
    %1656 = vmatpush1.xpose.msra.mxu0 0.0
    %1657 = vmatprep.subr.mxu0 0.0
    %1658 = vmatpush1.xpose.msra.mxu0 0.0
    %1659 = vmatprep.subr.mxu0 0.0
    %1660 = vmatpush1.xpose.msra.mxu0 0.0
    %1661 = vmatprep.subr.mxu0 0.0
    %1662 = vmatpush1.xpose.msra.mxu0 0.0
    %1663 = vmatprep.subr.mxu0 0.0
    %1664 = vmatpush1.xpose.msra.mxu0 0.0
    %1665 = vmatprep.subr.mxu0 0.0
    %1666 = vmatpush1.xpose.msra.mxu0 0.0
    %1667 = vmatprep.subr.mxu0 0.0
    %1668 = vmatpush1.xpose.msra.mxu0 0.0
    %1669 = vmatprep.subr.mxu0 0.0
    %1670 = vmatpush1.xpose.msra.mxu0 0.0
    %1671 = vmatprep.subr.mxu0 0.0
    %1672 = vmatpush1.xpose.msra.mxu0 0.0
    %1673 = vmatprep.subr.mxu0 0.0
    %1674 = vmatpush1.xpose.msra.mxu0 0.0
    %1675 = vmatprep.subr.mxu0 0.0
    %1676 = vmatpush1.xpose.msra.mxu0 0.0
    %1677 = vmatprep.subr.mxu0 0.0
    %1678 = vmatpush1.xpose.msra.mxu0 0.0
    %1679 = vmatprep.subr.mxu0 0.0
    %1680 = vmatpush1.xpose.msra.mxu0 0.0
    %1681 = vmatprep.subr.mxu0 0.0
    %1682 = vmatpush1.xpose.msra.mxu0 0.0
    %1683 = vmatprep.subr.mxu0 0.0
    %1684 = vmatpush1.xpose.msra.mxu0 0.0
    %1685 = vmatprep.subr.mxu0 0.0
    %1686 = vmatpush1.xpose.msra.mxu0 0.0
    %1687 = vmatprep.subr.mxu0 0.0
    %1688 = vmatpush1.xpose.msra.mxu0 0.0
    %1689 = vmatprep.subr.mxu0 0.0
    %1690 = vmatpush1.xpose.msra.mxu0 0.0
    %1691 = vmatprep.mubr.f32.mxu0 0.0
    %1692 = vmatmul.mubr.f32.gmra.mrb[0].mxu0 %v1622
    %v1693 = vpop.f32.mrb[0].mxu0
    %v1694 = vadd.f32 0.0, %v1693
    %v1695 = vpop.f32.mrb[0].mxu0
    %1696 = vdwg.mxu0
    %v1697 = vsel %vm1088, %v1162, -inf
    %1698 = vmax.xlane.f32.xlu0 %v1697
    %v1699 = vpop.xlane.xlu0 %1698
    %v1700 = vsel %vm1088, %v1238, -inf
    %1701 = vmax.xlane.f32.xlu0 %v1700
    %v1702 = vpop.xlane.xlu0 %1701
    %v1703 = vsel %vm1088, %v1314, -inf
    %1704 = vmax.xlane.f32.xlu0 %v1703
    %v1705 = vpop.xlane.xlu0 %1704
    %v1706 = vsel %vm1088, %v1390, -inf
    %1707 = vmax.xlane.f32.xlu0 %v1706
    %v1708 = vpop.xlane.xlu0 %1707
    %v1709 = vsel %vm1088, %v1466, -inf
    %1710 = vmax.xlane.f32.xlu0 %v1709
    %v1711 = vpop.xlane.xlu0 %1710
    %v1712 = vsel %vm1088, %v1542, -inf
    %1713 = vmax.xlane.f32.xlu0 %v1712
    %v1714 = vpop.xlane.xlu0 %1713
    %v1715 = vsel %vm1088, %v1618, -inf
    %1716 = vmax.xlane.f32.xlu0 %v1715
    %v1717 = vpop.xlane.xlu0 %1716
    %v1718 = vsel %vm1088, %v1694, -inf
    %1719 = vmax.xlane.f32.xlu0 %v1718
    %v1720 = vpop.xlane.xlu0 %1719
    %v1721 = vsub.f32 %v1162, %v1699
    %v1722 = vsub.f32 %v1238, %v1702
    %v1723 = vsub.f32 %v1314, %v1705
    %v1724 = vsub.f32 %v1390, %v1708
    %v1725 = vsub.f32 %v1466, %v1711
    %v1726 = vsub.f32 %v1542, %v1714
    %v1727 = vsub.f32 %v1618, %v1717
    %v1728 = vsub.f32 %v1694, %v1720
    %v1729 = vmul.f32 %v1721, 1.442695
    %v1730 = vpow.pop %v1729
    %v1731 = vmul.f32 %v1722, 1.442695
    %v1732 = vpow.pop %v1731
    %v1733 = vmul.f32 %v1723, 1.442695
    %v1734 = vpow.pop %v1733
    %v1735 = vmul.f32 %v1724, 1.442695
    %v1736 = vpow.pop %v1735
    %v1737 = vmul.f32 %v1725, 1.442695
    %v1738 = vpow.pop %v1737
    %v1739 = vmul.f32 %v1726, 1.442695
    %v1740 = vpow.pop %v1739
    %v1741 = vmul.f32 %v1727, 1.442695
    %v1742 = vpow.pop %v1741
    %v1743 = vmul.f32 %v1728, 1.442695
    %v1744 = vpow.pop %v1743
    %v1745 = vsel %vm1088, %v1730, 0.0
    %1746 = vadd.xlane.f32.xlu0 %v1745
    %v1747 = vpop.xlane.xlu0 %1746
    %v1748 = vsel %vm1088, %v1732, 0.0
    %1749 = vadd.xlane.f32.xlu0 %v1748
    %v1750 = vpop.xlane.xlu0 %1749
    %v1751 = vsel %vm1088, %v1734, 0.0
    %1752 = vadd.xlane.f32.xlu0 %v1751
    %v1753 = vpop.xlane.xlu0 %1752
    %v1754 = vsel %vm1088, %v1736, 0.0
    %1755 = vadd.xlane.f32.xlu0 %v1754
    %v1756 = vpop.xlane.xlu0 %1755
    %v1757 = vsel %vm1088, %v1738, 0.0
    %1758 = vadd.xlane.f32.xlu0 %v1757
    %v1759 = vpop.xlane.xlu0 %1758
    %v1760 = vsel %vm1088, %v1740, 0.0
    %1761 = vadd.xlane.f32.xlu0 %v1760
    %v1762 = vpop.xlane.xlu0 %1761
    %v1763 = vsel %vm1088, %v1742, 0.0
    %1764 = vadd.xlane.f32.xlu0 %v1763
    %v1765 = vpop.xlane.xlu0 %1764
    %v1766 = vsel %vm1088, %v1744, 0.0
    %1767 = vadd.xlane.f32.xlu0 %v1766
    %v1768 = vpop.xlane.xlu0 %1767
    %v1769 = vrcp.pop %v1747
    %v1770 = vrcp.pop %v1750
    %v1771 = vrcp.pop %v1753
    %v1772 = vrcp.pop %v1756
    %v1773 = vrcp.pop %v1759
    %v1774 = vrcp.pop %v1762
    %v1775 = vrcp.pop %v1765
    %v1776 = vrcp.pop %v1768
    %v1777 = vmul.f32 %v1730, %v1769
    %v1778 = vmul.f32 %v1732, %v1770
    %v1779 = vmul.f32 %v1734, %v1771
    %v1780 = vmul.f32 %v1736, %v1772
    %v1781 = vmul.f32 %v1738, %v1773
    %v1782 = vmul.f32 %v1740, %v1774
    %v1783 = vmul.f32 %v1742, %v1775
    %v1784 = vmul.f32 %v1744, %v1776
    %1785 = vst.msk [vmem:[#allocation5] sm:$0xff] %vm1088, %v1777
    %1786 = vst.msk [vmem:[#allocation5 + $0x8] sm:$0xff] %vm1088, %v1778
    %1787 = vst.msk [vmem:[#allocation5 + $0x10] sm:$0xff] %vm1088, %v1779
    %1788 = vst.msk [vmem:[#allocation5 + $0x18] sm:$0xff] %vm1088, %v1780
    %1789 = vst.msk [vmem:[#allocation5 + $0x20] sm:$0xff] %vm1088, %v1781
    %1790 = vst.msk [vmem:[#allocation5 + $0x28] sm:$0xff] %vm1088, %v1782
    %1791 = vst.msk [vmem:[#allocation5 + $0x30] sm:$0xff] %vm1088, %v1783
    %1792 = vst.msk [vmem:[#allocation5 + $0x38] sm:$0xff] %vm1088, %v1784
    %v1794 = vsel %vm1088, %v1777, 0
    %1796 = vmatprep.subr.mxu0 0.0
    %1797 = vmatpush1.msra.mxu0 %v1016
    %1798 = vmatprep.subr.mxu0 0.0
    %1799 = vmatpush1.msra.mxu0 0.0
    %1800 = vmatprep.subr.mxu0 0.0
    %1801 = vmatpush1.msra.mxu0 0.0
    %1802 = vmatprep.subr.mxu0 0.0
    %1803 = vmatpush1.msra.mxu0 0.0
    %1804 = vmatprep.subr.mxu0 0.0
    %1805 = vmatpush1.msra.mxu0 0.0
    %1806 = vmatprep.subr.mxu0 0.0
    %1807 = vmatpush1.msra.mxu0 0.0
    %1808 = vmatprep.subr.mxu0 0.0
    %1809 = vmatpush1.msra.mxu0 0.0
    %1810 = vmatprep.subr.mxu0 0.0
    %1811 = vmatpush1.msra.mxu0 0.0
    %1812 = vmatprep.subr.mxu0 0.0
    %1813 = vmatpush1.msra.mxu0 0.0
    %1814 = vmatprep.subr.mxu0 0.0
    %1815 = vmatpush1.msra.mxu0 0.0
    %1816 = vmatprep.subr.mxu0 0.0
    %1817 = vmatpush1.msra.mxu0 0.0
    %1818 = vmatprep.subr.mxu0 0.0
    %1819 = vmatpush1.msra.mxu0 0.0
    %1820 = vmatprep.subr.mxu0 0.0
    %1821 = vmatpush1.msra.mxu0 0.0
    %1822 = vmatprep.subr.mxu0 0.0
    %1823 = vmatpush1.msra.mxu0 0.0
    %1824 = vmatprep.subr.mxu0 0.0
    %1825 = vmatpush1.msra.mxu0 0.0
    %1826 = vmatprep.subr.mxu0 0.0
    %1827 = vmatpush1.msra.mxu0 0.0
    %1828 = vmatprep.subr.mxu0 0.0
    %1829 = vmatpush1.msra.mxu0 0.0
    %1830 = vmatprep.subr.mxu0 0.0
    %1831 = vmatpush1.msra.mxu0 0.0
    %1832 = vmatprep.subr.mxu0 0.0
    %1833 = vmatpush1.msra.mxu0 0.0
    %1834 = vmatprep.subr.mxu0 0.0
    %1835 = vmatpush1.msra.mxu0 0.0
    %1836 = vmatprep.subr.mxu0 0.0
    %1837 = vmatpush1.msra.mxu0 0.0
    %1838 = vmatprep.subr.mxu0 0.0
    %1839 = vmatpush1.msra.mxu0 0.0
    %1840 = vmatprep.subr.mxu0 0.0
    %1841 = vmatpush1.msra.mxu0 0.0
    %1842 = vmatprep.subr.mxu0 0.0
    %1843 = vmatpush1.msra.mxu0 0.0
    %1844 = vmatprep.subr.mxu0 0.0
    %1845 = vmatpush1.msra.mxu0 0.0
    %1846 = vmatprep.subr.mxu0 0.0
    %1847 = vmatpush1.msra.mxu0 0.0
    %1848 = vmatprep.subr.mxu0 0.0
    %1849 = vmatpush1.msra.mxu0 0.0
    %1850 = vmatprep.subr.mxu0 0.0
    %1851 = vmatpush1.msra.mxu0 0.0
    %1852 = vmatprep.subr.mxu0 0.0
    %1853 = vmatpush1.msra.mxu0 0.0
    %1854 = vmatprep.subr.mxu0 0.0
    %1855 = vmatpush1.msra.mxu0 0.0
    %1856 = vmatprep.subr.mxu0 0.0
    %1857 = vmatpush1.msra.mxu0 0.0
    %1858 = vmatprep.subr.mxu0 0.0
    %1859 = vmatpush1.msra.mxu0 0.0
    %1860 = vmatprep.mubr.f32.mxu0 0.0
    %1861 = vmatmul.mubr.f32.gmra.mrb[0].mxu0 %v1794
    %v1862 = vpop.f32.mrb[0].mxu0
    %v1863 = vadd.f32 0.0, %v1862
    %v1864 = vpop.f32.mrb[0].mxu0
    %1865 = vdwg.mxu0
    %v1867 = vsel %vm1088, %v1778, 0
    %1869 = vmatprep.subr.mxu0 0.0
    %1870 = vmatpush1.msra.mxu0 %v1017
    %1871 = vmatprep.subr.mxu0 0.0
    %1872 = vmatpush1.msra.mxu0 0.0
    %1873 = vmatprep.subr.mxu0 0.0
    %1874 = vmatpush1.msra.mxu0 0.0
    %1875 = vmatprep.subr.mxu0 0.0
    %1876 = vmatpush1.msra.mxu0 0.0
    %1877 = vmatprep.subr.mxu0 0.0
    %1878 = vmatpush1.msra.mxu0 0.0
    %1879 = vmatprep.subr.mxu0 0.0
    %1880 = vmatpush1.msra.mxu0 0.0
    %1881 = vmatprep.subr.mxu0 0.0
    %1882 = vmatpush1.msra.mxu0 0.0
    %1883 = vmatprep.subr.mxu0 0.0
    %1884 = vmatpush1.msra.mxu0 0.0
    %1885 = vmatprep.subr.mxu0 0.0
    %1886 = vmatpush1.msra.mxu0 0.0
    %1887 = vmatprep.subr.mxu0 0.0
    %1888 = vmatpush1.msra.mxu0 0.0
    %1889 = vmatprep.subr.mxu0 0.0
    %1890 = vmatpush1.msra.mxu0 0.0
    %1891 = vmatprep.subr.mxu0 0.0
    %1892 = vmatpush1.msra.mxu0 0.0
    %1893 = vmatprep.subr.mxu0 0.0
    %1894 = vmatpush1.msra.mxu0 0.0
    %1895 = vmatprep.subr.mxu0 0.0
    %1896 = vmatpush1.msra.mxu0 0.0
    %1897 = vmatprep.subr.mxu0 0.0
    %1898 = vmatpush1.msra.mxu0 0.0
    %1899 = vmatprep.subr.mxu0 0.0
    %1900 = vmatpush1.msra.mxu0 0.0
    %1901 = vmatprep.subr.mxu0 0.0
    %1902 = vmatpush1.msra.mxu0 0.0
    %1903 = vmatprep.subr.mxu0 0.0
    %1904 = vmatpush1.msra.mxu0 0.0
    %1905 = vmatprep.subr.mxu0 0.0
    %1906 = vmatpush1.msra.mxu0 0.0
    %1907 = vmatprep.subr.mxu0 0.0
    %1908 = vmatpush1.msra.mxu0 0.0
    %1909 = vmatprep.subr.mxu0 0.0
    %1910 = vmatpush1.msra.mxu0 0.0
    %1911 = vmatprep.subr.mxu0 0.0
    %1912 = vmatpush1.msra.mxu0 0.0
    %1913 = vmatprep.subr.mxu0 0.0
    %1914 = vmatpush1.msra.mxu0 0.0
    %1915 = vmatprep.subr.mxu0 0.0
    %1916 = vmatpush1.msra.mxu0 0.0
    %1917 = vmatprep.subr.mxu0 0.0
    %1918 = vmatpush1.msra.mxu0 0.0
    %1919 = vmatprep.subr.mxu0 0.0
    %1920 = vmatpush1.msra.mxu0 0.0
    %1921 = vmatprep.subr.mxu0 0.0
    %1922 = vmatpush1.msra.mxu0 0.0
    %1923 = vmatprep.subr.mxu0 0.0
    %1924 = vmatpush1.msra.mxu0 0.0
    %1925 = vmatprep.subr.mxu0 0.0
    %1926 = vmatpush1.msra.mxu0 0.0
    %1927 = vmatprep.subr.mxu0 0.0
    %1928 = vmatpush1.msra.mxu0 0.0
    %1929 = vmatprep.subr.mxu0 0.0
    %1930 = vmatpush1.msra.mxu0 0.0
    %1931 = vmatprep.subr.mxu0 0.0
    %1932 = vmatpush1.msra.mxu0 0.0
    %1933 = vmatprep.mubr.f32.mxu0 0.0
    %1934 = vmatmul.mubr.f32.gmra.mrb[0].mxu0 %v1867
    %v1935 = vpop.f32.mrb[0].mxu0
    %v1936 = vadd.f32 0.0, %v1935
    %v1937 = vpop.f32.mrb[0].mxu0
    %1938 = vdwg.mxu0
    %v1940 = vsel %vm1088, %v1779, 0
    %1942 = vmatprep.subr.mxu0 0.0
    %1943 = vmatpush1.msra.mxu0 %v1018
    %1944 = vmatprep.subr.mxu0 0.0
    %1945 = vmatpush1.msra.mxu0 0.0
    %1946 = vmatprep.subr.mxu0 0.0
    %1947 = vmatpush1.msra.mxu0 0.0
    %1948 = vmatprep.subr.mxu0 0.0
    %1949 = vmatpush1.msra.mxu0 0.0
    %1950 = vmatprep.subr.mxu0 0.0
    %1951 = vmatpush1.msra.mxu0 0.0
    %1952 = vmatprep.subr.mxu0 0.0
    %1953 = vmatpush1.msra.mxu0 0.0
    %1954 = vmatprep.subr.mxu0 0.0
    %1955 = vmatpush1.msra.mxu0 0.0
    %1956 = vmatprep.subr.mxu0 0.0
    %1957 = vmatpush1.msra.mxu0 0.0
    %1958 = vmatprep.subr.mxu0 0.0
    %1959 = vmatpush1.msra.mxu0 0.0
    %1960 = vmatprep.subr.mxu0 0.0
    %1961 = vmatpush1.msra.mxu0 0.0
    %1962 = vmatprep.subr.mxu0 0.0
    %1963 = vmatpush1.msra.mxu0 0.0
    %1964 = vmatprep.subr.mxu0 0.0
    %1965 = vmatpush1.msra.mxu0 0.0
    %1966 = vmatprep.subr.mxu0 0.0
    %1967 = vmatpush1.msra.mxu0 0.0
    %1968 = vmatprep.subr.mxu0 0.0
    %1969 = vmatpush1.msra.mxu0 0.0
    %1970 = vmatprep.subr.mxu0 0.0
    %1971 = vmatpush1.msra.mxu0 0.0
    %1972 = vmatprep.subr.mxu0 0.0
    %1973 = vmatpush1.msra.mxu0 0.0
    %1974 = vmatprep.subr.mxu0 0.0
    %1975 = vmatpush1.msra.mxu0 0.0
    %1976 = vmatprep.subr.mxu0 0.0
    %1977 = vmatpush1.msra.mxu0 0.0
    %1978 = vmatprep.subr.mxu0 0.0
    %1979 = vmatpush1.msra.mxu0 0.0
    %1980 = vmatprep.subr.mxu0 0.0
    %1981 = vmatpush1.msra.mxu0 0.0
    %1982 = vmatprep.subr.mxu0 0.0
    %1983 = vmatpush1.msra.mxu0 0.0
    %1984 = vmatprep.subr.mxu0 0.0
    %1985 = vmatpush1.msra.mxu0 0.0
    %1986 = vmatprep.subr.mxu0 0.0
    %1987 = vmatpush1.msra.mxu0 0.0
    %1988 = vmatprep.subr.mxu0 0.0
    %1989 = vmatpush1.msra.mxu0 0.0
    %1990 = vmatprep.subr.mxu0 0.0
    %1991 = vmatpush1.msra.mxu0 0.0
    %1992 = vmatprep.subr.mxu0 0.0
    %1993 = vmatpush1.msra.mxu0 0.0
    %1994 = vmatprep.subr.mxu0 0.0
    %1995 = vmatpush1.msra.mxu0 0.0
    %1996 = vmatprep.subr.mxu0 0.0
    %1997 = vmatpush1.msra.mxu0 0.0
    %1998 = vmatprep.subr.mxu0 0.0
    %1999 = vmatpush1.msra.mxu0 0.0
    %2000 = vmatprep.subr.mxu0 0.0
    %2001 = vmatpush1.msra.mxu0 0.0
    %2002 = vmatprep.subr.mxu0 0.0
    %2003 = vmatpush1.msra.mxu0 0.0
    %2004 = vmatprep.subr.mxu0 0.0
    %2005 = vmatpush1.msra.mxu0 0.0
    %2006 = vmatprep.mubr.f32.mxu0 0.0
    %2007 = vmatmul.mubr.f32.gmra.mrb[0].mxu0 %v1940
    %v2008 = vpop.f32.mrb[0].mxu0
    %v2009 = vadd.f32 0.0, %v2008
    %v2010 = vpop.f32.mrb[0].mxu0
    %2011 = vdwg.mxu0
    %v2013 = vsel %vm1088, %v1780, 0
    %2015 = vmatprep.subr.mxu0 0.0
    %2016 = vmatpush1.msra.mxu0 %v1019
    %2017 = vmatprep.subr.mxu0 0.0
    %2018 = vmatpush1.msra.mxu0 0.0
    %2019 = vmatprep.subr.mxu0 0.0
    %2020 = vmatpush1.msra.mxu0 0.0
    %2021 = vmatprep.subr.mxu0 0.0
    %2022 = vmatpush1.msra.mxu0 0.0
    %2023 = vmatprep.subr.mxu0 0.0
    %2024 = vmatpush1.msra.mxu0 0.0
    %2025 = vmatprep.subr.mxu0 0.0
    %2026 = vmatpush1.msra.mxu0 0.0
    %2027 = vmatprep.subr.mxu0 0.0
    %2028 = vmatpush1.msra.mxu0 0.0
    %2029 = vmatprep.subr.mxu0 0.0
    %2030 = vmatpush1.msra.mxu0 0.0
    %2031 = vmatprep.subr.mxu0 0.0
    %2032 = vmatpush1.msra.mxu0 0.0
    %2033 = vmatprep.subr.mxu0 0.0
    %2034 = vmatpush1.msra.mxu0 0.0
    %2035 = vmatprep.subr.mxu0 0.0
    %2036 = vmatpush1.msra.mxu0 0.0
    %2037 = vmatprep.subr.mxu0 0.0
    %2038 = vmatpush1.msra.mxu0 0.0
    %2039 = vmatprep.subr.mxu0 0.0
    %2040 = vmatpush1.msra.mxu0 0.0
    %2041 = vmatprep.subr.mxu0 0.0
    %2042 = vmatpush1.msra.mxu0 0.0
    %2043 = vmatprep.subr.mxu0 0.0
    %2044 = vmatpush1.msra.mxu0 0.0
    %2045 = vmatprep.subr.mxu0 0.0
    %2046 = vmatpush1.msra.mxu0 0.0
    %2047 = vmatprep.subr.mxu0 0.0
    %2048 = vmatpush1.msra.mxu0 0.0
    %2049 = vmatprep.subr.mxu0 0.0
    %2050 = vmatpush1.msra.mxu0 0.0
    %2051 = vmatprep.subr.mxu0 0.0
    %2052 = vmatpush1.msra.mxu0 0.0
    %2053 = vmatprep.subr.mxu0 0.0
    %2054 = vmatpush1.msra.mxu0 0.0
    %2055 = vmatprep.subr.mxu0 0.0
    %2056 = vmatpush1.msra.mxu0 0.0
    %2057 = vmatprep.subr.mxu0 0.0
    %2058 = vmatpush1.msra.mxu0 0.0
    %2059 = vmatprep.subr.mxu0 0.0
    %2060 = vmatpush1.msra.mxu0 0.0
    %2061 = vmatprep.subr.mxu0 0.0
    %2062 = vmatpush1.msra.mxu0 0.0
    %2063 = vmatprep.subr.mxu0 0.0
    %2064 = vmatpush1.msra.mxu0 0.0
    %2065 = vmatprep.subr.mxu0 0.0
    %2066 = vmatpush1.msra.mxu0 0.0
    %2067 = vmatprep.subr.mxu0 0.0
    %2068 = vmatpush1.msra.mxu0 0.0
    %2069 = vmatprep.subr.mxu0 0.0
    %2070 = vmatpush1.msra.mxu0 0.0
    %2071 = vmatprep.subr.mxu0 0.0
    %2072 = vmatpush1.msra.mxu0 0.0
    %2073 = vmatprep.subr.mxu0 0.0
    %2074 = vmatpush1.msra.mxu0 0.0
    %2075 = vmatprep.subr.mxu0 0.0
    %2076 = vmatpush1.msra.mxu0 0.0
    %2077 = vmatprep.subr.mxu0 0.0
    %2078 = vmatpush1.msra.mxu0 0.0
    %2079 = vmatprep.mubr.f32.mxu0 0.0
    %2080 = vmatmul.mubr.f32.gmra.mrb[0].mxu0 %v2013
    %v2081 = vpop.f32.mrb[0].mxu0
    %v2082 = vadd.f32 0.0, %v2081
    %v2083 = vpop.f32.mrb[0].mxu0
    %2084 = vdwg.mxu0
    %v2086 = vsel %vm1088, %v1781, 0
    %2088 = vmatprep.subr.mxu0 0.0
    %2089 = vmatpush1.msra.mxu0 %v1084
    %2090 = vmatprep.subr.mxu0 0.0
    %2091 = vmatpush1.msra.mxu0 0.0
    %2092 = vmatprep.subr.mxu0 0.0
    %2093 = vmatpush1.msra.mxu0 0.0
    %2094 = vmatprep.subr.mxu0 0.0
    %2095 = vmatpush1.msra.mxu0 0.0
    %2096 = vmatprep.subr.mxu0 0.0
    %2097 = vmatpush1.msra.mxu0 0.0
    %2098 = vmatprep.subr.mxu0 0.0
    %2099 = vmatpush1.msra.mxu0 0.0
    %2100 = vmatprep.subr.mxu0 0.0
    %2101 = vmatpush1.msra.mxu0 0.0
    %2102 = vmatprep.subr.mxu0 0.0
    %2103 = vmatpush1.msra.mxu0 0.0
    %2104 = vmatprep.subr.mxu0 0.0
    %2105 = vmatpush1.msra.mxu0 0.0
    %2106 = vmatprep.subr.mxu0 0.0
    %2107 = vmatpush1.msra.mxu0 0.0
    %2108 = vmatprep.subr.mxu0 0.0
    %2109 = vmatpush1.msra.mxu0 0.0
    %2110 = vmatprep.subr.mxu0 0.0
    %2111 = vmatpush1.msra.mxu0 0.0
    %2112 = vmatprep.subr.mxu0 0.0
    %2113 = vmatpush1.msra.mxu0 0.0
    %2114 = vmatprep.subr.mxu0 0.0
    %2115 = vmatpush1.msra.mxu0 0.0
    %2116 = vmatprep.subr.mxu0 0.0
    %2117 = vmatpush1.msra.mxu0 0.0
    %2118 = vmatprep.subr.mxu0 0.0
    %2119 = vmatpush1.msra.mxu0 0.0
    %2120 = vmatprep.subr.mxu0 0.0
    %2121 = vmatpush1.msra.mxu0 0.0
    %2122 = vmatprep.subr.mxu0 0.0
    %2123 = vmatpush1.msra.mxu0 0.0
    %2124 = vmatprep.subr.mxu0 0.0
    %2125 = vmatpush1.msra.mxu0 0.0
    %2126 = vmatprep.subr.mxu0 0.0
    %2127 = vmatpush1.msra.mxu0 0.0
    %2128 = vmatprep.subr.mxu0 0.0
    %2129 = vmatpush1.msra.mxu0 0.0
    %2130 = vmatprep.subr.mxu0 0.0
    %2131 = vmatpush1.msra.mxu0 0.0
    %2132 = vmatprep.subr.mxu0 0.0
    %2133 = vmatpush1.msra.mxu0 0.0
    %2134 = vmatprep.subr.mxu0 0.0
    %2135 = vmatpush1.msra.mxu0 0.0
    %2136 = vmatprep.subr.mxu0 0.0
    %2137 = vmatpush1.msra.mxu0 0.0
    %2138 = vmatprep.subr.mxu0 0.0
    %2139 = vmatpush1.msra.mxu0 0.0
    %2140 = vmatprep.subr.mxu0 0.0
    %2141 = vmatpush1.msra.mxu0 0.0
    %2142 = vmatprep.subr.mxu0 0.0
    %2143 = vmatpush1.msra.mxu0 0.0
    %2144 = vmatprep.subr.mxu0 0.0
    %2145 = vmatpush1.msra.mxu0 0.0
    %2146 = vmatprep.subr.mxu0 0.0
    %2147 = vmatpush1.msra.mxu0 0.0
    %2148 = vmatprep.subr.mxu0 0.0
    %2149 = vmatpush1.msra.mxu0 0.0
    %2150 = vmatprep.subr.mxu0 0.0
    %2151 = vmatpush1.msra.mxu0 0.0
    %2152 = vmatprep.mubr.f32.mxu0 0.0
    %2153 = vmatmul.mubr.f32.gmra.mrb[0].mxu0 %v2086
    %v2154 = vpop.f32.mrb[0].mxu0
    %v2155 = vadd.f32 0.0, %v2154
    %v2156 = vpop.f32.mrb[0].mxu0
    %2157 = vdwg.mxu0
    %v2159 = vsel %vm1088, %v1782, 0
    %2161 = vmatprep.subr.mxu0 0.0
    %2162 = vmatpush1.msra.mxu0 %v1085
    %2163 = vmatprep.subr.mxu0 0.0
    %2164 = vmatpush1.msra.mxu0 0.0
    %2165 = vmatprep.subr.mxu0 0.0
    %2166 = vmatpush1.msra.mxu0 0.0
    %2167 = vmatprep.subr.mxu0 0.0
    %2168 = vmatpush1.msra.mxu0 0.0
    %2169 = vmatprep.subr.mxu0 0.0
    %2170 = vmatpush1.msra.mxu0 0.0
    %2171 = vmatprep.subr.mxu0 0.0
    %2172 = vmatpush1.msra.mxu0 0.0
    %2173 = vmatprep.subr.mxu0 0.0
    %2174 = vmatpush1.msra.mxu0 0.0
    %2175 = vmatprep.subr.mxu0 0.0
    %2176 = vmatpush1.msra.mxu0 0.0
    %2177 = vmatprep.subr.mxu0 0.0
    %2178 = vmatpush1.msra.mxu0 0.0
    %2179 = vmatprep.subr.mxu0 0.0
    %2180 = vmatpush1.msra.mxu0 0.0
    %2181 = vmatprep.subr.mxu0 0.0
    %2182 = vmatpush1.msra.mxu0 0.0
    %2183 = vmatprep.subr.mxu0 0.0
    %2184 = vmatpush1.msra.mxu0 0.0
    %2185 = vmatprep.subr.mxu0 0.0
    %2186 = vmatpush1.msra.mxu0 0.0
    %2187 = vmatprep.subr.mxu0 0.0
    %2188 = vmatpush1.msra.mxu0 0.0
    %2189 = vmatprep.subr.mxu0 0.0
    %2190 = vmatpush1.msra.mxu0 0.0
    %2191 = vmatprep.subr.mxu0 0.0
    %2192 = vmatpush1.msra.mxu0 0.0
    %2193 = vmatprep.subr.mxu0 0.0
    %2194 = vmatpush1.msra.mxu0 0.0
    %2195 = vmatprep.subr.mxu0 0.0
    %2196 = vmatpush1.msra.mxu0 0.0
    %2197 = vmatprep.subr.mxu0 0.0
    %2198 = vmatpush1.msra.mxu0 0.0
    %2199 = vmatprep.subr.mxu0 0.0
    %2200 = vmatpush1.msra.mxu0 0.0
    %2201 = vmatprep.subr.mxu0 0.0
    %2202 = vmatpush1.msra.mxu0 0.0
    %2203 = vmatprep.subr.mxu0 0.0
    %2204 = vmatpush1.msra.mxu0 0.0
    %2205 = vmatprep.subr.mxu0 0.0
    %2206 = vmatpush1.msra.mxu0 0.0
    %2207 = vmatprep.subr.mxu0 0.0
    %2208 = vmatpush1.msra.mxu0 0.0
    %2209 = vmatprep.subr.mxu0 0.0
    %2210 = vmatpush1.msra.mxu0 0.0
    %2211 = vmatprep.subr.mxu0 0.0
    %2212 = vmatpush1.msra.mxu0 0.0
    %2213 = vmatprep.subr.mxu0 0.0
    %2214 = vmatpush1.msra.mxu0 0.0
    %2215 = vmatprep.subr.mxu0 0.0
    %2216 = vmatpush1.msra.mxu0 0.0
    %2217 = vmatprep.subr.mxu0 0.0
    %2218 = vmatpush1.msra.mxu0 0.0
    %2219 = vmatprep.subr.mxu0 0.0
    %2220 = vmatpush1.msra.mxu0 0.0
    %2221 = vmatprep.subr.mxu0 0.0
    %2222 = vmatpush1.msra.mxu0 0.0
    %2223 = vmatprep.subr.mxu0 0.0
    %2224 = vmatpush1.msra.mxu0 0.0
    %2225 = vmatprep.mubr.f32.mxu0 0.0
    %2226 = vmatmul.mubr.f32.gmra.mrb[0].mxu0 %v2159
    %v2227 = vpop.f32.mrb[0].mxu0
    %v2228 = vadd.f32 0.0, %v2227
    %v2229 = vpop.f32.mrb[0].mxu0
    %2230 = vdwg.mxu0
    %v2232 = vsel %vm1088, %v1783, 0
    %2234 = vmatprep.subr.mxu0 0.0
    %2235 = vmatpush1.msra.mxu0 %v1086
    %2236 = vmatprep.subr.mxu0 0.0
    %2237 = vmatpush1.msra.mxu0 0.0
    %2238 = vmatprep.subr.mxu0 0.0
    %2239 = vmatpush1.msra.mxu0 0.0
    %2240 = vmatprep.subr.mxu0 0.0
    %2241 = vmatpush1.msra.mxu0 0.0
    %2242 = vmatprep.subr.mxu0 0.0
    %2243 = vmatpush1.msra.mxu0 0.0
    %2244 = vmatprep.subr.mxu0 0.0
    %2245 = vmatpush1.msra.mxu0 0.0
    %2246 = vmatprep.subr.mxu0 0.0
    %2247 = vmatpush1.msra.mxu0 0.0
    %2248 = vmatprep.subr.mxu0 0.0
    %2249 = vmatpush1.msra.mxu0 0.0
    %2250 = vmatprep.subr.mxu0 0.0
    %2251 = vmatpush1.msra.mxu0 0.0
    %2252 = vmatprep.subr.mxu0 0.0
    %2253 = vmatpush1.msra.mxu0 0.0
    %2254 = vmatprep.subr.mxu0 0.0
    %2255 = vmatpush1.msra.mxu0 0.0
    %2256 = vmatprep.subr.mxu0 0.0
    %2257 = vmatpush1.msra.mxu0 0.0
    %2258 = vmatprep.subr.mxu0 0.0
    %2259 = vmatpush1.msra.mxu0 0.0
    %2260 = vmatprep.subr.mxu0 0.0
    %2261 = vmatpush1.msra.mxu0 0.0
    %2262 = vmatprep.subr.mxu0 0.0
    %2263 = vmatpush1.msra.mxu0 0.0
    %2264 = vmatprep.subr.mxu0 0.0
    %2265 = vmatpush1.msra.mxu0 0.0
    %2266 = vmatprep.subr.mxu0 0.0
    %2267 = vmatpush1.msra.mxu0 0.0
    %2268 = vmatprep.subr.mxu0 0.0
    %2269 = vmatpush1.msra.mxu0 0.0
    %2270 = vmatprep.subr.mxu0 0.0
    %2271 = vmatpush1.msra.mxu0 0.0
    %2272 = vmatprep.subr.mxu0 0.0
    %2273 = vmatpush1.msra.mxu0 0.0
    %2274 = vmatprep.subr.mxu0 0.0
    %2275 = vmatpush1.msra.mxu0 0.0
    %2276 = vmatprep.subr.mxu0 0.0
    %2277 = vmatpush1.msra.mxu0 0.0
    %2278 = vmatprep.subr.mxu0 0.0
    %2279 = vmatpush1.msra.mxu0 0.0
    %2280 = vmatprep.subr.mxu0 0.0
    %2281 = vmatpush1.msra.mxu0 0.0
    %2282 = vmatprep.subr.mxu0 0.0
    %2283 = vmatpush1.msra.mxu0 0.0
    %2284 = vmatprep.subr.mxu0 0.0
    %2285 = vmatpush1.msra.mxu0 0.0
    %2286 = vmatprep.subr.mxu0 0.0
    %2287 = vmatpush1.msra.mxu0 0.0
    %2288 = vmatprep.subr.mxu0 0.0
    %2289 = vmatpush1.msra.mxu0 0.0
    %2290 = vmatprep.subr.mxu0 0.0
    %2291 = vmatpush1.msra.mxu0 0.0
    %2292 = vmatprep.subr.mxu0 0.0
    %2293 = vmatpush1.msra.mxu0 0.0
    %2294 = vmatprep.subr.mxu0 0.0
    %2295 = vmatpush1.msra.mxu0 0.0
    %2296 = vmatprep.subr.mxu0 0.0
    %2297 = vmatpush1.msra.mxu0 0.0
    %2298 = vmatprep.mubr.f32.mxu0 0.0
    %2299 = vmatmul.mubr.f32.gmra.mrb[0].mxu0 %v2232
    %v2300 = vpop.f32.mrb[0].mxu0
    %v2301 = vadd.f32 0.0, %v2300
    %v2302 = vpop.f32.mrb[0].mxu0
    %2303 = vdwg.mxu0
    %v2305 = vsel %vm1088, %v1784, 0
    %2307 = vmatprep.subr.mxu0 0.0
    %2308 = vmatpush1.msra.mxu0 %v1087
    %2309 = vmatprep.subr.mxu0 0.0
    %2310 = vmatpush1.msra.mxu0 0.0
    %2311 = vmatprep.subr.mxu0 0.0
    %2312 = vmatpush1.msra.mxu0 0.0
    %2313 = vmatprep.subr.mxu0 0.0
    %2314 = vmatpush1.msra.mxu0 0.0
    %2315 = vmatprep.subr.mxu0 0.0
    %2316 = vmatpush1.msra.mxu0 0.0
    %2317 = vmatprep.subr.mxu0 0.0
    %2318 = vmatpush1.msra.mxu0 0.0
    %2319 = vmatprep.subr.mxu0 0.0
    %2320 = vmatpush1.msra.mxu0 0.0
    %2321 = vmatprep.subr.mxu0 0.0
    %2322 = vmatpush1.msra.mxu0 0.0
    %2323 = vmatprep.subr.mxu0 0.0
    %2324 = vmatpush1.msra.mxu0 0.0
    %2325 = vmatprep.subr.mxu0 0.0
    %2326 = vmatpush1.msra.mxu0 0.0
    %2327 = vmatprep.subr.mxu0 0.0
    %2328 = vmatpush1.msra.mxu0 0.0
    %2329 = vmatprep.subr.mxu0 0.0
    %2330 = vmatpush1.msra.mxu0 0.0
    %2331 = vmatprep.subr.mxu0 0.0
    %2332 = vmatpush1.msra.mxu0 0.0
    %2333 = vmatprep.subr.mxu0 0.0
    %2334 = vmatpush1.msra.mxu0 0.0
    %2335 = vmatprep.subr.mxu0 0.0
    %2336 = vmatpush1.msra.mxu0 0.0
    %2337 = vmatprep.subr.mxu0 0.0
    %2338 = vmatpush1.msra.mxu0 0.0
    %2339 = vmatprep.subr.mxu0 0.0
    %2340 = vmatpush1.msra.mxu0 0.0
    %2341 = vmatprep.subr.mxu0 0.0
    %2342 = vmatpush1.msra.mxu0 0.0
    %2343 = vmatprep.subr.mxu0 0.0
    %2344 = vmatpush1.msra.mxu0 0.0
    %2345 = vmatprep.subr.mxu0 0.0
    %2346 = vmatpush1.msra.mxu0 0.0
    %2347 = vmatprep.subr.mxu0 0.0
    %2348 = vmatpush1.msra.mxu0 0.0
    %2349 = vmatprep.subr.mxu0 0.0
    %2350 = vmatpush1.msra.mxu0 0.0
    %2351 = vmatprep.subr.mxu0 0.0
    %2352 = vmatpush1.msra.mxu0 0.0
    %2353 = vmatprep.subr.mxu0 0.0
    %2354 = vmatpush1.msra.mxu0 0.0
    %2355 = vmatprep.subr.mxu0 0.0
    %2356 = vmatpush1.msra.mxu0 0.0
    %2357 = vmatprep.subr.mxu0 0.0
    %2358 = vmatpush1.msra.mxu0 0.0
    %2359 = vmatprep.subr.mxu0 0.0
    %2360 = vmatpush1.msra.mxu0 0.0
    %2361 = vmatprep.subr.mxu0 0.0
    %2362 = vmatpush1.msra.mxu0 0.0
    %2363 = vmatprep.subr.mxu0 0.0
    %2364 = vmatpush1.msra.mxu0 0.0
    %2365 = vmatprep.subr.mxu0 0.0
    %2366 = vmatpush1.msra.mxu0 0.0
    %2367 = vmatprep.subr.mxu0 0.0
    %2368 = vmatpush1.msra.mxu0 0.0
    %2369 = vmatprep.subr.mxu0 0.0
    %2370 = vmatpush1.msra.mxu0 0.0
    %2371 = vmatprep.mubr.f32.mxu0 0.0
    %2372 = vmatmul.mubr.f32.gmra.mrb[0].mxu0 %v2305
    %v2373 = vpop.f32.mrb[0].mxu0
    %v2374 = vadd.f32 0.0, %v2373
    %v2375 = vpop.f32.mrb[0].mxu0
    %2376 = vdwg.mxu0
    %v2377 = vcombine.low %v1863, %v2009
    %v2378 = vcombine.high %v1863, %v2009
    %v2380 = vunpack.c.l.s4 1983009808
    %v2381 = vunpack.c.0.s8 %v2380
    %v2382 = vlaneseq
    %v2383 = vshrl.u32 %v2382, 7
    %v2384 = vsub.s32 %v2381, %v2383
    %v2385 = vrot.slane %v2377, %v2384
    %v2387 = vunpack.c.l.s4 1983009808
    %v2388 = vunpack.c.0.s8 %v2387
    %v2389 = vlaneseq
    %v2390 = vshrl.u32 %v2389, 7
    %v2391 = vsub.s32 %v2388, %v2390
    %v2392 = vrot.slane %v2378, %v2391
    %v2393 = vcombine.low %v1936, %v2082
    %v2394 = vcombine.high %v1936, %v2082
    %v2396 = vunpack.c.l.s4 1983009808
    %v2397 = vunpack.c.0.s8 %v2396
    %v2398 = vlaneseq
    %v2399 = vshrl.u32 %v2398, 7
    %v2400 = vsub.s32 %v2397, %v2399
    %v2401 = vrot.slane %v2393, %v2400
    %v2403 = vunpack.c.l.s4 1983009808
    %v2404 = vunpack.c.0.s8 %v2403
    %v2405 = vlaneseq
    %v2406 = vshrl.u32 %v2405, 7
    %v2407 = vsub.s32 %v2404, %v2406
    %v2408 = vrot.slane %v2394, %v2407
    %v2409 = vcombine.low %v2385, %v2401
    %v2410 = vcombine.high %v2385, %v2401
    %v2412 = vunpack.c.l.s4 1934713408
    %v2413 = vunpack.c.0.s8 %v2412
    %v2414 = vlaneseq
    %v2415 = vshrl.u32 %v2414, 7
    %v2416 = vsub.s32 %v2413, %v2415
    %v2417 = vrot.slane %v2409, %v2416
    %v2419 = vunpack.c.l.s4 1934713408
    %v2420 = vunpack.c.0.s8 %v2419
    %v2421 = vlaneseq
    %v2422 = vshrl.u32 %v2421, 7
    %v2423 = vsub.s32 %v2420, %v2422
    %v2424 = vrot.slane %v2410, %v2423
    %v2425 = vcombine.low %v2392, %v2408
    %v2426 = vcombine.high %v2392, %v2408
    %v2428 = vunpack.c.l.s4 1934713408
    %v2429 = vunpack.c.0.s8 %v2428
    %v2430 = vlaneseq
    %v2431 = vshrl.u32 %v2430, 7
    %v2432 = vsub.s32 %v2429, %v2431
    %v2433 = vrot.slane %v2425, %v2432
    %v2435 = vunpack.c.l.s4 1934713408
    %v2436 = vunpack.c.0.s8 %v2435
    %v2437 = vlaneseq
    %v2438 = vshrl.u32 %v2437, 7
    %v2439 = vsub.s32 %v2436, %v2438
    %v2440 = vrot.slane %v2426, %v2439
    %v2441 = vcombine.high %v2417, 0.0
    %v2442 = vcombine.high %v2424, 0.0
    %v2443 = vcombine.high %v2433, 0.0
    %v2444 = vcombine.high %v2440, 0.0
    %v2445 = vcombine.low %v2155, %v2301
    %v2446 = vcombine.high %v2155, %v2301
    %v2448 = vunpack.c.l.s4 1983009808
    %v2449 = vunpack.c.0.s8 %v2448
    %v2450 = vlaneseq
    %v2451 = vshrl.u32 %v2450, 7
    %v2452 = vsub.s32 %v2449, %v2451
    %v2453 = vrot.slane %v2445, %v2452
    %v2455 = vunpack.c.l.s4 1983009808
    %v2456 = vunpack.c.0.s8 %v2455
    %v2457 = vlaneseq
    %v2458 = vshrl.u32 %v2457, 7
    %v2459 = vsub.s32 %v2456, %v2458
    %v2460 = vrot.slane %v2446, %v2459
    %v2461 = vcombine.low %v2228, %v2374
    %v2462 = vcombine.high %v2228, %v2374
    %v2464 = vunpack.c.l.s4 1983009808
    %v2465 = vunpack.c.0.s8 %v2464
    %v2466 = vlaneseq
    %v2467 = vshrl.u32 %v2466, 7
    %v2468 = vsub.s32 %v2465, %v2467
    %v2469 = vrot.slane %v2461, %v2468
    %v2471 = vunpack.c.l.s4 1983009808
    %v2472 = vunpack.c.0.s8 %v2471
    %v2473 = vlaneseq
    %v2474 = vshrl.u32 %v2473, 7
    %v2475 = vsub.s32 %v2472, %v2474
    %v2476 = vrot.slane %v2462, %v2475
    %v2477 = vcombine.low %v2453, %v2469
    %v2478 = vcombine.high %v2453, %v2469
    %v2480 = vunpack.c.l.s4 1934713408
    %v2481 = vunpack.c.0.s8 %v2480
    %v2482 = vlaneseq
    %v2483 = vshrl.u32 %v2482, 7
    %v2484 = vsub.s32 %v2481, %v2483
    %v2485 = vrot.slane %v2477, %v2484
    %v2487 = vunpack.c.l.s4 1934713408
    %v2488 = vunpack.c.0.s8 %v2487
    %v2489 = vlaneseq
    %v2490 = vshrl.u32 %v2489, 7
    %v2491 = vsub.s32 %v2488, %v2490
    %v2492 = vrot.slane %v2478, %v2491
    %v2493 = vcombine.low %v2460, %v2476
    %v2494 = vcombine.high %v2460, %v2476
    %v2496 = vunpack.c.l.s4 1934713408
    %v2497 = vunpack.c.0.s8 %v2496
    %v2498 = vlaneseq
    %v2499 = vshrl.u32 %v2498, 7
    %v2500 = vsub.s32 %v2497, %v2499
    %v2501 = vrot.slane %v2493, %v2500
    %v2503 = vunpack.c.l.s4 1934713408
    %v2504 = vunpack.c.0.s8 %v2503
    %v2505 = vlaneseq
    %v2506 = vshrl.u32 %v2505, 7
    %v2507 = vsub.s32 %v2504, %v2506
    %v2508 = vrot.slane %v2494, %v2507
    %v2509 = vcombine.high %v2485, 0.0
    %v2510 = vcombine.high %v2492, 0.0
    %v2511 = vcombine.high %v2501, 0.0
    %v2512 = vcombine.high %v2508, 0.0
    %v2513 = vcombine.low %v2417, %v2424
    %v2515 = vunpack.c.l.s4 1983009808
    %v2516 = vunpack.c.0.s8 %v2515
    %v2517 = vlaneseq
    %v2518 = vshrl.u32 %v2517, 7
    %v2519 = vsub.s32 %v2516, %v2518
    %v2520 = vrot.slane %v2513, %v2519
    %v2521 = vcombine.low %v2441, %v2442
    %v2523 = vunpack.c.l.s4 1983009808
    %v2524 = vunpack.c.0.s8 %v2523
    %v2525 = vlaneseq
    %v2526 = vshrl.u32 %v2525, 7
    %v2527 = vsub.s32 %v2524, %v2526
    %v2528 = vrot.slane %v2521, %v2527
    %v2529 = vcombine.low %v2433, %v2440
    %v2531 = vunpack.c.l.s4 1983009808
    %v2532 = vunpack.c.0.s8 %v2531
    %v2533 = vlaneseq
    %v2534 = vshrl.u32 %v2533, 7
    %v2535 = vsub.s32 %v2532, %v2534
    %v2536 = vrot.slane %v2529, %v2535
    %v2537 = vcombine.low %v2443, %v2444
    %v2539 = vunpack.c.l.s4 1983009808
    %v2540 = vunpack.c.0.s8 %v2539
    %v2541 = vlaneseq
    %v2542 = vshrl.u32 %v2541, 7
    %v2543 = vsub.s32 %v2540, %v2542
    %v2544 = vrot.slane %v2537, %v2543
    %v2545 = vcombine.low %v2520, %v2528
    %v2546 = vcombine.high %v2520, %v2528
    %v2548 = vunpack.c.l.s4 1934713408
    %v2549 = vunpack.c.0.s8 %v2548
    %v2550 = vlaneseq
    %v2551 = vshrl.u32 %v2550, 7
    %v2552 = vsub.s32 %v2549, %v2551
    %v2553 = vrot.slane %v2545, %v2552
    %v2555 = vunpack.c.l.s4 1934713408
    %v2556 = vunpack.c.0.s8 %v2555
    %v2557 = vlaneseq
    %v2558 = vshrl.u32 %v2557, 7
    %v2559 = vsub.s32 %v2556, %v2558
    %v2560 = vrot.slane %v2546, %v2559
    %v2561 = vcombine.low %v2536, %v2544
    %v2562 = vcombine.high %v2536, %v2544
    %v2564 = vunpack.c.l.s4 1934713408
    %v2565 = vunpack.c.0.s8 %v2564
    %v2566 = vlaneseq
    %v2567 = vshrl.u32 %v2566, 7
    %v2568 = vsub.s32 %v2565, %v2567
    %v2569 = vrot.slane %v2561, %v2568
    %v2571 = vunpack.c.l.s4 1934713408
    %v2572 = vunpack.c.0.s8 %v2571
    %v2573 = vlaneseq
    %v2574 = vshrl.u32 %v2573, 7
    %v2575 = vsub.s32 %v2572, %v2574
    %v2576 = vrot.slane %v2562, %v2575
    %v2577 = vcombine.low %v2553, %v2569
    %v2578 = vcombine.high %v2553, %v2569
    %v2579 = vcombine.low %v2560, %v2576
    %v2580 = vcombine.high %v2560, %v2576
    %v2581 = vcombine.low %v2485, %v2492
    %v2583 = vunpack.c.l.s4 1983009808
    %v2584 = vunpack.c.0.s8 %v2583
    %v2585 = vlaneseq
    %v2586 = vshrl.u32 %v2585, 7
    %v2587 = vsub.s32 %v2584, %v2586
    %v2588 = vrot.slane %v2581, %v2587
    %v2589 = vcombine.low %v2509, %v2510
    %v2591 = vunpack.c.l.s4 1983009808
    %v2592 = vunpack.c.0.s8 %v2591
    %v2593 = vlaneseq
    %v2594 = vshrl.u32 %v2593, 7
    %v2595 = vsub.s32 %v2592, %v2594
    %v2596 = vrot.slane %v2589, %v2595
    %v2597 = vcombine.low %v2501, %v2508
    %v2599 = vunpack.c.l.s4 1983009808
    %v2600 = vunpack.c.0.s8 %v2599
    %v2601 = vlaneseq
    %v2602 = vshrl.u32 %v2601, 7
    %v2603 = vsub.s32 %v2600, %v2602
    %v2604 = vrot.slane %v2597, %v2603
    %v2605 = vcombine.low %v2511, %v2512
    %v2607 = vunpack.c.l.s4 1983009808
    %v2608 = vunpack.c.0.s8 %v2607
    %v2609 = vlaneseq
    %v2610 = vshrl.u32 %v2609, 7
    %v2611 = vsub.s32 %v2608, %v2610
    %v2612 = vrot.slane %v2605, %v2611
    %v2613 = vcombine.low %v2588, %v2596
    %v2614 = vcombine.high %v2588, %v2596
    %v2616 = vunpack.c.l.s4 1934713408
    %v2617 = vunpack.c.0.s8 %v2616
    %v2618 = vlaneseq
    %v2619 = vshrl.u32 %v2618, 7
    %v2620 = vsub.s32 %v2617, %v2619
    %v2621 = vrot.slane %v2613, %v2620
    %v2623 = vunpack.c.l.s4 1934713408
    %v2624 = vunpack.c.0.s8 %v2623
    %v2625 = vlaneseq
    %v2626 = vshrl.u32 %v2625, 7
    %v2627 = vsub.s32 %v2624, %v2626
    %v2628 = vrot.slane %v2614, %v2627
    %v2629 = vcombine.low %v2604, %v2612
    %v2630 = vcombine.high %v2604, %v2612
    %v2632 = vunpack.c.l.s4 1934713408
    %v2633 = vunpack.c.0.s8 %v2632
    %v2634 = vlaneseq
    %v2635 = vshrl.u32 %v2634, 7
    %v2636 = vsub.s32 %v2633, %v2635
    %v2637 = vrot.slane %v2629, %v2636
    %v2639 = vunpack.c.l.s4 1934713408
    %v2640 = vunpack.c.0.s8 %v2639
    %v2641 = vlaneseq
    %v2642 = vshrl.u32 %v2641, 7
    %v2643 = vsub.s32 %v2640, %v2642
    %v2644 = vrot.slane %v2630, %v2643
    %v2645 = vcombine.low %v2621, %v2637
    %v2646 = vcombine.high %v2621, %v2637
    %v2647 = vcombine.low %v2628, %v2644
    %v2648 = vcombine.high %v2628, %v2644
    %2651 = vrot.lane.b32.xlu0 %v2578, 8
    %v2652 = vpop.permute.xlu0 %2651
    %2653 = vrot.lane.b32.xlu0 %v2646, 8
    %v2654 = vpop.permute.xlu0 %2653
    %2659 = vrot.lane.b32.xlu0 %v2579, 16
    %v2660 = vpop.permute.xlu0 %2659
    %2661 = vrot.lane.b32.xlu0 %v2647, 16
    %v2662 = vpop.permute.xlu0 %2661
    %2667 = vrot.lane.b32.xlu0 %v2580, 24
    %v2668 = vpop.permute.xlu0 %2667
    %2669 = vrot.lane.b32.xlu0 %v2648, 24
    %v2670 = vpop.permute.xlu0 %2669
    %v2673 = vsel %vm1088, %v2577, %v2652
    %v2674 = vsel %vm1088, %v2645, %v2654
    %vm2675 = vcmask 130048
    %v2676 = vsel %vm2675, %v2673, %v2660
    %v2677 = vsel %vm2675, %v2674, %v2662
    %vm2678 = vcmask 195584
    %v2679 = vsel %vm2678, %v2676, %v2668
    %v2680 = vsel %vm2678, %v2677, %v2670
    %v2681 = vld [vmem:[%s5] sm:$0xff]
    %v2682 = vld [vmem:[%s5 + $0x8] sm:$0xff]
    %v2683 = vld [vmem:[%s5 + $0x10] sm:$0xff]
    %v2684 = vld [vmem:[%s5 + $0x18] sm:$0xff]
    %v2685 = vlaneseq
    %v2686 = vshrl.u32 %v2685, 7
    %v2687 = vsub.s32 0, %v2686
    %v2688 = vrot.slane %v38, %v2687
    %v2690 = vsel %vm56, %v2679, 0
    %v2693 = vsel %vm56, %v2680, 0
    %2695 = vmatprep.subr.mxu0 0.0
    %2696 = vmatpush1.msra.mxu0 %v2681
    %2697 = vmatprep.subr.mxu0 0.0
    %2698 = vmatpush1.msra.mxu0 %v2682
    %2699 = vmatprep.subr.mxu0 0.0
    %2700 = vmatpush1.msra.mxu0 %v2683
    %2701 = vmatprep.subr.mxu0 0.0
    %2702 = vmatpush1.msra.mxu0 %v2684
    %2703 = vmatprep.subr.mxu0 0.0
    %2704 = vmatpush1.msra.mxu0 0.0
    %2705 = vmatprep.subr.mxu0 0.0
    %2706 = vmatpush1.msra.mxu0 0.0
    %2707 = vmatprep.subr.mxu0 0.0
    %2708 = vmatpush1.msra.mxu0 0.0
    %2709 = vmatprep.subr.mxu0 0.0
    %2710 = vmatpush1.msra.mxu0 0.0
    %2711 = vmatprep.subr.mxu0 0.0
    %2712 = vmatpush1.msra.mxu0 0.0
    %2713 = vmatprep.subr.mxu0 0.0
    %2714 = vmatpush1.msra.mxu0 0.0
    %2715 = vmatprep.subr.mxu0 0.0
    %2716 = vmatpush1.msra.mxu0 0.0
    %2717 = vmatprep.subr.mxu0 0.0
    %2718 = vmatpush1.msra.mxu0 0.0
    %2719 = vmatprep.subr.mxu0 0.0
    %2720 = vmatpush1.msra.mxu0 0.0
    %2721 = vmatprep.subr.mxu0 0.0
    %2722 = vmatpush1.msra.mxu0 0.0
    %2723 = vmatprep.subr.mxu0 0.0
    %2724 = vmatpush1.msra.mxu0 0.0
    %2725 = vmatprep.subr.mxu0 0.0
    %2726 = vmatpush1.msra.mxu0 0.0
    %2727 = vmatprep.subr.mxu0 0.0
    %2728 = vmatpush1.msra.mxu0 0.0
    %2729 = vmatprep.subr.mxu0 0.0
    %2730 = vmatpush1.msra.mxu0 0.0
    %2731 = vmatprep.subr.mxu0 0.0
    %2732 = vmatpush1.msra.mxu0 0.0
    %2733 = vmatprep.subr.mxu0 0.0
    %2734 = vmatpush1.msra.mxu0 0.0
    %2735 = vmatprep.subr.mxu0 0.0
    %2736 = vmatpush1.msra.mxu0 0.0
    %2737 = vmatprep.subr.mxu0 0.0
    %2738 = vmatpush1.msra.mxu0 0.0
    %2739 = vmatprep.subr.mxu0 0.0
    %2740 = vmatpush1.msra.mxu0 0.0
    %2741 = vmatprep.subr.mxu0 0.0
    %2742 = vmatpush1.msra.mxu0 0.0
    %2743 = vmatprep.subr.mxu0 0.0
    %2744 = vmatpush1.msra.mxu0 0.0
    %2745 = vmatprep.subr.mxu0 0.0
    %2746 = vmatpush1.msra.mxu0 0.0
    %2747 = vmatprep.subr.mxu0 0.0
    %2748 = vmatpush1.msra.mxu0 0.0
    %2749 = vmatprep.subr.mxu0 0.0
    %2750 = vmatpush1.msra.mxu0 0.0
    %2751 = vmatprep.subr.mxu0 0.0
    %2752 = vmatpush1.msra.mxu0 0.0
    %2753 = vmatprep.subr.mxu0 0.0
    %2754 = vmatpush1.msra.mxu0 0.0
    %2755 = vmatprep.subr.mxu0 0.0
    %2756 = vmatpush1.msra.mxu0 0.0
    %2757 = vmatprep.subr.mxu0 0.0
    %2758 = vmatpush1.msra.mxu0 0.0
    %2759 = vmatprep.mubr.f32.mxu0 0.0
    %2760 = vmatmul.mubr.f32.gmra.mrb[0].mxu0 %v2690
    %v2761 = vpop.f32.mrb[0].mxu0
    %v2762 = vadd.f32 %v2688, %v2761
    %v2763 = vpop.f32.mrb[0].mxu0
    %2764 = vmatprep.mubr.f32.mxu0 0.0
    %2765 = vmatmul.mubr.f32.gmra.mrb[0].mxu0 %v2693
    %v2766 = vpop.f32.mrb[0].mxu0
    %v2767 = vadd.f32 %v2688, %v2766
    %v2768 = vpop.f32.mrb[0].mxu0
    %2769 = vdwg.mxu0
    %v2770 = vadd.f32 %v54, %v2762
    %v2771 = vadd.f32 %v55, %v2767
    %v2772 = vsel %vm56, %v2770, 0.0
    %2773 = vadd.xlane.f32.xlu0 %v2772
    %v2774 = vpop.xlane.xlu0 %2773
    %v2775 = vsel %vm56, %v2771, 0.0
    %2776 = vadd.xlane.f32.xlu0 %v2775
    %v2777 = vpop.xlane.xlu0 %2776
    %v2778 = vmul.f32 %v2774, %v63
    %v2779 = vmul.f32 %v2777, %v63
    %v2780 = vsub.f32 %v2770, %v2778
    %v2781 = vsub.f32 %v2771, %v2779
    %v2782 = vmul.f32 %v2780, %v2780
    %v2783 = vmul.f32 %v2781, %v2781
    %v2784 = vsel %vm56, %v2782, 0.0
    %2785 = vadd.xlane.f32.xlu0 %v2784
    %v2786 = vpop.xlane.xlu0 %2785
    %v2787 = vsel %vm56, %v2783, 0.0
    %2788 = vadd.xlane.f32.xlu0 %v2787
    %v2789 = vpop.xlane.xlu0 %2788
    %v2790 = vmul.f32 %v2786, %v63
    %v2791 = vmul.f32 %v2789, %v63
    %v2792 = vadd.f32 %v2790, 1e-06
    %v2793 = vadd.f32 %v2791, 1e-06
    %v2794 = vrsqrt.pop %v2792
    %v2795 = vrsqrt.pop %v2793
    %v2796 = vmul.f32 %v2780, %v2794
    %v2797 = vmul.f32 %v2781, %v2795
    %v2798 = vlaneseq
    %v2799 = vshrl.u32 %v2798, 7
    %v2800 = vsub.s32 0, %v2799
    %v2801 = vrot.slane %v39, %v2800
    %v2802 = vmul.f32 %v2796, %v2801
    %v2803 = vmul.f32 %v2797, %v2801
    %v2804 = vlaneseq
    %v2805 = vshrl.u32 %v2804, 7
    %v2806 = vsub.s32 0, %v2805
    %v2807 = vrot.slane %v40, %v2806
    %v2808 = vadd.f32 %v2802, %v2807
    %v2809 = vadd.f32 %v2803, %v2807
    %v2810 = vld [vmem:[%s6] sm:$0xff]
    %v2811 = vld [vmem:[%s6 + $0x8] sm:$0xff]
    %v2812 = vld [vmem:[%s6 + $0x10] sm:$0xff]
    %v2813 = vld [vmem:[%s6 + $0x18] sm:$0xff]
    %v2814 = vld [vmem:[%s7] sm:$0x1]
    %v2816 = vlaneseq
    %v2817 = vshrl.u32 %v2816, 7
    %v2818 = vsub.s32 0, %v2817
    %v2819 = vrot.slane %v2814, %v2818
    %v2822 = vsel %vm56, %v2808, 0
    %v2825 = vsel %vm56, %v2809, 0
    %2827 = vmatprep.subr.mxu0 0.0
    %2828 = vmatpush1.msra.mxu0 %v2810
    %2829 = vmatprep.subr.mxu0 0.0
    %2830 = vmatpush1.msra.mxu0 %v2811
    %2831 = vmatprep.subr.mxu0 0.0
    %2832 = vmatpush1.msra.mxu0 %v2812
    %2833 = vmatprep.subr.mxu0 0.0
    %2834 = vmatpush1.msra.mxu0 %v2813
    %2835 = vmatprep.subr.mxu0 0.0
    %2836 = vmatpush1.msra.mxu0 0.0
    %2837 = vmatprep.subr.mxu0 0.0
    %2838 = vmatpush1.msra.mxu0 0.0
    %2839 = vmatprep.subr.mxu0 0.0
    %2840 = vmatpush1.msra.mxu0 0.0
    %2841 = vmatprep.subr.mxu0 0.0
    %2842 = vmatpush1.msra.mxu0 0.0
    %2843 = vmatprep.subr.mxu0 0.0
    %2844 = vmatpush1.msra.mxu0 0.0
    %2845 = vmatprep.subr.mxu0 0.0
    %2846 = vmatpush1.msra.mxu0 0.0
    %2847 = vmatprep.subr.mxu0 0.0
    %2848 = vmatpush1.msra.mxu0 0.0
    %2849 = vmatprep.subr.mxu0 0.0
    %2850 = vmatpush1.msra.mxu0 0.0
    %2851 = vmatprep.subr.mxu0 0.0
    %2852 = vmatpush1.msra.mxu0 0.0
    %2853 = vmatprep.subr.mxu0 0.0
    %2854 = vmatpush1.msra.mxu0 0.0
    %2855 = vmatprep.subr.mxu0 0.0
    %2856 = vmatpush1.msra.mxu0 0.0
    %2857 = vmatprep.subr.mxu0 0.0
    %2858 = vmatpush1.msra.mxu0 0.0
    %2859 = vmatprep.subr.mxu0 0.0
    %2860 = vmatpush1.msra.mxu0 0.0
    %2861 = vmatprep.subr.mxu0 0.0
    %2862 = vmatpush1.msra.mxu0 0.0
    %2863 = vmatprep.subr.mxu0 0.0
    %2864 = vmatpush1.msra.mxu0 0.0
    %2865 = vmatprep.subr.mxu0 0.0
    %2866 = vmatpush1.msra.mxu0 0.0
    %2867 = vmatprep.subr.mxu0 0.0
    %2868 = vmatpush1.msra.mxu0 0.0
    %2869 = vmatprep.subr.mxu0 0.0
    %2870 = vmatpush1.msra.mxu0 0.0
    %2871 = vmatprep.subr.mxu0 0.0
    %2872 = vmatpush1.msra.mxu0 0.0
    %2873 = vmatprep.subr.mxu0 0.0
    %2874 = vmatpush1.msra.mxu0 0.0
    %2875 = vmatprep.subr.mxu0 0.0
    %2876 = vmatpush1.msra.mxu0 0.0
    %2877 = vmatprep.subr.mxu0 0.0
    %2878 = vmatpush1.msra.mxu0 0.0
    %2879 = vmatprep.subr.mxu0 0.0
    %2880 = vmatpush1.msra.mxu0 0.0
    %2881 = vmatprep.subr.mxu0 0.0
    %2882 = vmatpush1.msra.mxu0 0.0
    %2883 = vmatprep.subr.mxu0 0.0
    %2884 = vmatpush1.msra.mxu0 0.0
    %2885 = vmatprep.subr.mxu0 0.0
    %2886 = vmatpush1.msra.mxu0 0.0
    %2887 = vmatprep.subr.mxu0 0.0
    %2888 = vmatpush1.msra.mxu0 0.0
    %2889 = vmatprep.subr.mxu0 0.0
    %2890 = vmatpush1.msra.mxu0 0.0
    %2891 = vmatprep.mubr.f32.mxu0 0.0
    %2892 = vmatmul.mubr.f32.gmra.mrb[0].mxu0 %v2822
    %v2893 = vpop.f32.mrb[0].mxu0
    %v2894 = vadd.f32 %v2819, %v2893
    %v2895 = vpop.f32.mrb[0].mxu0
    %2896 = vmatprep.mubr.f32.mxu0 0.0
    %2897 = vmatmul.mubr.f32.gmra.mrb[0].mxu0 %v2825
    %v2898 = vpop.f32.mrb[0].mxu0
    %v2899 = vadd.f32 %v2819, %v2898
    %v2900 = vpop.f32.mrb[0].mxu0
    %2901 = vdwg.mxu0
    %v2902 = vmul.f32 %v2894, %v2894
    %v2903 = vmul.f32 %v2899, %v2899
    %v2904 = vmul.f32 %v2894, %v2902
    %v2905 = vmul.f32 %v2899, %v2903
    %v2906 = vmul.f32 %v2904, 0.044715
    %v2907 = vmul.f32 %v2905, 0.044715
    %v2908 = vadd.f32 %v2894, %v2906
    %v2909 = vadd.f32 %v2899, %v2907
    %v2910 = vmul.f32 %v2908, 0.7978846
    %v2911 = vmul.f32 %v2909, 0.7978846
    %v2912 = vtanh.pop %v2910
    %v2913 = vtanh.pop %v2911
    %v2914 = vadd.f32 %v2912, 1.0
    %v2915 = vadd.f32 %v2913, 1.0
    %v2916 = vmul.f32 %v2914, 0.5
    %v2917 = vmul.f32 %v2915, 0.5
    %v2918 = vmul.f32 %v2894, %v2916
    %v2919 = vmul.f32 %v2899, %v2917
    %v2920 = vld [vmem:[%s8] sm:$0xff]
    %v2921 = vld [vmem:[%s8 + $0x8] sm:$0xff]
    %v2922 = vld [vmem:[%s8 + $0x10] sm:$0xff]
    %v2923 = vld [vmem:[%s8 + $0x18] sm:$0xff]
    %v2924 = vld [vmem:[%s8 + $0x20] sm:$0xff]
    %v2925 = vld [vmem:[%s8 + $0x28] sm:$0xff]
    %v2926 = vld [vmem:[%s8 + $0x30] sm:$0xff]
    %v2927 = vld [vmem:[%s8 + $0x38] sm:$0xff]
    %v2928 = vlaneseq
    %v2929 = vshrl.u32 %v2928, 7
    %v2930 = vsub.s32 0, %v2929
    %v2931 = vrot.slane %v41, %v2930
    %vm2932 = vcmask 523264
    %v2934 = vsel %vm2932, %v2918, 0
    %v2937 = vsel %vm2932, %v2919, 0
    %2939 = vmatprep.subr.mxu0 0.0
    %2940 = vmatpush1.msra.mxu0 %v2920
    %2941 = vmatprep.subr.mxu0 0.0
    %2942 = vmatpush1.msra.mxu0 %v2921
    %2943 = vmatprep.subr.mxu0 0.0
    %2944 = vmatpush1.msra.mxu0 %v2922
    %2945 = vmatprep.subr.mxu0 0.0
    %2946 = vmatpush1.msra.mxu0 %v2923
    %2947 = vmatprep.subr.mxu0 0.0
    %2948 = vmatpush1.msra.mxu0 %v2924
    %2949 = vmatprep.subr.mxu0 0.0
    %2950 = vmatpush1.msra.mxu0 %v2925
    %2951 = vmatprep.subr.mxu0 0.0
    %2952 = vmatpush1.msra.mxu0 %v2926
    %2953 = vmatprep.subr.mxu0 0.0
    %2954 = vmatpush1.msra.mxu0 %v2927
    %2955 = vmatprep.subr.mxu0 0.0
    %2956 = vmatpush1.msra.mxu0 0.0
    %2957 = vmatprep.subr.mxu0 0.0
    %2958 = vmatpush1.msra.mxu0 0.0
    %2959 = vmatprep.subr.mxu0 0.0
    %2960 = vmatpush1.msra.mxu0 0.0
    %2961 = vmatprep.subr.mxu0 0.0
    %2962 = vmatpush1.msra.mxu0 0.0
    %2963 = vmatprep.subr.mxu0 0.0
    %2964 = vmatpush1.msra.mxu0 0.0
    %2965 = vmatprep.subr.mxu0 0.0
    %2966 = vmatpush1.msra.mxu0 0.0
    %2967 = vmatprep.subr.mxu0 0.0
    %2968 = vmatpush1.msra.mxu0 0.0
    %2969 = vmatprep.subr.mxu0 0.0
    %2970 = vmatpush1.msra.mxu0 0.0
    %2971 = vmatprep.subr.mxu0 0.0
    %2972 = vmatpush1.msra.mxu0 0.0
    %2973 = vmatprep.subr.mxu0 0.0
    %2974 = vmatpush1.msra.mxu0 0.0
    %2975 = vmatprep.subr.mxu0 0.0
    %2976 = vmatpush1.msra.mxu0 0.0
    %2977 = vmatprep.subr.mxu0 0.0
    %2978 = vmatpush1.msra.mxu0 0.0
    %2979 = vmatprep.subr.mxu0 0.0
    %2980 = vmatpush1.msra.mxu0 0.0
    %2981 = vmatprep.subr.mxu0 0.0
    %2982 = vmatpush1.msra.mxu0 0.0
    %2983 = vmatprep.subr.mxu0 0.0
    %2984 = vmatpush1.msra.mxu0 0.0
    %2985 = vmatprep.subr.mxu0 0.0
    %2986 = vmatpush1.msra.mxu0 0.0
    %2987 = vmatprep.subr.mxu0 0.0
    %2988 = vmatpush1.msra.mxu0 0.0
    %2989 = vmatprep.subr.mxu0 0.0
    %2990 = vmatpush1.msra.mxu0 0.0
    %2991 = vmatprep.subr.mxu0 0.0
    %2992 = vmatpush1.msra.mxu0 0.0
    %2993 = vmatprep.subr.mxu0 0.0
    %2994 = vmatpush1.msra.mxu0 0.0
    %2995 = vmatprep.subr.mxu0 0.0
    %2996 = vmatpush1.msra.mxu0 0.0
    %2997 = vmatprep.subr.mxu0 0.0
    %2998 = vmatpush1.msra.mxu0 0.0
    %2999 = vmatprep.subr.mxu0 0.0
    %3000 = vmatpush1.msra.mxu0 0.0
    %3001 = vmatprep.subr.mxu0 0.0
    %3002 = vmatpush1.msra.mxu0 0.0
    %3003 = vmatprep.mubr.f32.mxu0 0.0
    %3004 = vmatmul.mubr.f32.gmra.mrb[0].mxu0 %v2934
    %v3005 = vpop.f32.mrb[0].mxu0
    %v3006 = vadd.f32 %v2931, %v3005
    %v3007 = vpop.f32.mrb[0].mxu0
    %3008 = vmatprep.mubr.f32.mxu0 0.0
    %3009 = vmatmul.mubr.f32.gmra.mrb[0].mxu0 %v2937
    %v3010 = vpop.f32.mrb[0].mxu0
    %v3011 = vadd.f32 %v2931, %v3010
    %v3012 = vpop.f32.mrb[0].mxu0
    %3013 = vdwg.mxu0
    %v3014 = vadd.f32 %v2770, %v3006
    %v3015 = vadd.f32 %v2771, %v3011
    %v3016 = vsel %vm56, %v3014, 0.0
    %3017 = vadd.xlane.f32.xlu0 %v3016
    %v3018 = vpop.xlane.xlu0 %3017
    %v3019 = vsel %vm56, %v3015, 0.0
    %3020 = vadd.xlane.f32.xlu0 %v3019
    %v3021 = vpop.xlane.xlu0 %3020
    %v3022 = vmul.f32 %v3018, %v63
    %v3023 = vmul.f32 %v3021, %v63
    %v3024 = vsub.f32 %v3014, %v3022
    %v3025 = vsub.f32 %v3015, %v3023
    %v3026 = vmul.f32 %v3024, %v3024
    %v3027 = vmul.f32 %v3025, %v3025
    %v3028 = vsel %vm56, %v3026, 0.0
    %3029 = vadd.xlane.f32.xlu0 %v3028
    %v3030 = vpop.xlane.xlu0 %3029
    %v3031 = vsel %vm56, %v3027, 0.0
    %3032 = vadd.xlane.f32.xlu0 %v3031
    %v3033 = vpop.xlane.xlu0 %3032
    %v3034 = vmul.f32 %v3030, %v63
    %v3035 = vmul.f32 %v3033, %v63
    %v3036 = vadd.f32 %v3034, 1e-06
    %v3037 = vadd.f32 %v3035, 1e-06
    %v3038 = vrsqrt.pop %v3036
    %v3039 = vrsqrt.pop %v3037
    %v3040 = vmul.f32 %v3024, %v3038
    %v3041 = vmul.f32 %v3025, %v3039
    %v3042 = vlaneseq
    %v3043 = vshrl.u32 %v3042, 7
    %v3044 = vsub.s32 0, %v3043
    %v3045 = vrot.slane %v42, %v3044
    %v3046 = vmul.f32 %v3040, %v3045
    %v3047 = vmul.f32 %v3041, %v3045
    %v3048 = vlaneseq
    %v3049 = vshrl.u32 %v3048, 7
    %v3050 = vsub.s32 0, %v3049
    %v3051 = vrot.slane %v43, %v3050
    %v3052 = vadd.f32 %v3046, %v3051
    %v3053 = vadd.f32 %v3047, %v3051
    %3054 = vst.msk [vmem:[#allocation3] sm:$0xff] %vm56, %v3052
    %3055 = vst.msk [vmem:[#allocation3 + $0x8] sm:$0xff] %vm56, %v3053
    // Predicated region
    $region38: #{tpu_custom_call.1} parent=1 // pred_check
      _
    $region39: #{tpu_custom_call.1} parent=1 // pred_check_branch
      %3057 = sbr.rel (0) target = $region41
    $region40: #{tpu_custom_call.1} parent=1 // pred_region
      %s3059 = ssub.s32 256, 256
      %3060 = vsyncadd [#allocation4], %s3059
      %s3061 = sshll.u32 [#allocation3], 4
      %s3062 = int_to_ptr.vmem [resolvable:$true] %s3061
      %3067 = dma.vmem_to_hbm [thread:$0]  %s3062, 256, %s9, [#allocation4], 128, 128, 8
    $region41: #{tpu_custom_call.1} parent=1 // pred_fallthru
      _
    // Predicated region
    $region42: #{tpu_custom_call.1} parent=1 // pred_check
      _
    $region43: #{tpu_custom_call.1} parent=1 // pred_check_branch
      %3069 = sbr.rel (0) target = $region45
    $region44: #{tpu_custom_call.1} parent=1 // pred_region
      %s3071 = ssub.s32 1024, 1024
      %3072 = vsyncadd [#allocation6], %s3071
      %s3073 = sshll.u32 [#allocation5], 4
      %s3074 = int_to_ptr.vmem [resolvable:$true] %s3073
      %3079 = dma.vmem_to_hbm [thread:$0]  %s3074, 1024, %s10, [#allocation6], 128, 128, 8
    $region45: #{tpu_custom_call.1} parent=1 // pred_fallthru
      _
    // Predicated region
    $region46: #{tpu_custom_call.1} parent=1 // pred_check
      _
    $region47: #{tpu_custom_call.1} parent=1 // pred_check_branch
      %3081 = sbr.rel (0) target = $region49
    $region48: #{tpu_custom_call.1} parent=1 // pred_region
      %3082 = dma.done [#allocation4], 256
    $region49: #{tpu_custom_call.1} parent=1 // pred_fallthru
      _
    // Predicated region
    $region50: #{tpu_custom_call.1} parent=1 // pred_check
      _
    $region51: #{tpu_custom_call.1} parent=1 // pred_check_branch
      %3084 = sbr.rel (0) target = $region53
    $region52: #{tpu_custom_call.1} parent=1 // pred_region
      %3085 = dma.done [#allocation6], 1024
    $region53: #{tpu_custom_call.1} parent=1 // pred_fallthru
      _
    %3086 = vsyncpa [#allocation4], 1
    %3087 = vsyncpa [#allocation6], 1

// kernel: tpu_custom_call.1
$region0: #{tpu_custom_call.1}
  #allocation0 [shape = 'u32[]', space=smem, size = 0x4, offset = 0x4, fixed_abs, tag = 'smem constant byte address 0x4 - core index']
  #allocation1 [shape = 'u32[144,128]{1,0:T(1,128)}', space=vmem, size = 0x12000, scoped, tag = 'internal scratch']
  #allocation2 [shape = 'f32[2,8,32]{2,1,0:T(8,128)}', space=vmem, size = 0x2000, scoped, tag = 'scratch operand']
  %s0 = inlined_call_operand.vmem [shape: f32[2,1,32], index: 0, kind: input, shape index: {}]
  %s1 = inlined_call_operand.vmem [shape: f32[2,7,32], index: 1, kind: input, shape index: {}]
  %s2 = inlined_call_operand.vmem [shape: f32[8,32], index: 2, kind: input, shape index: {}]
  %s3 = inlined_call_operand.vmem [shape: f32[32,96], index: 3, kind: input, shape index: {}]
  %s4 = inlined_call_operand.vmem [shape: f32[1,96], index: 4, kind: input, shape index: {}]
  %s5 = inlined_call_operand.vmem [shape: f32[32,32], index: 5, kind: input, shape index: {}]
  %s6 = inlined_call_operand.vmem [shape: f32[32,64], index: 6, kind: input, shape index: {}]
  %s7 = inlined_call_operand.vmem [shape: f32[1,64], index: 7, kind: input, shape index: {}]
  %s8 = inlined_call_operand.vmem [shape: f32[64,32], index: 8, kind: input, shape index: {}]
  %s9 = inlined_call_operand.hbm [shape: f32[2,8,32], index: 9, kind: output, shape index: {0}]
  %s10 = inlined_call_operand.hbm [shape: f32[2,4,8,8], index: 10, kind: output, shape index: {1}]
  %11 = xla_tuple %s9, %s10
  %s12 = sld [smem:[#allocation0]]
  $region54: #{tpu_custom_call.1} parent=0
    _
  %s14 = ssub.s32 1, %s12
  %s15 = scalar_select 0, %s14, %s12
  $region1: #{tpu_custom_call.1} parent=0
    #allocation3 [shape = 'u8[8192]{0}', space=vmem, size = 0x2000, scoped, tag = 'output window, operand 0, single buffered']
    #allocation4 [shape = 's32[1]{0}', space=sflag, size = 0x4, scoped, tag = 'scoped memory for tpu_custom_call.1']
    #allocation5 [shape = 'u8[32768]{0}', space=vmem, size = 0x8000, scoped, tag = 'output window, operand 1, single buffered']
    #allocation6 [shape = 's32[1]{0}', space=sflag, size = 0x4, scoped, tag = 'scoped memory for tpu_custom_call.1']
    %16 = vsyncpa [#allocation4], 0
    %17 = vsyncpa [#allocation6], 0
    // Predicated region
    $region2: #{tpu_custom_call.1} parent=1 // pred_check
      _
    $region3: #{tpu_custom_call.1} parent=1 // pred_check_branch
      %19 = sbr.rel (0) target = $region5
    $region4: #{tpu_custom_call.1} parent=1 // pred_region
      _
    $region5: #{tpu_custom_call.1} parent=1 // pred_fallthru
      _
    // Predicated region
    $region6: #{tpu_custom_call.1} parent=1 // pred_check
      _
    $region7: #{tpu_custom_call.1} parent=1 // pred_check_branch
      %21 = sbr.rel (0) target = $region9
    $region8: #{tpu_custom_call.1} parent=1 // pred_region
      _
    $region9: #{tpu_custom_call.1} parent=1 // pred_fallthru
      _
    // Predicated region
    $region10: #{tpu_custom_call.1} parent=1 // pred_check
      _
    $region11: #{tpu_custom_call.1} parent=1 // pred_check_branch
      %23 = sbr.rel (0) target = $region13
    $region12: #{tpu_custom_call.1} parent=1 // pred_region
      _
    $region13: #{tpu_custom_call.1} parent=1 // pred_fallthru
      _
    // Predicated region
    $region14: #{tpu_custom_call.1} parent=1 // pred_check
      _
    $region15: #{tpu_custom_call.1} parent=1 // pred_check_branch
      %25 = sbr.rel (0) target = $region17
    $region16: #{tpu_custom_call.1} parent=1 // pred_region
      _
    $region17: #{tpu_custom_call.1} parent=1 // pred_fallthru
      _
    // Predicated region
    $region18: #{tpu_custom_call.1} parent=1 // pred_check
      _
    $region19: #{tpu_custom_call.1} parent=1 // pred_check_branch
      %27 = sbr.rel (0) target = $region21
    $region20: #{tpu_custom_call.1} parent=1 // pred_region
      _
    $region21: #{tpu_custom_call.1} parent=1 // pred_fallthru
      _
    // Predicated region
    $region22: #{tpu_custom_call.1} parent=1 // pred_check
      _
    $region23: #{tpu_custom_call.1} parent=1 // pred_check_branch
      %29 = sbr.rel (0) target = $region25
    $region24: #{tpu_custom_call.1} parent=1 // pred_region
      _
    $region25: #{tpu_custom_call.1} parent=1 // pred_fallthru
      _
    // Predicated region
    $region26: #{tpu_custom_call.1} parent=1 // pred_check
      _
    $region27: #{tpu_custom_call.1} parent=1 // pred_check_branch
      %31 = sbr.rel (0) target = $region29
    $region28: #{tpu_custom_call.1} parent=1 // pred_region
      _
    $region29: #{tpu_custom_call.1} parent=1 // pred_fallthru
      _
    // Predicated region
    $region30: #{tpu_custom_call.1} parent=1 // pred_check
      _
    $region31: #{tpu_custom_call.1} parent=1 // pred_check_branch
      %33 = sbr.rel (0) target = $region33
    $region32: #{tpu_custom_call.1} parent=1 // pred_region
      _
    $region33: #{tpu_custom_call.1} parent=1 // pred_fallthru
      _
    // Predicated region
    $region34: #{tpu_custom_call.1} parent=1 // pred_check
      _
    $region35: #{tpu_custom_call.1} parent=1 // pred_check_branch
      %35 = sbr.rel (0) target = $region37
    $region36: #{tpu_custom_call.1} parent=1 // pred_region
      _
    $region37: #{tpu_custom_call.1} parent=1 // pred_fallthru
      _
    %v36 = vld [vmem:[%s2] sm:$0x1]
    %v37 = vld [vmem:[%s2 + $0x1] sm:$0x1]
    %v38 = vld [vmem:[%s2 + $0x2] sm:$0x1]
    %v39 = vld [vmem:[%s2 + $0x3] sm:$0x1]
    %v40 = vld [vmem:[%s2 + $0x4] sm:$0x1]
    %v41 = vld [vmem:[%s2 + $0x5] sm:$0x1]
    %v42 = vld [vmem:[%s2 + $0x6] sm:$0x1]
    %v43 = vld [vmem:[%s2 + $0x7] sm:$0x1]
    %v44 = vld [vmem:[%s0] sm:$0x1]
    %v45 = vld [vmem:[%s0 + $0x1] sm:$0x1]
    %vm46 = vcmask 253952
    %47 = vst.msk [vmem:[#allocation2] sm:$0x1] %vm46, %v44
    %48 = vst.msk [vmem:[#allocation2 + $0x8] sm:$0x1] %vm46, %v45
    %v49 = vld [vmem:[%s1] sm:$0x7f]
    %v50 = vld [vmem:[%s1 + $0x8] sm:$0x7f]
    %vm51 = vcmask 260096
    %52 = vst.msk [vmem:[#allocation2 + $0x1] sm:$0x7f] %vm51, %v49
    %53 = vst.msk [vmem:[#allocation2 + $0x9] sm:$0x7f] %vm51, %v50
    %v54 = vld [vmem:[#allocation2] sm:$0xff]
    %v55 = vld [vmem:[#allocation2 + $0x8] sm:$0xff]
    %vm56 = vcmask 261120
    %v57 = vsel %vm56, %v54, 0.0
    %58 = vadd.xlane.f32.xlu0 %v57
    %v59 = vpop.xlane.xlu0 %58
    %v60 = vsel %vm56, %v55, 0.0
    %61 = vadd.xlane.f32.xlu0 %v60
    %v62 = vpop.xlane.xlu0 %61
    %v63 = vrcp.pop 32.0
    %v64 = vmul.f32 %v59, %v63
    %v65 = vmul.f32 %v62, %v63
    %v66 = vsub.f32 %v54, %v64
    %v67 = vsub.f32 %v55, %v65
    %v68 = vmul.f32 %v66, %v66
    %v69 = vmul.f32 %v67, %v67
    %v70 = vsel %vm56, %v68, 0.0
    %71 = vadd.xlane.f32.xlu0 %v70
    %v72 = vpop.xlane.xlu0 %71
    %v73 = vsel %vm56, %v69, 0.0
    %74 = vadd.xlane.f32.xlu0 %v73
    %v75 = vpop.xlane.xlu0 %74
    %v76 = vmul.f32 %v72, %v63
    %v77 = vmul.f32 %v75, %v63
    %v78 = vadd.f32 %v76, 1e-06
    %v79 = vadd.f32 %v77, 1e-06
    %v80 = vrsqrt.pop %v78
    %v81 = vrsqrt.pop %v79
    %v82 = vmul.f32 %v66, %v80
    %v83 = vmul.f32 %v67, %v81
    %v84 = vlaneseq
    %v85 = vshrl.u32 %v84, 7
    %v86 = vsub.s32 0, %v85
    %v87 = vrot.slane %v36, %v86
    %v88 = vmul.f32 %v82, %v87
    %v89 = vmul.f32 %v83, %v87
    %v90 = vlaneseq
    %v91 = vshrl.u32 %v90, 7
    %v92 = vsub.s32 0, %v91
    %v93 = vrot.slane %v37, %v92
    %v94 = vadd.f32 %v88, %v93
    %v95 = vadd.f32 %v89, %v93
    %v96 = vld [vmem:[%s3] sm:$0xff]
    %v97 = vld [vmem:[%s3 + $0x8] sm:$0xff]
    %v98 = vld [vmem:[%s3 + $0x10] sm:$0xff]
    %v99 = vld [vmem:[%s3 + $0x18] sm:$0xff]
    %v100 = vld [vmem:[%s4] sm:$0x1]
    %v102 = vlaneseq
    %v103 = vshrl.u32 %v102, 7
    %v104 = vsub.s32 0, %v103
    %v105 = vrot.slane %v100, %v104
    %v108 = vsel %vm56, %v94, 0
    %v111 = vsel %vm56, %v95, 0
    %113 = vmatprep.subr.mxu0 0.0
    %114 = vmatpush1.msra.mxu0 %v96
    %115 = vmatprep.subr.mxu0 0.0
    %116 = vmatpush1.msra.mxu0 %v97
    %117 = vmatprep.subr.mxu0 0.0
    %118 = vmatpush1.msra.mxu0 %v98
    %119 = vmatprep.subr.mxu0 0.0
    %120 = vmatpush1.msra.mxu0 %v99
    %121 = vmatprep.subr.mxu0 0.0
    %122 = vmatpush1.msra.mxu0 0.0
    %123 = vmatprep.subr.mxu0 0.0
    %124 = vmatpush1.msra.mxu0 0.0
    %125 = vmatprep.subr.mxu0 0.0
    %126 = vmatpush1.msra.mxu0 0.0
    %127 = vmatprep.subr.mxu0 0.0
    %128 = vmatpush1.msra.mxu0 0.0
    %129 = vmatprep.subr.mxu0 0.0
    %130 = vmatpush1.msra.mxu0 0.0
    %131 = vmatprep.subr.mxu0 0.0
    %132 = vmatpush1.msra.mxu0 0.0
    %133 = vmatprep.subr.mxu0 0.0
    %134 = vmatpush1.msra.mxu0 0.0
    %135 = vmatprep.subr.mxu0 0.0
    %136 = vmatpush1.msra.mxu0 0.0
    %137 = vmatprep.subr.mxu0 0.0
    %138 = vmatpush1.msra.mxu0 0.0
    %139 = vmatprep.subr.mxu0 0.0
    %140 = vmatpush1.msra.mxu0 0.0
    %141 = vmatprep.subr.mxu0 0.0
    %142 = vmatpush1.msra.mxu0 0.0
    %143 = vmatprep.subr.mxu0 0.0
    %144 = vmatpush1.msra.mxu0 0.0
    %145 = vmatprep.subr.mxu0 0.0
    %146 = vmatpush1.msra.mxu0 0.0
    %147 = vmatprep.subr.mxu0 0.0
    %148 = vmatpush1.msra.mxu0 0.0
    %149 = vmatprep.subr.mxu0 0.0
    %150 = vmatpush1.msra.mxu0 0.0
    %151 = vmatprep.subr.mxu0 0.0
    %152 = vmatpush1.msra.mxu0 0.0
    %153 = vmatprep.subr.mxu0 0.0
    %154 = vmatpush1.msra.mxu0 0.0
    %155 = vmatprep.subr.mxu0 0.0
    %156 = vmatpush1.msra.mxu0 0.0
    %157 = vmatprep.subr.mxu0 0.0
    %158 = vmatpush1.msra.mxu0 0.0
    %159 = vmatprep.subr.mxu0 0.0
    %160 = vmatpush1.msra.mxu0 0.0
    %161 = vmatprep.subr.mxu0 0.0
    %162 = vmatpush1.msra.mxu0 0.0
    %163 = vmatprep.subr.mxu0 0.0
    %164 = vmatpush1.msra.mxu0 0.0
    %165 = vmatprep.subr.mxu0 0.0
    %166 = vmatpush1.msra.mxu0 0.0
    %167 = vmatprep.subr.mxu0 0.0
    %168 = vmatpush1.msra.mxu0 0.0
    %169 = vmatprep.subr.mxu0 0.0
    %170 = vmatpush1.msra.mxu0 0.0
    %171 = vmatprep.subr.mxu0 0.0
    %172 = vmatpush1.msra.mxu0 0.0
    %173 = vmatprep.subr.mxu0 0.0
    %174 = vmatpush1.msra.mxu0 0.0
    %175 = vmatprep.subr.mxu0 0.0
    %176 = vmatpush1.msra.mxu0 0.0
    %177 = vmatprep.mubr.f32.mxu0 0.0
    %178 = vmatmul.mubr.f32.gmra.mrb[0].mxu0 %v108
    %v179 = vpop.f32.mrb[0].mxu0
    %v180 = vadd.f32 %v105, %v179
    %v181 = vpop.f32.mrb[0].mxu0
    %182 = vmatprep.mubr.f32.mxu0 0.0
    %183 = vmatmul.mubr.f32.gmra.mrb[0].mxu0 %v111
    %v184 = vpop.f32.mrb[0].mxu0
    %v185 = vadd.f32 %v105, %v184
    %v186 = vpop.f32.mrb[0].mxu0
    %187 = vdwg.mxu0
    %v188 = vmul.f32 %v180, 0.35355338
    %v189 = vmul.f32 %v185, 0.35355338
    %192 = vrot.lane.b32.xlu0 %v188, 120
    %v193 = vpop.permute.xlu0 %192
    %194 = vrot.lane.b32.xlu0 %v189, 120
    %v195 = vpop.permute.xlu0 %194
    %198 = vrot.lane.b32.xlu0 %v188, 112
    %v199 = vpop.permute.xlu0 %198
    %200 = vrot.lane.b32.xlu0 %v189, 112
    %v201 = vpop.permute.xlu0 %200
    %204 = vrot.lane.b32.xlu0 %v188, 104
    %v205 = vpop.permute.xlu0 %204
    %206 = vrot.lane.b32.xlu0 %v189, 104
    %v207 = vpop.permute.xlu0 %206
    %v210 = vcombine.low %v188, %v199
    %v211 = vcombine.high %v188, %v199
    %v213 = vunpack.c.l.s4 1983009808
    %v214 = vunpack.c.0.s8 %v213
    %v215 = vlaneseq
    %v216 = vshrl.u32 %v215, 7
    %v217 = vsub.s32 %v214, %v216
    %v218 = vrot.slane %v210, %v217
    %v220 = vunpack.c.l.s4 1983009808
    %v221 = vunpack.c.0.s8 %v220
    %v222 = vlaneseq
    %v223 = vshrl.u32 %v222, 7
    %v224 = vsub.s32 %v221, %v223
    %v225 = vrot.slane %v211, %v224
    %v226 = vcombine.low %v193, %v205
    %v227 = vcombine.high %v193, %v205
    %v229 = vunpack.c.l.s4 1983009808
    %v230 = vunpack.c.0.s8 %v229
    %v231 = vlaneseq
    %v232 = vshrl.u32 %v231, 7
    %v233 = vsub.s32 %v230, %v232
    %v234 = vrot.slane %v226, %v233
    %v236 = vunpack.c.l.s4 1983009808
    %v237 = vunpack.c.0.s8 %v236
    %v238 = vlaneseq
    %v239 = vshrl.u32 %v238, 7
    %v240 = vsub.s32 %v237, %v239
    %v241 = vrot.slane %v227, %v240
    %v242 = vcombine.low %v218, %v234
    %v243 = vcombine.high %v218, %v234
    %v245 = vunpack.c.l.s4 1934713408
    %v246 = vunpack.c.0.s8 %v245
    %v247 = vlaneseq
    %v248 = vshrl.u32 %v247, 7
    %v249 = vsub.s32 %v246, %v248
    %v250 = vrot.slane %v242, %v249
    %v252 = vunpack.c.l.s4 1934713408
    %v253 = vunpack.c.0.s8 %v252
    %v254 = vlaneseq
    %v255 = vshrl.u32 %v254, 7
    %v256 = vsub.s32 %v253, %v255
    %v257 = vrot.slane %v243, %v256
    %v258 = vcombine.low %v225, %v241
    %v259 = vcombine.high %v225, %v241
    %v261 = vunpack.c.l.s4 1934713408
    %v262 = vunpack.c.0.s8 %v261
    %v263 = vlaneseq
    %v264 = vshrl.u32 %v263, 7
    %v265 = vsub.s32 %v262, %v264
    %v266 = vrot.slane %v258, %v265
    %v268 = vunpack.c.l.s4 1934713408
    %v269 = vunpack.c.0.s8 %v268
    %v270 = vlaneseq
    %v271 = vshrl.u32 %v270, 7
    %v272 = vsub.s32 %v269, %v271
    %v273 = vrot.slane %v259, %v272
    %v274 = vcombine.high %v250, 0.0
    %v275 = vcombine.high %v257, 0.0
    %v276 = vcombine.high %v266, 0.0
    %v277 = vcombine.high %v273, 0.0
    %v278 = vcombine.low %v189, %v201
    %v279 = vcombine.high %v189, %v201
    %v281 = vunpack.c.l.s4 1983009808
    %v282 = vunpack.c.0.s8 %v281
    %v283 = vlaneseq
    %v284 = vshrl.u32 %v283, 7
    %v285 = vsub.s32 %v282, %v284
    %v286 = vrot.slane %v278, %v285
    %v288 = vunpack.c.l.s4 1983009808
    %v289 = vunpack.c.0.s8 %v288
    %v290 = vlaneseq
    %v291 = vshrl.u32 %v290, 7
    %v292 = vsub.s32 %v289, %v291
    %v293 = vrot.slane %v279, %v292
    %v294 = vcombine.low %v195, %v207
    %v295 = vcombine.high %v195, %v207
    %v297 = vunpack.c.l.s4 1983009808
    %v298 = vunpack.c.0.s8 %v297
    %v299 = vlaneseq
    %v300 = vshrl.u32 %v299, 7
    %v301 = vsub.s32 %v298, %v300
    %v302 = vrot.slane %v294, %v301
    %v304 = vunpack.c.l.s4 1983009808
    %v305 = vunpack.c.0.s8 %v304
    %v306 = vlaneseq
    %v307 = vshrl.u32 %v306, 7
    %v308 = vsub.s32 %v305, %v307
    %v309 = vrot.slane %v295, %v308
    %v310 = vcombine.low %v286, %v302
    %v311 = vcombine.high %v286, %v302
    %v313 = vunpack.c.l.s4 1934713408
    %v314 = vunpack.c.0.s8 %v313
    %v315 = vlaneseq
    %v316 = vshrl.u32 %v315, 7
    %v317 = vsub.s32 %v314, %v316
    %v318 = vrot.slane %v310, %v317
    %v320 = vunpack.c.l.s4 1934713408
    %v321 = vunpack.c.0.s8 %v320
    %v322 = vlaneseq
    %v323 = vshrl.u32 %v322, 7
    %v324 = vsub.s32 %v321, %v323
    %v325 = vrot.slane %v311, %v324
    %v326 = vcombine.low %v293, %v309
    %v327 = vcombine.high %v293, %v309
    %v329 = vunpack.c.l.s4 1934713408
    %v330 = vunpack.c.0.s8 %v329
    %v331 = vlaneseq
    %v332 = vshrl.u32 %v331, 7
    %v333 = vsub.s32 %v330, %v332
    %v334 = vrot.slane %v326, %v333
    %v336 = vunpack.c.l.s4 1934713408
    %v337 = vunpack.c.0.s8 %v336
    %v338 = vlaneseq
    %v339 = vshrl.u32 %v338, 7
    %v340 = vsub.s32 %v337, %v339
    %v341 = vrot.slane %v327, %v340
    %v342 = vcombine.high %v318, 0.0
    %v343 = vcombine.high %v325, 0.0
    %v344 = vcombine.high %v334, 0.0
    %v345 = vcombine.high %v341, 0.0
    %v346 = vcombine.low %v250, %v257
    %v348 = vunpack.c.l.s4 1983009808
    %v349 = vunpack.c.0.s8 %v348
    %v350 = vlaneseq
    %v351 = vshrl.u32 %v350, 7
    %v352 = vsub.s32 %v349, %v351
    %v353 = vrot.slane %v346, %v352
    %v354 = vcombine.low %v274, %v275
    %v356 = vunpack.c.l.s4 1983009808
    %v357 = vunpack.c.0.s8 %v356
    %v358 = vlaneseq
    %v359 = vshrl.u32 %v358, 7
    %v360 = vsub.s32 %v357, %v359
    %v361 = vrot.slane %v354, %v360
    %v362 = vcombine.low %v266, %v273
    %v364 = vunpack.c.l.s4 1983009808
    %v365 = vunpack.c.0.s8 %v364
    %v366 = vlaneseq
    %v367 = vshrl.u32 %v366, 7
    %v368 = vsub.s32 %v365, %v367
    %v369 = vrot.slane %v362, %v368
    %v370 = vcombine.low %v276, %v277
    %v372 = vunpack.c.l.s4 1983009808
    %v373 = vunpack.c.0.s8 %v372
    %v374 = vlaneseq
    %v375 = vshrl.u32 %v374, 7
    %v376 = vsub.s32 %v373, %v375
    %v377 = vrot.slane %v370, %v376
    %v378 = vcombine.low %v353, %v361
    %v379 = vcombine.high %v353, %v361
    %v381 = vunpack.c.l.s4 1934713408
    %v382 = vunpack.c.0.s8 %v381
    %v383 = vlaneseq
    %v384 = vshrl.u32 %v383, 7
    %v385 = vsub.s32 %v382, %v384
    %v386 = vrot.slane %v378, %v385
    %v388 = vunpack.c.l.s4 1934713408
    %v389 = vunpack.c.0.s8 %v388
    %v390 = vlaneseq
    %v391 = vshrl.u32 %v390, 7
    %v392 = vsub.s32 %v389, %v391
    %v393 = vrot.slane %v379, %v392
    %v394 = vcombine.low %v369, %v377
    %v395 = vcombine.high %v369, %v377
    %v397 = vunpack.c.l.s4 1934713408
    %v398 = vunpack.c.0.s8 %v397
    %v399 = vlaneseq
    %v400 = vshrl.u32 %v399, 7
    %v401 = vsub.s32 %v398, %v400
    %v402 = vrot.slane %v394, %v401
    %v404 = vunpack.c.l.s4 1934713408
    %v405 = vunpack.c.0.s8 %v404
    %v406 = vlaneseq
    %v407 = vshrl.u32 %v406, 7
    %v408 = vsub.s32 %v405, %v407
    %v409 = vrot.slane %v395, %v408
    %v410 = vcombine.low %v386, %v402
    %v411 = vcombine.high %v386, %v402
    %v412 = vcombine.low %v393, %v409
    %v413 = vcombine.high %v393, %v409
    %v414 = vcombine.low %v318, %v325
    %v416 = vunpack.c.l.s4 1983009808
    %v417 = vunpack.c.0.s8 %v416
    %v418 = vlaneseq
    %v419 = vshrl.u32 %v418, 7
    %v420 = vsub.s32 %v417, %v419
    %v421 = vrot.slane %v414, %v420
    %v422 = vcombine.low %v342, %v343
    %v424 = vunpack.c.l.s4 1983009808
    %v425 = vunpack.c.0.s8 %v424
    %v426 = vlaneseq
    %v427 = vshrl.u32 %v426, 7
    %v428 = vsub.s32 %v425, %v427
    %v429 = vrot.slane %v422, %v428
    %v430 = vcombine.low %v334, %v341
    %v432 = vunpack.c.l.s4 1983009808
    %v433 = vunpack.c.0.s8 %v432
    %v434 = vlaneseq
    %v435 = vshrl.u32 %v434, 7
    %v436 = vsub.s32 %v433, %v435
    %v437 = vrot.slane %v430, %v436
    %v438 = vcombine.low %v344, %v345
    %v440 = vunpack.c.l.s4 1983009808
    %v441 = vunpack.c.0.s8 %v440
    %v442 = vlaneseq
    %v443 = vshrl.u32 %v442, 7
    %v444 = vsub.s32 %v441, %v443
    %v445 = vrot.slane %v438, %v444
    %v446 = vcombine.low %v421, %v429
    %v447 = vcombine.high %v421, %v429
    %v449 = vunpack.c.l.s4 1934713408
    %v450 = vunpack.c.0.s8 %v449
    %v451 = vlaneseq
    %v452 = vshrl.u32 %v451, 7
    %v453 = vsub.s32 %v450, %v452
    %v454 = vrot.slane %v446, %v453
    %v456 = vunpack.c.l.s4 1934713408
    %v457 = vunpack.c.0.s8 %v456
    %v458 = vlaneseq
    %v459 = vshrl.u32 %v458, 7
    %v460 = vsub.s32 %v457, %v459
    %v461 = vrot.slane %v447, %v460
    %v462 = vcombine.low %v437, %v445
    %v463 = vcombine.high %v437, %v445
    %v465 = vunpack.c.l.s4 1934713408
    %v466 = vunpack.c.0.s8 %v465
    %v467 = vlaneseq
    %v468 = vshrl.u32 %v467, 7
    %v469 = vsub.s32 %v466, %v468
    %v470 = vrot.slane %v462, %v469
    %v472 = vunpack.c.l.s4 1934713408
    %v473 = vunpack.c.0.s8 %v472
    %v474 = vlaneseq
    %v475 = vshrl.u32 %v474, 7
    %v476 = vsub.s32 %v473, %v475
    %v477 = vrot.slane %v463, %v476
    %v478 = vcombine.low %v454, %v470
    %v479 = vcombine.high %v454, %v470
    %v480 = vcombine.low %v461, %v477
    %v481 = vcombine.high %v461, %v477
    %484 = vrot.lane.b32.xlu0 %v180, 120
    %v485 = vpop.permute.xlu0 %484
    %486 = vrot.lane.b32.xlu0 %v185, 120
    %v487 = vpop.permute.xlu0 %486
    %488 = vrot.lane.b32.xlu0 %v180, 112
    %v489 = vpop.permute.xlu0 %488
    %490 = vrot.lane.b32.xlu0 %v185, 112
    %v491 = vpop.permute.xlu0 %490
    %492 = vrot.lane.b32.xlu0 %v180, 104
    %v493 = vpop.permute.xlu0 %492
    %494 = vrot.lane.b32.xlu0 %v185, 104
    %v495 = vpop.permute.xlu0 %494
    %496 = vrot.lane.b32.xlu0 %v180, 96
    %v497 = vpop.permute.xlu0 %496
    %498 = vrot.lane.b32.xlu0 %v185, 96
    %v499 = vpop.permute.xlu0 %498
    %500 = vrot.lane.b32.xlu0 %v485, 96
    %v501 = vpop.permute.xlu0 %500
    %502 = vrot.lane.b32.xlu0 %v487, 96
    %v503 = vpop.permute.xlu0 %502
    %504 = vrot.lane.b32.xlu0 %v489, 96
    %v505 = vpop.permute.xlu0 %504
    %506 = vrot.lane.b32.xlu0 %v491, 96
    %v507 = vpop.permute.xlu0 %506
    %508 = vrot.lane.b32.xlu0 %v493, 96
    %v509 = vpop.permute.xlu0 %508
    %510 = vrot.lane.b32.xlu0 %v495, 96
    %v511 = vpop.permute.xlu0 %510
    %v520 = vcombine.low %v497, %v505
    %v521 = vcombine.high %v497, %v505
    %v523 = vunpack.c.l.s4 1983009808
    %v524 = vunpack.c.0.s8 %v523
    %v525 = vlaneseq
    %v526 = vshrl.u32 %v525, 7
    %v527 = vsub.s32 %v524, %v526
    %v528 = vrot.slane %v520, %v527
    %v530 = vunpack.c.l.s4 1983009808
    %v531 = vunpack.c.0.s8 %v530
    %v532 = vlaneseq
    %v533 = vshrl.u32 %v532, 7
    %v534 = vsub.s32 %v531, %v533
    %v535 = vrot.slane %v521, %v534
    %v536 = vcombine.low %v501, %v509
    %v537 = vcombine.high %v501, %v509
    %v539 = vunpack.c.l.s4 1983009808
    %v540 = vunpack.c.0.s8 %v539
    %v541 = vlaneseq
    %v542 = vshrl.u32 %v541, 7
    %v543 = vsub.s32 %v540, %v542
    %v544 = vrot.slane %v536, %v543
    %v546 = vunpack.c.l.s4 1983009808
    %v547 = vunpack.c.0.s8 %v546
    %v548 = vlaneseq
    %v549 = vshrl.u32 %v548, 7
    %v550 = vsub.s32 %v547, %v549
    %v551 = vrot.slane %v537, %v550
    %v552 = vcombine.low %v528, %v544
    %v553 = vcombine.high %v528, %v544
    %v555 = vunpack.c.l.s4 1934713408
    %v556 = vunpack.c.0.s8 %v555
    %v557 = vlaneseq
    %v558 = vshrl.u32 %v557, 7
    %v559 = vsub.s32 %v556, %v558
    %v560 = vrot.slane %v552, %v559
    %v562 = vunpack.c.l.s4 1934713408
    %v563 = vunpack.c.0.s8 %v562
    %v564 = vlaneseq
    %v565 = vshrl.u32 %v564, 7
    %v566 = vsub.s32 %v563, %v565
    %v567 = vrot.slane %v553, %v566
    %v568 = vcombine.low %v535, %v551
    %v569 = vcombine.high %v535, %v551
    %v571 = vunpack.c.l.s4 1934713408
    %v572 = vunpack.c.0.s8 %v571
    %v573 = vlaneseq
    %v574 = vshrl.u32 %v573, 7
    %v575 = vsub.s32 %v572, %v574
    %v576 = vrot.slane %v568, %v575
    %v578 = vunpack.c.l.s4 1934713408
    %v579 = vunpack.c.0.s8 %v578
    %v580 = vlaneseq
    %v581 = vshrl.u32 %v580, 7
    %v582 = vsub.s32 %v579, %v581
    %v583 = vrot.slane %v569, %v582
    %v584 = vcombine.high %v560, 0.0
    %v585 = vcombine.high %v567, 0.0
    %v586 = vcombine.high %v576, 0.0
    %v587 = vcombine.high %v583, 0.0
    %v588 = vcombine.low %v499, %v507
    %v589 = vcombine.high %v499, %v507
    %v591 = vunpack.c.l.s4 1983009808
    %v592 = vunpack.c.0.s8 %v591
    %v593 = vlaneseq
    %v594 = vshrl.u32 %v593, 7
    %v595 = vsub.s32 %v592, %v594
    %v596 = vrot.slane %v588, %v595
    %v598 = vunpack.c.l.s4 1983009808
    %v599 = vunpack.c.0.s8 %v598
    %v600 = vlaneseq
    %v601 = vshrl.u32 %v600, 7
    %v602 = vsub.s32 %v599, %v601
    %v603 = vrot.slane %v589, %v602
    %v604 = vcombine.low %v503, %v511
    %v605 = vcombine.high %v503, %v511
    %v607 = vunpack.c.l.s4 1983009808
    %v608 = vunpack.c.0.s8 %v607
    %v609 = vlaneseq
    %v610 = vshrl.u32 %v609, 7
    %v611 = vsub.s32 %v608, %v610
    %v612 = vrot.slane %v604, %v611
    %v614 = vunpack.c.l.s4 1983009808
    %v615 = vunpack.c.0.s8 %v614
    %v616 = vlaneseq
    %v617 = vshrl.u32 %v616, 7
    %v618 = vsub.s32 %v615, %v617
    %v619 = vrot.slane %v605, %v618
    %v620 = vcombine.low %v596, %v612
    %v621 = vcombine.high %v596, %v612
    %v623 = vunpack.c.l.s4 1934713408
    %v624 = vunpack.c.0.s8 %v623
    %v625 = vlaneseq
    %v626 = vshrl.u32 %v625, 7
    %v627 = vsub.s32 %v624, %v626
    %v628 = vrot.slane %v620, %v627
    %v630 = vunpack.c.l.s4 1934713408
    %v631 = vunpack.c.0.s8 %v630
    %v632 = vlaneseq
    %v633 = vshrl.u32 %v632, 7
    %v634 = vsub.s32 %v631, %v633
    %v635 = vrot.slane %v621, %v634
    %v636 = vcombine.low %v603, %v619
    %v637 = vcombine.high %v603, %v619
    %v639 = vunpack.c.l.s4 1934713408
    %v640 = vunpack.c.0.s8 %v639
    %v641 = vlaneseq
    %v642 = vshrl.u32 %v641, 7
    %v643 = vsub.s32 %v640, %v642
    %v644 = vrot.slane %v636, %v643
    %v646 = vunpack.c.l.s4 1934713408
    %v647 = vunpack.c.0.s8 %v646
    %v648 = vlaneseq
    %v649 = vshrl.u32 %v648, 7
    %v650 = vsub.s32 %v647, %v649
    %v651 = vrot.slane %v637, %v650
    %v652 = vcombine.high %v628, 0.0
    %v653 = vcombine.high %v635, 0.0
    %v654 = vcombine.high %v644, 0.0
    %v655 = vcombine.high %v651, 0.0
    %v656 = vcombine.low %v560, %v567
    %v658 = vunpack.c.l.s4 1983009808
    %v659 = vunpack.c.0.s8 %v658
    %v660 = vlaneseq
    %v661 = vshrl.u32 %v660, 7
    %v662 = vsub.s32 %v659, %v661
    %v663 = vrot.slane %v656, %v662
    %v664 = vcombine.low %v584, %v585
    %v666 = vunpack.c.l.s4 1983009808
    %v667 = vunpack.c.0.s8 %v666
    %v668 = vlaneseq
    %v669 = vshrl.u32 %v668, 7
    %v670 = vsub.s32 %v667, %v669
    %v671 = vrot.slane %v664, %v670
    %v672 = vcombine.low %v576, %v583
    %v674 = vunpack.c.l.s4 1983009808
    %v675 = vunpack.c.0.s8 %v674
    %v676 = vlaneseq
    %v677 = vshrl.u32 %v676, 7
    %v678 = vsub.s32 %v675, %v677
    %v679 = vrot.slane %v672, %v678
    %v680 = vcombine.low %v586, %v587
    %v682 = vunpack.c.l.s4 1983009808
    %v683 = vunpack.c.0.s8 %v682
    %v684 = vlaneseq
    %v685 = vshrl.u32 %v684, 7
    %v686 = vsub.s32 %v683, %v685
    %v687 = vrot.slane %v680, %v686
    %v688 = vcombine.low %v663, %v671
    %v689 = vcombine.high %v663, %v671
    %v691 = vunpack.c.l.s4 1934713408
    %v692 = vunpack.c.0.s8 %v691
    %v693 = vlaneseq
    %v694 = vshrl.u32 %v693, 7
    %v695 = vsub.s32 %v692, %v694
    %v696 = vrot.slane %v688, %v695
    %v698 = vunpack.c.l.s4 1934713408
    %v699 = vunpack.c.0.s8 %v698
    %v700 = vlaneseq
    %v701 = vshrl.u32 %v700, 7
    %v702 = vsub.s32 %v699, %v701
    %v703 = vrot.slane %v689, %v702
    %v704 = vcombine.low %v679, %v687
    %v705 = vcombine.high %v679, %v687
    %v707 = vunpack.c.l.s4 1934713408
    %v708 = vunpack.c.0.s8 %v707
    %v709 = vlaneseq
    %v710 = vshrl.u32 %v709, 7
    %v711 = vsub.s32 %v708, %v710
    %v712 = vrot.slane %v704, %v711
    %v714 = vunpack.c.l.s4 1934713408
    %v715 = vunpack.c.0.s8 %v714
    %v716 = vlaneseq
    %v717 = vshrl.u32 %v716, 7
    %v718 = vsub.s32 %v715, %v717
    %v719 = vrot.slane %v705, %v718
    %v720 = vcombine.low %v696, %v712
    %v721 = vcombine.high %v696, %v712
    %v722 = vcombine.low %v703, %v719
    %v723 = vcombine.high %v703, %v719
    %v724 = vcombine.low %v628, %v635
    %v726 = vunpack.c.l.s4 1983009808
    %v727 = vunpack.c.0.s8 %v726
    %v728 = vlaneseq
    %v729 = vshrl.u32 %v728, 7
    %v730 = vsub.s32 %v727, %v729
    %v731 = vrot.slane %v724, %v730
    %v732 = vcombine.low %v652, %v653
    %v734 = vunpack.c.l.s4 1983009808
    %v735 = vunpack.c.0.s8 %v734
    %v736 = vlaneseq
    %v737 = vshrl.u32 %v736, 7
    %v738 = vsub.s32 %v735, %v737
    %v739 = vrot.slane %v732, %v738
    %v740 = vcombine.low %v644, %v651
    %v742 = vunpack.c.l.s4 1983009808
    %v743 = vunpack.c.0.s8 %v742
    %v744 = vlaneseq
    %v745 = vshrl.u32 %v744, 7
    %v746 = vsub.s32 %v743, %v745
    %v747 = vrot.slane %v740, %v746
    %v748 = vcombine.low %v654, %v655
    %v750 = vunpack.c.l.s4 1983009808
    %v751 = vunpack.c.0.s8 %v750
    %v752 = vlaneseq
    %v753 = vshrl.u32 %v752, 7
    %v754 = vsub.s32 %v751, %v753
    %v755 = vrot.slane %v748, %v754
    %v756 = vcombine.low %v731, %v739
    %v757 = vcombine.high %v731, %v739
    %v759 = vunpack.c.l.s4 1934713408
    %v760 = vunpack.c.0.s8 %v759
    %v761 = vlaneseq
    %v762 = vshrl.u32 %v761, 7
    %v763 = vsub.s32 %v760, %v762
    %v764 = vrot.slane %v756, %v763
    %v766 = vunpack.c.l.s4 1934713408
    %v767 = vunpack.c.0.s8 %v766
    %v768 = vlaneseq
    %v769 = vshrl.u32 %v768, 7
    %v770 = vsub.s32 %v767, %v769
    %v771 = vrot.slane %v757, %v770
    %v772 = vcombine.low %v747, %v755
    %v773 = vcombine.high %v747, %v755
    %v775 = vunpack.c.l.s4 1934713408
    %v776 = vunpack.c.0.s8 %v775
    %v777 = vlaneseq
    %v778 = vshrl.u32 %v777, 7
    %v779 = vsub.s32 %v776, %v778
    %v780 = vrot.slane %v772, %v779
    %v782 = vunpack.c.l.s4 1934713408
    %v783 = vunpack.c.0.s8 %v782
    %v784 = vlaneseq
    %v785 = vshrl.u32 %v784, 7
    %v786 = vsub.s32 %v783, %v785
    %v787 = vrot.slane %v773, %v786
    %v788 = vcombine.low %v764, %v780
    %v789 = vcombine.high %v764, %v780
    %v790 = vcombine.low %v771, %v787
    %v791 = vcombine.high %v771, %v787
    %792 = vrot.lane.b32.xlu0 %v180, 64
    %v793 = vpop.permute.xlu0 %792
    %794 = vrot.lane.b32.xlu0 %v185, 64
    %v795 = vpop.permute.xlu0 %794
    %796 = vrot.lane.b32.xlu0 %v485, 64
    %v797 = vpop.permute.xlu0 %796
    %798 = vrot.lane.b32.xlu0 %v487, 64
    %v799 = vpop.permute.xlu0 %798
    %800 = vrot.lane.b32.xlu0 %v489, 64
    %v801 = vpop.permute.xlu0 %800
    %802 = vrot.lane.b32.xlu0 %v491, 64
    %v803 = vpop.permute.xlu0 %802
    %804 = vrot.lane.b32.xlu0 %v493, 64
    %v805 = vpop.permute.xlu0 %804
    %806 = vrot.lane.b32.xlu0 %v495, 64
    %v807 = vpop.permute.xlu0 %806
    %v816 = vcombine.low %v793, %v801
    %v817 = vcombine.high %v793, %v801
    %v819 = vunpack.c.l.s4 1983009808
    %v820 = vunpack.c.0.s8 %v819
    %v821 = vlaneseq
    %v822 = vshrl.u32 %v821, 7
    %v823 = vsub.s32 %v820, %v822
    %v824 = vrot.slane %v816, %v823
    %v826 = vunpack.c.l.s4 1983009808
    %v827 = vunpack.c.0.s8 %v826
    %v828 = vlaneseq
    %v829 = vshrl.u32 %v828, 7
    %v830 = vsub.s32 %v827, %v829
    %v831 = vrot.slane %v817, %v830
    %v832 = vcombine.low %v797, %v805
    %v833 = vcombine.high %v797, %v805
    %v835 = vunpack.c.l.s4 1983009808
    %v836 = vunpack.c.0.s8 %v835
    %v837 = vlaneseq
    %v838 = vshrl.u32 %v837, 7
    %v839 = vsub.s32 %v836, %v838
    %v840 = vrot.slane %v832, %v839
    %v842 = vunpack.c.l.s4 1983009808
    %v843 = vunpack.c.0.s8 %v842
    %v844 = vlaneseq
    %v845 = vshrl.u32 %v844, 7
    %v846 = vsub.s32 %v843, %v845
    %v847 = vrot.slane %v833, %v846
    %v848 = vcombine.low %v824, %v840
    %v849 = vcombine.high %v824, %v840
    %v851 = vunpack.c.l.s4 1934713408
    %v852 = vunpack.c.0.s8 %v851
    %v853 = vlaneseq
    %v854 = vshrl.u32 %v853, 7
    %v855 = vsub.s32 %v852, %v854
    %v856 = vrot.slane %v848, %v855
    %v858 = vunpack.c.l.s4 1934713408
    %v859 = vunpack.c.0.s8 %v858
    %v860 = vlaneseq
    %v861 = vshrl.u32 %v860, 7
    %v862 = vsub.s32 %v859, %v861
    %v863 = vrot.slane %v849, %v862
    %v864 = vcombine.low %v831, %v847
    %v865 = vcombine.high %v831, %v847
    %v867 = vunpack.c.l.s4 1934713408
    %v868 = vunpack.c.0.s8 %v867
    %v869 = vlaneseq
    %v870 = vshrl.u32 %v869, 7
    %v871 = vsub.s32 %v868, %v870
    %v872 = vrot.slane %v864, %v871
    %v874 = vunpack.c.l.s4 1934713408
    %v875 = vunpack.c.0.s8 %v874
    %v876 = vlaneseq
    %v877 = vshrl.u32 %v876, 7
    %v878 = vsub.s32 %v875, %v877
    %v879 = vrot.slane %v865, %v878
    %v880 = vcombine.high %v856, 0.0
    %v881 = vcombine.high %v863, 0.0
    %v882 = vcombine.high %v872, 0.0
    %v883 = vcombine.high %v879, 0.0
    %v884 = vcombine.low %v795, %v803
    %v885 = vcombine.high %v795, %v803
    %v887 = vunpack.c.l.s4 1983009808
    %v888 = vunpack.c.0.s8 %v887
    %v889 = vlaneseq
    %v890 = vshrl.u32 %v889, 7
    %v891 = vsub.s32 %v888, %v890
    %v892 = vrot.slane %v884, %v891
    %v894 = vunpack.c.l.s4 1983009808
    %v895 = vunpack.c.0.s8 %v894
    %v896 = vlaneseq
    %v897 = vshrl.u32 %v896, 7
    %v898 = vsub.s32 %v895, %v897
    %v899 = vrot.slane %v885, %v898
    %v900 = vcombine.low %v799, %v807
    %v901 = vcombine.high %v799, %v807
    %v903 = vunpack.c.l.s4 1983009808
    %v904 = vunpack.c.0.s8 %v903
    %v905 = vlaneseq
    %v906 = vshrl.u32 %v905, 7
    %v907 = vsub.s32 %v904, %v906
    %v908 = vrot.slane %v900, %v907
    %v910 = vunpack.c.l.s4 1983009808
    %v911 = vunpack.c.0.s8 %v910
    %v912 = vlaneseq
    %v913 = vshrl.u32 %v912, 7
    %v914 = vsub.s32 %v911, %v913
    %v915 = vrot.slane %v901, %v914
    %v916 = vcombine.low %v892, %v908
    %v917 = vcombine.high %v892, %v908
    %v919 = vunpack.c.l.s4 1934713408
    %v920 = vunpack.c.0.s8 %v919
    %v921 = vlaneseq
    %v922 = vshrl.u32 %v921, 7
    %v923 = vsub.s32 %v920, %v922
    %v924 = vrot.slane %v916, %v923
    %v926 = vunpack.c.l.s4 1934713408
    %v927 = vunpack.c.0.s8 %v926
    %v928 = vlaneseq
    %v929 = vshrl.u32 %v928, 7
    %v930 = vsub.s32 %v927, %v929
    %v931 = vrot.slane %v917, %v930
    %v932 = vcombine.low %v899, %v915
    %v933 = vcombine.high %v899, %v915
    %v935 = vunpack.c.l.s4 1934713408
    %v936 = vunpack.c.0.s8 %v935
    %v937 = vlaneseq
    %v938 = vshrl.u32 %v937, 7
    %v939 = vsub.s32 %v936, %v938
    %v940 = vrot.slane %v932, %v939
    %v942 = vunpack.c.l.s4 1934713408
    %v943 = vunpack.c.0.s8 %v942
    %v944 = vlaneseq
    %v945 = vshrl.u32 %v944, 7
    %v946 = vsub.s32 %v943, %v945
    %v947 = vrot.slane %v933, %v946
    %v948 = vcombine.high %v924, 0.0
    %v949 = vcombine.high %v931, 0.0
    %v950 = vcombine.high %v940, 0.0
    %v951 = vcombine.high %v947, 0.0
    %v952 = vcombine.low %v856, %v863
    %v954 = vunpack.c.l.s4 1983009808
    %v955 = vunpack.c.0.s8 %v954
    %v956 = vlaneseq
    %v957 = vshrl.u32 %v956, 7
    %v958 = vsub.s32 %v955, %v957
    %v959 = vrot.slane %v952, %v958
    %v960 = vcombine.low %v880, %v881
    %v962 = vunpack.c.l.s4 1983009808
    %v963 = vunpack.c.0.s8 %v962
    %v964 = vlaneseq
    %v965 = vshrl.u32 %v964, 7
    %v966 = vsub.s32 %v963, %v965
    %v967 = vrot.slane %v960, %v966
    %v968 = vcombine.low %v872, %v879
    %v970 = vunpack.c.l.s4 1983009808
    %v971 = vunpack.c.0.s8 %v970
    %v972 = vlaneseq
    %v973 = vshrl.u32 %v972, 7
    %v974 = vsub.s32 %v971, %v973
    %v975 = vrot.slane %v968, %v974
    %v976 = vcombine.low %v882, %v883
    %v978 = vunpack.c.l.s4 1983009808
    %v979 = vunpack.c.0.s8 %v978
    %v980 = vlaneseq
    %v981 = vshrl.u32 %v980, 7
    %v982 = vsub.s32 %v979, %v981
    %v983 = vrot.slane %v976, %v982
    %v984 = vcombine.low %v959, %v967
    %v985 = vcombine.high %v959, %v967
    %v987 = vunpack.c.l.s4 1934713408
    %v988 = vunpack.c.0.s8 %v987
    %v989 = vlaneseq
    %v990 = vshrl.u32 %v989, 7
    %v991 = vsub.s32 %v988, %v990
    %v992 = vrot.slane %v984, %v991
    %v994 = vunpack.c.l.s4 1934713408
    %v995 = vunpack.c.0.s8 %v994
    %v996 = vlaneseq
    %v997 = vshrl.u32 %v996, 7
    %v998 = vsub.s32 %v995, %v997
    %v999 = vrot.slane %v985, %v998
    %v1000 = vcombine.low %v975, %v983
    %v1001 = vcombine.high %v975, %v983
    %v1003 = vunpack.c.l.s4 1934713408
    %v1004 = vunpack.c.0.s8 %v1003
    %v1005 = vlaneseq
    %v1006 = vshrl.u32 %v1005, 7
    %v1007 = vsub.s32 %v1004, %v1006
    %v1008 = vrot.slane %v1000, %v1007
    %v1010 = vunpack.c.l.s4 1934713408
    %v1011 = vunpack.c.0.s8 %v1010
    %v1012 = vlaneseq
    %v1013 = vshrl.u32 %v1012, 7
    %v1014 = vsub.s32 %v1011, %v1013
    %v1015 = vrot.slane %v1001, %v1014
    %v1016 = vcombine.low %v992, %v1008
    %v1017 = vcombine.high %v992, %v1008
    %v1018 = vcombine.low %v999, %v1015
    %v1019 = vcombine.high %v999, %v1015
    %v1020 = vcombine.low %v924, %v931
    %v1022 = vunpack.c.l.s4 1983009808
    %v1023 = vunpack.c.0.s8 %v1022
    %v1024 = vlaneseq
    %v1025 = vshrl.u32 %v1024, 7
    %v1026 = vsub.s32 %v1023, %v1025
    %v1027 = vrot.slane %v1020, %v1026
    %v1028 = vcombine.low %v948, %v949
    %v1030 = vunpack.c.l.s4 1983009808
    %v1031 = vunpack.c.0.s8 %v1030
    %v1032 = vlaneseq
    %v1033 = vshrl.u32 %v1032, 7
    %v1034 = vsub.s32 %v1031, %v1033
    %v1035 = vrot.slane %v1028, %v1034
    %v1036 = vcombine.low %v940, %v947
    %v1038 = vunpack.c.l.s4 1983009808
    %v1039 = vunpack.c.0.s8 %v1038
    %v1040 = vlaneseq
    %v1041 = vshrl.u32 %v1040, 7
    %v1042 = vsub.s32 %v1039, %v1041
    %v1043 = vrot.slane %v1036, %v1042
    %v1044 = vcombine.low %v950, %v951
    %v1046 = vunpack.c.l.s4 1983009808
    %v1047 = vunpack.c.0.s8 %v1046
    %v1048 = vlaneseq
    %v1049 = vshrl.u32 %v1048, 7
    %v1050 = vsub.s32 %v1047, %v1049
    %v1051 = vrot.slane %v1044, %v1050
    %v1052 = vcombine.low %v1027, %v1035
    %v1053 = vcombine.high %v1027, %v1035
    %v1055 = vunpack.c.l.s4 1934713408
    %v1056 = vunpack.c.0.s8 %v1055
    %v1057 = vlaneseq
    %v1058 = vshrl.u32 %v1057, 7
    %v1059 = vsub.s32 %v1056, %v1058
    %v1060 = vrot.slane %v1052, %v1059
    %v1062 = vunpack.c.l.s4 1934713408
    %v1063 = vunpack.c.0.s8 %v1062
    %v1064 = vlaneseq
    %v1065 = vshrl.u32 %v1064, 7
    %v1066 = vsub.s32 %v1063, %v1065
    %v1067 = vrot.slane %v1053, %v1066
    %v1068 = vcombine.low %v1043, %v1051
    %v1069 = vcombine.high %v1043, %v1051
    %v1071 = vunpack.c.l.s4 1934713408
    %v1072 = vunpack.c.0.s8 %v1071
    %v1073 = vlaneseq
    %v1074 = vshrl.u32 %v1073, 7
    %v1075 = vsub.s32 %v1072, %v1074
    %v1076 = vrot.slane %v1068, %v1075
    %v1078 = vunpack.c.l.s4 1934713408
    %v1079 = vunpack.c.0.s8 %v1078
    %v1080 = vlaneseq
    %v1081 = vshrl.u32 %v1080, 7
    %v1082 = vsub.s32 %v1079, %v1081
    %v1083 = vrot.slane %v1069, %v1082
    %v1084 = vcombine.low %v1060, %v1076
    %v1085 = vcombine.high %v1060, %v1076
    %v1086 = vcombine.low %v1067, %v1083
    %v1087 = vcombine.high %v1067, %v1083
    %vm1088 = vcmask 64512
    %v1090 = vsel %vm1088, %v410, 0
    %v1093 = vsel %vm1088, %v720, 0
    %1095 = vmatprep.subr.mxu0 0.0
    %1096 = vmatpush1.xpose.msra.mxu0 %v1093
    %1097 = vmatprep.subr.mxu0 0.0
    %1098 = vmatpush1.xpose.msra.mxu0 0.0
    %1099 = vmatprep.subr.mxu0 0.0
    %1100 = vmatpush1.xpose.msra.mxu0 0.0
    %1101 = vmatprep.subr.mxu0 0.0
    %1102 = vmatpush1.xpose.msra.mxu0 0.0
    %1103 = vmatprep.subr.mxu0 0.0
    %1104 = vmatpush1.xpose.msra.mxu0 0.0
    %1105 = vmatprep.subr.mxu0 0.0
    %1106 = vmatpush1.xpose.msra.mxu0 0.0
    %1107 = vmatprep.subr.mxu0 0.0
    %1108 = vmatpush1.xpose.msra.mxu0 0.0
    %1109 = vmatprep.subr.mxu0 0.0
    %1110 = vmatpush1.xpose.msra.mxu0 0.0
    %1111 = vmatprep.subr.mxu0 0.0
    %1112 = vmatpush1.xpose.msra.mxu0 0.0
    %1113 = vmatprep.subr.mxu0 0.0
    %1114 = vmatpush1.xpose.msra.mxu0 0.0
    %1115 = vmatprep.subr.mxu0 0.0
    %1116 = vmatpush1.xpose.msra.mxu0 0.0
    %1117 = vmatprep.subr.mxu0 0.0
    %1118 = vmatpush1.xpose.msra.mxu0 0.0
    %1119 = vmatprep.subr.mxu0 0.0
    %1120 = vmatpush1.xpose.msra.mxu0 0.0
    %1121 = vmatprep.subr.mxu0 0.0
    %1122 = vmatpush1.xpose.msra.mxu0 0.0
    %1123 = vmatprep.subr.mxu0 0.0
    %1124 = vmatpush1.xpose.msra.mxu0 0.0
    %1125 = vmatprep.subr.mxu0 0.0
    %1126 = vmatpush1.xpose.msra.mxu0 0.0
    %1127 = vmatprep.subr.mxu0 0.0
    %1128 = vmatpush1.xpose.msra.mxu0 0.0
    %1129 = vmatprep.subr.mxu0 0.0
    %1130 = vmatpush1.xpose.msra.mxu0 0.0
    %1131 = vmatprep.subr.mxu0 0.0
    %1132 = vmatpush1.xpose.msra.mxu0 0.0
    %1133 = vmatprep.subr.mxu0 0.0
    %1134 = vmatpush1.xpose.msra.mxu0 0.0
    %1135 = vmatprep.subr.mxu0 0.0
    %1136 = vmatpush1.xpose.msra.mxu0 0.0
    %1137 = vmatprep.subr.mxu0 0.0
    %1138 = vmatpush1.xpose.msra.mxu0 0.0
    %1139 = vmatprep.subr.mxu0 0.0
    %1140 = vmatpush1.xpose.msra.mxu0 0.0
    %1141 = vmatprep.subr.mxu0 0.0
    %1142 = vmatpush1.xpose.msra.mxu0 0.0
    %1143 = vmatprep.subr.mxu0 0.0
    %1144 = vmatpush1.xpose.msra.mxu0 0.0
    %1145 = vmatprep.subr.mxu0 0.0
    %1146 = vmatpush1.xpose.msra.mxu0 0.0
    %1147 = vmatprep.subr.mxu0 0.0
    %1148 = vmatpush1.xpose.msra.mxu0 0.0
    %1149 = vmatprep.subr.mxu0 0.0
    %1150 = vmatpush1.xpose.msra.mxu0 0.0
    %1151 = vmatprep.subr.mxu0 0.0
    %1152 = vmatpush1.xpose.msra.mxu0 0.0
    %1153 = vmatprep.subr.mxu0 0.0
    %1154 = vmatpush1.xpose.msra.mxu0 0.0
    %1155 = vmatprep.subr.mxu0 0.0
    %1156 = vmatpush1.xpose.msra.mxu0 0.0
    %1157 = vmatprep.subr.mxu0 0.0
    %1158 = vmatpush1.xpose.msra.mxu0 0.0
    %1159 = vmatprep.mubr.f32.mxu0 0.0
    %1160 = vmatmul.mubr.f32.gmra.mrb[0].mxu0 %v1090
    %v1161 = vpop.f32.mrb[0].mxu0
    %v1162 = vadd.f32 0.0, %v1161
    %v1163 = vpop.f32.mrb[0].mxu0
    %1164 = vdwg.mxu0
    %v1166 = vsel %vm1088, %v411, 0
    %v1169 = vsel %vm1088, %v721, 0
    %1171 = vmatprep.subr.mxu0 0.0
    %1172 = vmatpush1.xpose.msra.mxu0 %v1169
    %1173 = vmatprep.subr.mxu0 0.0
    %1174 = vmatpush1.xpose.msra.mxu0 0.0
    %1175 = vmatprep.subr.mxu0 0.0
    %1176 = vmatpush1.xpose.msra.mxu0 0.0
    %1177 = vmatprep.subr.mxu0 0.0
    %1178 = vmatpush1.xpose.msra.mxu0 0.0
    %1179 = vmatprep.subr.mxu0 0.0
    %1180 = vmatpush1.xpose.msra.mxu0 0.0
    %1181 = vmatprep.subr.mxu0 0.0
    %1182 = vmatpush1.xpose.msra.mxu0 0.0
    %1183 = vmatprep.subr.mxu0 0.0
    %1184 = vmatpush1.xpose.msra.mxu0 0.0
    %1185 = vmatprep.subr.mxu0 0.0
    %1186 = vmatpush1.xpose.msra.mxu0 0.0
    %1187 = vmatprep.subr.mxu0 0.0
    %1188 = vmatpush1.xpose.msra.mxu0 0.0
    %1189 = vmatprep.subr.mxu0 0.0
    %1190 = vmatpush1.xpose.msra.mxu0 0.0
    %1191 = vmatprep.subr.mxu0 0.0
    %1192 = vmatpush1.xpose.msra.mxu0 0.0
    %1193 = vmatprep.subr.mxu0 0.0
    %1194 = vmatpush1.xpose.msra.mxu0 0.0
    %1195 = vmatprep.subr.mxu0 0.0
    %1196 = vmatpush1.xpose.msra.mxu0 0.0
    %1197 = vmatprep.subr.mxu0 0.0
    %1198 = vmatpush1.xpose.msra.mxu0 0.0
    %1199 = vmatprep.subr.mxu0 0.0
    %1200 = vmatpush1.xpose.msra.mxu0 0.0
    %1201 = vmatprep.subr.mxu0 0.0
    %1202 = vmatpush1.xpose.msra.mxu0 0.0
    %1203 = vmatprep.subr.mxu0 0.0
    %1204 = vmatpush1.xpose.msra.mxu0 0.0
    %1205 = vmatprep.subr.mxu0 0.0
    %1206 = vmatpush1.xpose.msra.mxu0 0.0
    %1207 = vmatprep.subr.mxu0 0.0
    %1208 = vmatpush1.xpose.msra.mxu0 0.0
    %1209 = vmatprep.subr.mxu0 0.0
    %1210 = vmatpush1.xpose.msra.mxu0 0.0
    %1211 = vmatprep.subr.mxu0 0.0
    %1212 = vmatpush1.xpose.msra.mxu0 0.0
    %1213 = vmatprep.subr.mxu0 0.0
    %1214 = vmatpush1.xpose.msra.mxu0 0.0
    %1215 = vmatprep.subr.mxu0 0.0
    %1216 = vmatpush1.xpose.msra.mxu0 0.0
    %1217 = vmatprep.subr.mxu0 0.0
    %1218 = vmatpush1.xpose.msra.mxu0 0.0
    %1219 = vmatprep.subr.mxu0 0.0
    %1220 = vmatpush1.xpose.msra.mxu0 0.0
    %1221 = vmatprep.subr.mxu0 0.0
    %1222 = vmatpush1.xpose.msra.mxu0 0.0
    %1223 = vmatprep.subr.mxu0 0.0
    %1224 = vmatpush1.xpose.msra.mxu0 0.0
    %1225 = vmatprep.subr.mxu0 0.0
    %1226 = vmatpush1.xpose.msra.mxu0 0.0
    %1227 = vmatprep.subr.mxu0 0.0
    %1228 = vmatpush1.xpose.msra.mxu0 0.0
    %1229 = vmatprep.subr.mxu0 0.0
    %1230 = vmatpush1.xpose.msra.mxu0 0.0
    %1231 = vmatprep.subr.mxu0 0.0
    %1232 = vmatpush1.xpose.msra.mxu0 0.0
    %1233 = vmatprep.subr.mxu0 0.0
    %1234 = vmatpush1.xpose.msra.mxu0 0.0
    %1235 = vmatprep.mubr.f32.mxu0 0.0
    %1236 = vmatmul.mubr.f32.gmra.mrb[0].mxu0 %v1166
    %v1237 = vpop.f32.mrb[0].mxu0
    %v1238 = vadd.f32 0.0, %v1237
    %v1239 = vpop.f32.mrb[0].mxu0
    %1240 = vdwg.mxu0
    %v1242 = vsel %vm1088, %v412, 0
    %v1245 = vsel %vm1088, %v722, 0
    %1247 = vmatprep.subr.mxu0 0.0
    %1248 = vmatpush1.xpose.msra.mxu0 %v1245
    %1249 = vmatprep.subr.mxu0 0.0
    %1250 = vmatpush1.xpose.msra.mxu0 0.0
    %1251 = vmatprep.subr.mxu0 0.0
    %1252 = vmatpush1.xpose.msra.mxu0 0.0
    %1253 = vmatprep.subr.mxu0 0.0
    %1254 = vmatpush1.xpose.msra.mxu0 0.0
    %1255 = vmatprep.subr.mxu0 0.0
    %1256 = vmatpush1.xpose.msra.mxu0 0.0
    %1257 = vmatprep.subr.mxu0 0.0
    %1258 = vmatpush1.xpose.msra.mxu0 0.0
    %1259 = vmatprep.subr.mxu0 0.0
    %1260 = vmatpush1.xpose.msra.mxu0 0.0
    %1261 = vmatprep.subr.mxu0 0.0
    %1262 = vmatpush1.xpose.msra.mxu0 0.0
    %1263 = vmatprep.subr.mxu0 0.0
    %1264 = vmatpush1.xpose.msra.mxu0 0.0
    %1265 = vmatprep.subr.mxu0 0.0
    %1266 = vmatpush1.xpose.msra.mxu0 0.0
    %1267 = vmatprep.subr.mxu0 0.0
    %1268 = vmatpush1.xpose.msra.mxu0 0.0
    %1269 = vmatprep.subr.mxu0 0.0
    %1270 = vmatpush1.xpose.msra.mxu0 0.0
    %1271 = vmatprep.subr.mxu0 0.0
    %1272 = vmatpush1.xpose.msra.mxu0 0.0
    %1273 = vmatprep.subr.mxu0 0.0
    %1274 = vmatpush1.xpose.msra.mxu0 0.0
    %1275 = vmatprep.subr.mxu0 0.0
    %1276 = vmatpush1.xpose.msra.mxu0 0.0
    %1277 = vmatprep.subr.mxu0 0.0
    %1278 = vmatpush1.xpose.msra.mxu0 0.0
    %1279 = vmatprep.subr.mxu0 0.0
    %1280 = vmatpush1.xpose.msra.mxu0 0.0
    %1281 = vmatprep.subr.mxu0 0.0
    %1282 = vmatpush1.xpose.msra.mxu0 0.0
    %1283 = vmatprep.subr.mxu0 0.0
    %1284 = vmatpush1.xpose.msra.mxu0 0.0
    %1285 = vmatprep.subr.mxu0 0.0
    %1286 = vmatpush1.xpose.msra.mxu0 0.0
    %1287 = vmatprep.subr.mxu0 0.0
    %1288 = vmatpush1.xpose.msra.mxu0 0.0
    %1289 = vmatprep.subr.mxu0 0.0
    %1290 = vmatpush1.xpose.msra.mxu0 0.0
    %1291 = vmatprep.subr.mxu0 0.0
    %1292 = vmatpush1.xpose.msra.mxu0 0.0
    %1293 = vmatprep.subr.mxu0 0.0
    %1294 = vmatpush1.xpose.msra.mxu0 0.0
    %1295 = vmatprep.subr.mxu0 0.0
    %1296 = vmatpush1.xpose.msra.mxu0 0.0
    %1297 = vmatprep.subr.mxu0 0.0
    %1298 = vmatpush1.xpose.msra.mxu0 0.0
    %1299 = vmatprep.subr.mxu0 0.0
    %1300 = vmatpush1.xpose.msra.mxu0 0.0
    %1301 = vmatprep.subr.mxu0 0.0
    %1302 = vmatpush1.xpose.msra.mxu0 0.0
    %1303 = vmatprep.subr.mxu0 0.0
    %1304 = vmatpush1.xpose.msra.mxu0 0.0
    %1305 = vmatprep.subr.mxu0 0.0
    %1306 = vmatpush1.xpose.msra.mxu0 0.0
    %1307 = vmatprep.subr.mxu0 0.0
    %1308 = vmatpush1.xpose.msra.mxu0 0.0
    %1309 = vmatprep.subr.mxu0 0.0
    %1310 = vmatpush1.xpose.msra.mxu0 0.0
    %1311 = vmatprep.mubr.f32.mxu0 0.0
    %1312 = vmatmul.mubr.f32.gmra.mrb[0].mxu0 %v1242
    %v1313 = vpop.f32.mrb[0].mxu0
    %v1314 = vadd.f32 0.0, %v1313
    %v1315 = vpop.f32.mrb[0].mxu0
    %1316 = vdwg.mxu0
    %v1318 = vsel %vm1088, %v413, 0
    %v1321 = vsel %vm1088, %v723, 0
    %1323 = vmatprep.subr.mxu0 0.0
    %1324 = vmatpush1.xpose.msra.mxu0 %v1321
    %1325 = vmatprep.subr.mxu0 0.0
    %1326 = vmatpush1.xpose.msra.mxu0 0.0
    %1327 = vmatprep.subr.mxu0 0.0
    %1328 = vmatpush1.xpose.msra.mxu0 0.0
    %1329 = vmatprep.subr.mxu0 0.0
    %1330 = vmatpush1.xpose.msra.mxu0 0.0
    %1331 = vmatprep.subr.mxu0 0.0
    %1332 = vmatpush1.xpose.msra.mxu0 0.0
    %1333 = vmatprep.subr.mxu0 0.0
    %1334 = vmatpush1.xpose.msra.mxu0 0.0
    %1335 = vmatprep.subr.mxu0 0.0
    %1336 = vmatpush1.xpose.msra.mxu0 0.0
    %1337 = vmatprep.subr.mxu0 0.0
    %1338 = vmatpush1.xpose.msra.mxu0 0.0
    %1339 = vmatprep.subr.mxu0 0.0
    %1340 = vmatpush1.xpose.msra.mxu0 0.0
    %1341 = vmatprep.subr.mxu0 0.0
    %1342 = vmatpush1.xpose.msra.mxu0 0.0
    %1343 = vmatprep.subr.mxu0 0.0
    %1344 = vmatpush1.xpose.msra.mxu0 0.0
    %1345 = vmatprep.subr.mxu0 0.0
    %1346 = vmatpush1.xpose.msra.mxu0 0.0
    %1347 = vmatprep.subr.mxu0 0.0
    %1348 = vmatpush1.xpose.msra.mxu0 0.0
    %1349 = vmatprep.subr.mxu0 0.0
    %1350 = vmatpush1.xpose.msra.mxu0 0.0
    %1351 = vmatprep.subr.mxu0 0.0
    %1352 = vmatpush1.xpose.msra.mxu0 0.0
    %1353 = vmatprep.subr.mxu0 0.0
    %1354 = vmatpush1.xpose.msra.mxu0 0.0
    %1355 = vmatprep.subr.mxu0 0.0
    %1356 = vmatpush1.xpose.msra.mxu0 0.0
    %1357 = vmatprep.subr.mxu0 0.0
    %1358 = vmatpush1.xpose.msra.mxu0 0.0
    %1359 = vmatprep.subr.mxu0 0.0
    %1360 = vmatpush1.xpose.msra.mxu0 0.0
    %1361 = vmatprep.subr.mxu0 0.0
    %1362 = vmatpush1.xpose.msra.mxu0 0.0
    %1363 = vmatprep.subr.mxu0 0.0
    %1364 = vmatpush1.xpose.msra.mxu0 0.0
    %1365 = vmatprep.subr.mxu0 0.0
    %1366 = vmatpush1.xpose.msra.mxu0 0.0
    %1367 = vmatprep.subr.mxu0 0.0
    %1368 = vmatpush1.xpose.msra.mxu0 0.0
    %1369 = vmatprep.subr.mxu0 0.0
    %1370 = vmatpush1.xpose.msra.mxu0 0.0
    %1371 = vmatprep.subr.mxu0 0.0
    %1372 = vmatpush1.xpose.msra.mxu0 0.0
    %1373 = vmatprep.subr.mxu0 0.0
    %1374 = vmatpush1.xpose.msra.mxu0 0.0
    %1375 = vmatprep.subr.mxu0 0.0
    %1376 = vmatpush1.xpose.msra.mxu0 0.0
    %1377 = vmatprep.subr.mxu0 0.0
    %1378 = vmatpush1.xpose.msra.mxu0 0.0
    %1379 = vmatprep.subr.mxu0 0.0
    %1380 = vmatpush1.xpose.msra.mxu0 0.0
    %1381 = vmatprep.subr.mxu0 0.0
    %1382 = vmatpush1.xpose.msra.mxu0 0.0
    %1383 = vmatprep.subr.mxu0 0.0
    %1384 = vmatpush1.xpose.msra.mxu0 0.0
    %1385 = vmatprep.subr.mxu0 0.0
    %1386 = vmatpush1.xpose.msra.mxu0 0.0
    %1387 = vmatprep.mubr.f32.mxu0 0.0
    %1388 = vmatmul.mubr.f32.gmra.mrb[0].mxu0 %v1318
    %v1389 = vpop.f32.mrb[0].mxu0
    %v1390 = vadd.f32 0.0, %v1389
    %v1391 = vpop.f32.mrb[0].mxu0
    %1392 = vdwg.mxu0
    %v1394 = vsel %vm1088, %v478, 0
    %v1397 = vsel %vm1088, %v788, 0
    %1399 = vmatprep.subr.mxu0 0.0
    %1400 = vmatpush1.xpose.msra.mxu0 %v1397
    %1401 = vmatprep.subr.mxu0 0.0
    %1402 = vmatpush1.xpose.msra.mxu0 0.0
    %1403 = vmatprep.subr.mxu0 0.0
    %1404 = vmatpush1.xpose.msra.mxu0 0.0
    %1405 = vmatprep.subr.mxu0 0.0
    %1406 = vmatpush1.xpose.msra.mxu0 0.0
    %1407 = vmatprep.subr.mxu0 0.0
    %1408 = vmatpush1.xpose.msra.mxu0 0.0
    %1409 = vmatprep.subr.mxu0 0.0
    %1410 = vmatpush1.xpose.msra.mxu0 0.0
    %1411 = vmatprep.subr.mxu0 0.0
    %1412 = vmatpush1.xpose.msra.mxu0 0.0
    %1413 = vmatprep.subr.mxu0 0.0
    %1414 = vmatpush1.xpose.msra.mxu0 0.0
    %1415 = vmatprep.subr.mxu0 0.0
    %1416 = vmatpush1.xpose.msra.mxu0 0.0
    %1417 = vmatprep.subr.mxu0 0.0
    %1418 = vmatpush1.xpose.msra.mxu0 0.0
    %1419 = vmatprep.subr.mxu0 0.0
    %1420 = vmatpush1.xpose.msra.mxu0 0.0
    %1421 = vmatprep.subr.mxu0 0.0
    %1422 = vmatpush1.xpose.msra.mxu0 0.0
    %1423 = vmatprep.subr.mxu0 0.0
    %1424 = vmatpush1.xpose.msra.mxu0 0.0
    %1425 = vmatprep.subr.mxu0 0.0
    %1426 = vmatpush1.xpose.msra.mxu0 0.0
    %1427 = vmatprep.subr.mxu0 0.0
    %1428 = vmatpush1.xpose.msra.mxu0 0.0
    %1429 = vmatprep.subr.mxu0 0.0
    %1430 = vmatpush1.xpose.msra.mxu0 0.0
    %1431 = vmatprep.subr.mxu0 0.0
    %1432 = vmatpush1.xpose.msra.mxu0 0.0
    %1433 = vmatprep.subr.mxu0 0.0
    %1434 = vmatpush1.xpose.msra.mxu0 0.0
    %1435 = vmatprep.subr.mxu0 0.0
    %1436 = vmatpush1.xpose.msra.mxu0 0.0
    %1437 = vmatprep.subr.mxu0 0.0
    %1438 = vmatpush1.xpose.msra.mxu0 0.0
    %1439 = vmatprep.subr.mxu0 0.0
    %1440 = vmatpush1.xpose.msra.mxu0 0.0
    %1441 = vmatprep.subr.mxu0 0.0
    %1442 = vmatpush1.xpose.msra.mxu0 0.0
    %1443 = vmatprep.subr.mxu0 0.0
    %1444 = vmatpush1.xpose.msra.mxu0 0.0
    %1445 = vmatprep.subr.mxu0 0.0
    %1446 = vmatpush1.xpose.msra.mxu0 0.0
    %1447 = vmatprep.subr.mxu0 0.0
    %1448 = vmatpush1.xpose.msra.mxu0 0.0
    %1449 = vmatprep.subr.mxu0 0.0
    %1450 = vmatpush1.xpose.msra.mxu0 0.0
    %1451 = vmatprep.subr.mxu0 0.0
    %1452 = vmatpush1.xpose.msra.mxu0 0.0
    %1453 = vmatprep.subr.mxu0 0.0
    %1454 = vmatpush1.xpose.msra.mxu0 0.0
    %1455 = vmatprep.subr.mxu0 0.0
    %1456 = vmatpush1.xpose.msra.mxu0 0.0
    %1457 = vmatprep.subr.mxu0 0.0
    %1458 = vmatpush1.xpose.msra.mxu0 0.0
    %1459 = vmatprep.subr.mxu0 0.0
    %1460 = vmatpush1.xpose.msra.mxu0 0.0
    %1461 = vmatprep.subr.mxu0 0.0
    %1462 = vmatpush1.xpose.msra.mxu0 0.0
    %1463 = vmatprep.mubr.f32.mxu0 0.0
    %1464 = vmatmul.mubr.f32.gmra.mrb[0].mxu0 %v1394
    %v1465 = vpop.f32.mrb[0].mxu0
    %v1466 = vadd.f32 0.0, %v1465
    %v1467 = vpop.f32.mrb[0].mxu0
    %1468 = vdwg.mxu0
    %v1470 = vsel %vm1088, %v479, 0
    %v1473 = vsel %vm1088, %v789, 0
    %1475 = vmatprep.subr.mxu0 0.0
    %1476 = vmatpush1.xpose.msra.mxu0 %v1473
    %1477 = vmatprep.subr.mxu0 0.0
    %1478 = vmatpush1.xpose.msra.mxu0 0.0
    %1479 = vmatprep.subr.mxu0 0.0
    %1480 = vmatpush1.xpose.msra.mxu0 0.0
    %1481 = vmatprep.subr.mxu0 0.0
    %1482 = vmatpush1.xpose.msra.mxu0 0.0
    %1483 = vmatprep.subr.mxu0 0.0
    %1484 = vmatpush1.xpose.msra.mxu0 0.0
    %1485 = vmatprep.subr.mxu0 0.0
    %1486 = vmatpush1.xpose.msra.mxu0 0.0
    %1487 = vmatprep.subr.mxu0 0.0
    %1488 = vmatpush1.xpose.msra.mxu0 0.0
    %1489 = vmatprep.subr.mxu0 0.0
    %1490 = vmatpush1.xpose.msra.mxu0 0.0
    %1491 = vmatprep.subr.mxu0 0.0
    %1492 = vmatpush1.xpose.msra.mxu0 0.0
    %1493 = vmatprep.subr.mxu0 0.0
    %1494 = vmatpush1.xpose.msra.mxu0 0.0
    %1495 = vmatprep.subr.mxu0 0.0
    %1496 = vmatpush1.xpose.msra.mxu0 0.0
    %1497 = vmatprep.subr.mxu0 0.0
    %1498 = vmatpush1.xpose.msra.mxu0 0.0
    %1499 = vmatprep.subr.mxu0 0.0
    %1500 = vmatpush1.xpose.msra.mxu0 0.0
    %1501 = vmatprep.subr.mxu0 0.0
    %1502 = vmatpush1.xpose.msra.mxu0 0.0
    %1503 = vmatprep.subr.mxu0 0.0
    %1504 = vmatpush1.xpose.msra.mxu0 0.0
    %1505 = vmatprep.subr.mxu0 0.0
    %1506 = vmatpush1.xpose.msra.mxu0 0.0
    %1507 = vmatprep.subr.mxu0 0.0
    %1508 = vmatpush1.xpose.msra.mxu0 0.0
    %1509 = vmatprep.subr.mxu0 0.0
    %1510 = vmatpush1.xpose.msra.mxu0 0.0
    %1511 = vmatprep.subr.mxu0 0.0
    %1512 = vmatpush1.xpose.msra.mxu0 0.0
    %1513 = vmatprep.subr.mxu0 0.0
    %1514 = vmatpush1.xpose.msra.mxu0 0.0
    %1515 = vmatprep.subr.mxu0 0.0
    %1516 = vmatpush1.xpose.msra.mxu0 0.0
    %1517 = vmatprep.subr.mxu0 0.0
    %1518 = vmatpush1.xpose.msra.mxu0 0.0
    %1519 = vmatprep.subr.mxu0 0.0
    %1520 = vmatpush1.xpose.msra.mxu0 0.0
    %1521 = vmatprep.subr.mxu0 0.0
    %1522 = vmatpush1.xpose.msra.mxu0 0.0
    %1523 = vmatprep.subr.mxu0 0.0
    %1524 = vmatpush1.xpose.msra.mxu0 0.0
    %1525 = vmatprep.subr.mxu0 0.0
    %1526 = vmatpush1.xpose.msra.mxu0 0.0
    %1527 = vmatprep.subr.mxu0 0.0
    %1528 = vmatpush1.xpose.msra.mxu0 0.0
    %1529 = vmatprep.subr.mxu0 0.0
    %1530 = vmatpush1.xpose.msra.mxu0 0.0
    %1531 = vmatprep.subr.mxu0 0.0
    %1532 = vmatpush1.xpose.msra.mxu0 0.0
    %1533 = vmatprep.subr.mxu0 0.0
    %1534 = vmatpush1.xpose.msra.mxu0 0.0
    %1535 = vmatprep.subr.mxu0 0.0
    %1536 = vmatpush1.xpose.msra.mxu0 0.0
    %1537 = vmatprep.subr.mxu0 0.0
    %1538 = vmatpush1.xpose.msra.mxu0 0.0
    %1539 = vmatprep.mubr.f32.mxu0 0.0
    %1540 = vmatmul.mubr.f32.gmra.mrb[0].mxu0 %v1470
    %v1541 = vpop.f32.mrb[0].mxu0
    %v1542 = vadd.f32 0.0, %v1541
    %v1543 = vpop.f32.mrb[0].mxu0
    %1544 = vdwg.mxu0
    %v1546 = vsel %vm1088, %v480, 0
    %v1549 = vsel %vm1088, %v790, 0
    %1551 = vmatprep.subr.mxu0 0.0
    %1552 = vmatpush1.xpose.msra.mxu0 %v1549
    %1553 = vmatprep.subr.mxu0 0.0
    %1554 = vmatpush1.xpose.msra.mxu0 0.0
    %1555 = vmatprep.subr.mxu0 0.0
    %1556 = vmatpush1.xpose.msra.mxu0 0.0
    %1557 = vmatprep.subr.mxu0 0.0
    %1558 = vmatpush1.xpose.msra.mxu0 0.0
    %1559 = vmatprep.subr.mxu0 0.0
    %1560 = vmatpush1.xpose.msra.mxu0 0.0
    %1561 = vmatprep.subr.mxu0 0.0
    %1562 = vmatpush1.xpose.msra.mxu0 0.0
    %1563 = vmatprep.subr.mxu0 0.0
    %1564 = vmatpush1.xpose.msra.mxu0 0.0
    %1565 = vmatprep.subr.mxu0 0.0
    %1566 = vmatpush1.xpose.msra.mxu0 0.0
    %1567 = vmatprep.subr.mxu0 0.0
    %1568 = vmatpush1.xpose.msra.mxu0 0.0
    %1569 = vmatprep.subr.mxu0 0.0
    %1570 = vmatpush1.xpose.msra.mxu0 0.0
    %1571 = vmatprep.subr.mxu0 0.0
    %1572 = vmatpush1.xpose.msra.mxu0 0.0
    %1573 = vmatprep.subr.mxu0 0.0
    %1574 = vmatpush1.xpose.msra.mxu0 0.0
    %1575 = vmatprep.subr.mxu0 0.0
    %1576 = vmatpush1.xpose.msra.mxu0 0.0
    %1577 = vmatprep.subr.mxu0 0.0
    %1578 = vmatpush1.xpose.msra.mxu0 0.0
    %1579 = vmatprep.subr.mxu0 0.0
    %1580 = vmatpush1.xpose.msra.mxu0 0.0
    %1581 = vmatprep.subr.mxu0 0.0
    %1582 = vmatpush1.xpose.msra.mxu0 0.0
    %1583 = vmatprep.subr.mxu0 0.0
    %1584 = vmatpush1.xpose.msra.mxu0 0.0
    %1585 = vmatprep.subr.mxu0 0.0
    %1586 = vmatpush1.xpose.msra.mxu0 0.0
    %1587 = vmatprep.subr.mxu0 0.0
    %1588 = vmatpush1.xpose.msra.mxu0 0.0
    %1589 = vmatprep.subr.mxu0 0.0
    %1590 = vmatpush1.xpose.msra.mxu0 0.0
    %1591 = vmatprep.subr.mxu0 0.0
    %1592 = vmatpush1.xpose.msra.mxu0 0.0
    %1593 = vmatprep.subr.mxu0 0.0
    %1594 = vmatpush1.xpose.msra.mxu0 0.0
    %1595 = vmatprep.subr.mxu0 0.0
    %1596 = vmatpush1.xpose.msra.mxu0 0.0
    %1597 = vmatprep.subr.mxu0 0.0
    %1598 = vmatpush1.xpose.msra.mxu0 0.0
    %1599 = vmatprep.subr.mxu0 0.0
    %1600 = vmatpush1.xpose.msra.mxu0 0.0
    %1601 = vmatprep.subr.mxu0 0.0
    %1602 = vmatpush1.xpose.msra.mxu0 0.0
    %1603 = vmatprep.subr.mxu0 0.0
    %1604 = vmatpush1.xpose.msra.mxu0 0.0
    %1605 = vmatprep.subr.mxu0 0.0
    %1606 = vmatpush1.xpose.msra.mxu0 0.0
    %1607 = vmatprep.subr.mxu0 0.0
    %1608 = vmatpush1.xpose.msra.mxu0 0.0
    %1609 = vmatprep.subr.mxu0 0.0
    %1610 = vmatpush1.xpose.msra.mxu0 0.0
    %1611 = vmatprep.subr.mxu0 0.0
    %1612 = vmatpush1.xpose.msra.mxu0 0.0
    %1613 = vmatprep.subr.mxu0 0.0
    %1614 = vmatpush1.xpose.msra.mxu0 0.0
    %1615 = vmatprep.mubr.f32.mxu0 0.0
    %1616 = vmatmul.mubr.f32.gmra.mrb[0].mxu0 %v1546
    %v1617 = vpop.f32.mrb[0].mxu0
    %v1618 = vadd.f32 0.0, %v1617
    %v1619 = vpop.f32.mrb[0].mxu0
    %1620 = vdwg.mxu0
    %v1622 = vsel %vm1088, %v481, 0
    %v1625 = vsel %vm1088, %v791, 0
    %1627 = vmatprep.subr.mxu0 0.0
    %1628 = vmatpush1.xpose.msra.mxu0 %v1625
    %1629 = vmatprep.subr.mxu0 0.0
    %1630 = vmatpush1.xpose.msra.mxu0 0.0
    %1631 = vmatprep.subr.mxu0 0.0
    %1632 = vmatpush1.xpose.msra.mxu0 0.0
    %1633 = vmatprep.subr.mxu0 0.0
    %1634 = vmatpush1.xpose.msra.mxu0 0.0
    %1635 = vmatprep.subr.mxu0 0.0
    %1636 = vmatpush1.xpose.msra.mxu0 0.0
    %1637 = vmatprep.subr.mxu0 0.0
    %1638 = vmatpush1.xpose.msra.mxu0 0.0
    %1639 = vmatprep.subr.mxu0 0.0
    %1640 = vmatpush1.xpose.msra.mxu0 0.0
    %1641 = vmatprep.subr.mxu0 0.0
    %1642 = vmatpush1.xpose.msra.mxu0 0.0
    %1643 = vmatprep.subr.mxu0 0.0
    %1644 = vmatpush1.xpose.msra.mxu0 0.0
    %1645 = vmatprep.subr.mxu0 0.0
    %1646 = vmatpush1.xpose.msra.mxu0 0.0
    %1647 = vmatprep.subr.mxu0 0.0
    %1648 = vmatpush1.xpose.msra.mxu0 0.0
    %1649 = vmatprep.subr.mxu0 0.0
    %1650 = vmatpush1.xpose.msra.mxu0 0.0
    %1651 = vmatprep.subr.mxu0 0.0
    %1652 = vmatpush1.xpose.msra.mxu0 0.0
    %1653 = vmatprep.subr.mxu0 0.0
    %1654 = vmatpush1.xpose.msra.mxu0 0.0
    %1655 = vmatprep.subr.mxu0 0.0
    %1656 = vmatpush1.xpose.msra.mxu0 0.0
    %1657 = vmatprep.subr.mxu0 0.0
    %1658 = vmatpush1.xpose.msra.mxu0 0.0
    %1659 = vmatprep.subr.mxu0 0.0
    %1660 = vmatpush1.xpose.msra.mxu0 0.0
    %1661 = vmatprep.subr.mxu0 0.0
    %1662 = vmatpush1.xpose.msra.mxu0 0.0
    %1663 = vmatprep.subr.mxu0 0.0
    %1664 = vmatpush1.xpose.msra.mxu0 0.0
    %1665 = vmatprep.subr.mxu0 0.0
    %1666 = vmatpush1.xpose.msra.mxu0 0.0
    %1667 = vmatprep.subr.mxu0 0.0
    %1668 = vmatpush1.xpose.msra.mxu0 0.0
    %1669 = vmatprep.subr.mxu0 0.0
    %1670 = vmatpush1.xpose.msra.mxu0 0.0
    %1671 = vmatprep.subr.mxu0 0.0
    %1672 = vmatpush1.xpose.msra.mxu0 0.0
    %1673 = vmatprep.subr.mxu0 0.0
    %1674 = vmatpush1.xpose.msra.mxu0 0.0
    %1675 = vmatprep.subr.mxu0 0.0
    %1676 = vmatpush1.xpose.msra.mxu0 0.0
    %1677 = vmatprep.subr.mxu0 0.0
    %1678 = vmatpush1.xpose.msra.mxu0 0.0
    %1679 = vmatprep.subr.mxu0 0.0
    %1680 = vmatpush1.xpose.msra.mxu0 0.0
    %1681 = vmatprep.subr.mxu0 0.0
    %1682 = vmatpush1.xpose.msra.mxu0 0.0
    %1683 = vmatprep.subr.mxu0 0.0
    %1684 = vmatpush1.xpose.msra.mxu0 0.0
    %1685 = vmatprep.subr.mxu0 0.0
    %1686 = vmatpush1.xpose.msra.mxu0 0.0
    %1687 = vmatprep.subr.mxu0 0.0
    %1688 = vmatpush1.xpose.msra.mxu0 0.0
    %1689 = vmatprep.subr.mxu0 0.0
    %1690 = vmatpush1.xpose.msra.mxu0 0.0
    %1691 = vmatprep.mubr.f32.mxu0 0.0
    %1692 = vmatmul.mubr.f32.gmra.mrb[0].mxu0 %v1622
    %v1693 = vpop.f32.mrb[0].mxu0
    %v1694 = vadd.f32 0.0, %v1693
    %v1695 = vpop.f32.mrb[0].mxu0
    %1696 = vdwg.mxu0
    %v1697 = vsel %vm1088, %v1162, -inf
    %1698 = vmax.xlane.f32.xlu0 %v1697
    %v1699 = vpop.xlane.xlu0 %1698
    %v1700 = vsel %vm1088, %v1238, -inf
    %1701 = vmax.xlane.f32.xlu0 %v1700
    %v1702 = vpop.xlane.xlu0 %1701
    %v1703 = vsel %vm1088, %v1314, -inf
    %1704 = vmax.xlane.f32.xlu0 %v1703
    %v1705 = vpop.xlane.xlu0 %1704
    %v1706 = vsel %vm1088, %v1390, -inf
    %1707 = vmax.xlane.f32.xlu0 %v1706
    %v1708 = vpop.xlane.xlu0 %1707
    %v1709 = vsel %vm1088, %v1466, -inf
    %1710 = vmax.xlane.f32.xlu0 %v1709
    %v1711 = vpop.xlane.xlu0 %1710
    %v1712 = vsel %vm1088, %v1542, -inf
    %1713 = vmax.xlane.f32.xlu0 %v1712
    %v1714 = vpop.xlane.xlu0 %1713
    %v1715 = vsel %vm1088, %v1618, -inf
    %1716 = vmax.xlane.f32.xlu0 %v1715
    %v1717 = vpop.xlane.xlu0 %1716
    %v1718 = vsel %vm1088, %v1694, -inf
    %1719 = vmax.xlane.f32.xlu0 %v1718
    %v1720 = vpop.xlane.xlu0 %1719
    %v1721 = vsub.f32 %v1162, %v1699
    %v1722 = vsub.f32 %v1238, %v1702
    %v1723 = vsub.f32 %v1314, %v1705
    %v1724 = vsub.f32 %v1390, %v1708
    %v1725 = vsub.f32 %v1466, %v1711
    %v1726 = vsub.f32 %v1542, %v1714
    %v1727 = vsub.f32 %v1618, %v1717
    %v1728 = vsub.f32 %v1694, %v1720
    %v1729 = vmul.f32 %v1721, 1.442695
    %v1730 = vpow.pop %v1729
    %v1731 = vmul.f32 %v1722, 1.442695
    %v1732 = vpow.pop %v1731
    %v1733 = vmul.f32 %v1723, 1.442695
    %v1734 = vpow.pop %v1733
    %v1735 = vmul.f32 %v1724, 1.442695
    %v1736 = vpow.pop %v1735
    %v1737 = vmul.f32 %v1725, 1.442695
    %v1738 = vpow.pop %v1737
    %v1739 = vmul.f32 %v1726, 1.442695
    %v1740 = vpow.pop %v1739
    %v1741 = vmul.f32 %v1727, 1.442695
    %v1742 = vpow.pop %v1741
    %v1743 = vmul.f32 %v1728, 1.442695
    %v1744 = vpow.pop %v1743
    %v1745 = vsel %vm1088, %v1730, 0.0
    %1746 = vadd.xlane.f32.xlu0 %v1745
    %v1747 = vpop.xlane.xlu0 %1746
    %v1748 = vsel %vm1088, %v1732, 0.0
    %1749 = vadd.xlane.f32.xlu0 %v1748
    %v1750 = vpop.xlane.xlu0 %1749
    %v1751 = vsel %vm1088, %v1734, 0.0
    %1752 = vadd.xlane.f32.xlu0 %v1751
    %v1753 = vpop.xlane.xlu0 %1752
    %v1754 = vsel %vm1088, %v1736, 0.0
    %1755 = vadd.xlane.f32.xlu0 %v1754
    %v1756 = vpop.xlane.xlu0 %1755
    %v1757 = vsel %vm1088, %v1738, 0.0
    %1758 = vadd.xlane.f32.xlu0 %v1757
    %v1759 = vpop.xlane.xlu0 %1758
    %v1760 = vsel %vm1088, %v1740, 0.0
    %1761 = vadd.xlane.f32.xlu0 %v1760
    %v1762 = vpop.xlane.xlu0 %1761
    %v1763 = vsel %vm1088, %v1742, 0.0
    %1764 = vadd.xlane.f32.xlu0 %v1763
    %v1765 = vpop.xlane.xlu0 %1764
    %v1766 = vsel %vm1088, %v1744, 0.0
    %1767 = vadd.xlane.f32.xlu0 %v1766
    %v1768 = vpop.xlane.xlu0 %1767
    %v1769 = vrcp.pop %v1747
    %v1770 = vrcp.pop %v1750
    %v1771 = vrcp.pop %v1753
    %v1772 = vrcp.pop %v1756
    %v1773 = vrcp.pop %v1759
    %v1774 = vrcp.pop %v1762
    %v1775 = vrcp.pop %v1765
    %v1776 = vrcp.pop %v1768
    %v1777 = vmul.f32 %v1730, %v1769
    %v1778 = vmul.f32 %v1732, %v1770
    %v1779 = vmul.f32 %v1734, %v1771
    %v1780 = vmul.f32 %v1736, %v1772
    %v1781 = vmul.f32 %v1738, %v1773
    %v1782 = vmul.f32 %v1740, %v1774
    %v1783 = vmul.f32 %v1742, %v1775
    %v1784 = vmul.f32 %v1744, %v1776
    %1785 = vst.msk [vmem:[#allocation5] sm:$0xff] %vm1088, %v1777
    %1786 = vst.msk [vmem:[#allocation5 + $0x8] sm:$0xff] %vm1088, %v1778
    %1787 = vst.msk [vmem:[#allocation5 + $0x10] sm:$0xff] %vm1088, %v1779
    %1788 = vst.msk [vmem:[#allocation5 + $0x18] sm:$0xff] %vm1088, %v1780
    %1789 = vst.msk [vmem:[#allocation5 + $0x20] sm:$0xff] %vm1088, %v1781
    %1790 = vst.msk [vmem:[#allocation5 + $0x28] sm:$0xff] %vm1088, %v1782
    %1791 = vst.msk [vmem:[#allocation5 + $0x30] sm:$0xff] %vm1088, %v1783
    %1792 = vst.msk [vmem:[#allocation5 + $0x38] sm:$0xff] %vm1088, %v1784
    %v1794 = vsel %vm1088, %v1777, 0
    %1796 = vmatprep.subr.mxu0 0.0
    %1797 = vmatpush1.msra.mxu0 %v1016
    %1798 = vmatprep.subr.mxu0 0.0
    %1799 = vmatpush1.msra.mxu0 0.0
    %1800 = vmatprep.subr.mxu0 0.0
    %1801 = vmatpush1.msra.mxu0 0.0
    %1802 = vmatprep.subr.mxu0 0.0
    %1803 = vmatpush1.msra.mxu0 0.0
    %1804 = vmatprep.subr.mxu0 0.0
    %1805 = vmatpush1.msra.mxu0 0.0
    %1806 = vmatprep.subr.mxu0 0.0
    %1807 = vmatpush1.msra.mxu0 0.0
    %1808 = vmatprep.subr.mxu0 0.0
    %1809 = vmatpush1.msra.mxu0 0.0
    %1810 = vmatprep.subr.mxu0 0.0
    %1811 = vmatpush1.msra.mxu0 0.0
    %1812 = vmatprep.subr.mxu0 0.0
    %1813 = vmatpush1.msra.mxu0 0.0
    %1814 = vmatprep.subr.mxu0 0.0
    %1815 = vmatpush1.msra.mxu0 0.0
    %1816 = vmatprep.subr.mxu0 0.0
    %1817 = vmatpush1.msra.mxu0 0.0
    %1818 = vmatprep.subr.mxu0 0.0
    %1819 = vmatpush1.msra.mxu0 0.0
    %1820 = vmatprep.subr.mxu0 0.0
    %1821 = vmatpush1.msra.mxu0 0.0
    %1822 = vmatprep.subr.mxu0 0.0
    %1823 = vmatpush1.msra.mxu0 0.0
    %1824 = vmatprep.subr.mxu0 0.0
    %1825 = vmatpush1.msra.mxu0 0.0
    %1826 = vmatprep.subr.mxu0 0.0
    %1827 = vmatpush1.msra.mxu0 0.0
    %1828 = vmatprep.subr.mxu0 0.0
    %1829 = vmatpush1.msra.mxu0 0.0
    %1830 = vmatprep.subr.mxu0 0.0
    %1831 = vmatpush1.msra.mxu0 0.0
    %1832 = vmatprep.subr.mxu0 0.0
    %1833 = vmatpush1.msra.mxu0 0.0
    %1834 = vmatprep.subr.mxu0 0.0
    %1835 = vmatpush1.msra.mxu0 0.0
    %1836 = vmatprep.subr.mxu0 0.0
    %1837 = vmatpush1.msra.mxu0 0.0
    %1838 = vmatprep.subr.mxu0 0.0
    %1839 = vmatpush1.msra.mxu0 0.0
    %1840 = vmatprep.subr.mxu0 0.0
    %1841 = vmatpush1.msra.mxu0 0.0
    %1842 = vmatprep.subr.mxu0 0.0
    %1843 = vmatpush1.msra.mxu0 0.0
    %1844 = vmatprep.subr.mxu0 0.0
    %1845 = vmatpush1.msra.mxu0 0.0
    %1846 = vmatprep.subr.mxu0 0.0
    %1847 = vmatpush1.msra.mxu0 0.0
    %1848 = vmatprep.subr.mxu0 0.0
    %1849 = vmatpush1.msra.mxu0 0.0
    %1850 = vmatprep.subr.mxu0 0.0
    %1851 = vmatpush1.msra.mxu0 0.0
    %1852 = vmatprep.subr.mxu0 0.0
    %1853 = vmatpush1.msra.mxu0 0.0
    %1854 = vmatprep.subr.mxu0 0.0
    %1855 = vmatpush1.msra.mxu0 0.0
    %1856 = vmatprep.subr.mxu0 0.0
    %1857 = vmatpush1.msra.mxu0 0.0
    %1858 = vmatprep.subr.mxu0 0.0
    %1859 = vmatpush1.msra.mxu0 0.0
    %1860 = vmatprep.mubr.f32.mxu0 0.0
    %1861 = vmatmul.mubr.f32.gmra.mrb[0].mxu0 %v1794
    %v1862 = vpop.f32.mrb[0].mxu0
    %v1863 = vadd.f32 0.0, %v1862
    %v1864 = vpop.f32.mrb[0].mxu0
    %1865 = vdwg.mxu0
    %v1867 = vsel %vm1088, %v1778, 0
    %1869 = vmatprep.subr.mxu0 0.0
    %1870 = vmatpush1.msra.mxu0 %v1017
    %1871 = vmatprep.subr.mxu0 0.0
    %1872 = vmatpush1.msra.mxu0 0.0
    %1873 = vmatprep.subr.mxu0 0.0
    %1874 = vmatpush1.msra.mxu0 0.0
    %1875 = vmatprep.subr.mxu0 0.0
    %1876 = vmatpush1.msra.mxu0 0.0
    %1877 = vmatprep.subr.mxu0 0.0
    %1878 = vmatpush1.msra.mxu0 0.0
    %1879 = vmatprep.subr.mxu0 0.0
    %1880 = vmatpush1.msra.mxu0 0.0
    %1881 = vmatprep.subr.mxu0 0.0
    %1882 = vmatpush1.msra.mxu0 0.0
    %1883 = vmatprep.subr.mxu0 0.0
    %1884 = vmatpush1.msra.mxu0 0.0
    %1885 = vmatprep.subr.mxu0 0.0
    %1886 = vmatpush1.msra.mxu0 0.0
    %1887 = vmatprep.subr.mxu0 0.0
    %1888 = vmatpush1.msra.mxu0 0.0
    %1889 = vmatprep.subr.mxu0 0.0
    %1890 = vmatpush1.msra.mxu0 0.0
    %1891 = vmatprep.subr.mxu0 0.0
    %1892 = vmatpush1.msra.mxu0 0.0
    %1893 = vmatprep.subr.mxu0 0.0
    %1894 = vmatpush1.msra.mxu0 0.0
    %1895 = vmatprep.subr.mxu0 0.0
    %1896 = vmatpush1.msra.mxu0 0.0
    %1897 = vmatprep.subr.mxu0 0.0
    %1898 = vmatpush1.msra.mxu0 0.0
    %1899 = vmatprep.subr.mxu0 0.0
    %1900 = vmatpush1.msra.mxu0 0.0
    %1901 = vmatprep.subr.mxu0 0.0
    %1902 = vmatpush1.msra.mxu0 0.0
    %1903 = vmatprep.subr.mxu0 0.0
    %1904 = vmatpush1.msra.mxu0 0.0
    %1905 = vmatprep.subr.mxu0 0.0
    %1906 = vmatpush1.msra.mxu0 0.0
    %1907 = vmatprep.subr.mxu0 0.0
    %1908 = vmatpush1.msra.mxu0 0.0
    %1909 = vmatprep.subr.mxu0 0.0
    %1910 = vmatpush1.msra.mxu0 0.0
    %1911 = vmatprep.subr.mxu0 0.0
    %1912 = vmatpush1.msra.mxu0 0.0
    %1913 = vmatprep.subr.mxu0 0.0
    %1914 = vmatpush1.msra.mxu0 0.0
    %1915 = vmatprep.subr.mxu0 0.0
    %1916 = vmatpush1.msra.mxu0 0.0
    %1917 = vmatprep.subr.mxu0 0.0
    %1918 = vmatpush1.msra.mxu0 0.0
    %1919 = vmatprep.subr.mxu0 0.0
    %1920 = vmatpush1.msra.mxu0 0.0
    %1921 = vmatprep.subr.mxu0 0.0
    %1922 = vmatpush1.msra.mxu0 0.0
    %1923 = vmatprep.subr.mxu0 0.0
    %1924 = vmatpush1.msra.mxu0 0.0
    %1925 = vmatprep.subr.mxu0 0.0
    %1926 = vmatpush1.msra.mxu0 0.0
    %1927 = vmatprep.subr.mxu0 0.0
    %1928 = vmatpush1.msra.mxu0 0.0
    %1929 = vmatprep.subr.mxu0 0.0
    %1930 = vmatpush1.msra.mxu0 0.0
    %1931 = vmatprep.subr.mxu0 0.0
    %1932 = vmatpush1.msra.mxu0 0.0
    %1933 = vmatprep.mubr.f32.mxu0 0.0
    %1934 = vmatmul.mubr.f32.gmra.mrb[0].mxu0 %v1867
    %v1935 = vpop.f32.mrb[0].mxu0
    %v1936 = vadd.f32 0.0, %v1935
    %v1937 = vpop.f32.mrb[0].mxu0
    %1938 = vdwg.mxu0
    %v1940 = vsel %vm1088, %v1779, 0
    %1942 = vmatprep.subr.mxu0 0.0
    %1943 = vmatpush1.msra.mxu0 %v1018
    %1944 = vmatprep.subr.mxu0 0.0
    %1945 = vmatpush1.msra.mxu0 0.0
    %1946 = vmatprep.subr.mxu0 0.0
    %1947 = vmatpush1.msra.mxu0 0.0
    %1948 = vmatprep.subr.mxu0 0.0
    %1949 = vmatpush1.msra.mxu0 0.0
    %1950 = vmatprep.subr.mxu0 0.0
    %1951 = vmatpush1.msra.mxu0 0.0
    %1952 = vmatprep.subr.mxu0 0.0
    %1953 = vmatpush1.msra.mxu0 0.0
    %1954 = vmatprep.subr.mxu0 0.0
    %1955 = vmatpush1.msra.mxu0 0.0
    %1956 = vmatprep.subr.mxu0 0.0
    %1957 = vmatpush1.msra.mxu0 0.0
    %1958 = vmatprep.subr.mxu0 0.0
    %1959 = vmatpush1.msra.mxu0 0.0
    %1960 = vmatprep.subr.mxu0 0.0
    %1961 = vmatpush1.msra.mxu0 0.0
    %1962 = vmatprep.subr.mxu0 0.0
    %1963 = vmatpush1.msra.mxu0 0.0
    %1964 = vmatprep.subr.mxu0 0.0
    %1965 = vmatpush1.msra.mxu0 0.0
    %1966 = vmatprep.subr.mxu0 0.0
    %1967 = vmatpush1.msra.mxu0 0.0
    %1968 = vmatprep.subr.mxu0 0.0
    %1969 = vmatpush1.msra.mxu0 0.0
    %1970 = vmatprep.subr.mxu0 0.0
    %1971 = vmatpush1.msra.mxu0 0.0
    %1972 = vmatprep.subr.mxu0 0.0
    %1973 = vmatpush1.msra.mxu0 0.0
    %1974 = vmatprep.subr.mxu0 0.0
    %1975 = vmatpush1.msra.mxu0 0.0
    %1976 = vmatprep.subr.mxu0 0.0
    %1977 = vmatpush1.msra.mxu0 0.0
    %1978 = vmatprep.subr.mxu0 0.0
    %1979 = vmatpush1.msra.mxu0 0.0
    %1980 = vmatprep.subr.mxu0 0.0
    %1981 = vmatpush1.msra.mxu0 0.0
    %1982 = vmatprep.subr.mxu0 0.0
    %1983 = vmatpush1.msra.mxu0 0.0
    %1984 = vmatprep.subr.mxu0 0.0
    %1985 = vmatpush1.msra.mxu0 0.0
    %1986 = vmatprep.subr.mxu0 0.0
    %1987 = vmatpush1.msra.mxu0 0.0
    %1988 = vmatprep.subr.mxu0 0.0
    %1989 = vmatpush1.msra.mxu0 0.0
    %1990 = vmatprep.subr.mxu0 0.0
    %1991 = vmatpush1.msra.mxu0 0.0
    %1992 = vmatprep.subr.mxu0 0.0
    %1993 = vmatpush1.msra.mxu0 0.0
    %1994 = vmatprep.subr.mxu0 0.0
    %1995 = vmatpush1.msra.mxu0 0.0
    %1996 = vmatprep.subr.mxu0 0.0
    %1997 = vmatpush1.msra.mxu0 0.0
    %1998 = vmatprep.subr.mxu0 0.0
    %1999 = vmatpush1.msra.mxu0 0.0
    %2000 = vmatprep.subr.mxu0 0.0
    %2001 = vmatpush1.msra.mxu0 0.0
    %2002 = vmatprep.subr.mxu0 0.0
    %2003 = vmatpush1.msra.mxu0 0.0
    %2004 = vmatprep.subr.mxu0 0.0
    %2005 = vmatpush1.msra.mxu0 0.0
    %2006 = vmatprep.mubr.f32.mxu0 0.0
    %2007 = vmatmul.mubr.f32.gmra.mrb[0].mxu0 %v1940
    %v2008 = vpop.f32.mrb[0].mxu0
    %v2009 = vadd.f32 0.0, %v2008
    %v2010 = vpop.f32.mrb[0].mxu0
    %2011 = vdwg.mxu0
    %v2013 = vsel %vm1088, %v1780, 0
    %2015 = vmatprep.subr.mxu0 0.0
    %2016 = vmatpush1.msra.mxu0 %v1019
    %2017 = vmatprep.subr.mxu0 0.0
    %2018 = vmatpush1.msra.mxu0 0.0
    %2019 = vmatprep.subr.mxu0 0.0
    %2020 = vmatpush1.msra.mxu0 0.0
    %2021 = vmatprep.subr.mxu0 0.0
    %2022 = vmatpush1.msra.mxu0 0.0
    %2023 = vmatprep.subr.mxu0 0.0
    %2024 = vmatpush1.msra.mxu0 0.0
    %2025 = vmatprep.subr.mxu0 0.0
    %2026 = vmatpush1.msra.mxu0 0.0
    %2027 = vmatprep.subr.mxu0 0.0
    %2028 = vmatpush1.msra.mxu0 0.0
    %2029 = vmatprep.subr.mxu0 0.0
    %2030 = vmatpush1.msra.mxu0 0.0
    %2031 = vmatprep.subr.mxu0 0.0
    %2032 = vmatpush1.msra.mxu0 0.0
    %2033 = vmatprep.subr.mxu0 0.0
    %2034 = vmatpush1.msra.mxu0 0.0
    %2035 = vmatprep.subr.mxu0 0.0
    %2036 = vmatpush1.msra.mxu0 0.0
    %2037 = vmatprep.subr.mxu0 0.0
    %2038 = vmatpush1.msra.mxu0 0.0
    %2039 = vmatprep.subr.mxu0 0.0
    %2040 = vmatpush1.msra.mxu0 0.0
    %2041 = vmatprep.subr.mxu0 0.0
    %2042 = vmatpush1.msra.mxu0 0.0
    %2043 = vmatprep.subr.mxu0 0.0
    %2044 = vmatpush1.msra.mxu0 0.0
    %2045 = vmatprep.subr.mxu0 0.0
    %2046 = vmatpush1.msra.mxu0 0.0
    %2047 = vmatprep.subr.mxu0 0.0
    %2048 = vmatpush1.msra.mxu0 0.0
    %2049 = vmatprep.subr.mxu0 0.0
    %2050 = vmatpush1.msra.mxu0 0.0
    %2051 = vmatprep.subr.mxu0 0.0
    %2052 = vmatpush1.msra.mxu0 0.0
    %2053 = vmatprep.subr.mxu0 0.0
    %2054 = vmatpush1.msra.mxu0 0.0
    %2055 = vmatprep.subr.mxu0 0.0
    %2056 = vmatpush1.msra.mxu0 0.0
    %2057 = vmatprep.subr.mxu0 0.0
    %2058 = vmatpush1.msra.mxu0 0.0
    %2059 = vmatprep.subr.mxu0 0.0
    %2060 = vmatpush1.msra.mxu0 0.0
    %2061 = vmatprep.subr.mxu0 0.0
    %2062 = vmatpush1.msra.mxu0 0.0
    %2063 = vmatprep.subr.mxu0 0.0
    %2064 = vmatpush1.msra.mxu0 0.0
    %2065 = vmatprep.subr.mxu0 0.0
    %2066 = vmatpush1.msra.mxu0 0.0
    %2067 = vmatprep.subr.mxu0 0.0
    %2068 = vmatpush1.msra.mxu0 0.0
    %2069 = vmatprep.subr.mxu0 0.0
    %2070 = vmatpush1.msra.mxu0 0.0
    %2071 = vmatprep.subr.mxu0 0.0
    %2072 = vmatpush1.msra.mxu0 0.0
    %2073 = vmatprep.subr.mxu0 0.0
    %2074 = vmatpush1.msra.mxu0 0.0
    %2075 = vmatprep.subr.mxu0 0.0
    %2076 = vmatpush1.msra.mxu0 0.0
    %2077 = vmatprep.subr.mxu0 0.0
    %2078 = vmatpush1.msra.mxu0 0.0
    %2079 = vmatprep.mubr.f32.mxu0 0.0
    %2080 = vmatmul.mubr.f32.gmra.mrb[0].mxu0 %v2013
    %v2081 = vpop.f32.mrb[0].mxu0
    %v2082 = vadd.f32 0.0, %v2081
    %v2083 = vpop.f32.mrb[0].mxu0
    %2084 = vdwg.mxu0
    %v2086 = vsel %vm1088, %v1781, 0
    %2088 = vmatprep.subr.mxu0 0.0
    %2089 = vmatpush1.msra.mxu0 %v1084
    %2090 = vmatprep.subr.mxu0 0.0
    %2091 = vmatpush1.msra.mxu0 0.0
    %2092 = vmatprep.subr.mxu0 0.0
    %2093 = vmatpush1.msra.mxu0 0.0
    %2094 = vmatprep.subr.mxu0 0.0
    %2095 = vmatpush1.msra.mxu0 0.0
    %2096 = vmatprep.subr.mxu0 0.0
    %2097 = vmatpush1.msra.mxu0 0.0
    %2098 = vmatprep.subr.mxu0 0.0
    %2099 = vmatpush1.msra.mxu0 0.0
    %2100 = vmatprep.subr.mxu0 0.0
    %2101 = vmatpush1.msra.mxu0 0.0
    %2102 = vmatprep.subr.mxu0 0.0
    %2103 = vmatpush1.msra.mxu0 0.0
    %2104 = vmatprep.subr.mxu0 0.0
    %2105 = vmatpush1.msra.mxu0 0.0
    %2106 = vmatprep.subr.mxu0 0.0
    %2107 = vmatpush1.msra.mxu0 0.0
    %2108 = vmatprep.subr.mxu0 0.0
    %2109 = vmatpush1.msra.mxu0 0.0
    %2110 = vmatprep.subr.mxu0 0.0
    %2111 = vmatpush1.msra.mxu0 0.0
    %2112 = vmatprep.subr.mxu0 0.0
    %2113 = vmatpush1.msra.mxu0 0.0
    %2114 = vmatprep.subr.mxu0 0.0
    %2115 = vmatpush1.msra.mxu0 0.0
    %2116 = vmatprep.subr.mxu0 0.0
    %2117 = vmatpush1.msra.mxu0 0.0
    %2118 = vmatprep.subr.mxu0 0.0
    %2119 = vmatpush1.msra.mxu0 0.0
    %2120 = vmatprep.subr.mxu0 0.0
    %2121 = vmatpush1.msra.mxu0 0.0
    %2122 = vmatprep.subr.mxu0 0.0
    %2123 = vmatpush1.msra.mxu0 0.0
    %2124 = vmatprep.subr.mxu0 0.0
    %2125 = vmatpush1.msra.mxu0 0.0
    %2126 = vmatprep.subr.mxu0 0.0
    %2127 = vmatpush1.msra.mxu0 0.0
    %2128 = vmatprep.subr.mxu0 0.0
    %2129 = vmatpush1.msra.mxu0 0.0
    %2130 = vmatprep.subr.mxu0 0.0
    %2131 = vmatpush1.msra.mxu0 0.0
    %2132 = vmatprep.subr.mxu0 0.0
    %2133 = vmatpush1.msra.mxu0 0.0
    %2134 = vmatprep.subr.mxu0 0.0
    %2135 = vmatpush1.msra.mxu0 0.0
    %2136 = vmatprep.subr.mxu0 0.0
    %2137 = vmatpush1.msra.mxu0 0.0
    %2138 = vmatprep.subr.mxu0 0.0
    %2139 = vmatpush1.msra.mxu0 0.0
    %2140 = vmatprep.subr.mxu0 0.0
    %2141 = vmatpush1.msra.mxu0 0.0
    %2142 = vmatprep.subr.mxu0 0.0
    %2143 = vmatpush1.msra.mxu0 0.0
    %2144 = vmatprep.subr.mxu0 0.0
    %2145 = vmatpush1.msra.mxu0 0.0
    %2146 = vmatprep.subr.mxu0 0.0
    %2147 = vmatpush1.msra.mxu0 0.0
    %2148 = vmatprep.subr.mxu0 0.0
    %2149 = vmatpush1.msra.mxu0 0.0
    %2150 = vmatprep.subr.mxu0 0.0
    %2151 = vmatpush1.msra.mxu0 0.0
    %2152 = vmatprep.mubr.f32.mxu0 0.0
    %2153 = vmatmul.mubr.f32.gmra.mrb[0].mxu0 %v2086
    %v2154 = vpop.f32.mrb[0].mxu0
    %v2155 = vadd.f32 0.0, %v2154
    %v2156 = vpop.f32.mrb[0].mxu0
    %2157 = vdwg.mxu0
    %v2159 = vsel %vm1088, %v1782, 0
    %2161 = vmatprep.subr.mxu0 0.0
    %2162 = vmatpush1.msra.mxu0 %v1085
    %2163 = vmatprep.subr.mxu0 0.0
    %2164 = vmatpush1.msra.mxu0 0.0
    %2165 = vmatprep.subr.mxu0 0.0
    %2166 = vmatpush1.msra.mxu0 0.0
    %2167 = vmatprep.subr.mxu0 0.0
    %2168 = vmatpush1.msra.mxu0 0.0
    %2169 = vmatprep.subr.mxu0 0.0
    %2170 = vmatpush1.msra.mxu0 0.0
    %2171 = vmatprep.subr.mxu0 0.0
    %2172 = vmatpush1.msra.mxu0 0.0
    %2173 = vmatprep.subr.mxu0 0.0
    %2174 = vmatpush1.msra.mxu0 0.0
    %2175 = vmatprep.subr.mxu0 0.0
    %2176 = vmatpush1.msra.mxu0 0.0
    %2177 = vmatprep.subr.mxu0 0.0
    %2178 = vmatpush1.msra.mxu0 0.0
    %2179 = vmatprep.subr.mxu0 0.0
    %2180 = vmatpush1.msra.mxu0 0.0
    %2181 = vmatprep.subr.mxu0 0.0
    %2182 = vmatpush1.msra.mxu0 0.0
    %2183 = vmatprep.subr.mxu0 0.0
    %2184 = vmatpush1.msra.mxu0 0.0
    %2185 = vmatprep.subr.mxu0 0.0
    %2186 = vmatpush1.msra.mxu0 0.0
    %2187 = vmatprep.subr.mxu0 0.0
    %2188 = vmatpush1.msra.mxu0 0.0
    %2189 = vmatprep.subr.mxu0 0.0
    %2190 = vmatpush1.msra.mxu0 0.0
    %2191 = vmatprep.subr.mxu0 0.0
    %2192 = vmatpush1.msra.mxu0 0.0
    %2193 = vmatprep.subr.mxu0 0.0
    %2194 = vmatpush1.msra.mxu0 0.0
    %2195 = vmatprep.subr.mxu0 0.0
    %2196 = vmatpush1.msra.mxu0 0.0
    %2197 = vmatprep.subr.mxu0 0.0
    %2198 = vmatpush1.msra.mxu0 0.0
    %2199 = vmatprep.subr.mxu0 0.0
    %2200 = vmatpush1.msra.mxu0 0.0
    %2201 = vmatprep.subr.mxu0 0.0
    %2202 = vmatpush1.msra.mxu0 0.0
    %2203 = vmatprep.subr.mxu0 0.0
    %2204 = vmatpush1.msra.mxu0 0.0
    %2205 = vmatprep.subr.mxu0 0.0
    %2206 = vmatpush1.msra.mxu0 0.0
    %2207 = vmatprep.subr.mxu0 0.0
    %2208 = vmatpush1.msra.mxu0 0.0
    %2209 = vmatprep.subr.mxu0 0.0
    %2210 = vmatpush1.msra.mxu0 0.0
    %2211 = vmatprep.subr.mxu0 0.0
    %2212 = vmatpush1.msra.mxu0 0.0
    %2213 = vmatprep.subr.mxu0 0.0
    %2214 = vmatpush1.msra.mxu0 0.0
    %2215 = vmatprep.subr.mxu0 0.0
    %2216 = vmatpush1.msra.mxu0 0.0
    %2217 = vmatprep.subr.mxu0 0.0
    %2218 = vmatpush1.msra.mxu0 0.0
    %2219 = vmatprep.subr.mxu0 0.0
    %2220 = vmatpush1.msra.mxu0 0.0
    %2221 = vmatprep.subr.mxu0 0.0
    %2222 = vmatpush1.msra.mxu0 0.0
    %2223 = vmatprep.subr.mxu0 0.0
    %2224 = vmatpush1.msra.mxu0 0.0
    %2225 = vmatprep.mubr.f32.mxu0 0.0
    %2226 = vmatmul.mubr.f32.gmra.mrb[0].mxu0 %v2159
    %v2227 = vpop.f32.mrb[0].mxu0
    %v2228 = vadd.f32 0.0, %v2227
    %v2229 = vpop.f32.mrb[0].mxu0
    %2230 = vdwg.mxu0
    %v2232 = vsel %vm1088, %v1783, 0
    %2234 = vmatprep.subr.mxu0 0.0
    %2235 = vmatpush1.msra.mxu0 %v1086
    %2236 = vmatprep.subr.mxu0 0.0
    %2237 = vmatpush1.msra.mxu0 0.0
    %2238 = vmatprep.subr.mxu0 0.0
    %2239 = vmatpush1.msra.mxu0 0.0
    %2240 = vmatprep.subr.mxu0 0.0
    %2241 = vmatpush1.msra.mxu0 0.0
    %2242 = vmatprep.subr.mxu0 0.0
    %2243 = vmatpush1.msra.mxu0 0.0
    %2244 = vmatprep.subr.mxu0 0.0
    %2245 = vmatpush1.msra.mxu0 0.0
    %2246 = vmatprep.subr.mxu0 0.0
    %2247 = vmatpush1.msra.mxu0 0.0
    %2248 = vmatprep.subr.mxu0 0.0
    %2249 = vmatpush1.msra.mxu0 0.0
    %2250 = vmatprep.subr.mxu0 0.0
    %2251 = vmatpush1.msra.mxu0 0.0
    %2252 = vmatprep.subr.mxu0 0.0
    %2253 = vmatpush1.msra.mxu0 0.0
    %2254 = vmatprep.subr.mxu0 0.0
    %2255 = vmatpush1.msra.mxu0 0.0
    %2256 = vmatprep.subr.mxu0 0.0
    %2257 = vmatpush1.msra.mxu0 0.0
    %2258 = vmatprep.subr.mxu0 0.0
    %2259 = vmatpush1.msra.mxu0 0.0
    %2260 = vmatprep.subr.mxu0 0.0
    %2261 = vmatpush1.msra.mxu0 0.0
    %2262 = vmatprep.subr.mxu0 0.0
    %2263 = vmatpush1.msra.mxu0 0.0
    %2264 = vmatprep.subr.mxu0 0.0
    %2265 = vmatpush1.msra.mxu0 0.0
    %2266 = vmatprep.subr.mxu0 0.0
    %2267 = vmatpush1.msra.mxu0 0.0
    %2268 = vmatprep.subr.mxu0 0.0
    %2269 = vmatpush1.msra.mxu0 0.0
    %2270 = vmatprep.subr.mxu0 0.0
    %2271 = vmatpush1.msra.mxu0 0.0
    %2272 = vmatprep.subr.mxu0 0.0
    %2273 = vmatpush1.msra.mxu0 0.0
    %2274 = vmatprep.subr.mxu0 0.0
    %2275 = vmatpush1.msra.mxu0 0.0
    %2276 = vmatprep.subr.mxu0 0.0
    %2277 = vmatpush1.msra.mxu0 0.0
    %2278 = vmatprep.subr.mxu0 0.0
    %2279 = vmatpush1.msra.mxu0 0.0
    %2280 = vmatprep.subr.mxu0 0.0
    %2281 = vmatpush1.msra.mxu0 0.0
    %2282 = vmatprep.subr.mxu0 0.0
    %2283 = vmatpush1.msra.mxu0 0.0
    %2284 = vmatprep.subr.mxu0 0.0
    %2285 = vmatpush1.msra.mxu0 0.0
    %2286 = vmatprep.subr.mxu0 0.0
    %2287 = vmatpush1.msra.mxu0 0.0
    %2288 = vmatprep.subr.mxu0 0.0
    %2289 = vmatpush1.msra.mxu0 0.0
    %2290 = vmatprep.subr.mxu0 0.0
    %2291 = vmatpush1.msra.mxu0 0.0
    %2292 = vmatprep.subr.mxu0 0.0
    %2293 = vmatpush1.msra.mxu0 0.0
    %2294 = vmatprep.subr.mxu0 0.0
    %2295 = vmatpush1.msra.mxu0 0.0
    %2296 = vmatprep.subr.mxu0 0.0
    %2297 = vmatpush1.msra.mxu0 0.0
    %2298 = vmatprep.mubr.f32.mxu0 0.0
    %2299 = vmatmul.mubr.f32.gmra.mrb[0].mxu0 %v2232
    %v2300 = vpop.f32.mrb[0].mxu0
    %v2301 = vadd.f32 0.0, %v2300
    %v2302 = vpop.f32.mrb[0].mxu0
    %2303 = vdwg.mxu0
    %v2305 = vsel %vm1088, %v1784, 0
    %2307 = vmatprep.subr.mxu0 0.0
    %2308 = vmatpush1.msra.mxu0 %v1087
    %2309 = vmatprep.subr.mxu0 0.0
    %2310 = vmatpush1.msra.mxu0 0.0
    %2311 = vmatprep.subr.mxu0 0.0
    %2312 = vmatpush1.msra.mxu0 0.0
    %2313 = vmatprep.subr.mxu0 0.0
    %2314 = vmatpush1.msra.mxu0 0.0
    %2315 = vmatprep.subr.mxu0 0.0
    %2316 = vmatpush1.msra.mxu0 0.0
    %2317 = vmatprep.subr.mxu0 0.0
    %2318 = vmatpush1.msra.mxu0 0.0
    %2319 = vmatprep.subr.mxu0 0.0
    %2320 = vmatpush1.msra.mxu0 0.0
    %2321 = vmatprep.subr.mxu0 0.0
    %2322 = vmatpush1.msra.mxu0 0.0
    %2323 = vmatprep.subr.mxu0 0.0
    %2324 = vmatpush1.msra.mxu0 0.0
    %2325 = vmatprep.subr.mxu0 0.0
    %2326 = vmatpush1.msra.mxu0 0.0
    %2327 = vmatprep.subr.mxu0 0.0
    %2328 = vmatpush1.msra.mxu0 0.0
    %2329 = vmatprep.subr.mxu0 0.0
    %2330 = vmatpush1.msra.mxu0 0.0
    %2331 = vmatprep.subr.mxu0 0.0
    %2332 = vmatpush1.msra.mxu0 0.0
    %2333 = vmatprep.subr.mxu0 0.0
    %2334 = vmatpush1.msra.mxu0 0.0
    %2335 = vmatprep.subr.mxu0 0.0
    %2336 = vmatpush1.msra.mxu0 0.0
    %2337 = vmatprep.subr.mxu0 0.0
    %2338 = vmatpush1.msra.mxu0 0.0
    %2339 = vmatprep.subr.mxu0 0.0
    %2340 = vmatpush1.msra.mxu0 0.0
    %2341 = vmatprep.subr.mxu0 0.0
    %2342 = vmatpush1.msra.mxu0 0.0
    %2343 = vmatprep.subr.mxu0 0.0
    %2344 = vmatpush1.msra.mxu0 0.0
    %2345 = vmatprep.subr.mxu0 0.0
    %2346 = vmatpush1.msra.mxu0 0.0
    %2347 = vmatprep.subr.mxu0 0.0
    %2348 = vmatpush1.msra.mxu0 0.0
    %2349 = vmatprep.subr.mxu0 0.0
    %2350 = vmatpush1.msra.mxu0 0.0
    %2351 = vmatprep.subr.mxu0 0.0
    %2352 = vmatpush1.msra.mxu0 0.0
    %2353 = vmatprep.subr.mxu0 0.0
    %2354 = vmatpush1.msra.mxu0 0.0
    %2355 = vmatprep.subr.mxu0 0.0
    %2356 = vmatpush1.msra.mxu0 0.0
    %2357 = vmatprep.subr.mxu0 0.0
    %2358 = vmatpush1.msra.mxu0 0.0
    %2359 = vmatprep.subr.mxu0 0.0
    %2360 = vmatpush1.msra.mxu0 0.0
    %2361 = vmatprep.subr.mxu0 0.0
    %2362 = vmatpush1.msra.mxu0 0.0
    %2363 = vmatprep.subr.mxu0 0.0
    %2364 = vmatpush1.msra.mxu0 0.0
    %2365 = vmatprep.subr.mxu0 0.0
    %2366 = vmatpush1.msra.mxu0 0.0
    %2367 = vmatprep.subr.mxu0 0.0
    %2368 = vmatpush1.msra.mxu0 0.0
    %2369 = vmatprep.subr.mxu0 0.0
    %2370 = vmatpush1.msra.mxu0 0.0
    %2371 = vmatprep.mubr.f32.mxu0 0.0
    %2372 = vmatmul.mubr.f32.gmra.mrb[0].mxu0 %v2305
    %v2373 = vpop.f32.mrb[0].mxu0
    %v2374 = vadd.f32 0.0, %v2373
    %v2375 = vpop.f32.mrb[0].mxu0
    %2376 = vdwg.mxu0
    %v2377 = vcombine.low %v1863, %v2009
    %v2378 = vcombine.high %v1863, %v2009
    %v2380 = vunpack.c.l.s4 1983009808
    %v2381 = vunpack.c.0.s8 %v2380
    %v2382 = vlaneseq
    %v2383 = vshrl.u32 %v2382, 7
    %v2384 = vsub.s32 %v2381, %v2383
    %v2385 = vrot.slane %v2377, %v2384
    %v2387 = vunpack.c.l.s4 1983009808
    %v2388 = vunpack.c.0.s8 %v2387
    %v2389 = vlaneseq
    %v2390 = vshrl.u32 %v2389, 7
    %v2391 = vsub.s32 %v2388, %v2390
    %v2392 = vrot.slane %v2378, %v2391
    %v2393 = vcombine.low %v1936, %v2082
    %v2394 = vcombine.high %v1936, %v2082
    %v2396 = vunpack.c.l.s4 1983009808
    %v2397 = vunpack.c.0.s8 %v2396
    %v2398 = vlaneseq
    %v2399 = vshrl.u32 %v2398, 7
    %v2400 = vsub.s32 %v2397, %v2399
    %v2401 = vrot.slane %v2393, %v2400
    %v2403 = vunpack.c.l.s4 1983009808
    %v2404 = vunpack.c.0.s8 %v2403
    %v2405 = vlaneseq
    %v2406 = vshrl.u32 %v2405, 7
    %v2407 = vsub.s32 %v2404, %v2406
    %v2408 = vrot.slane %v2394, %v2407
    %v2409 = vcombine.low %v2385, %v2401
    %v2410 = vcombine.high %v2385, %v2401
    %v2412 = vunpack.c.l.s4 1934713408
    %v2413 = vunpack.c.0.s8 %v2412
    %v2414 = vlaneseq
    %v2415 = vshrl.u32 %v2414, 7
    %v2416 = vsub.s32 %v2413, %v2415
    %v2417 = vrot.slane %v2409, %v2416
    %v2419 = vunpack.c.l.s4 1934713408
    %v2420 = vunpack.c.0.s8 %v2419
    %v2421 = vlaneseq
    %v2422 = vshrl.u32 %v2421, 7
    %v2423 = vsub.s32 %v2420, %v2422
    %v2424 = vrot.slane %v2410, %v2423
    %v2425 = vcombine.low %v2392, %v2408
    %v2426 = vcombine.high %v2392, %v2408
    %v2428 = vunpack.c.l.s4 1934713408
    %v2429 = vunpack.c.0.s8 %v2428
    %v2430 = vlaneseq
    %v2431 = vshrl.u32 %v2430, 7
    %v2432 = vsub.s32 %v2429, %v2431
    %v2433 = vrot.slane %v2425, %v2432
    %v2435 = vunpack.c.l.s4 1934713408
    %v2436 = vunpack.c.0.s8 %v2435
    %v2437 = vlaneseq
    %v2438 = vshrl.u32 %v2437, 7
    %v2439 = vsub.s32 %v2436, %v2438
    %v2440 = vrot.slane %v2426, %v2439
    %v2441 = vcombine.high %v2417, 0.0
    %v2442 = vcombine.high %v2424, 0.0
    %v2443 = vcombine.high %v2433, 0.0
    %v2444 = vcombine.high %v2440, 0.0
    %v2445 = vcombine.low %v2155, %v2301
    %v2446 = vcombine.high %v2155, %v2301
    %v2448 = vunpack.c.l.s4 1983009808
    %v2449 = vunpack.c.0.s8 %v2448
    %v2450 = vlaneseq
    %v2451 = vshrl.u32 %v2450, 7
    %v2452 = vsub.s32 %v2449, %v2451
    %v2453 = vrot.slane %v2445, %v2452
    %v2455 = vunpack.c.l.s4 1983009808
    %v2456 = vunpack.c.0.s8 %v2455
    %v2457 = vlaneseq
    %v2458 = vshrl.u32 %v2457, 7
    %v2459 = vsub.s32 %v2456, %v2458
    %v2460 = vrot.slane %v2446, %v2459
    %v2461 = vcombine.low %v2228, %v2374
    %v2462 = vcombine.high %v2228, %v2374
    %v2464 = vunpack.c.l.s4 1983009808
    %v2465 = vunpack.c.0.s8 %v2464
    %v2466 = vlaneseq
    %v2467 = vshrl.u32 %v2466, 7
    %v2468 = vsub.s32 %v2465, %v2467
    %v2469 = vrot.slane %v2461, %v2468
    %v2471 = vunpack.c.l.s4 1983009808
    %v2472 = vunpack.c.0.s8 %v2471
    %v2473 = vlaneseq
    %v2474 = vshrl.u32 %v2473, 7
    %v2475 = vsub.s32 %v2472, %v2474
    %v2476 = vrot.slane %v2462, %v2475
    %v2477 = vcombine.low %v2453, %v2469
    %v2478 = vcombine.high %v2453, %v2469
    %v2480 = vunpack.c.l.s4 1934713408
    %v2481 = vunpack.c.0.s8 %v2480
    %v2482 = vlaneseq
    %v2483 = vshrl.u32 %v2482, 7
    %v2484 = vsub.s32 %v2481, %v2483
    %v2485 = vrot.slane %v2477, %v2484
    %v2487 = vunpack.c.l.s4 1934713408
    %v2488 = vunpack.c.0.s8 %v2487
    %v2489 = vlaneseq
    %v2490 = vshrl.u32 %v2489, 7
    %v2491 = vsub.s32 %v2488, %v2490
    %v2492 = vrot.slane %v2478, %v2491
    %v2493 = vcombine.low %v2460, %v2476
    %v2494 = vcombine.high %v2460, %v2476
    %v2496 = vunpack.c.l.s4 1934713408
    %v2497 = vunpack.c.0.s8 %v2496
    %v2498 = vlaneseq
    %v2499 = vshrl.u32 %v2498, 7
    %v2500 = vsub.s32 %v2497, %v2499
    %v2501 = vrot.slane %v2493, %v2500
    %v2503 = vunpack.c.l.s4 1934713408
    %v2504 = vunpack.c.0.s8 %v2503
    %v2505 = vlaneseq
    %v2506 = vshrl.u32 %v2505, 7
    %v2507 = vsub.s32 %v2504, %v2506
    %v2508 = vrot.slane %v2494, %v2507
    %v2509 = vcombine.high %v2485, 0.0
    %v2510 = vcombine.high %v2492, 0.0
    %v2511 = vcombine.high %v2501, 0.0
    %v2512 = vcombine.high %v2508, 0.0
    %v2513 = vcombine.low %v2417, %v2424
    %v2515 = vunpack.c.l.s4 1983009808
    %v2516 = vunpack.c.0.s8 %v2515
    %v2517 = vlaneseq
    %v2518 = vshrl.u32 %v2517, 7
    %v2519 = vsub.s32 %v2516, %v2518
    %v2520 = vrot.slane %v2513, %v2519
    %v2521 = vcombine.low %v2441, %v2442
    %v2523 = vunpack.c.l.s4 1983009808
    %v2524 = vunpack.c.0.s8 %v2523
    %v2525 = vlaneseq
    %v2526 = vshrl.u32 %v2525, 7
    %v2527 = vsub.s32 %v2524, %v2526
    %v2528 = vrot.slane %v2521, %v2527
    %v2529 = vcombine.low %v2433, %v2440
    %v2531 = vunpack.c.l.s4 1983009808
    %v2532 = vunpack.c.0.s8 %v2531
    %v2533 = vlaneseq
    %v2534 = vshrl.u32 %v2533, 7
    %v2535 = vsub.s32 %v2532, %v2534
    %v2536 = vrot.slane %v2529, %v2535
    %v2537 = vcombine.low %v2443, %v2444
    %v2539 = vunpack.c.l.s4 1983009808
    %v2540 = vunpack.c.0.s8 %v2539
    %v2541 = vlaneseq
    %v2542 = vshrl.u32 %v2541, 7
    %v2543 = vsub.s32 %v2540, %v2542
    %v2544 = vrot.slane %v2537, %v2543
    %v2545 = vcombine.low %v2520, %v2528
    %v2546 = vcombine.high %v2520, %v2528
    %v2548 = vunpack.c.l.s4 1934713408
    %v2549 = vunpack.c.0.s8 %v2548
    %v2550 = vlaneseq
    %v2551 = vshrl.u32 %v2550, 7
    %v2552 = vsub.s32 %v2549, %v2551
    %v2553 = vrot.slane %v2545, %v2552
    %v2555 = vunpack.c.l.s4 1934713408
    %v2556 = vunpack.c.0.s8 %v2555
    %v2557 = vlaneseq
    %v2558 = vshrl.u32 %v2557, 7
    %v2559 = vsub.s32 %v2556, %v2558
    %v2560 = vrot.slane %v2546, %v2559
    %v2561 = vcombine.low %v2536, %v2544
    %v2562 = vcombine.high %v2536, %v2544
    %v2564 = vunpack.c.l.s4 1934713408
    %v2565 = vunpack.c.0.s8 %v2564
    %v2566 = vlaneseq
    %v2567 = vshrl.u32 %v2566, 7
    %v2568 = vsub.s32 %v2565, %v2567
    %v2569 = vrot.slane %v2561, %v2568
    %v2571 = vunpack.c.l.s4 1934713408
    %v2572 = vunpack.c.0.s8 %v2571
    %v2573 = vlaneseq
    %v2574 = vshrl.u32 %v2573, 7
    %v2575 = vsub.s32 %v2572, %v2574
    %v2576 = vrot.slane %v2562, %v2575
    %v2577 = vcombine.low %v2553, %v2569
    %v2578 = vcombine.high %v2553, %v2569
    %v2579 = vcombine.low %v2560, %v2576
    %v2580 = vcombine.high %v2560, %v2576
    %v2581 = vcombine.low %v2485, %v2492
    %v2583 = vunpack.c.l.s4 1983009808
    %v2584 = vunpack.c.0.s8 %v2583
    %v2585 = vlaneseq
    %v2586 = vshrl.u32 %v2585, 7
    %v2587 = vsub.s32 %v2584, %v2586
    %v2588 = vrot.slane %v2581, %v2587
    %v2589 = vcombine.low %v2509, %v2510
    %v2591 = vunpack.c.l.s4 1983009808
    %v2592 = vunpack.c.0.s8 %v2591
    %v2593 = vlaneseq
    %v2594 = vshrl.u32 %v2593, 7
    %v2595 = vsub.s32 %v2592, %v2594
    %v2596 = vrot.slane %v2589, %v2595
    %v2597 = vcombine.low %v2501, %v2508
    %v2599 = vunpack.c.l.s4 1983009808
    %v2600 = vunpack.c.0.s8 %v2599
    %v2601 = vlaneseq
    %v2602 = vshrl.u32 %v2601, 7
    %v2603 = vsub.s32 %v2600, %v2602
    %v2604 = vrot.slane %v2597, %v2603
    %v2605 = vcombine.low %v2511, %v2512
    %v2607 = vunpack.c.l.s4 1983009808
    %v2608 = vunpack.c.0.s8 %v2607
    %v2609 = vlaneseq
    %v2610 = vshrl.u32 %v2609, 7
    %v2611 = vsub.s32 %v2608, %v2610
    %v2612 = vrot.slane %v2605, %v2611
    %v2613 = vcombine.low %v2588, %v2596
    %v2614 = vcombine.high %v2588, %v2596
    %v2616 = vunpack.c.l.s4 1934713408
    %v2617 = vunpack.c.0.s8 %v2616
    %v2618 = vlaneseq
    %v2619 = vshrl.u32 %v2618, 7
    %v2620 = vsub.s32 %v2617, %v2619
    %v2621 = vrot.slane %v2613, %v2620
    %v2623 = vunpack.c.l.s4 1934713408
    %v2624 = vunpack.c.0.s8 %v2623
    %v2625 = vlaneseq
    %v2626 = vshrl.u32 %v2625, 7
    %v2627 = vsub.s32 %v2624, %v2626
    %v2628 = vrot.slane %v2614, %v2627
    %v2629 = vcombine.low %v2604, %v2612
    %v2630 = vcombine.high %v2604, %v2612
    %v2632 = vunpack.c.l.s4 1934713408
    %v2633 = vunpack.c.0.s8 %v2632
    %v2634 = vlaneseq
    %v2635 = vshrl.u32 %v2634, 7
    %v2636 = vsub.s32 %v2633, %v2635
    %v2637 = vrot.slane %v2629, %v2636
    %v2639 = vunpack.c.l.s4 1934713408
    %v2640 = vunpack.c.0.s8 %v2639
    %v2641 = vlaneseq
    %v2642 = vshrl.u32 %v2641, 7
    %v2643 = vsub.s32 %v2640, %v2642
    %v2644 = vrot.slane %v2630, %v2643
    %v2645 = vcombine.low %v2621, %v2637
    %v2646 = vcombine.high %v2621, %v2637
    %v2647 = vcombine.low %v2628, %v2644
    %v2648 = vcombine.high %v2628, %v2644
    %2651 = vrot.lane.b32.xlu0 %v2578, 8
    %v2652 = vpop.permute.xlu0 %2651
    %2653 = vrot.lane.b32.xlu0 %v2646, 8
    %v2654 = vpop.permute.xlu0 %2653
    %2659 = vrot.lane.b32.xlu0 %v2579, 16
    %v2660 = vpop.permute.xlu0 %2659
    %2661 = vrot.lane.b32.xlu0 %v2647, 16
    %v2662 = vpop.permute.xlu0 %2661
    %2667 = vrot.lane.b32.xlu0 %v2580, 24
    %v2668 = vpop.permute.xlu0 %2667
    %2669 = vrot.lane.b32.xlu0 %v2648, 24
    %v2670 = vpop.permute.xlu0 %2669
    %v2673 = vsel %vm1088, %v2577, %v2652
    %v2674 = vsel %vm1088, %v2645, %v2654
    %vm2675 = vcmask 130048
    %v2676 = vsel %vm2675, %v2673, %v2660
    %v2677 = vsel %vm2675, %v2674, %v2662
    %vm2678 = vcmask 195584
    %v2679 = vsel %vm2678, %v2676, %v2668
    %v2680 = vsel %vm2678, %v2677, %v2670
    %v2681 = vld [vmem:[%s5] sm:$0xff]
    %v2682 = vld [vmem:[%s5 + $0x8] sm:$0xff]
    %v2683 = vld [vmem:[%s5 + $0x10] sm:$0xff]
    %v2684 = vld [vmem:[%s5 + $0x18] sm:$0xff]
    %v2685 = vlaneseq
    %v2686 = vshrl.u32 %v2685, 7
    %v2687 = vsub.s32 0, %v2686
    %v2688 = vrot.slane %v38, %v2687
    %v2690 = vsel %vm56, %v2679, 0
    %v2693 = vsel %vm56, %v2680, 0
    %2695 = vmatprep.subr.mxu0 0.0
    %2696 = vmatpush1.msra.mxu0 %v2681
    %2697 = vmatprep.subr.mxu0 0.0
    %2698 = vmatpush1.msra.mxu0 %v2682
    %2699 = vmatprep.subr.mxu0 0.0
    %2700 = vmatpush1.msra.mxu0 %v2683
    %2701 = vmatprep.subr.mxu0 0.0
    %2702 = vmatpush1.msra.mxu0 %v2684
    %2703 = vmatprep.subr.mxu0 0.0
    %2704 = vmatpush1.msra.mxu0 0.0
    %2705 = vmatprep.subr.mxu0 0.0
    %2706 = vmatpush1.msra.mxu0 0.0
    %2707 = vmatprep.subr.mxu0 0.0
    %2708 = vmatpush1.msra.mxu0 0.0
    %2709 = vmatprep.subr.mxu0 0.0
    %2710 = vmatpush1.msra.mxu0 0.0
    %2711 = vmatprep.subr.mxu0 0.0
    %2712 = vmatpush1.msra.mxu0 0.0
    %2713 = vmatprep.subr.mxu0 0.0
    %2714 = vmatpush1.msra.mxu0 0.0
    %2715 = vmatprep.subr.mxu0 0.0
    %2716 = vmatpush1.msra.mxu0 0.0
    %2717 = vmatprep.subr.mxu0 0.0
    %2718 = vmatpush1.msra.mxu0 0.0
    %2719 = vmatprep.subr.mxu0 0.0
    %2720 = vmatpush1.msra.mxu0 0.0
    %2721 = vmatprep.subr.mxu0 0.0
    %2722 = vmatpush1.msra.mxu0 0.0
    %2723 = vmatprep.subr.mxu0 0.0
    %2724 = vmatpush1.msra.mxu0 0.0
    %2725 = vmatprep.subr.mxu0 0.0
    %2726 = vmatpush1.msra.mxu0 0.0
    %2727 = vmatprep.subr.mxu0 0.0
    %2728 = vmatpush1.msra.mxu0 0.0
    %2729 = vmatprep.subr.mxu0 0.0
    %2730 = vmatpush1.msra.mxu0 0.0
    %2731 = vmatprep.subr.mxu0 0.0
    %2732 = vmatpush1.msra.mxu0 0.0
    %2733 = vmatprep.subr.mxu0 0.0
    %2734 = vmatpush1.msra.mxu0 0.0
    %2735 = vmatprep.subr.mxu0 0.0
    %2736 = vmatpush1.msra.mxu0 0.0
    %2737 = vmatprep.subr.mxu0 0.0
    %2738 = vmatpush1.msra.mxu0 0.0
    %2739 = vmatprep.subr.mxu0 0.0
    %2740 = vmatpush1.msra.mxu0 0.0
    %2741 = vmatprep.subr.mxu0 0.0
    %2742 = vmatpush1.msra.mxu0 0.0
    %2743 = vmatprep.subr.mxu0 0.0
    %2744 = vmatpush1.msra.mxu0 0.0
    %2745 = vmatprep.subr.mxu0 0.0
    %2746 = vmatpush1.msra.mxu0 0.0
    %2747 = vmatprep.subr.mxu0 0.0
    %2748 = vmatpush1.msra.mxu0 0.0
    %2749 = vmatprep.subr.mxu0 0.0
    %2750 = vmatpush1.msra.mxu0 0.0
    %2751 = vmatprep.subr.mxu0 0.0
    %2752 = vmatpush1.msra.mxu0 0.0
    %2753 = vmatprep.subr.mxu0 0.0
    %2754 = vmatpush1.msra.mxu0 0.0
    %2755 = vmatprep.subr.mxu0 0.0
    %2756 = vmatpush1.msra.mxu0 0.0
    %2757 = vmatprep.subr.mxu0 0.0
    %2758 = vmatpush1.msra.mxu0 0.0
    %2759 = vmatprep.mubr.f32.mxu0 0.0
    %2760 = vmatmul.mubr.f32.gmra.mrb[0].mxu0 %v2690
    %v2761 = vpop.f32.mrb[0].mxu0
    %v2762 = vadd.f32 %v2688, %v2761
    %v2763 = vpop.f32.mrb[0].mxu0
    %2764 = vmatprep.mubr.f32.mxu0 0.0
    %2765 = vmatmul.mubr.f32.gmra.mrb[0].mxu0 %v2693
    %v2766 = vpop.f32.mrb[0].mxu0
    %v2767 = vadd.f32 %v2688, %v2766
    %v2768 = vpop.f32.mrb[0].mxu0
    %2769 = vdwg.mxu0
    %v2770 = vadd.f32 %v54, %v2762
    %v2771 = vadd.f32 %v55, %v2767
    %v2772 = vsel %vm56, %v2770, 0.0
    %2773 = vadd.xlane.f32.xlu0 %v2772
    %v2774 = vpop.xlane.xlu0 %2773
    %v2775 = vsel %vm56, %v2771, 0.0
    %2776 = vadd.xlane.f32.xlu0 %v2775
    %v2777 = vpop.xlane.xlu0 %2776
    %v2778 = vmul.f32 %v2774, %v63
    %v2779 = vmul.f32 %v2777, %v63
    %v2780 = vsub.f32 %v2770, %v2778
    %v2781 = vsub.f32 %v2771, %v2779
    %v2782 = vmul.f32 %v2780, %v2780
    %v2783 = vmul.f32 %v2781, %v2781
    %v2784 = vsel %vm56, %v2782, 0.0
    %2785 = vadd.xlane.f32.xlu0 %v2784
    %v2786 = vpop.xlane.xlu0 %2785
    %v2787 = vsel %vm56, %v2783, 0.0
    %2788 = vadd.xlane.f32.xlu0 %v2787
    %v2789 = vpop.xlane.xlu0 %2788
    %v2790 = vmul.f32 %v2786, %v63
    %v2791 = vmul.f32 %v2789, %v63
    %v2792 = vadd.f32 %v2790, 1e-06
    %v2793 = vadd.f32 %v2791, 1e-06
    %v2794 = vrsqrt.pop %v2792
    %v2795 = vrsqrt.pop %v2793
    %v2796 = vmul.f32 %v2780, %v2794
    %v2797 = vmul.f32 %v2781, %v2795
    %v2798 = vlaneseq
    %v2799 = vshrl.u32 %v2798, 7
    %v2800 = vsub.s32 0, %v2799
    %v2801 = vrot.slane %v39, %v2800
    %v2802 = vmul.f32 %v2796, %v2801
    %v2803 = vmul.f32 %v2797, %v2801
    %v2804 = vlaneseq
    %v2805 = vshrl.u32 %v2804, 7
    %v2806 = vsub.s32 0, %v2805
    %v2807 = vrot.slane %v40, %v2806
    %v2808 = vadd.f32 %v2802, %v2807
    %v2809 = vadd.f32 %v2803, %v2807
    %v2810 = vld [vmem:[%s6] sm:$0xff]
    %v2811 = vld [vmem:[%s6 + $0x8] sm:$0xff]
    %v2812 = vld [vmem:[%s6 + $0x10] sm:$0xff]
    %v2813 = vld [vmem:[%s6 + $0x18] sm:$0xff]
    %v2814 = vld [vmem:[%s7] sm:$0x1]
    %v2816 = vlaneseq
    %v2817 = vshrl.u32 %v2816, 7
    %v2818 = vsub.s32 0, %v2817
    %v2819 = vrot.slane %v2814, %v2818
    %v2822 = vsel %vm56, %v2808, 0
    %v2825 = vsel %vm56, %v2809, 0
    %2827 = vmatprep.subr.mxu0 0.0
    %2828 = vmatpush1.msra.mxu0 %v2810
    %2829 = vmatprep.subr.mxu0 0.0
    %2830 = vmatpush1.msra.mxu0 %v2811
    %2831 = vmatprep.subr.mxu0 0.0
    %2832 = vmatpush1.msra.mxu0 %v2812
    %2833 = vmatprep.subr.mxu0 0.0
    %2834 = vmatpush1.msra.mxu0 %v2813
    %2835 = vmatprep.subr.mxu0 0.0
    %2836 = vmatpush1.msra.mxu0 0.0
    %2837 = vmatprep.subr.mxu0 0.0
    %2838 = vmatpush1.msra.mxu0 0.0
    %2839 = vmatprep.subr.mxu0 0.0
    %2840 = vmatpush1.msra.mxu0 0.0
    %2841 = vmatprep.subr.mxu0 0.0
    %2842 = vmatpush1.msra.mxu0 0.0
    %2843 = vmatprep.subr.mxu0 0.0
    %2844 = vmatpush1.msra.mxu0 0.0
    %2845 = vmatprep.subr.mxu0 0.0
    %2846 = vmatpush1.msra.mxu0 0.0
    %2847 = vmatprep.subr.mxu0 0.0
    %2848 = vmatpush1.msra.mxu0 0.0
    %2849 = vmatprep.subr.mxu0 0.0
    %2850 = vmatpush1.msra.mxu0 0.0
    %2851 = vmatprep.subr.mxu0 0.0
    %2852 = vmatpush1.msra.mxu0 0.0
    %2853 = vmatprep.subr.mxu0 0.0
    %2854 = vmatpush1.msra.mxu0 0.0
    %2855 = vmatprep.subr.mxu0 0.0
    %2856 = vmatpush1.msra.mxu0 0.0
    %2857 = vmatprep.subr.mxu0 0.0
    %2858 = vmatpush1.msra.mxu0 0.0
    %2859 = vmatprep.subr.mxu0 0.0
    %2860 = vmatpush1.msra.mxu0 0.0
    %2861 = vmatprep.subr.mxu0 0.0
    %2862 = vmatpush1.msra.mxu0 0.0
    %2863 = vmatprep.subr.mxu0 0.0
    %2864 = vmatpush1.msra.mxu0 0.0
    %2865 = vmatprep.subr.mxu0 0.0
    %2866 = vmatpush1.msra.mxu0 0.0
    %2867 = vmatprep.subr.mxu0 0.0
    %2868 = vmatpush1.msra.mxu0 0.0
    %2869 = vmatprep.subr.mxu0 0.0
    %2870 = vmatpush1.msra.mxu0 0.0
    %2871 = vmatprep.subr.mxu0 0.0
    %2872 = vmatpush1.msra.mxu0 0.0
    %2873 = vmatprep.subr.mxu0 0.0
    %2874 = vmatpush1.msra.mxu0 0.0
    %2875 = vmatprep.subr.mxu0 0.0
    %2876 = vmatpush1.msra.mxu0 0.0
    %2877 = vmatprep.subr.mxu0 0.0
    %2878 = vmatpush1.msra.mxu0 0.0
    %2879 = vmatprep.subr.mxu0 0.0
    %2880 = vmatpush1.msra.mxu0 0.0
    %2881 = vmatprep.subr.mxu0 0.0
    %2882 = vmatpush1.msra.mxu0 0.0
    %2883 = vmatprep.subr.mxu0 0.0
    %2884 = vmatpush1.msra.mxu0 0.0
    %2885 = vmatprep.subr.mxu0 0.0
    %2886 = vmatpush1.msra.mxu0 0.0
    %2887 = vmatprep.subr.mxu0 0.0
    %2888 = vmatpush1.msra.mxu0 0.0
    %2889 = vmatprep.subr.mxu0 0.0
    %2890 = vmatpush1.msra.mxu0 0.0
    %2891 = vmatprep.mubr.f32.mxu0 0.0
    %2892 = vmatmul.mubr.f32.gmra.mrb[0].mxu0 %v2822
    %v2893 = vpop.f32.mrb[0].mxu0
    %v2894 = vadd.f32 %v2819, %v2893
    %v2895 = vpop.f32.mrb[0].mxu0
    %2896 = vmatprep.mubr.f32.mxu0 0.0
    %2897 = vmatmul.mubr.f32.gmra.mrb[0].mxu0 %v2825
    %v2898 = vpop.f32.mrb[0].mxu0
    %v2899 = vadd.f32 %v2819, %v2898
    %v2900 = vpop.f32.mrb[0].mxu0
    %2901 = vdwg.mxu0
    %v2902 = vmul.f32 %v2894, %v2894
    %v2903 = vmul.f32 %v2899, %v2899
    %v2904 = vmul.f32 %v2894, %v2902
    %v2905 = vmul.f32 %v2899, %v2903
    %v2906 = vmul.f32 %v2904, 0.044715
    %v2907 = vmul.f32 %v2905, 0.044715
    %v2908 = vadd.f32 %v2894, %v2906
    %v2909 = vadd.f32 %v2899, %v2907
    %v2910 = vmul.f32 %v2908, 0.7978846
    %v2911 = vmul.f32 %v2909, 0.7978846
    %v2912 = vtanh.pop %v2910
    %v2913 = vtanh.pop %v2911
    %v2914 = vadd.f32 %v2912, 1.0
    %v2915 = vadd.f32 %v2913, 1.0
    %v2916 = vmul.f32 %v2914, 0.5
    %v2917 = vmul.f32 %v2915, 0.5
    %v2918 = vmul.f32 %v2894, %v2916
    %v2919 = vmul.f32 %v2899, %v2917
    %v2920 = vld [vmem:[%s8] sm:$0xff]
    %v2921 = vld [vmem:[%s8 + $0x8] sm:$0xff]
    %v2922 = vld [vmem:[%s8 + $0x10] sm:$0xff]
    %v2923 = vld [vmem:[%s8 + $0x18] sm:$0xff]
    %v2924 = vld [vmem:[%s8 + $0x20] sm:$0xff]
    %v2925 = vld [vmem:[%s8 + $0x28] sm:$0xff]
    %v2926 = vld [vmem:[%s8 + $0x30] sm:$0xff]
    %v2927 = vld [vmem:[%s8 + $0x38] sm:$0xff]
    %v2928 = vlaneseq
    %v2929 = vshrl.u32 %v2928, 7
    %v2930 = vsub.s32 0, %v2929
    %v2931 = vrot.slane %v41, %v2930
    %vm2932 = vcmask 523264
    %v2934 = vsel %vm2932, %v2918, 0
    %v2937 = vsel %vm2932, %v2919, 0
    %2939 = vmatprep.subr.mxu0 0.0
    %2940 = vmatpush1.msra.mxu0 %v2920
    %2941 = vmatprep.subr.mxu0 0.0
    %2942 = vmatpush1.msra.mxu0 %v2921
    %2943 = vmatprep.subr.mxu0 0.0
    %2944 = vmatpush1.msra.mxu0 %v2922
    %2945 = vmatprep.subr.mxu0 0.0
    %2946 = vmatpush1.msra.mxu0 %v2923
    %2947 = vmatprep.subr.mxu0 0.0
    %2948 = vmatpush1.msra.mxu0 %v2924
    %2949 = vmatprep.subr.mxu0 0.0
    %2950 = vmatpush1.msra.mxu0 %v2925
    %2951 = vmatprep.subr.mxu0 0.0
    %2952 = vmatpush1.msra.mxu0 %v2926
    %2953 = vmatprep.subr.mxu0 0.0
    %2954 = vmatpush1.msra.mxu0 %v2927
    %2955 = vmatprep.subr.mxu0 0.0
    %2956 = vmatpush1.msra.mxu0 0.0
    %2957 = vmatprep.subr.mxu0 0.0
    %2958 = vmatpush1.msra.mxu0 0.0
    %2959 = vmatprep.subr.mxu0 0.0
    %2960 = vmatpush1.msra.mxu0 0.0
    %2961 = vmatprep.subr.mxu0 0.0
    %2962 = vmatpush1.msra.mxu0 0.0
    %2963 = vmatprep.subr.mxu0 0.0
    %2964 = vmatpush1.msra.mxu0 0.0
    %2965 = vmatprep.subr.mxu0 0.0
    %2966 = vmatpush1.msra.mxu0 0.0
    %2967 = vmatprep.subr.mxu0 0.0
    %2968 = vmatpush1.msra.mxu0 0.0
    %2969 = vmatprep.subr.mxu0 0.0
    %2970 = vmatpush1.msra.mxu0 0.0
    %2971 = vmatprep.subr.mxu0 0.0
    %2972 = vmatpush1.msra.mxu0 0.0
    %2973 = vmatprep.subr.mxu0 0.0
    %2974 = vmatpush1.msra.mxu0 0.0
    %2975 = vmatprep.subr.mxu0 0.0
    %2976 = vmatpush1.msra.mxu0 0.0
    %2977 = vmatprep.subr.mxu0 0.0
    %2978 = vmatpush1.msra.mxu0 0.0
    %2979 = vmatprep.subr.mxu0 0.0
    %2980 = vmatpush1.msra.mxu0 0.0
    %2981 = vmatprep.subr.mxu0 0.0
    %2982 = vmatpush1.msra.mxu0 0.0
    %2983 = vmatprep.subr.mxu0 0.0
    %2984 = vmatpush1.msra.mxu0 0.0
    %2985 = vmatprep.subr.mxu0 0.0
    %2986 = vmatpush1.msra.mxu0 0.0
    %2987 = vmatprep.subr.mxu0 0.0
    %2988 = vmatpush1.msra.mxu0 0.0
    %2989 = vmatprep.subr.mxu0 0.0
    %2990 = vmatpush1.msra.mxu0 0.0
    %2991 = vmatprep.subr.mxu0 0.0
    %2992 = vmatpush1.msra.mxu0 0.0
    %2993 = vmatprep.subr.mxu0 0.0
    %2994 = vmatpush1.msra.mxu0 0.0
    %2995 = vmatprep.subr.mxu0 0.0
    %2996 = vmatpush1.msra.mxu0 0.0
    %2997 = vmatprep.subr.mxu0 0.0
    %2998 = vmatpush1.msra.mxu0 0.0
    %2999 = vmatprep.subr.mxu0 0.0
    %3000 = vmatpush1.msra.mxu0 0.0
    %3001 = vmatprep.subr.mxu0 0.0
    %3002 = vmatpush1.msra.mxu0 0.0
    %3003 = vmatprep.mubr.f32.mxu0 0.0
    %3004 = vmatmul.mubr.f32.gmra.mrb[0].mxu0 %v2934
    %v3005 = vpop.f32.mrb[0].mxu0
    %v3006 = vadd.f32 %v2931, %v3005
    %v3007 = vpop.f32.mrb[0].mxu0
    %3008 = vmatprep.mubr.f32.mxu0 0.0
    %3009 = vmatmul.mubr.f32.gmra.mrb[0].mxu0 %v2937
    %v3010 = vpop.f32.mrb[0].mxu0
    %v3011 = vadd.f32 %v2931, %v3010
    %v3012 = vpop.f32.mrb[0].mxu0
    %3013 = vdwg.mxu0
    %v3014 = vadd.f32 %v2770, %v3006
    %v3015 = vadd.f32 %v2771, %v3011
    %v3016 = vsel %vm56, %v3014, 0.0
    %3017 = vadd.xlane.f32.xlu0 %v3016
    %v3018 = vpop.xlane.xlu0 %3017
    %v3019 = vsel %vm56, %v3015, 0.0
    %3020 = vadd.xlane.f32.xlu0 %v3019
    %v3021 = vpop.xlane.xlu0 %3020
    %v3022 = vmul.f32 %v3018, %v63
    %v3023 = vmul.f32 %v3021, %v63
    %v3024 = vsub.f32 %v3014, %v3022
    %v3025 = vsub.f32 %v3015, %v3023
    %v3026 = vmul.f32 %v3024, %v3024
    %v3027 = vmul.f32 %v3025, %v3025
    %v3028 = vsel %vm56, %v3026, 0.0
    %3029 = vadd.xlane.f32.xlu0 %v3028
    %v3030 = vpop.xlane.xlu0 %3029
    %v3031 = vsel %vm56, %v3027, 0.0
    %3032 = vadd.xlane.f32.xlu0 %v3031
    %v3033 = vpop.xlane.xlu0 %3032
    %v3034 = vmul.f32 %v3030, %v63
    %v3035 = vmul.f32 %v3033, %v63
    %v3036 = vadd.f32 %v3034, 1e-06
    %v3037 = vadd.f32 %v3035, 1e-06
    %v3038 = vrsqrt.pop %v3036
    %v3039 = vrsqrt.pop %v3037
    %v3040 = vmul.f32 %v3024, %v3038
    %v3041 = vmul.f32 %v3025, %v3039
    %v3042 = vlaneseq
    %v3043 = vshrl.u32 %v3042, 7
    %v3044 = vsub.s32 0, %v3043
    %v3045 = vrot.slane %v42, %v3044
    %v3046 = vmul.f32 %v3040, %v3045
    %v3047 = vmul.f32 %v3041, %v3045
    %v3048 = vlaneseq
    %v3049 = vshrl.u32 %v3048, 7
    %v3050 = vsub.s32 0, %v3049
    %v3051 = vrot.slane %v43, %v3050
    %v3052 = vadd.f32 %v3046, %v3051
    %v3053 = vadd.f32 %v3047, %v3051
    %3054 = vst.msk [vmem:[#allocation3] sm:$0xff] %vm56, %v3052
    %3055 = vst.msk [vmem:[#allocation3 + $0x8] sm:$0xff] %vm56, %v3053
    // Predicated region
    $region38: #{tpu_custom_call.1} parent=1 // pred_check
      _
    $region39: #{tpu_custom_call.1} parent=1 // pred_check_branch
      %3057 = sbr.rel (0) target = $region41
    $region40: #{tpu_custom_call.1} parent=1 // pred_region
      %s3059 = ssub.s32 256, 256
      %3060 = vsyncadd [#allocation4], %s3059
      %s3061 = sshll.u32 [#allocation3], 4
      %s3062 = int_to_ptr.vmem [resolvable:$true] %s3061
      %3067 = dma.vmem_to_hbm [thread:$0]  %s3062, 256, %s9, [#allocation4], 128, 128, 8
    $region41: #{tpu_custom_call.1} parent=1 // pred_fallthru
      _
    // Predicated region
    $region42: #{tpu_custom_call.1} parent=1 // pred_check
      _
    $region43: #{tpu_custom_call.1} parent=1 // pred_check_branch
      %3069 = sbr.rel (0) target = $region45
    $region44: #{tpu_custom_call.1} parent=1 // pred_region
      %s3071 = ssub.s32 1024, 1024
      %3072 = vsyncadd [#allocation6], %s3071
      %s3073 = sshll.u32 [#allocation5], 4
      %s3074 = int_to_ptr.vmem [resolvable:$true] %s3073
      %3079 = dma.vmem_to_hbm [thread:$0]  %s3074, 1024, %s10, [#allocation6], 128, 128, 8
    $region45: #{tpu_custom_call.1} parent=1 // pred_fallthru
      _
    // Predicated region
    $region46: #{tpu_custom_call.1} parent=1 // pred_check
      _
    $region47: #{tpu_custom_call.1} parent=1 // pred_check_branch
      %3081 = sbr.rel (0) target = $region49
    $region48: #{tpu_custom_call.1} parent=1 // pred_region
      %3082 = dma.done [#allocation4], 256
    $region49: #{tpu_custom_call.1} parent=1 // pred_fallthru
      _
    // Predicated region
    $region50: #{tpu_custom_call.1} parent=1 // pred_check
      _
    $region51: #{tpu_custom_call.1} parent=1 // pred_check_branch
      %3084 = sbr.rel (0) target = $region53
    $region52: #{tpu_custom_call.1} parent=1 // pred_region
      %3085 = dma.done [#allocation6], 1024
    $region53: #{tpu_custom_call.1} parent=1 // pred_fallthru
      _
    %3086 = vsyncpa [#allocation4], 1
    %3087 = vsyncpa [#allocation6], 1

// kernel: tpu_custom_call.1
$region0: #{tpu_custom_call.1}
  #allocation0 [shape = 'u32[]', space=smem, size = 0x4, offset = 0x4, fixed_abs, tag = 'smem constant byte address 0x4 - core index']
  #allocation1 [shape = 'u32[144,128]{1,0:T(1,128)}', space=vmem, size = 0x12000, scoped, tag = 'internal scratch']
  #allocation2 [shape = 'f32[2,8,32]{2,1,0:T(8,128)}', space=vmem, size = 0x2000, scoped, tag = 'scratch operand']
  #allocation3 [shape = 'f32[16,32]{1,0:T(8,128)}', space=vmem, size = 0x2000, scoped, tag = 'scratch operand']
  %s0 = inlined_call_operand.vmem [shape: f32[2,1,32], index: 0, kind: input, shape index: {}]
  %s1 = inlined_call_operand.vmem [shape: f32[2,7,32], index: 1, kind: input, shape index: {}]
  %s2 = inlined_call_operand.vmem [shape: f32[8,32], index: 2, kind: input, shape index: {}]
  %s3 = inlined_call_operand.vmem [shape: f32[32,96], index: 3, kind: input, shape index: {}]
  %s4 = inlined_call_operand.vmem [shape: f32[1,96], index: 4, kind: input, shape index: {}]
  %s5 = inlined_call_operand.vmem [shape: f32[32,32], index: 5, kind: input, shape index: {}]
  %s6 = inlined_call_operand.vmem [shape: f32[32,64], index: 6, kind: input, shape index: {}]
  %s7 = inlined_call_operand.vmem [shape: f32[1,64], index: 7, kind: input, shape index: {}]
  %s8 = inlined_call_operand.vmem [shape: f32[64,32], index: 8, kind: input, shape index: {}]
  %s9 = inlined_call_operand.hbm [shape: f32[2,8,32], index: 9, kind: output, shape index: {0}]
  %s10 = inlined_call_operand.hbm [shape: f32[2,4,8,8], index: 10, kind: output, shape index: {1}]
  %11 = xla_tuple %s9, %s10
  %s12 = sld [smem:[#allocation0]]
  $region54: #{tpu_custom_call.1} parent=0
    _
  %s14 = ssub.s32 1, %s12
  %s15 = scalar_select 0, %s14, %s12
  $region1: #{tpu_custom_call.1} parent=0
    #allocation4 [shape = 'u8[8192]{0}', space=vmem, size = 0x2000, scoped, tag = 'output window, operand 0, single buffered']
    #allocation5 [shape = 's32[1]{0}', space=sflag, size = 0x4, scoped, tag = 'scoped memory for tpu_custom_call.1']
    #allocation6 [shape = 'u8[32768]{0}', space=vmem, size = 0x8000, scoped, tag = 'output window, operand 1, single buffered']
    #allocation7 [shape = 's32[1]{0}', space=sflag, size = 0x4, scoped, tag = 'scoped memory for tpu_custom_call.1']
    %16 = vsyncpa [#allocation5], 0
    %17 = vsyncpa [#allocation7], 0
    // Predicated region
    $region2: #{tpu_custom_call.1} parent=1 // pred_check
      _
    $region3: #{tpu_custom_call.1} parent=1 // pred_check_branch
      %19 = sbr.rel (0) target = $region5
    $region4: #{tpu_custom_call.1} parent=1 // pred_region
      _
    $region5: #{tpu_custom_call.1} parent=1 // pred_fallthru
      _
    // Predicated region
    $region6: #{tpu_custom_call.1} parent=1 // pred_check
      _
    $region7: #{tpu_custom_call.1} parent=1 // pred_check_branch
      %21 = sbr.rel (0) target = $region9
    $region8: #{tpu_custom_call.1} parent=1 // pred_region
      _
    $region9: #{tpu_custom_call.1} parent=1 // pred_fallthru
      _
    // Predicated region
    $region10: #{tpu_custom_call.1} parent=1 // pred_check
      _
    $region11: #{tpu_custom_call.1} parent=1 // pred_check_branch
      %23 = sbr.rel (0) target = $region13
    $region12: #{tpu_custom_call.1} parent=1 // pred_region
      _
    $region13: #{tpu_custom_call.1} parent=1 // pred_fallthru
      _
    // Predicated region
    $region14: #{tpu_custom_call.1} parent=1 // pred_check
      _
    $region15: #{tpu_custom_call.1} parent=1 // pred_check_branch
      %25 = sbr.rel (0) target = $region17
    $region16: #{tpu_custom_call.1} parent=1 // pred_region
      _
    $region17: #{tpu_custom_call.1} parent=1 // pred_fallthru
      _
    // Predicated region
    $region18: #{tpu_custom_call.1} parent=1 // pred_check
      _
    $region19: #{tpu_custom_call.1} parent=1 // pred_check_branch
      %27 = sbr.rel (0) target = $region21
    $region20: #{tpu_custom_call.1} parent=1 // pred_region
      _
    $region21: #{tpu_custom_call.1} parent=1 // pred_fallthru
      _
    // Predicated region
    $region22: #{tpu_custom_call.1} parent=1 // pred_check
      _
    $region23: #{tpu_custom_call.1} parent=1 // pred_check_branch
      %29 = sbr.rel (0) target = $region25
    $region24: #{tpu_custom_call.1} parent=1 // pred_region
      _
    $region25: #{tpu_custom_call.1} parent=1 // pred_fallthru
      _
    // Predicated region
    $region26: #{tpu_custom_call.1} parent=1 // pred_check
      _
    $region27: #{tpu_custom_call.1} parent=1 // pred_check_branch
      %31 = sbr.rel (0) target = $region29
    $region28: #{tpu_custom_call.1} parent=1 // pred_region
      _
    $region29: #{tpu_custom_call.1} parent=1 // pred_fallthru
      _
    // Predicated region
    $region30: #{tpu_custom_call.1} parent=1 // pred_check
      _
    $region31: #{tpu_custom_call.1} parent=1 // pred_check_branch
      %33 = sbr.rel (0) target = $region33
    $region32: #{tpu_custom_call.1} parent=1 // pred_region
      _
    $region33: #{tpu_custom_call.1} parent=1 // pred_fallthru
      _
    // Predicated region
    $region34: #{tpu_custom_call.1} parent=1 // pred_check
      _
    $region35: #{tpu_custom_call.1} parent=1 // pred_check_branch
      %35 = sbr.rel (0) target = $region37
    $region36: #{tpu_custom_call.1} parent=1 // pred_region
      _
    $region37: #{tpu_custom_call.1} parent=1 // pred_fallthru
      _
    %v36 = vld [vmem:[%s2] sm:$0x1]
    %v37 = vld [vmem:[%s2 + $0x1] sm:$0x1]
    %v38 = vld [vmem:[%s2 + $0x2] sm:$0x1]
    %v39 = vld [vmem:[%s2 + $0x3] sm:$0x1]
    %v40 = vld [vmem:[%s2 + $0x4] sm:$0x1]
    %v41 = vld [vmem:[%s2 + $0x5] sm:$0x1]
    %v42 = vld [vmem:[%s2 + $0x6] sm:$0x1]
    %v43 = vld [vmem:[%s2 + $0x7] sm:$0x1]
    %v44 = vld [vmem:[%s0] sm:$0x1]
    %v45 = vld [vmem:[%s0 + $0x1] sm:$0x1]
    %vm46 = vcmask 253952
    %47 = vst.msk [vmem:[#allocation2] sm:$0x1] %vm46, %v44
    %48 = vst.msk [vmem:[#allocation2 + $0x8] sm:$0x1] %vm46, %v45
    %v49 = vld [vmem:[%s1] sm:$0x7f]
    %v50 = vld [vmem:[%s1 + $0x8] sm:$0x7f]
    %vm51 = vcmask 260096
    %52 = vst.msk [vmem:[#allocation2 + $0x1] sm:$0x7f] %vm51, %v49
    %53 = vst.msk [vmem:[#allocation2 + $0x9] sm:$0x7f] %vm51, %v50
    %v54 = vld [vmem:[#allocation2] sm:$0xff]
    %v55 = vld [vmem:[#allocation2 + $0x8] sm:$0xff]
    %vm56 = vcmask 261120
    %v57 = vsel %vm56, %v54, 0.0
    %58 = vadd.xlane.f32.xlu0 %v57
    %v59 = vpop.xlane.xlu0 %58
    %v60 = vsel %vm56, %v55, 0.0
    %61 = vadd.xlane.f32.xlu0 %v60
    %v62 = vpop.xlane.xlu0 %61
    %v63 = vrcp.pop 32.0
    %v64 = vmul.f32 %v59, %v63
    %v65 = vmul.f32 %v62, %v63
    %v66 = vsub.f32 %v54, %v64
    %v67 = vsub.f32 %v55, %v65
    %v68 = vmul.f32 %v66, %v66
    %v69 = vmul.f32 %v67, %v67
    %v70 = vsel %vm56, %v68, 0.0
    %71 = vadd.xlane.f32.xlu0 %v70
    %v72 = vpop.xlane.xlu0 %71
    %v73 = vsel %vm56, %v69, 0.0
    %74 = vadd.xlane.f32.xlu0 %v73
    %v75 = vpop.xlane.xlu0 %74
    %v76 = vmul.f32 %v72, %v63
    %v77 = vmul.f32 %v75, %v63
    %v78 = vadd.f32 %v76, 1e-06
    %v79 = vadd.f32 %v77, 1e-06
    %v80 = vrsqrt.pop %v78
    %v81 = vrsqrt.pop %v79
    %v82 = vmul.f32 %v66, %v80
    %v83 = vmul.f32 %v67, %v81
    %v84 = vlaneseq
    %v85 = vshrl.u32 %v84, 7
    %v86 = vsub.s32 0, %v85
    %v87 = vrot.slane %v36, %v86
    %v88 = vmul.f32 %v82, %v87
    %v89 = vmul.f32 %v83, %v87
    %v90 = vlaneseq
    %v91 = vshrl.u32 %v90, 7
    %v92 = vsub.s32 0, %v91
    %v93 = vrot.slane %v37, %v92
    %v94 = vadd.f32 %v88, %v93
    %v95 = vadd.f32 %v89, %v93
    %v96 = vld [vmem:[%s3] sm:$0xff]
    %v97 = vld [vmem:[%s3 + $0x8] sm:$0xff]
    %v98 = vld [vmem:[%s3 + $0x10] sm:$0xff]
    %v99 = vld [vmem:[%s3 + $0x18] sm:$0xff]
    %v100 = vld [vmem:[%s4] sm:$0x1]
    %v102 = vlaneseq
    %v103 = vshrl.u32 %v102, 7
    %v104 = vsub.s32 0, %v103
    %v105 = vrot.slane %v100, %v104
    %v108 = vsel %vm56, %v94, 0
    %v111 = vsel %vm56, %v95, 0
    %113 = vmatprep.subr.mxu0 0.0
    %114 = vmatpush1.msra.mxu0 %v96
    %115 = vmatprep.subr.mxu0 0.0
    %116 = vmatpush1.msra.mxu0 %v97
    %117 = vmatprep.subr.mxu0 0.0
    %118 = vmatpush1.msra.mxu0 %v98
    %119 = vmatprep.subr.mxu0 0.0
    %120 = vmatpush1.msra.mxu0 %v99
    %121 = vmatprep.subr.mxu0 0.0
    %122 = vmatpush1.msra.mxu0 0.0
    %123 = vmatprep.subr.mxu0 0.0
    %124 = vmatpush1.msra.mxu0 0.0
    %125 = vmatprep.subr.mxu0 0.0
    %126 = vmatpush1.msra.mxu0 0.0
    %127 = vmatprep.subr.mxu0 0.0
    %128 = vmatpush1.msra.mxu0 0.0
    %129 = vmatprep.subr.mxu0 0.0
    %130 = vmatpush1.msra.mxu0 0.0
    %131 = vmatprep.subr.mxu0 0.0
    %132 = vmatpush1.msra.mxu0 0.0
    %133 = vmatprep.subr.mxu0 0.0
    %134 = vmatpush1.msra.mxu0 0.0
    %135 = vmatprep.subr.mxu0 0.0
    %136 = vmatpush1.msra.mxu0 0.0
    %137 = vmatprep.subr.mxu0 0.0
    %138 = vmatpush1.msra.mxu0 0.0
    %139 = vmatprep.subr.mxu0 0.0
    %140 = vmatpush1.msra.mxu0 0.0
    %141 = vmatprep.subr.mxu0 0.0
    %142 = vmatpush1.msra.mxu0 0.0
    %143 = vmatprep.subr.mxu0 0.0
    %144 = vmatpush1.msra.mxu0 0.0
    %145 = vmatprep.subr.mxu0 0.0
    %146 = vmatpush1.msra.mxu0 0.0
    %147 = vmatprep.subr.mxu0 0.0
    %148 = vmatpush1.msra.mxu0 0.0
    %149 = vmatprep.subr.mxu0 0.0
    %150 = vmatpush1.msra.mxu0 0.0
    %151 = vmatprep.subr.mxu0 0.0
    %152 = vmatpush1.msra.mxu0 0.0
    %153 = vmatprep.subr.mxu0 0.0
    %154 = vmatpush1.msra.mxu0 0.0
    %155 = vmatprep.subr.mxu0 0.0
    %156 = vmatpush1.msra.mxu0 0.0
    %157 = vmatprep.subr.mxu0 0.0
    %158 = vmatpush1.msra.mxu0 0.0
    %159 = vmatprep.subr.mxu0 0.0
    %160 = vmatpush1.msra.mxu0 0.0
    %161 = vmatprep.subr.mxu0 0.0
    %162 = vmatpush1.msra.mxu0 0.0
    %163 = vmatprep.subr.mxu0 0.0
    %164 = vmatpush1.msra.mxu0 0.0
    %165 = vmatprep.subr.mxu0 0.0
    %166 = vmatpush1.msra.mxu0 0.0
    %167 = vmatprep.subr.mxu0 0.0
    %168 = vmatpush1.msra.mxu0 0.0
    %169 = vmatprep.subr.mxu0 0.0
    %170 = vmatpush1.msra.mxu0 0.0
    %171 = vmatprep.subr.mxu0 0.0
    %172 = vmatpush1.msra.mxu0 0.0
    %173 = vmatprep.subr.mxu0 0.0
    %174 = vmatpush1.msra.mxu0 0.0
    %175 = vmatprep.subr.mxu0 0.0
    %176 = vmatpush1.msra.mxu0 0.0
    %177 = vmatprep.mubr.f32.mxu0 0.0
    %178 = vmatmul.mubr.f32.gmra.mrb[0].mxu0 %v108
    %v179 = vpop.f32.mrb[0].mxu0
    %v180 = vadd.f32 %v105, %v179
    %v181 = vpop.f32.mrb[0].mxu0
    %182 = vmatprep.mubr.f32.mxu0 0.0
    %183 = vmatmul.mubr.f32.gmra.mrb[0].mxu0 %v111
    %v184 = vpop.f32.mrb[0].mxu0
    %v185 = vadd.f32 %v105, %v184
    %v186 = vpop.f32.mrb[0].mxu0
    %187 = vdwg.mxu0
    %v188 = vmul.f32 %v180, 0.35355338
    %v189 = vmul.f32 %v185, 0.35355338
    %191 = vrot.lane.b32.xlu0 %v180, 96
    %v192 = vpop.permute.xlu0 %191
    %vm193 = vcmask 64512
    %v195 = vsel %vm193, %v188, 0
    %v197 = vsel %vm193, %v192, 0
    %199 = vmatprep.subr.mxu0 0.0
    %200 = vmatpush1.xpose.msra.mxu0 %v197
    %201 = vmatprep.subr.mxu0 0.0
    %202 = vmatpush1.xpose.msra.mxu0 0.0
    %203 = vmatprep.subr.mxu0 0.0
    %204 = vmatpush1.xpose.msra.mxu0 0.0
    %205 = vmatprep.subr.mxu0 0.0
    %206 = vmatpush1.xpose.msra.mxu0 0.0
    %207 = vmatprep.subr.mxu0 0.0
    %208 = vmatpush1.xpose.msra.mxu0 0.0
    %209 = vmatprep.subr.mxu0 0.0
    %210 = vmatpush1.xpose.msra.mxu0 0.0
    %211 = vmatprep.subr.mxu0 0.0
    %212 = vmatpush1.xpose.msra.mxu0 0.0
    %213 = vmatprep.subr.mxu0 0.0
    %214 = vmatpush1.xpose.msra.mxu0 0.0
    %215 = vmatprep.subr.mxu0 0.0
    %216 = vmatpush1.xpose.msra.mxu0 0.0
    %217 = vmatprep.subr.mxu0 0.0
    %218 = vmatpush1.xpose.msra.mxu0 0.0
    %219 = vmatprep.subr.mxu0 0.0
    %220 = vmatpush1.xpose.msra.mxu0 0.0
    %221 = vmatprep.subr.mxu0 0.0
    %222 = vmatpush1.xpose.msra.mxu0 0.0
    %223 = vmatprep.subr.mxu0 0.0
    %224 = vmatpush1.xpose.msra.mxu0 0.0
    %225 = vmatprep.subr.mxu0 0.0
    %226 = vmatpush1.xpose.msra.mxu0 0.0
    %227 = vmatprep.subr.mxu0 0.0
    %228 = vmatpush1.xpose.msra.mxu0 0.0
    %229 = vmatprep.subr.mxu0 0.0
    %230 = vmatpush1.xpose.msra.mxu0 0.0
    %231 = vmatprep.subr.mxu0 0.0
    %232 = vmatpush1.xpose.msra.mxu0 0.0
    %233 = vmatprep.subr.mxu0 0.0
    %234 = vmatpush1.xpose.msra.mxu0 0.0
    %235 = vmatprep.subr.mxu0 0.0
    %236 = vmatpush1.xpose.msra.mxu0 0.0
    %237 = vmatprep.subr.mxu0 0.0
    %238 = vmatpush1.xpose.msra.mxu0 0.0
    %239 = vmatprep.subr.mxu0 0.0
    %240 = vmatpush1.xpose.msra.mxu0 0.0
    %241 = vmatprep.subr.mxu0 0.0
    %242 = vmatpush1.xpose.msra.mxu0 0.0
    %243 = vmatprep.subr.mxu0 0.0
    %244 = vmatpush1.xpose.msra.mxu0 0.0
    %245 = vmatprep.subr.mxu0 0.0
    %246 = vmatpush1.xpose.msra.mxu0 0.0
    %247 = vmatprep.subr.mxu0 0.0
    %248 = vmatpush1.xpose.msra.mxu0 0.0
    %249 = vmatprep.subr.mxu0 0.0
    %250 = vmatpush1.xpose.msra.mxu0 0.0
    %251 = vmatprep.subr.mxu0 0.0
    %252 = vmatpush1.xpose.msra.mxu0 0.0
    %253 = vmatprep.subr.mxu0 0.0
    %254 = vmatpush1.xpose.msra.mxu0 0.0
    %255 = vmatprep.subr.mxu0 0.0
    %256 = vmatpush1.xpose.msra.mxu0 0.0
    %257 = vmatprep.subr.mxu0 0.0
    %258 = vmatpush1.xpose.msra.mxu0 0.0
    %259 = vmatprep.subr.mxu0 0.0
    %260 = vmatpush1.xpose.msra.mxu0 0.0
    %261 = vmatprep.subr.mxu0 0.0
    %262 = vmatpush1.xpose.msra.mxu0 0.0
    %263 = vmatprep.mubr.f32.mxu0 0.0
    %264 = vmatmul.mubr.f32.gmra.mrb[0].mxu0 %v195
    %v265 = vpop.f32.mrb[0].mxu0
    %v266 = vadd.f32 0.0, %v265
    %v267 = vpop.f32.mrb[0].mxu0
    %268 = vdwg.mxu0
    %270 = vrot.lane.b32.xlu0 %v185, 96
    %v271 = vpop.permute.xlu0 %270
    %v273 = vsel %vm193, %v189, 0
    %v275 = vsel %vm193, %v271, 0
    %277 = vmatprep.subr.mxu0 0.0
    %278 = vmatpush1.xpose.msra.mxu0 %v275
    %279 = vmatprep.subr.mxu0 0.0
    %280 = vmatpush1.xpose.msra.mxu0 0.0
    %281 = vmatprep.subr.mxu0 0.0
    %282 = vmatpush1.xpose.msra.mxu0 0.0
    %283 = vmatprep.subr.mxu0 0.0
    %284 = vmatpush1.xpose.msra.mxu0 0.0
    %285 = vmatprep.subr.mxu0 0.0
    %286 = vmatpush1.xpose.msra.mxu0 0.0
    %287 = vmatprep.subr.mxu0 0.0
    %288 = vmatpush1.xpose.msra.mxu0 0.0
    %289 = vmatprep.subr.mxu0 0.0
    %290 = vmatpush1.xpose.msra.mxu0 0.0
    %291 = vmatprep.subr.mxu0 0.0
    %292 = vmatpush1.xpose.msra.mxu0 0.0
    %293 = vmatprep.subr.mxu0 0.0
    %294 = vmatpush1.xpose.msra.mxu0 0.0
    %295 = vmatprep.subr.mxu0 0.0
    %296 = vmatpush1.xpose.msra.mxu0 0.0
    %297 = vmatprep.subr.mxu0 0.0
    %298 = vmatpush1.xpose.msra.mxu0 0.0
    %299 = vmatprep.subr.mxu0 0.0
    %300 = vmatpush1.xpose.msra.mxu0 0.0
    %301 = vmatprep.subr.mxu0 0.0
    %302 = vmatpush1.xpose.msra.mxu0 0.0
    %303 = vmatprep.subr.mxu0 0.0
    %304 = vmatpush1.xpose.msra.mxu0 0.0
    %305 = vmatprep.subr.mxu0 0.0
    %306 = vmatpush1.xpose.msra.mxu0 0.0
    %307 = vmatprep.subr.mxu0 0.0
    %308 = vmatpush1.xpose.msra.mxu0 0.0
    %309 = vmatprep.subr.mxu0 0.0
    %310 = vmatpush1.xpose.msra.mxu0 0.0
    %311 = vmatprep.subr.mxu0 0.0
    %312 = vmatpush1.xpose.msra.mxu0 0.0
    %313 = vmatprep.subr.mxu0 0.0
    %314 = vmatpush1.xpose.msra.mxu0 0.0
    %315 = vmatprep.subr.mxu0 0.0
    %316 = vmatpush1.xpose.msra.mxu0 0.0
    %317 = vmatprep.subr.mxu0 0.0
    %318 = vmatpush1.xpose.msra.mxu0 0.0
    %319 = vmatprep.subr.mxu0 0.0
    %320 = vmatpush1.xpose.msra.mxu0 0.0
    %321 = vmatprep.subr.mxu0 0.0
    %322 = vmatpush1.xpose.msra.mxu0 0.0
    %323 = vmatprep.subr.mxu0 0.0
    %324 = vmatpush1.xpose.msra.mxu0 0.0
    %325 = vmatprep.subr.mxu0 0.0
    %326 = vmatpush1.xpose.msra.mxu0 0.0
    %327 = vmatprep.subr.mxu0 0.0
    %328 = vmatpush1.xpose.msra.mxu0 0.0
    %329 = vmatprep.subr.mxu0 0.0
    %330 = vmatpush1.xpose.msra.mxu0 0.0
    %331 = vmatprep.subr.mxu0 0.0
    %332 = vmatpush1.xpose.msra.mxu0 0.0
    %333 = vmatprep.subr.mxu0 0.0
    %334 = vmatpush1.xpose.msra.mxu0 0.0
    %335 = vmatprep.subr.mxu0 0.0
    %336 = vmatpush1.xpose.msra.mxu0 0.0
    %337 = vmatprep.subr.mxu0 0.0
    %338 = vmatpush1.xpose.msra.mxu0 0.0
    %339 = vmatprep.subr.mxu0 0.0
    %340 = vmatpush1.xpose.msra.mxu0 0.0
    %341 = vmatprep.mubr.f32.mxu0 0.0
    %342 = vmatmul.mubr.f32.gmra.mrb[0].mxu0 %v273
    %v343 = vpop.f32.mrb[0].mxu0
    %v344 = vadd.f32 0.0, %v343
    %v345 = vpop.f32.mrb[0].mxu0
    %346 = vdwg.mxu0
    %v347 = vsel %vm193, %v266, -inf
    %348 = vmax.xlane.f32.xlu0 %v347
    %v349 = vpop.xlane.xlu0 %348
    %v350 = vsel %vm193, %v344, -inf
    %351 = vmax.xlane.f32.xlu0 %v350
    %v352 = vpop.xlane.xlu0 %351
    %v353 = vsub.f32 %v266, %v349
    %v354 = vsub.f32 %v344, %v352
    %v355 = vmul.f32 %v353, 1.442695
    %v356 = vpow.pop %v355
    %v357 = vmul.f32 %v354, 1.442695
    %v358 = vpow.pop %v357
    %v359 = vsel %vm193, %v356, 0.0
    %360 = vadd.xlane.f32.xlu0 %v359
    %v361 = vpop.xlane.xlu0 %360
    %v362 = vsel %vm193, %v358, 0.0
    %363 = vadd.xlane.f32.xlu0 %v362
    %v364 = vpop.xlane.xlu0 %363
    %v365 = vrcp.pop %v361
    %v366 = vrcp.pop %v364
    %v367 = vmul.f32 %v356, %v365
    %v368 = vmul.f32 %v358, %v366
    %369 = vst.msk [vmem:[#allocation6] sm:$0xff] %vm193, %v367
    %370 = vst.msk [vmem:[#allocation6 + $0x20] sm:$0xff] %vm193, %v368
    %371 = vrot.lane.b32.xlu0 %v180, 64
    %v372 = vpop.permute.xlu0 %371
    %v375 = vsel %vm193, %v367, 0
    %377 = vmatprep.subr.mxu0 0.0
    %378 = vmatpush1.msra.mxu0 %v372
    %379 = vmatprep.subr.mxu0 0.0
    %380 = vmatpush1.msra.mxu0 0.0
    %381 = vmatprep.subr.mxu0 0.0
    %382 = vmatpush1.msra.mxu0 0.0
    %383 = vmatprep.subr.mxu0 0.0
    %384 = vmatpush1.msra.mxu0 0.0
    %385 = vmatprep.subr.mxu0 0.0
    %386 = vmatpush1.msra.mxu0 0.0
    %387 = vmatprep.subr.mxu0 0.0
    %388 = vmatpush1.msra.mxu0 0.0
    %389 = vmatprep.subr.mxu0 0.0
    %390 = vmatpush1.msra.mxu0 0.0
    %391 = vmatprep.subr.mxu0 0.0
    %392 = vmatpush1.msra.mxu0 0.0
    %393 = vmatprep.subr.mxu0 0.0
    %394 = vmatpush1.msra.mxu0 0.0
    %395 = vmatprep.subr.mxu0 0.0
    %396 = vmatpush1.msra.mxu0 0.0
    %397 = vmatprep.subr.mxu0 0.0
    %398 = vmatpush1.msra.mxu0 0.0
    %399 = vmatprep.subr.mxu0 0.0
    %400 = vmatpush1.msra.mxu0 0.0
    %401 = vmatprep.subr.mxu0 0.0
    %402 = vmatpush1.msra.mxu0 0.0
    %403 = vmatprep.subr.mxu0 0.0
    %404 = vmatpush1.msra.mxu0 0.0
    %405 = vmatprep.subr.mxu0 0.0
    %406 = vmatpush1.msra.mxu0 0.0
    %407 = vmatprep.subr.mxu0 0.0
    %408 = vmatpush1.msra.mxu0 0.0
    %409 = vmatprep.subr.mxu0 0.0
    %410 = vmatpush1.msra.mxu0 0.0
    %411 = vmatprep.subr.mxu0 0.0
    %412 = vmatpush1.msra.mxu0 0.0
    %413 = vmatprep.subr.mxu0 0.0
    %414 = vmatpush1.msra.mxu0 0.0
    %415 = vmatprep.subr.mxu0 0.0
    %416 = vmatpush1.msra.mxu0 0.0
    %417 = vmatprep.subr.mxu0 0.0
    %418 = vmatpush1.msra.mxu0 0.0
    %419 = vmatprep.subr.mxu0 0.0
    %420 = vmatpush1.msra.mxu0 0.0
    %421 = vmatprep.subr.mxu0 0.0
    %422 = vmatpush1.msra.mxu0 0.0
    %423 = vmatprep.subr.mxu0 0.0
    %424 = vmatpush1.msra.mxu0 0.0
    %425 = vmatprep.subr.mxu0 0.0
    %426 = vmatpush1.msra.mxu0 0.0
    %427 = vmatprep.subr.mxu0 0.0
    %428 = vmatpush1.msra.mxu0 0.0
    %429 = vmatprep.subr.mxu0 0.0
    %430 = vmatpush1.msra.mxu0 0.0
    %431 = vmatprep.subr.mxu0 0.0
    %432 = vmatpush1.msra.mxu0 0.0
    %433 = vmatprep.subr.mxu0 0.0
    %434 = vmatpush1.msra.mxu0 0.0
    %435 = vmatprep.subr.mxu0 0.0
    %436 = vmatpush1.msra.mxu0 0.0
    %437 = vmatprep.subr.mxu0 0.0
    %438 = vmatpush1.msra.mxu0 0.0
    %439 = vmatprep.subr.mxu0 0.0
    %440 = vmatpush1.msra.mxu0 0.0
    %441 = vmatprep.mubr.f32.mxu0 0.0
    %442 = vmatmul.mubr.f32.gmra.mrb[0].mxu0 %v375
    %v443 = vpop.f32.mrb[0].mxu0
    %v444 = vadd.f32 0.0, %v443
    %v445 = vpop.f32.mrb[0].mxu0
    %446 = vdwg.mxu0
    %447 = vrot.lane.b32.xlu0 %v185, 64
    %v448 = vpop.permute.xlu0 %447
    %v451 = vsel %vm193, %v368, 0
    %453 = vmatprep.subr.mxu0 0.0
    %454 = vmatpush1.msra.mxu0 %v448
    %455 = vmatprep.subr.mxu0 0.0
    %456 = vmatpush1.msra.mxu0 0.0
    %457 = vmatprep.subr.mxu0 0.0
    %458 = vmatpush1.msra.mxu0 0.0
    %459 = vmatprep.subr.mxu0 0.0
    %460 = vmatpush1.msra.mxu0 0.0
    %461 = vmatprep.subr.mxu0 0.0
    %462 = vmatpush1.msra.mxu0 0.0
    %463 = vmatprep.subr.mxu0 0.0
    %464 = vmatpush1.msra.mxu0 0.0
    %465 = vmatprep.subr.mxu0 0.0
    %466 = vmatpush1.msra.mxu0 0.0
    %467 = vmatprep.subr.mxu0 0.0
    %468 = vmatpush1.msra.mxu0 0.0
    %469 = vmatprep.subr.mxu0 0.0
    %470 = vmatpush1.msra.mxu0 0.0
    %471 = vmatprep.subr.mxu0 0.0
    %472 = vmatpush1.msra.mxu0 0.0
    %473 = vmatprep.subr.mxu0 0.0
    %474 = vmatpush1.msra.mxu0 0.0
    %475 = vmatprep.subr.mxu0 0.0
    %476 = vmatpush1.msra.mxu0 0.0
    %477 = vmatprep.subr.mxu0 0.0
    %478 = vmatpush1.msra.mxu0 0.0
    %479 = vmatprep.subr.mxu0 0.0
    %480 = vmatpush1.msra.mxu0 0.0
    %481 = vmatprep.subr.mxu0 0.0
    %482 = vmatpush1.msra.mxu0 0.0
    %483 = vmatprep.subr.mxu0 0.0
    %484 = vmatpush1.msra.mxu0 0.0
    %485 = vmatprep.subr.mxu0 0.0
    %486 = vmatpush1.msra.mxu0 0.0
    %487 = vmatprep.subr.mxu0 0.0
    %488 = vmatpush1.msra.mxu0 0.0
    %489 = vmatprep.subr.mxu0 0.0
    %490 = vmatpush1.msra.mxu0 0.0
    %491 = vmatprep.subr.mxu0 0.0
    %492 = vmatpush1.msra.mxu0 0.0
    %493 = vmatprep.subr.mxu0 0.0
    %494 = vmatpush1.msra.mxu0 0.0
    %495 = vmatprep.subr.mxu0 0.0
    %496 = vmatpush1.msra.mxu0 0.0
    %497 = vmatprep.subr.mxu0 0.0
    %498 = vmatpush1.msra.mxu0 0.0
    %499 = vmatprep.subr.mxu0 0.0
    %500 = vmatpush1.msra.mxu0 0.0
    %501 = vmatprep.subr.mxu0 0.0
    %502 = vmatpush1.msra.mxu0 0.0
    %503 = vmatprep.subr.mxu0 0.0
    %504 = vmatpush1.msra.mxu0 0.0
    %505 = vmatprep.subr.mxu0 0.0
    %506 = vmatpush1.msra.mxu0 0.0
    %507 = vmatprep.subr.mxu0 0.0
    %508 = vmatpush1.msra.mxu0 0.0
    %509 = vmatprep.subr.mxu0 0.0
    %510 = vmatpush1.msra.mxu0 0.0
    %511 = vmatprep.subr.mxu0 0.0
    %512 = vmatpush1.msra.mxu0 0.0
    %513 = vmatprep.subr.mxu0 0.0
    %514 = vmatpush1.msra.mxu0 0.0
    %515 = vmatprep.subr.mxu0 0.0
    %516 = vmatpush1.msra.mxu0 0.0
    %517 = vmatprep.mubr.f32.mxu0 0.0
    %518 = vmatmul.mubr.f32.gmra.mrb[0].mxu0 %v451
    %v519 = vpop.f32.mrb[0].mxu0
    %v520 = vadd.f32 0.0, %v519
    %v521 = vpop.f32.mrb[0].mxu0
    %522 = vdwg.mxu0
    %523 = vst.msk [vmem:[#allocation3] sm:$0xff] %vm193, %v444
    %524 = vst.msk [vmem:[#allocation3 + $0x8] sm:$0xff] %vm193, %v520
    %525 = vrot.lane.b32.xlu0 %v188, 120
    %v526 = vpop.permute.xlu0 %525
    %527 = vrot.lane.b32.xlu0 %v180, 88
    %v528 = vpop.permute.xlu0 %527
    %v529 = vsel %vm193, %v526, 0
    %v531 = vsel %vm193, %v528, 0
    %533 = vmatprep.subr.mxu0 0.0
    %534 = vmatpush1.xpose.msra.mxu0 %v531
    %535 = vmatprep.subr.mxu0 0.0
    %536 = vmatpush1.xpose.msra.mxu0 0.0
    %537 = vmatprep.subr.mxu0 0.0
    %538 = vmatpush1.xpose.msra.mxu0 0.0
    %539 = vmatprep.subr.mxu0 0.0
    %540 = vmatpush1.xpose.msra.mxu0 0.0
    %541 = vmatprep.subr.mxu0 0.0
    %542 = vmatpush1.xpose.msra.mxu0 0.0
    %543 = vmatprep.subr.mxu0 0.0
    %544 = vmatpush1.xpose.msra.mxu0 0.0
    %545 = vmatprep.subr.mxu0 0.0
    %546 = vmatpush1.xpose.msra.mxu0 0.0
    %547 = vmatprep.subr.mxu0 0.0
    %548 = vmatpush1.xpose.msra.mxu0 0.0
    %549 = vmatprep.subr.mxu0 0.0
    %550 = vmatpush1.xpose.msra.mxu0 0.0
    %551 = vmatprep.subr.mxu0 0.0
    %552 = vmatpush1.xpose.msra.mxu0 0.0
    %553 = vmatprep.subr.mxu0 0.0
    %554 = vmatpush1.xpose.msra.mxu0 0.0
    %555 = vmatprep.subr.mxu0 0.0
    %556 = vmatpush1.xpose.msra.mxu0 0.0
    %557 = vmatprep.subr.mxu0 0.0
    %558 = vmatpush1.xpose.msra.mxu0 0.0
    %559 = vmatprep.subr.mxu0 0.0
    %560 = vmatpush1.xpose.msra.mxu0 0.0
    %561 = vmatprep.subr.mxu0 0.0
    %562 = vmatpush1.xpose.msra.mxu0 0.0
    %563 = vmatprep.subr.mxu0 0.0
    %564 = vmatpush1.xpose.msra.mxu0 0.0
    %565 = vmatprep.subr.mxu0 0.0
    %566 = vmatpush1.xpose.msra.mxu0 0.0
    %567 = vmatprep.subr.mxu0 0.0
    %568 = vmatpush1.xpose.msra.mxu0 0.0
    %569 = vmatprep.subr.mxu0 0.0
    %570 = vmatpush1.xpose.msra.mxu0 0.0
    %571 = vmatprep.subr.mxu0 0.0
    %572 = vmatpush1.xpose.msra.mxu0 0.0
    %573 = vmatprep.subr.mxu0 0.0
    %574 = vmatpush1.xpose.msra.mxu0 0.0
    %575 = vmatprep.subr.mxu0 0.0
    %576 = vmatpush1.xpose.msra.mxu0 0.0
    %577 = vmatprep.subr.mxu0 0.0
    %578 = vmatpush1.xpose.msra.mxu0 0.0
    %579 = vmatprep.subr.mxu0 0.0
    %580 = vmatpush1.xpose.msra.mxu0 0.0
    %581 = vmatprep.subr.mxu0 0.0
    %582 = vmatpush1.xpose.msra.mxu0 0.0
    %583 = vmatprep.subr.mxu0 0.0
    %584 = vmatpush1.xpose.msra.mxu0 0.0
    %585 = vmatprep.subr.mxu0 0.0
    %586 = vmatpush1.xpose.msra.mxu0 0.0
    %587 = vmatprep.subr.mxu0 0.0
    %588 = vmatpush1.xpose.msra.mxu0 0.0
    %589 = vmatprep.subr.mxu0 0.0
    %590 = vmatpush1.xpose.msra.mxu0 0.0
    %591 = vmatprep.subr.mxu0 0.0
    %592 = vmatpush1.xpose.msra.mxu0 0.0
    %593 = vmatprep.subr.mxu0 0.0
    %594 = vmatpush1.xpose.msra.mxu0 0.0
    %595 = vmatprep.subr.mxu0 0.0
    %596 = vmatpush1.xpose.msra.mxu0 0.0
    %597 = vmatprep.mubr.f32.mxu0 0.0
    %598 = vmatmul.mubr.f32.gmra.mrb[0].mxu0 %v529
    %v599 = vpop.f32.mrb[0].mxu0
    %v600 = vadd.f32 0.0, %v599
    %v601 = vpop.f32.mrb[0].mxu0
    %602 = vdwg.mxu0
    %603 = vrot.lane.b32.xlu0 %v189, 120
    %v604 = vpop.permute.xlu0 %603
    %605 = vrot.lane.b32.xlu0 %v185, 88
    %v606 = vpop.permute.xlu0 %605
    %v607 = vsel %vm193, %v604, 0
    %v609 = vsel %vm193, %v606, 0
    %611 = vmatprep.subr.mxu0 0.0
    %612 = vmatpush1.xpose.msra.mxu0 %v609
    %613 = vmatprep.subr.mxu0 0.0
    %614 = vmatpush1.xpose.msra.mxu0 0.0
    %615 = vmatprep.subr.mxu0 0.0
    %616 = vmatpush1.xpose.msra.mxu0 0.0
    %617 = vmatprep.subr.mxu0 0.0
    %618 = vmatpush1.xpose.msra.mxu0 0.0
    %619 = vmatprep.subr.mxu0 0.0
    %620 = vmatpush1.xpose.msra.mxu0 0.0
    %621 = vmatprep.subr.mxu0 0.0
    %622 = vmatpush1.xpose.msra.mxu0 0.0
    %623 = vmatprep.subr.mxu0 0.0
    %624 = vmatpush1.xpose.msra.mxu0 0.0
    %625 = vmatprep.subr.mxu0 0.0
    %626 = vmatpush1.xpose.msra.mxu0 0.0
    %627 = vmatprep.subr.mxu0 0.0
    %628 = vmatpush1.xpose.msra.mxu0 0.0
    %629 = vmatprep.subr.mxu0 0.0
    %630 = vmatpush1.xpose.msra.mxu0 0.0
    %631 = vmatprep.subr.mxu0 0.0
    %632 = vmatpush1.xpose.msra.mxu0 0.0
    %633 = vmatprep.subr.mxu0 0.0
    %634 = vmatpush1.xpose.msra.mxu0 0.0
    %635 = vmatprep.subr.mxu0 0.0
    %636 = vmatpush1.xpose.msra.mxu0 0.0
    %637 = vmatprep.subr.mxu0 0.0
    %638 = vmatpush1.xpose.msra.mxu0 0.0
    %639 = vmatprep.subr.mxu0 0.0
    %640 = vmatpush1.xpose.msra.mxu0 0.0
    %641 = vmatprep.subr.mxu0 0.0
    %642 = vmatpush1.xpose.msra.mxu0 0.0
    %643 = vmatprep.subr.mxu0 0.0
    %644 = vmatpush1.xpose.msra.mxu0 0.0
    %645 = vmatprep.subr.mxu0 0.0
    %646 = vmatpush1.xpose.msra.mxu0 0.0
    %647 = vmatprep.subr.mxu0 0.0
    %648 = vmatpush1.xpose.msra.mxu0 0.0
    %649 = vmatprep.subr.mxu0 0.0
    %650 = vmatpush1.xpose.msra.mxu0 0.0
    %651 = vmatprep.subr.mxu0 0.0
    %652 = vmatpush1.xpose.msra.mxu0 0.0
    %653 = vmatprep.subr.mxu0 0.0
    %654 = vmatpush1.xpose.msra.mxu0 0.0
    %655 = vmatprep.subr.mxu0 0.0
    %656 = vmatpush1.xpose.msra.mxu0 0.0
    %657 = vmatprep.subr.mxu0 0.0
    %658 = vmatpush1.xpose.msra.mxu0 0.0
    %659 = vmatprep.subr.mxu0 0.0
    %660 = vmatpush1.xpose.msra.mxu0 0.0
    %661 = vmatprep.subr.mxu0 0.0
    %662 = vmatpush1.xpose.msra.mxu0 0.0
    %663 = vmatprep.subr.mxu0 0.0
    %664 = vmatpush1.xpose.msra.mxu0 0.0
    %665 = vmatprep.subr.mxu0 0.0
    %666 = vmatpush1.xpose.msra.mxu0 0.0
    %667 = vmatprep.subr.mxu0 0.0
    %668 = vmatpush1.xpose.msra.mxu0 0.0
    %669 = vmatprep.subr.mxu0 0.0
    %670 = vmatpush1.xpose.msra.mxu0 0.0
    %671 = vmatprep.subr.mxu0 0.0
    %672 = vmatpush1.xpose.msra.mxu0 0.0
    %673 = vmatprep.subr.mxu0 0.0
    %674 = vmatpush1.xpose.msra.mxu0 0.0
    %675 = vmatprep.mubr.f32.mxu0 0.0
    %676 = vmatmul.mubr.f32.gmra.mrb[0].mxu0 %v607
    %v677 = vpop.f32.mrb[0].mxu0
    %v678 = vadd.f32 0.0, %v677
    %v679 = vpop.f32.mrb[0].mxu0
    %680 = vdwg.mxu0
    %v681 = vsel %vm193, %v600, -inf
    %682 = vmax.xlane.f32.xlu0 %v681
    %v683 = vpop.xlane.xlu0 %682
    %v684 = vsel %vm193, %v678, -inf
    %685 = vmax.xlane.f32.xlu0 %v684
    %v686 = vpop.xlane.xlu0 %685
    %v687 = vsub.f32 %v600, %v683
    %v688 = vsub.f32 %v678, %v686
    %v689 = vmul.f32 %v687, 1.442695
    %v690 = vpow.pop %v689
    %v691 = vmul.f32 %v688, 1.442695
    %v692 = vpow.pop %v691
    %v693 = vsel %vm193, %v690, 0.0
    %694 = vadd.xlane.f32.xlu0 %v693
    %v695 = vpop.xlane.xlu0 %694
    %v696 = vsel %vm193, %v692, 0.0
    %697 = vadd.xlane.f32.xlu0 %v696
    %v698 = vpop.xlane.xlu0 %697
    %v699 = vrcp.pop %v695
    %v700 = vrcp.pop %v698
    %v701 = vmul.f32 %v690, %v699
    %v702 = vmul.f32 %v692, %v700
    %s703 = scalar_lea.vmem [#allocation6], 8
    %704 = vst.msk [vmem:[%s703] sm:$0xff] %vm193, %v701
    %705 = vst.msk [vmem:[%s703 + $0x20] sm:$0xff] %vm193, %v702
    %706 = vrot.lane.b32.xlu0 %v180, 56
    %v707 = vpop.permute.xlu0 %706
    %v710 = vsel %vm193, %v701, 0
    %712 = vmatprep.subr.mxu0 0.0
    %713 = vmatpush1.msra.mxu0 %v707
    %714 = vmatprep.subr.mxu0 0.0
    %715 = vmatpush1.msra.mxu0 0.0
    %716 = vmatprep.subr.mxu0 0.0
    %717 = vmatpush1.msra.mxu0 0.0
    %718 = vmatprep.subr.mxu0 0.0
    %719 = vmatpush1.msra.mxu0 0.0
    %720 = vmatprep.subr.mxu0 0.0
    %721 = vmatpush1.msra.mxu0 0.0
    %722 = vmatprep.subr.mxu0 0.0
    %723 = vmatpush1.msra.mxu0 0.0
    %724 = vmatprep.subr.mxu0 0.0
    %725 = vmatpush1.msra.mxu0 0.0
    %726 = vmatprep.subr.mxu0 0.0
    %727 = vmatpush1.msra.mxu0 0.0
    %728 = vmatprep.subr.mxu0 0.0
    %729 = vmatpush1.msra.mxu0 0.0
    %730 = vmatprep.subr.mxu0 0.0
    %731 = vmatpush1.msra.mxu0 0.0
    %732 = vmatprep.subr.mxu0 0.0
    %733 = vmatpush1.msra.mxu0 0.0
    %734 = vmatprep.subr.mxu0 0.0
    %735 = vmatpush1.msra.mxu0 0.0
    %736 = vmatprep.subr.mxu0 0.0
    %737 = vmatpush1.msra.mxu0 0.0
    %738 = vmatprep.subr.mxu0 0.0
    %739 = vmatpush1.msra.mxu0 0.0
    %740 = vmatprep.subr.mxu0 0.0
    %741 = vmatpush1.msra.mxu0 0.0
    %742 = vmatprep.subr.mxu0 0.0
    %743 = vmatpush1.msra.mxu0 0.0
    %744 = vmatprep.subr.mxu0 0.0
    %745 = vmatpush1.msra.mxu0 0.0
    %746 = vmatprep.subr.mxu0 0.0
    %747 = vmatpush1.msra.mxu0 0.0
    %748 = vmatprep.subr.mxu0 0.0
    %749 = vmatpush1.msra.mxu0 0.0
    %750 = vmatprep.subr.mxu0 0.0
    %751 = vmatpush1.msra.mxu0 0.0
    %752 = vmatprep.subr.mxu0 0.0
    %753 = vmatpush1.msra.mxu0 0.0
    %754 = vmatprep.subr.mxu0 0.0
    %755 = vmatpush1.msra.mxu0 0.0
    %756 = vmatprep.subr.mxu0 0.0
    %757 = vmatpush1.msra.mxu0 0.0
    %758 = vmatprep.subr.mxu0 0.0
    %759 = vmatpush1.msra.mxu0 0.0
    %760 = vmatprep.subr.mxu0 0.0
    %761 = vmatpush1.msra.mxu0 0.0
    %762 = vmatprep.subr.mxu0 0.0
    %763 = vmatpush1.msra.mxu0 0.0
    %764 = vmatprep.subr.mxu0 0.0
    %765 = vmatpush1.msra.mxu0 0.0
    %766 = vmatprep.subr.mxu0 0.0
    %767 = vmatpush1.msra.mxu0 0.0
    %768 = vmatprep.subr.mxu0 0.0
    %769 = vmatpush1.msra.mxu0 0.0
    %770 = vmatprep.subr.mxu0 0.0
    %771 = vmatpush1.msra.mxu0 0.0
    %772 = vmatprep.subr.mxu0 0.0
    %773 = vmatpush1.msra.mxu0 0.0
    %774 = vmatprep.subr.mxu0 0.0
    %775 = vmatpush1.msra.mxu0 0.0
    %776 = vmatprep.mubr.f32.mxu0 0.0
    %777 = vmatmul.mubr.f32.gmra.mrb[0].mxu0 %v710
    %v778 = vpop.f32.mrb[0].mxu0
    %v779 = vadd.f32 0.0, %v778
    %v780 = vpop.f32.mrb[0].mxu0
    %781 = vdwg.mxu0
    %782 = vrot.lane.b32.xlu0 %v185, 56
    %v783 = vpop.permute.xlu0 %782
    %v786 = vsel %vm193, %v702, 0
    %788 = vmatprep.subr.mxu0 0.0
    %789 = vmatpush1.msra.mxu0 %v783
    %790 = vmatprep.subr.mxu0 0.0
    %791 = vmatpush1.msra.mxu0 0.0
    %792 = vmatprep.subr.mxu0 0.0
    %793 = vmatpush1.msra.mxu0 0.0
    %794 = vmatprep.subr.mxu0 0.0
    %795 = vmatpush1.msra.mxu0 0.0
    %796 = vmatprep.subr.mxu0 0.0
    %797 = vmatpush1.msra.mxu0 0.0
    %798 = vmatprep.subr.mxu0 0.0
    %799 = vmatpush1.msra.mxu0 0.0
    %800 = vmatprep.subr.mxu0 0.0
    %801 = vmatpush1.msra.mxu0 0.0
    %802 = vmatprep.subr.mxu0 0.0
    %803 = vmatpush1.msra.mxu0 0.0
    %804 = vmatprep.subr.mxu0 0.0
    %805 = vmatpush1.msra.mxu0 0.0
    %806 = vmatprep.subr.mxu0 0.0
    %807 = vmatpush1.msra.mxu0 0.0
    %808 = vmatprep.subr.mxu0 0.0
    %809 = vmatpush1.msra.mxu0 0.0
    %810 = vmatprep.subr.mxu0 0.0
    %811 = vmatpush1.msra.mxu0 0.0
    %812 = vmatprep.subr.mxu0 0.0
    %813 = vmatpush1.msra.mxu0 0.0
    %814 = vmatprep.subr.mxu0 0.0
    %815 = vmatpush1.msra.mxu0 0.0
    %816 = vmatprep.subr.mxu0 0.0
    %817 = vmatpush1.msra.mxu0 0.0
    %818 = vmatprep.subr.mxu0 0.0
    %819 = vmatpush1.msra.mxu0 0.0
    %820 = vmatprep.subr.mxu0 0.0
    %821 = vmatpush1.msra.mxu0 0.0
    %822 = vmatprep.subr.mxu0 0.0
    %823 = vmatpush1.msra.mxu0 0.0
    %824 = vmatprep.subr.mxu0 0.0
    %825 = vmatpush1.msra.mxu0 0.0
    %826 = vmatprep.subr.mxu0 0.0
    %827 = vmatpush1.msra.mxu0 0.0
    %828 = vmatprep.subr.mxu0 0.0
    %829 = vmatpush1.msra.mxu0 0.0
    %830 = vmatprep.subr.mxu0 0.0
    %831 = vmatpush1.msra.mxu0 0.0
    %832 = vmatprep.subr.mxu0 0.0
    %833 = vmatpush1.msra.mxu0 0.0
    %834 = vmatprep.subr.mxu0 0.0
    %835 = vmatpush1.msra.mxu0 0.0
    %836 = vmatprep.subr.mxu0 0.0
    %837 = vmatpush1.msra.mxu0 0.0
    %838 = vmatprep.subr.mxu0 0.0
    %839 = vmatpush1.msra.mxu0 0.0
    %840 = vmatprep.subr.mxu0 0.0
    %841 = vmatpush1.msra.mxu0 0.0
    %842 = vmatprep.subr.mxu0 0.0
    %843 = vmatpush1.msra.mxu0 0.0
    %844 = vmatprep.subr.mxu0 0.0
    %845 = vmatpush1.msra.mxu0 0.0
    %846 = vmatprep.subr.mxu0 0.0
    %847 = vmatpush1.msra.mxu0 0.0
    %848 = vmatprep.subr.mxu0 0.0
    %849 = vmatpush1.msra.mxu0 0.0
    %850 = vmatprep.subr.mxu0 0.0
    %851 = vmatpush1.msra.mxu0 0.0
    %852 = vmatprep.mubr.f32.mxu0 0.0
    %853 = vmatmul.mubr.f32.gmra.mrb[0].mxu0 %v786
    %v854 = vpop.f32.mrb[0].mxu0
    %v855 = vadd.f32 0.0, %v854
    %v856 = vpop.f32.mrb[0].mxu0
    %857 = vdwg.mxu0
    %860 = vrot.lane.b32.xlu0 %v779, 8
    %v861 = vpop.permute.xlu0 %860
    %862 = vrot.lane.b32.xlu0 %v855, 8
    %v863 = vpop.permute.xlu0 %862
    %vm866 = vcmask 130112
    %867 = vst.msk [vmem:[#allocation3] sm:$0xff] %vm866, %v861
    %868 = vst.msk [vmem:[#allocation3 + $0x8] sm:$0xff] %vm866, %v863
    %869 = vrot.lane.b32.xlu0 %v188, 112
    %v870 = vpop.permute.xlu0 %869
    %871 = vrot.lane.b32.xlu0 %v180, 80
    %v872 = vpop.permute.xlu0 %871
    %v873 = vsel %vm193, %v870, 0
    %v875 = vsel %vm193, %v872, 0
    %877 = vmatprep.subr.mxu0 0.0
    %878 = vmatpush1.xpose.msra.mxu0 %v875
    %879 = vmatprep.subr.mxu0 0.0
    %880 = vmatpush1.xpose.msra.mxu0 0.0
    %881 = vmatprep.subr.mxu0 0.0
    %882 = vmatpush1.xpose.msra.mxu0 0.0
    %883 = vmatprep.subr.mxu0 0.0
    %884 = vmatpush1.xpose.msra.mxu0 0.0
    %885 = vmatprep.subr.mxu0 0.0
    %886 = vmatpush1.xpose.msra.mxu0 0.0
    %887 = vmatprep.subr.mxu0 0.0
    %888 = vmatpush1.xpose.msra.mxu0 0.0
    %889 = vmatprep.subr.mxu0 0.0
    %890 = vmatpush1.xpose.msra.mxu0 0.0
    %891 = vmatprep.subr.mxu0 0.0
    %892 = vmatpush1.xpose.msra.mxu0 0.0
    %893 = vmatprep.subr.mxu0 0.0
    %894 = vmatpush1.xpose.msra.mxu0 0.0
    %895 = vmatprep.subr.mxu0 0.0
    %896 = vmatpush1.xpose.msra.mxu0 0.0
    %897 = vmatprep.subr.mxu0 0.0
    %898 = vmatpush1.xpose.msra.mxu0 0.0
    %899 = vmatprep.subr.mxu0 0.0
    %900 = vmatpush1.xpose.msra.mxu0 0.0
    %901 = vmatprep.subr.mxu0 0.0
    %902 = vmatpush1.xpose.msra.mxu0 0.0
    %903 = vmatprep.subr.mxu0 0.0
    %904 = vmatpush1.xpose.msra.mxu0 0.0
    %905 = vmatprep.subr.mxu0 0.0
    %906 = vmatpush1.xpose.msra.mxu0 0.0
    %907 = vmatprep.subr.mxu0 0.0
    %908 = vmatpush1.xpose.msra.mxu0 0.0
    %909 = vmatprep.subr.mxu0 0.0
    %910 = vmatpush1.xpose.msra.mxu0 0.0
    %911 = vmatprep.subr.mxu0 0.0
    %912 = vmatpush1.xpose.msra.mxu0 0.0
    %913 = vmatprep.subr.mxu0 0.0
    %914 = vmatpush1.xpose.msra.mxu0 0.0
    %915 = vmatprep.subr.mxu0 0.0
    %916 = vmatpush1.xpose.msra.mxu0 0.0
    %917 = vmatprep.subr.mxu0 0.0
    %918 = vmatpush1.xpose.msra.mxu0 0.0
    %919 = vmatprep.subr.mxu0 0.0
    %920 = vmatpush1.xpose.msra.mxu0 0.0
    %921 = vmatprep.subr.mxu0 0.0
    %922 = vmatpush1.xpose.msra.mxu0 0.0
    %923 = vmatprep.subr.mxu0 0.0
    %924 = vmatpush1.xpose.msra.mxu0 0.0
    %925 = vmatprep.subr.mxu0 0.0
    %926 = vmatpush1.xpose.msra.mxu0 0.0
    %927 = vmatprep.subr.mxu0 0.0
    %928 = vmatpush1.xpose.msra.mxu0 0.0
    %929 = vmatprep.subr.mxu0 0.0
    %930 = vmatpush1.xpose.msra.mxu0 0.0
    %931 = vmatprep.subr.mxu0 0.0
    %932 = vmatpush1.xpose.msra.mxu0 0.0
    %933 = vmatprep.subr.mxu0 0.0
    %934 = vmatpush1.xpose.msra.mxu0 0.0
    %935 = vmatprep.subr.mxu0 0.0
    %936 = vmatpush1.xpose.msra.mxu0 0.0
    %937 = vmatprep.subr.mxu0 0.0
    %938 = vmatpush1.xpose.msra.mxu0 0.0
    %939 = vmatprep.subr.mxu0 0.0
    %940 = vmatpush1.xpose.msra.mxu0 0.0
    %941 = vmatprep.mubr.f32.mxu0 0.0
    %942 = vmatmul.mubr.f32.gmra.mrb[0].mxu0 %v873
    %v943 = vpop.f32.mrb[0].mxu0
    %v944 = vadd.f32 0.0, %v943
    %v945 = vpop.f32.mrb[0].mxu0
    %946 = vdwg.mxu0
    %947 = vrot.lane.b32.xlu0 %v189, 112
    %v948 = vpop.permute.xlu0 %947
    %949 = vrot.lane.b32.xlu0 %v185, 80
    %v950 = vpop.permute.xlu0 %949
    %v951 = vsel %vm193, %v948, 0
    %v953 = vsel %vm193, %v950, 0
    %955 = vmatprep.subr.mxu0 0.0
    %956 = vmatpush1.xpose.msra.mxu0 %v953
    %957 = vmatprep.subr.mxu0 0.0
    %958 = vmatpush1.xpose.msra.mxu0 0.0
    %959 = vmatprep.subr.mxu0 0.0
    %960 = vmatpush1.xpose.msra.mxu0 0.0
    %961 = vmatprep.subr.mxu0 0.0
    %962 = vmatpush1.xpose.msra.mxu0 0.0
    %963 = vmatprep.subr.mxu0 0.0
    %964 = vmatpush1.xpose.msra.mxu0 0.0
    %965 = vmatprep.subr.mxu0 0.0
    %966 = vmatpush1.xpose.msra.mxu0 0.0
    %967 = vmatprep.subr.mxu0 0.0
    %968 = vmatpush1.xpose.msra.mxu0 0.0
    %969 = vmatprep.subr.mxu0 0.0
    %970 = vmatpush1.xpose.msra.mxu0 0.0
    %971 = vmatprep.subr.mxu0 0.0
    %972 = vmatpush1.xpose.msra.mxu0 0.0
    %973 = vmatprep.subr.mxu0 0.0
    %974 = vmatpush1.xpose.msra.mxu0 0.0
    %975 = vmatprep.subr.mxu0 0.0
    %976 = vmatpush1.xpose.msra.mxu0 0.0
    %977 = vmatprep.subr.mxu0 0.0
    %978 = vmatpush1.xpose.msra.mxu0 0.0
    %979 = vmatprep.subr.mxu0 0.0
    %980 = vmatpush1.xpose.msra.mxu0 0.0
    %981 = vmatprep.subr.mxu0 0.0
    %982 = vmatpush1.xpose.msra.mxu0 0.0
    %983 = vmatprep.subr.mxu0 0.0
    %984 = vmatpush1.xpose.msra.mxu0 0.0
    %985 = vmatprep.subr.mxu0 0.0
    %986 = vmatpush1.xpose.msra.mxu0 0.0
    %987 = vmatprep.subr.mxu0 0.0
    %988 = vmatpush1.xpose.msra.mxu0 0.0
    %989 = vmatprep.subr.mxu0 0.0
    %990 = vmatpush1.xpose.msra.mxu0 0.0
    %991 = vmatprep.subr.mxu0 0.0
    %992 = vmatpush1.xpose.msra.mxu0 0.0
    %993 = vmatprep.subr.mxu0 0.0
    %994 = vmatpush1.xpose.msra.mxu0 0.0
    %995 = vmatprep.subr.mxu0 0.0
    %996 = vmatpush1.xpose.msra.mxu0 0.0
    %997 = vmatprep.subr.mxu0 0.0
    %998 = vmatpush1.xpose.msra.mxu0 0.0
    %999 = vmatprep.subr.mxu0 0.0
    %1000 = vmatpush1.xpose.msra.mxu0 0.0
    %1001 = vmatprep.subr.mxu0 0.0
    %1002 = vmatpush1.xpose.msra.mxu0 0.0
    %1003 = vmatprep.subr.mxu0 0.0
    %1004 = vmatpush1.xpose.msra.mxu0 0.0
    %1005 = vmatprep.subr.mxu0 0.0
    %1006 = vmatpush1.xpose.msra.mxu0 0.0
    %1007 = vmatprep.subr.mxu0 0.0
    %1008 = vmatpush1.xpose.msra.mxu0 0.0
    %1009 = vmatprep.subr.mxu0 0.0
    %1010 = vmatpush1.xpose.msra.mxu0 0.0
    %1011 = vmatprep.subr.mxu0 0.0
    %1012 = vmatpush1.xpose.msra.mxu0 0.0
    %1013 = vmatprep.subr.mxu0 0.0
    %1014 = vmatpush1.xpose.msra.mxu0 0.0
    %1015 = vmatprep.subr.mxu0 0.0
    %1016 = vmatpush1.xpose.msra.mxu0 0.0
    %1017 = vmatprep.subr.mxu0 0.0
    %1018 = vmatpush1.xpose.msra.mxu0 0.0
    %1019 = vmatprep.mubr.f32.mxu0 0.0
    %1020 = vmatmul.mubr.f32.gmra.mrb[0].mxu0 %v951
    %v1021 = vpop.f32.mrb[0].mxu0
    %v1022 = vadd.f32 0.0, %v1021
    %v1023 = vpop.f32.mrb[0].mxu0
    %1024 = vdwg.mxu0
    %v1025 = vsel %vm193, %v944, -inf
    %1026 = vmax.xlane.f32.xlu0 %v1025
    %v1027 = vpop.xlane.xlu0 %1026
    %v1028 = vsel %vm193, %v1022, -inf
    %1029 = vmax.xlane.f32.xlu0 %v1028
    %v1030 = vpop.xlane.xlu0 %1029
    %v1031 = vsub.f32 %v944, %v1027
    %v1032 = vsub.f32 %v1022, %v1030
    %v1033 = vmul.f32 %v1031, 1.442695
    %v1034 = vpow.pop %v1033
    %v1035 = vmul.f32 %v1032, 1.442695
    %v1036 = vpow.pop %v1035
    %v1037 = vsel %vm193, %v1034, 0.0
    %1038 = vadd.xlane.f32.xlu0 %v1037
    %v1039 = vpop.xlane.xlu0 %1038
    %v1040 = vsel %vm193, %v1036, 0.0
    %1041 = vadd.xlane.f32.xlu0 %v1040
    %v1042 = vpop.xlane.xlu0 %1041
    %v1043 = vrcp.pop %v1039
    %v1044 = vrcp.pop %v1042
    %v1045 = vmul.f32 %v1034, %v1043
    %v1046 = vmul.f32 %v1036, %v1044
    %s1047 = scalar_lea.vmem [#allocation6], 16
    %1048 = vst.msk [vmem:[%s1047] sm:$0xff] %vm193, %v1045
    %1049 = vst.msk [vmem:[%s1047 + $0x20] sm:$0xff] %vm193, %v1046
    %1050 = vrot.lane.b32.xlu0 %v180, 48
    %v1051 = vpop.permute.xlu0 %1050
    %v1054 = vsel %vm193, %v1045, 0
    %1056 = vmatprep.subr.mxu0 0.0
    %1057 = vmatpush1.msra.mxu0 %v1051
    %1058 = vmatprep.subr.mxu0 0.0
    %1059 = vmatpush1.msra.mxu0 0.0
    %1060 = vmatprep.subr.mxu0 0.0
    %1061 = vmatpush1.msra.mxu0 0.0
    %1062 = vmatprep.subr.mxu0 0.0
    %1063 = vmatpush1.msra.mxu0 0.0
    %1064 = vmatprep.subr.mxu0 0.0
    %1065 = vmatpush1.msra.mxu0 0.0
    %1066 = vmatprep.subr.mxu0 0.0
    %1067 = vmatpush1.msra.mxu0 0.0
    %1068 = vmatprep.subr.mxu0 0.0
    %1069 = vmatpush1.msra.mxu0 0.0
    %1070 = vmatprep.subr.mxu0 0.0
    %1071 = vmatpush1.msra.mxu0 0.0
    %1072 = vmatprep.subr.mxu0 0.0
    %1073 = vmatpush1.msra.mxu0 0.0
    %1074 = vmatprep.subr.mxu0 0.0
    %1075 = vmatpush1.msra.mxu0 0.0
    %1076 = vmatprep.subr.mxu0 0.0
    %1077 = vmatpush1.msra.mxu0 0.0
    %1078 = vmatprep.subr.mxu0 0.0
    %1079 = vmatpush1.msra.mxu0 0.0
    %1080 = vmatprep.subr.mxu0 0.0
    %1081 = vmatpush1.msra.mxu0 0.0
    %1082 = vmatprep.subr.mxu0 0.0
    %1083 = vmatpush1.msra.mxu0 0.0
    %1084 = vmatprep.subr.mxu0 0.0
    %1085 = vmatpush1.msra.mxu0 0.0
    %1086 = vmatprep.subr.mxu0 0.0
    %1087 = vmatpush1.msra.mxu0 0.0
    %1088 = vmatprep.subr.mxu0 0.0
    %1089 = vmatpush1.msra.mxu0 0.0
    %1090 = vmatprep.subr.mxu0 0.0
    %1091 = vmatpush1.msra.mxu0 0.0
    %1092 = vmatprep.subr.mxu0 0.0
    %1093 = vmatpush1.msra.mxu0 0.0
    %1094 = vmatprep.subr.mxu0 0.0
    %1095 = vmatpush1.msra.mxu0 0.0
    %1096 = vmatprep.subr.mxu0 0.0
    %1097 = vmatpush1.msra.mxu0 0.0
    %1098 = vmatprep.subr.mxu0 0.0
    %1099 = vmatpush1.msra.mxu0 0.0
    %1100 = vmatprep.subr.mxu0 0.0
    %1101 = vmatpush1.msra.mxu0 0.0
    %1102 = vmatprep.subr.mxu0 0.0
    %1103 = vmatpush1.msra.mxu0 0.0
    %1104 = vmatprep.subr.mxu0 0.0
    %1105 = vmatpush1.msra.mxu0 0.0
    %1106 = vmatprep.subr.mxu0 0.0
    %1107 = vmatpush1.msra.mxu0 0.0
    %1108 = vmatprep.subr.mxu0 0.0
    %1109 = vmatpush1.msra.mxu0 0.0
    %1110 = vmatprep.subr.mxu0 0.0
    %1111 = vmatpush1.msra.mxu0 0.0
    %1112 = vmatprep.subr.mxu0 0.0
    %1113 = vmatpush1.msra.mxu0 0.0
    %1114 = vmatprep.subr.mxu0 0.0
    %1115 = vmatpush1.msra.mxu0 0.0
    %1116 = vmatprep.subr.mxu0 0.0
    %1117 = vmatpush1.msra.mxu0 0.0
    %1118 = vmatprep.subr.mxu0 0.0
    %1119 = vmatpush1.msra.mxu0 0.0
    %1120 = vmatprep.mubr.f32.mxu0 0.0
    %1121 = vmatmul.mubr.f32.gmra.mrb[0].mxu0 %v1054
    %v1122 = vpop.f32.mrb[0].mxu0
    %v1123 = vadd.f32 0.0, %v1122
    %v1124 = vpop.f32.mrb[0].mxu0
    %1125 = vdwg.mxu0
    %1126 = vrot.lane.b32.xlu0 %v185, 48
    %v1127 = vpop.permute.xlu0 %1126
    %v1130 = vsel %vm193, %v1046, 0
    %1132 = vmatprep.subr.mxu0 0.0
    %1133 = vmatpush1.msra.mxu0 %v1127
    %1134 = vmatprep.subr.mxu0 0.0
    %1135 = vmatpush1.msra.mxu0 0.0
    %1136 = vmatprep.subr.mxu0 0.0
    %1137 = vmatpush1.msra.mxu0 0.0
    %1138 = vmatprep.subr.mxu0 0.0
    %1139 = vmatpush1.msra.mxu0 0.0
    %1140 = vmatprep.subr.mxu0 0.0
    %1141 = vmatpush1.msra.mxu0 0.0
    %1142 = vmatprep.subr.mxu0 0.0
    %1143 = vmatpush1.msra.mxu0 0.0
    %1144 = vmatprep.subr.mxu0 0.0
    %1145 = vmatpush1.msra.mxu0 0.0
    %1146 = vmatprep.subr.mxu0 0.0
    %1147 = vmatpush1.msra.mxu0 0.0
    %1148 = vmatprep.subr.mxu0 0.0
    %1149 = vmatpush1.msra.mxu0 0.0
    %1150 = vmatprep.subr.mxu0 0.0
    %1151 = vmatpush1.msra.mxu0 0.0
    %1152 = vmatprep.subr.mxu0 0.0
    %1153 = vmatpush1.msra.mxu0 0.0
    %1154 = vmatprep.subr.mxu0 0.0
    %1155 = vmatpush1.msra.mxu0 0.0
    %1156 = vmatprep.subr.mxu0 0.0
    %1157 = vmatpush1.msra.mxu0 0.0
    %1158 = vmatprep.subr.mxu0 0.0
    %1159 = vmatpush1.msra.mxu0 0.0
    %1160 = vmatprep.subr.mxu0 0.0
    %1161 = vmatpush1.msra.mxu0 0.0
    %1162 = vmatprep.subr.mxu0 0.0
    %1163 = vmatpush1.msra.mxu0 0.0
    %1164 = vmatprep.subr.mxu0 0.0
    %1165 = vmatpush1.msra.mxu0 0.0
    %1166 = vmatprep.subr.mxu0 0.0
    %1167 = vmatpush1.msra.mxu0 0.0
    %1168 = vmatprep.subr.mxu0 0.0
    %1169 = vmatpush1.msra.mxu0 0.0
    %1170 = vmatprep.subr.mxu0 0.0
    %1171 = vmatpush1.msra.mxu0 0.0
    %1172 = vmatprep.subr.mxu0 0.0
    %1173 = vmatpush1.msra.mxu0 0.0
    %1174 = vmatprep.subr.mxu0 0.0
    %1175 = vmatpush1.msra.mxu0 0.0
    %1176 = vmatprep.subr.mxu0 0.0
    %1177 = vmatpush1.msra.mxu0 0.0
    %1178 = vmatprep.subr.mxu0 0.0
    %1179 = vmatpush1.msra.mxu0 0.0
    %1180 = vmatprep.subr.mxu0 0.0
    %1181 = vmatpush1.msra.mxu0 0.0
    %1182 = vmatprep.subr.mxu0 0.0
    %1183 = vmatpush1.msra.mxu0 0.0
    %1184 = vmatprep.subr.mxu0 0.0
    %1185 = vmatpush1.msra.mxu0 0.0
    %1186 = vmatprep.subr.mxu0 0.0
    %1187 = vmatpush1.msra.mxu0 0.0
    %1188 = vmatprep.subr.mxu0 0.0
    %1189 = vmatpush1.msra.mxu0 0.0
    %1190 = vmatprep.subr.mxu0 0.0
    %1191 = vmatpush1.msra.mxu0 0.0
    %1192 = vmatprep.subr.mxu0 0.0
    %1193 = vmatpush1.msra.mxu0 0.0
    %1194 = vmatprep.subr.mxu0 0.0
    %1195 = vmatpush1.msra.mxu0 0.0
    %1196 = vmatprep.mubr.f32.mxu0 0.0
    %1197 = vmatmul.mubr.f32.gmra.mrb[0].mxu0 %v1130
    %v1198 = vpop.f32.mrb[0].mxu0
    %v1199 = vadd.f32 0.0, %v1198
    %v1200 = vpop.f32.mrb[0].mxu0
    %1201 = vdwg.mxu0
    %1204 = vrot.lane.b32.xlu0 %v1123, 16
    %v1205 = vpop.permute.xlu0 %1204
    %1206 = vrot.lane.b32.xlu0 %v1199, 16
    %v1207 = vpop.permute.xlu0 %1206
    %vm1210 = vcmask 195712
    %1211 = vst.msk [vmem:[#allocation3] sm:$0xff] %vm1210, %v1205
    %1212 = vst.msk [vmem:[#allocation3 + $0x8] sm:$0xff] %vm1210, %v1207
    %1213 = vrot.lane.b32.xlu0 %v188, 104
    %v1214 = vpop.permute.xlu0 %1213
    %1215 = vrot.lane.b32.xlu0 %v180, 72
    %v1216 = vpop.permute.xlu0 %1215
    %v1217 = vsel %vm193, %v1214, 0
    %v1219 = vsel %vm193, %v1216, 0
    %1221 = vmatprep.subr.mxu0 0.0
    %1222 = vmatpush1.xpose.msra.mxu0 %v1219
    %1223 = vmatprep.subr.mxu0 0.0
    %1224 = vmatpush1.xpose.msra.mxu0 0.0
    %1225 = vmatprep.subr.mxu0 0.0
    %1226 = vmatpush1.xpose.msra.mxu0 0.0
    %1227 = vmatprep.subr.mxu0 0.0
    %1228 = vmatpush1.xpose.msra.mxu0 0.0
    %1229 = vmatprep.subr.mxu0 0.0
    %1230 = vmatpush1.xpose.msra.mxu0 0.0
    %1231 = vmatprep.subr.mxu0 0.0
    %1232 = vmatpush1.xpose.msra.mxu0 0.0
    %1233 = vmatprep.subr.mxu0 0.0
    %1234 = vmatpush1.xpose.msra.mxu0 0.0
    %1235 = vmatprep.subr.mxu0 0.0
    %1236 = vmatpush1.xpose.msra.mxu0 0.0
    %1237 = vmatprep.subr.mxu0 0.0
    %1238 = vmatpush1.xpose.msra.mxu0 0.0
    %1239 = vmatprep.subr.mxu0 0.0
    %1240 = vmatpush1.xpose.msra.mxu0 0.0
    %1241 = vmatprep.subr.mxu0 0.0
    %1242 = vmatpush1.xpose.msra.mxu0 0.0
    %1243 = vmatprep.subr.mxu0 0.0
    %1244 = vmatpush1.xpose.msra.mxu0 0.0
    %1245 = vmatprep.subr.mxu0 0.0
    %1246 = vmatpush1.xpose.msra.mxu0 0.0
    %1247 = vmatprep.subr.mxu0 0.0
    %1248 = vmatpush1.xpose.msra.mxu0 0.0
    %1249 = vmatprep.subr.mxu0 0.0
    %1250 = vmatpush1.xpose.msra.mxu0 0.0
    %1251 = vmatprep.subr.mxu0 0.0
    %1252 = vmatpush1.xpose.msra.mxu0 0.0
    %1253 = vmatprep.subr.mxu0 0.0
    %1254 = vmatpush1.xpose.msra.mxu0 0.0
    %1255 = vmatprep.subr.mxu0 0.0
    %1256 = vmatpush1.xpose.msra.mxu0 0.0
    %1257 = vmatprep.subr.mxu0 0.0
    %1258 = vmatpush1.xpose.msra.mxu0 0.0
    %1259 = vmatprep.subr.mxu0 0.0
    %1260 = vmatpush1.xpose.msra.mxu0 0.0
    %1261 = vmatprep.subr.mxu0 0.0
    %1262 = vmatpush1.xpose.msra.mxu0 0.0
    %1263 = vmatprep.subr.mxu0 0.0
    %1264 = vmatpush1.xpose.msra.mxu0 0.0
    %1265 = vmatprep.subr.mxu0 0.0
    %1266 = vmatpush1.xpose.msra.mxu0 0.0
    %1267 = vmatprep.subr.mxu0 0.0
    %1268 = vmatpush1.xpose.msra.mxu0 0.0
    %1269 = vmatprep.subr.mxu0 0.0
    %1270 = vmatpush1.xpose.msra.mxu0 0.0
    %1271 = vmatprep.subr.mxu0 0.0
    %1272 = vmatpush1.xpose.msra.mxu0 0.0
    %1273 = vmatprep.subr.mxu0 0.0
    %1274 = vmatpush1.xpose.msra.mxu0 0.0
    %1275 = vmatprep.subr.mxu0 0.0
    %1276 = vmatpush1.xpose.msra.mxu0 0.0
    %1277 = vmatprep.subr.mxu0 0.0
    %1278 = vmatpush1.xpose.msra.mxu0 0.0
    %1279 = vmatprep.subr.mxu0 0.0
    %1280 = vmatpush1.xpose.msra.mxu0 0.0
    %1281 = vmatprep.subr.mxu0 0.0
    %1282 = vmatpush1.xpose.msra.mxu0 0.0
    %1283 = vmatprep.subr.mxu0 0.0
    %1284 = vmatpush1.xpose.msra.mxu0 0.0
    %1285 = vmatprep.mubr.f32.mxu0 0.0
    %1286 = vmatmul.mubr.f32.gmra.mrb[0].mxu0 %v1217
    %v1287 = vpop.f32.mrb[0].mxu0
    %v1288 = vadd.f32 0.0, %v1287
    %v1289 = vpop.f32.mrb[0].mxu0
    %1290 = vdwg.mxu0
    %1291 = vrot.lane.b32.xlu0 %v189, 104
    %v1292 = vpop.permute.xlu0 %1291
    %1293 = vrot.lane.b32.xlu0 %v185, 72
    %v1294 = vpop.permute.xlu0 %1293
    %v1295 = vsel %vm193, %v1292, 0
    %v1297 = vsel %vm193, %v1294, 0
    %1299 = vmatprep.subr.mxu0 0.0
    %1300 = vmatpush1.xpose.msra.mxu0 %v1297
    %1301 = vmatprep.subr.mxu0 0.0
    %1302 = vmatpush1.xpose.msra.mxu0 0.0
    %1303 = vmatprep.subr.mxu0 0.0
    %1304 = vmatpush1.xpose.msra.mxu0 0.0
    %1305 = vmatprep.subr.mxu0 0.0
    %1306 = vmatpush1.xpose.msra.mxu0 0.0
    %1307 = vmatprep.subr.mxu0 0.0
    %1308 = vmatpush1.xpose.msra.mxu0 0.0
    %1309 = vmatprep.subr.mxu0 0.0
    %1310 = vmatpush1.xpose.msra.mxu0 0.0
    %1311 = vmatprep.subr.mxu0 0.0
    %1312 = vmatpush1.xpose.msra.mxu0 0.0
    %1313 = vmatprep.subr.mxu0 0.0
    %1314 = vmatpush1.xpose.msra.mxu0 0.0
    %1315 = vmatprep.subr.mxu0 0.0
    %1316 = vmatpush1.xpose.msra.mxu0 0.0
    %1317 = vmatprep.subr.mxu0 0.0
    %1318 = vmatpush1.xpose.msra.mxu0 0.0
    %1319 = vmatprep.subr.mxu0 0.0
    %1320 = vmatpush1.xpose.msra.mxu0 0.0
    %1321 = vmatprep.subr.mxu0 0.0
    %1322 = vmatpush1.xpose.msra.mxu0 0.0
    %1323 = vmatprep.subr.mxu0 0.0
    %1324 = vmatpush1.xpose.msra.mxu0 0.0
    %1325 = vmatprep.subr.mxu0 0.0
    %1326 = vmatpush1.xpose.msra.mxu0 0.0
    %1327 = vmatprep.subr.mxu0 0.0
    %1328 = vmatpush1.xpose.msra.mxu0 0.0
    %1329 = vmatprep.subr.mxu0 0.0
    %1330 = vmatpush1.xpose.msra.mxu0 0.0
    %1331 = vmatprep.subr.mxu0 0.0
    %1332 = vmatpush1.xpose.msra.mxu0 0.0
    %1333 = vmatprep.subr.mxu0 0.0
    %1334 = vmatpush1.xpose.msra.mxu0 0.0
    %1335 = vmatprep.subr.mxu0 0.0
    %1336 = vmatpush1.xpose.msra.mxu0 0.0
    %1337 = vmatprep.subr.mxu0 0.0
    %1338 = vmatpush1.xpose.msra.mxu0 0.0
    %1339 = vmatprep.subr.mxu0 0.0
    %1340 = vmatpush1.xpose.msra.mxu0 0.0
    %1341 = vmatprep.subr.mxu0 0.0
    %1342 = vmatpush1.xpose.msra.mxu0 0.0
    %1343 = vmatprep.subr.mxu0 0.0
    %1344 = vmatpush1.xpose.msra.mxu0 0.0
    %1345 = vmatprep.subr.mxu0 0.0
    %1346 = vmatpush1.xpose.msra.mxu0 0.0
    %1347 = vmatprep.subr.mxu0 0.0
    %1348 = vmatpush1.xpose.msra.mxu0 0.0
    %1349 = vmatprep.subr.mxu0 0.0
    %1350 = vmatpush1.xpose.msra.mxu0 0.0
    %1351 = vmatprep.subr.mxu0 0.0
    %1352 = vmatpush1.xpose.msra.mxu0 0.0
    %1353 = vmatprep.subr.mxu0 0.0
    %1354 = vmatpush1.xpose.msra.mxu0 0.0
    %1355 = vmatprep.subr.mxu0 0.0
    %1356 = vmatpush1.xpose.msra.mxu0 0.0
    %1357 = vmatprep.subr.mxu0 0.0
    %1358 = vmatpush1.xpose.msra.mxu0 0.0
    %1359 = vmatprep.subr.mxu0 0.0
    %1360 = vmatpush1.xpose.msra.mxu0 0.0
    %1361 = vmatprep.subr.mxu0 0.0
    %1362 = vmatpush1.xpose.msra.mxu0 0.0
    %1363 = vmatprep.mubr.f32.mxu0 0.0
    %1364 = vmatmul.mubr.f32.gmra.mrb[0].mxu0 %v1295
    %v1365 = vpop.f32.mrb[0].mxu0
    %v1366 = vadd.f32 0.0, %v1365
    %v1367 = vpop.f32.mrb[0].mxu0
    %1368 = vdwg.mxu0
    %v1369 = vsel %vm193, %v1288, -inf
    %1370 = vmax.xlane.f32.xlu0 %v1369
    %v1371 = vpop.xlane.xlu0 %1370
    %v1372 = vsel %vm193, %v1366, -inf
    %1373 = vmax.xlane.f32.xlu0 %v1372
    %v1374 = vpop.xlane.xlu0 %1373
    %v1375 = vsub.f32 %v1288, %v1371
    %v1376 = vsub.f32 %v1366, %v1374
    %v1377 = vmul.f32 %v1375, 1.442695
    %v1378 = vpow.pop %v1377
    %v1379 = vmul.f32 %v1376, 1.442695
    %v1380 = vpow.pop %v1379
    %v1381 = vsel %vm193, %v1378, 0.0
    %1382 = vadd.xlane.f32.xlu0 %v1381
    %v1383 = vpop.xlane.xlu0 %1382
    %v1384 = vsel %vm193, %v1380, 0.0
    %1385 = vadd.xlane.f32.xlu0 %v1384
    %v1386 = vpop.xlane.xlu0 %1385
    %v1387 = vrcp.pop %v1383
    %v1388 = vrcp.pop %v1386
    %v1389 = vmul.f32 %v1378, %v1387
    %v1390 = vmul.f32 %v1380, %v1388
    %s1391 = scalar_lea.vmem [#allocation6], 24
    %1392 = vst.msk [vmem:[%s1391] sm:$0xff] %vm193, %v1389
    %1393 = vst.msk [vmem:[%s1391 + $0x20] sm:$0xff] %vm193, %v1390
    %1394 = vrot.lane.b32.xlu0 %v180, 40
    %v1395 = vpop.permute.xlu0 %1394
    %v1398 = vsel %vm193, %v1389, 0
    %1400 = vmatprep.subr.mxu0 0.0
    %1401 = vmatpush1.msra.mxu0 %v1395
    %1402 = vmatprep.subr.mxu0 0.0
    %1403 = vmatpush1.msra.mxu0 0.0
    %1404 = vmatprep.subr.mxu0 0.0
    %1405 = vmatpush1.msra.mxu0 0.0
    %1406 = vmatprep.subr.mxu0 0.0
    %1407 = vmatpush1.msra.mxu0 0.0
    %1408 = vmatprep.subr.mxu0 0.0
    %1409 = vmatpush1.msra.mxu0 0.0
    %1410 = vmatprep.subr.mxu0 0.0
    %1411 = vmatpush1.msra.mxu0 0.0
    %1412 = vmatprep.subr.mxu0 0.0
    %1413 = vmatpush1.msra.mxu0 0.0
    %1414 = vmatprep.subr.mxu0 0.0
    %1415 = vmatpush1.msra.mxu0 0.0
    %1416 = vmatprep.subr.mxu0 0.0
    %1417 = vmatpush1.msra.mxu0 0.0
    %1418 = vmatprep.subr.mxu0 0.0
    %1419 = vmatpush1.msra.mxu0 0.0
    %1420 = vmatprep.subr.mxu0 0.0
    %1421 = vmatpush1.msra.mxu0 0.0
    %1422 = vmatprep.subr.mxu0 0.0
    %1423 = vmatpush1.msra.mxu0 0.0
    %1424 = vmatprep.subr.mxu0 0.0
    %1425 = vmatpush1.msra.mxu0 0.0
    %1426 = vmatprep.subr.mxu0 0.0
    %1427 = vmatpush1.msra.mxu0 0.0
    %1428 = vmatprep.subr.mxu0 0.0
    %1429 = vmatpush1.msra.mxu0 0.0
    %1430 = vmatprep.subr.mxu0 0.0
    %1431 = vmatpush1.msra.mxu0 0.0
    %1432 = vmatprep.subr.mxu0 0.0
    %1433 = vmatpush1.msra.mxu0 0.0
    %1434 = vmatprep.subr.mxu0 0.0
    %1435 = vmatpush1.msra.mxu0 0.0
    %1436 = vmatprep.subr.mxu0 0.0
    %1437 = vmatpush1.msra.mxu0 0.0
    %1438 = vmatprep.subr.mxu0 0.0
    %1439 = vmatpush1.msra.mxu0 0.0
    %1440 = vmatprep.subr.mxu0 0.0
    %1441 = vmatpush1.msra.mxu0 0.0
    %1442 = vmatprep.subr.mxu0 0.0
    %1443 = vmatpush1.msra.mxu0 0.0
    %1444 = vmatprep.subr.mxu0 0.0
    %1445 = vmatpush1.msra.mxu0 0.0
    %1446 = vmatprep.subr.mxu0 0.0
    %1447 = vmatpush1.msra.mxu0 0.0
    %1448 = vmatprep.subr.mxu0 0.0
    %1449 = vmatpush1.msra.mxu0 0.0
    %1450 = vmatprep.subr.mxu0 0.0
    %1451 = vmatpush1.msra.mxu0 0.0
    %1452 = vmatprep.subr.mxu0 0.0
    %1453 = vmatpush1.msra.mxu0 0.0
    %1454 = vmatprep.subr.mxu0 0.0
    %1455 = vmatpush1.msra.mxu0 0.0
    %1456 = vmatprep.subr.mxu0 0.0
    %1457 = vmatpush1.msra.mxu0 0.0
    %1458 = vmatprep.subr.mxu0 0.0
    %1459 = vmatpush1.msra.mxu0 0.0
    %1460 = vmatprep.subr.mxu0 0.0
    %1461 = vmatpush1.msra.mxu0 0.0
    %1462 = vmatprep.subr.mxu0 0.0
    %1463 = vmatpush1.msra.mxu0 0.0
    %1464 = vmatprep.mubr.f32.mxu0 0.0
    %1465 = vmatmul.mubr.f32.gmra.mrb[0].mxu0 %v1398
    %v1466 = vpop.f32.mrb[0].mxu0
    %v1467 = vadd.f32 0.0, %v1466
    %v1468 = vpop.f32.mrb[0].mxu0
    %1469 = vdwg.mxu0
    %1470 = vrot.lane.b32.xlu0 %v185, 40
    %v1471 = vpop.permute.xlu0 %1470
    %v1474 = vsel %vm193, %v1390, 0
    %1476 = vmatprep.subr.mxu0 0.0
    %1477 = vmatpush1.msra.mxu0 %v1471
    %1478 = vmatprep.subr.mxu0 0.0
    %1479 = vmatpush1.msra.mxu0 0.0
    %1480 = vmatprep.subr.mxu0 0.0
    %1481 = vmatpush1.msra.mxu0 0.0
    %1482 = vmatprep.subr.mxu0 0.0
    %1483 = vmatpush1.msra.mxu0 0.0
    %1484 = vmatprep.subr.mxu0 0.0
    %1485 = vmatpush1.msra.mxu0 0.0
    %1486 = vmatprep.subr.mxu0 0.0
    %1487 = vmatpush1.msra.mxu0 0.0
    %1488 = vmatprep.subr.mxu0 0.0
    %1489 = vmatpush1.msra.mxu0 0.0
    %1490 = vmatprep.subr.mxu0 0.0
    %1491 = vmatpush1.msra.mxu0 0.0
    %1492 = vmatprep.subr.mxu0 0.0
    %1493 = vmatpush1.msra.mxu0 0.0
    %1494 = vmatprep.subr.mxu0 0.0
    %1495 = vmatpush1.msra.mxu0 0.0
    %1496 = vmatprep.subr.mxu0 0.0
    %1497 = vmatpush1.msra.mxu0 0.0
    %1498 = vmatprep.subr.mxu0 0.0
    %1499 = vmatpush1.msra.mxu0 0.0
    %1500 = vmatprep.subr.mxu0 0.0
    %1501 = vmatpush1.msra.mxu0 0.0
    %1502 = vmatprep.subr.mxu0 0.0
    %1503 = vmatpush1.msra.mxu0 0.0
    %1504 = vmatprep.subr.mxu0 0.0
    %1505 = vmatpush1.msra.mxu0 0.0
    %1506 = vmatprep.subr.mxu0 0.0
    %1507 = vmatpush1.msra.mxu0 0.0
    %1508 = vmatprep.subr.mxu0 0.0
    %1509 = vmatpush1.msra.mxu0 0.0
    %1510 = vmatprep.subr.mxu0 0.0
    %1511 = vmatpush1.msra.mxu0 0.0
    %1512 = vmatprep.subr.mxu0 0.0
    %1513 = vmatpush1.msra.mxu0 0.0
    %1514 = vmatprep.subr.mxu0 0.0
    %1515 = vmatpush1.msra.mxu0 0.0
    %1516 = vmatprep.subr.mxu0 0.0
    %1517 = vmatpush1.msra.mxu0 0.0
    %1518 = vmatprep.subr.mxu0 0.0
    %1519 = vmatpush1.msra.mxu0 0.0
    %1520 = vmatprep.subr.mxu0 0.0
    %1521 = vmatpush1.msra.mxu0 0.0
    %1522 = vmatprep.subr.mxu0 0.0
    %1523 = vmatpush1.msra.mxu0 0.0
    %1524 = vmatprep.subr.mxu0 0.0
    %1525 = vmatpush1.msra.mxu0 0.0
    %1526 = vmatprep.subr.mxu0 0.0
    %1527 = vmatpush1.msra.mxu0 0.0
    %1528 = vmatprep.subr.mxu0 0.0
    %1529 = vmatpush1.msra.mxu0 0.0
    %1530 = vmatprep.subr.mxu0 0.0
    %1531 = vmatpush1.msra.mxu0 0.0
    %1532 = vmatprep.subr.mxu0 0.0
    %1533 = vmatpush1.msra.mxu0 0.0
    %1534 = vmatprep.subr.mxu0 0.0
    %1535 = vmatpush1.msra.mxu0 0.0
    %1536 = vmatprep.subr.mxu0 0.0
    %1537 = vmatpush1.msra.mxu0 0.0
    %1538 = vmatprep.subr.mxu0 0.0
    %1539 = vmatpush1.msra.mxu0 0.0
    %1540 = vmatprep.mubr.f32.mxu0 0.0
    %1541 = vmatmul.mubr.f32.gmra.mrb[0].mxu0 %v1474
    %v1542 = vpop.f32.mrb[0].mxu0
    %v1543 = vadd.f32 0.0, %v1542
    %v1544 = vpop.f32.mrb[0].mxu0
    %1545 = vdwg.mxu0
    %1548 = vrot.lane.b32.xlu0 %v1467, 24
    %v1549 = vpop.permute.xlu0 %1548
    %1550 = vrot.lane.b32.xlu0 %v1543, 24
    %v1551 = vpop.permute.xlu0 %1550
    %vm1554 = vcmask 261312
    %1555 = vst.msk [vmem:[#allocation3] sm:$0xff] %vm1554, %v1549
    %1556 = vst.msk [vmem:[#allocation3 + $0x8] sm:$0xff] %vm1554, %v1551
    %v1557 = vld [vmem:[#allocation3] sm:$0xff]
    %v1558 = vld [vmem:[#allocation3 + $0x8] sm:$0xff]
    %v1559 = vld [vmem:[%s5] sm:$0xff]
    %v1560 = vld [vmem:[%s5 + $0x8] sm:$0xff]
    %v1561 = vld [vmem:[%s5 + $0x10] sm:$0xff]
    %v1562 = vld [vmem:[%s5 + $0x18] sm:$0xff]
    %v1563 = vlaneseq
    %v1564 = vshrl.u32 %v1563, 7
    %v1565 = vsub.s32 0, %v1564
    %v1566 = vrot.slane %v38, %v1565
    %v1568 = vsel %vm56, %v1557, 0
    %v1571 = vsel %vm56, %v1558, 0
    %1573 = vmatprep.subr.mxu0 0.0
    %1574 = vmatpush1.msra.mxu0 %v1559
    %1575 = vmatprep.subr.mxu0 0.0
    %1576 = vmatpush1.msra.mxu0 %v1560
    %1577 = vmatprep.subr.mxu0 0.0
    %1578 = vmatpush1.msra.mxu0 %v1561
    %1579 = vmatprep.subr.mxu0 0.0
    %1580 = vmatpush1.msra.mxu0 %v1562
    %1581 = vmatprep.subr.mxu0 0.0
    %1582 = vmatpush1.msra.mxu0 0.0
    %1583 = vmatprep.subr.mxu0 0.0
    %1584 = vmatpush1.msra.mxu0 0.0
    %1585 = vmatprep.subr.mxu0 0.0
    %1586 = vmatpush1.msra.mxu0 0.0
    %1587 = vmatprep.subr.mxu0 0.0
    %1588 = vmatpush1.msra.mxu0 0.0
    %1589 = vmatprep.subr.mxu0 0.0
    %1590 = vmatpush1.msra.mxu0 0.0
    %1591 = vmatprep.subr.mxu0 0.0
    %1592 = vmatpush1.msra.mxu0 0.0
    %1593 = vmatprep.subr.mxu0 0.0
    %1594 = vmatpush1.msra.mxu0 0.0
    %1595 = vmatprep.subr.mxu0 0.0
    %1596 = vmatpush1.msra.mxu0 0.0
    %1597 = vmatprep.subr.mxu0 0.0
    %1598 = vmatpush1.msra.mxu0 0.0
    %1599 = vmatprep.subr.mxu0 0.0
    %1600 = vmatpush1.msra.mxu0 0.0
    %1601 = vmatprep.subr.mxu0 0.0
    %1602 = vmatpush1.msra.mxu0 0.0
    %1603 = vmatprep.subr.mxu0 0.0
    %1604 = vmatpush1.msra.mxu0 0.0
    %1605 = vmatprep.subr.mxu0 0.0
    %1606 = vmatpush1.msra.mxu0 0.0
    %1607 = vmatprep.subr.mxu0 0.0
    %1608 = vmatpush1.msra.mxu0 0.0
    %1609 = vmatprep.subr.mxu0 0.0
    %1610 = vmatpush1.msra.mxu0 0.0
    %1611 = vmatprep.subr.mxu0 0.0
    %1612 = vmatpush1.msra.mxu0 0.0
    %1613 = vmatprep.subr.mxu0 0.0
    %1614 = vmatpush1.msra.mxu0 0.0
    %1615 = vmatprep.subr.mxu0 0.0
    %1616 = vmatpush1.msra.mxu0 0.0
    %1617 = vmatprep.subr.mxu0 0.0
    %1618 = vmatpush1.msra.mxu0 0.0
    %1619 = vmatprep.subr.mxu0 0.0
    %1620 = vmatpush1.msra.mxu0 0.0
    %1621 = vmatprep.subr.mxu0 0.0
    %1622 = vmatpush1.msra.mxu0 0.0
    %1623 = vmatprep.subr.mxu0 0.0
    %1624 = vmatpush1.msra.mxu0 0.0
    %1625 = vmatprep.subr.mxu0 0.0
    %1626 = vmatpush1.msra.mxu0 0.0
    %1627 = vmatprep.subr.mxu0 0.0
    %1628 = vmatpush1.msra.mxu0 0.0
    %1629 = vmatprep.subr.mxu0 0.0
    %1630 = vmatpush1.msra.mxu0 0.0
    %1631 = vmatprep.subr.mxu0 0.0
    %1632 = vmatpush1.msra.mxu0 0.0
    %1633 = vmatprep.subr.mxu0 0.0
    %1634 = vmatpush1.msra.mxu0 0.0
    %1635 = vmatprep.subr.mxu0 0.0
    %1636 = vmatpush1.msra.mxu0 0.0
    %1637 = vmatprep.mubr.f32.mxu0 0.0
    %1638 = vmatmul.mubr.f32.gmra.mrb[0].mxu0 %v1568
    %v1639 = vpop.f32.mrb[0].mxu0
    %v1640 = vadd.f32 %v1566, %v1639
    %v1641 = vpop.f32.mrb[0].mxu0
    %1642 = vmatprep.mubr.f32.mxu0 0.0
    %1643 = vmatmul.mubr.f32.gmra.mrb[0].mxu0 %v1571
    %v1644 = vpop.f32.mrb[0].mxu0
    %v1645 = vadd.f32 %v1566, %v1644
    %v1646 = vpop.f32.mrb[0].mxu0
    %1647 = vdwg.mxu0
    %v1648 = vadd.f32 %v54, %v1640
    %v1649 = vadd.f32 %v55, %v1645
    %v1650 = vsel %vm56, %v1648, 0.0
    %1651 = vadd.xlane.f32.xlu0 %v1650
    %v1652 = vpop.xlane.xlu0 %1651
    %v1653 = vsel %vm56, %v1649, 0.0
    %1654 = vadd.xlane.f32.xlu0 %v1653
    %v1655 = vpop.xlane.xlu0 %1654
    %v1656 = vmul.f32 %v1652, %v63
    %v1657 = vmul.f32 %v1655, %v63
    %v1658 = vsub.f32 %v1648, %v1656
    %v1659 = vsub.f32 %v1649, %v1657
    %v1660 = vmul.f32 %v1658, %v1658
    %v1661 = vmul.f32 %v1659, %v1659
    %v1662 = vsel %vm56, %v1660, 0.0
    %1663 = vadd.xlane.f32.xlu0 %v1662
    %v1664 = vpop.xlane.xlu0 %1663
    %v1665 = vsel %vm56, %v1661, 0.0
    %1666 = vadd.xlane.f32.xlu0 %v1665
    %v1667 = vpop.xlane.xlu0 %1666
    %v1668 = vmul.f32 %v1664, %v63
    %v1669 = vmul.f32 %v1667, %v63
    %v1670 = vadd.f32 %v1668, 1e-06
    %v1671 = vadd.f32 %v1669, 1e-06
    %v1672 = vrsqrt.pop %v1670
    %v1673 = vrsqrt.pop %v1671
    %v1674 = vmul.f32 %v1658, %v1672
    %v1675 = vmul.f32 %v1659, %v1673
    %v1676 = vlaneseq
    %v1677 = vshrl.u32 %v1676, 7
    %v1678 = vsub.s32 0, %v1677
    %v1679 = vrot.slane %v39, %v1678
    %v1680 = vmul.f32 %v1674, %v1679
    %v1681 = vmul.f32 %v1675, %v1679
    %v1682 = vlaneseq
    %v1683 = vshrl.u32 %v1682, 7
    %v1684 = vsub.s32 0, %v1683
    %v1685 = vrot.slane %v40, %v1684
    %v1686 = vadd.f32 %v1680, %v1685
    %v1687 = vadd.f32 %v1681, %v1685
    %v1688 = vld [vmem:[%s6] sm:$0xff]
    %v1689 = vld [vmem:[%s6 + $0x8] sm:$0xff]
    %v1690 = vld [vmem:[%s6 + $0x10] sm:$0xff]
    %v1691 = vld [vmem:[%s6 + $0x18] sm:$0xff]
    %v1692 = vld [vmem:[%s7] sm:$0x1]
    %v1694 = vlaneseq
    %v1695 = vshrl.u32 %v1694, 7
    %v1696 = vsub.s32 0, %v1695
    %v1697 = vrot.slane %v1692, %v1696
    %v1700 = vsel %vm56, %v1686, 0
    %v1703 = vsel %vm56, %v1687, 0
    %1705 = vmatprep.subr.mxu0 0.0
    %1706 = vmatpush1.msra.mxu0 %v1688
    %1707 = vmatprep.subr.mxu0 0.0
    %1708 = vmatpush1.msra.mxu0 %v1689
    %1709 = vmatprep.subr.mxu0 0.0
    %1710 = vmatpush1.msra.mxu0 %v1690
    %1711 = vmatprep.subr.mxu0 0.0
    %1712 = vmatpush1.msra.mxu0 %v1691
    %1713 = vmatprep.subr.mxu0 0.0
    %1714 = vmatpush1.msra.mxu0 0.0
    %1715 = vmatprep.subr.mxu0 0.0
    %1716 = vmatpush1.msra.mxu0 0.0
    %1717 = vmatprep.subr.mxu0 0.0
    %1718 = vmatpush1.msra.mxu0 0.0
    %1719 = vmatprep.subr.mxu0 0.0
    %1720 = vmatpush1.msra.mxu0 0.0
    %1721 = vmatprep.subr.mxu0 0.0
    %1722 = vmatpush1.msra.mxu0 0.0
    %1723 = vmatprep.subr.mxu0 0.0
    %1724 = vmatpush1.msra.mxu0 0.0
    %1725 = vmatprep.subr.mxu0 0.0
    %1726 = vmatpush1.msra.mxu0 0.0
    %1727 = vmatprep.subr.mxu0 0.0
    %1728 = vmatpush1.msra.mxu0 0.0
    %1729 = vmatprep.subr.mxu0 0.0
    %1730 = vmatpush1.msra.mxu0 0.0
    %1731 = vmatprep.subr.mxu0 0.0
    %1732 = vmatpush1.msra.mxu0 0.0
    %1733 = vmatprep.subr.mxu0 0.0
    %1734 = vmatpush1.msra.mxu0 0.0
    %1735 = vmatprep.subr.mxu0 0.0
    %1736 = vmatpush1.msra.mxu0 0.0
    %1737 = vmatprep.subr.mxu0 0.0
    %1738 = vmatpush1.msra.mxu0 0.0
    %1739 = vmatprep.subr.mxu0 0.0
    %1740 = vmatpush1.msra.mxu0 0.0
    %1741 = vmatprep.subr.mxu0 0.0
    %1742 = vmatpush1.msra.mxu0 0.0
    %1743 = vmatprep.subr.mxu0 0.0
    %1744 = vmatpush1.msra.mxu0 0.0
    %1745 = vmatprep.subr.mxu0 0.0
    %1746 = vmatpush1.msra.mxu0 0.0
    %1747 = vmatprep.subr.mxu0 0.0
    %1748 = vmatpush1.msra.mxu0 0.0
    %1749 = vmatprep.subr.mxu0 0.0
    %1750 = vmatpush1.msra.mxu0 0.0
    %1751 = vmatprep.subr.mxu0 0.0
    %1752 = vmatpush1.msra.mxu0 0.0
    %1753 = vmatprep.subr.mxu0 0.0
    %1754 = vmatpush1.msra.mxu0 0.0
    %1755 = vmatprep.subr.mxu0 0.0
    %1756 = vmatpush1.msra.mxu0 0.0
    %1757 = vmatprep.subr.mxu0 0.0
    %1758 = vmatpush1.msra.mxu0 0.0
    %1759 = vmatprep.subr.mxu0 0.0
    %1760 = vmatpush1.msra.mxu0 0.0
    %1761 = vmatprep.subr.mxu0 0.0
    %1762 = vmatpush1.msra.mxu0 0.0
    %1763 = vmatprep.subr.mxu0 0.0
    %1764 = vmatpush1.msra.mxu0 0.0
    %1765 = vmatprep.subr.mxu0 0.0
    %1766 = vmatpush1.msra.mxu0 0.0
    %1767 = vmatprep.subr.mxu0 0.0
    %1768 = vmatpush1.msra.mxu0 0.0
    %1769 = vmatprep.mubr.f32.mxu0 0.0
    %1770 = vmatmul.mubr.f32.gmra.mrb[0].mxu0 %v1700
    %v1771 = vpop.f32.mrb[0].mxu0
    %v1772 = vadd.f32 %v1697, %v1771
    %v1773 = vpop.f32.mrb[0].mxu0
    %1774 = vmatprep.mubr.f32.mxu0 0.0
    %1775 = vmatmul.mubr.f32.gmra.mrb[0].mxu0 %v1703
    %v1776 = vpop.f32.mrb[0].mxu0
    %v1777 = vadd.f32 %v1697, %v1776
    %v1778 = vpop.f32.mrb[0].mxu0
    %1779 = vdwg.mxu0
    %v1780 = vmul.f32 %v1772, %v1772
    %v1781 = vmul.f32 %v1777, %v1777
    %v1782 = vmul.f32 %v1772, %v1780
    %v1783 = vmul.f32 %v1777, %v1781
    %v1784 = vmul.f32 %v1782, 0.044715
    %v1785 = vmul.f32 %v1783, 0.044715
    %v1786 = vadd.f32 %v1772, %v1784
    %v1787 = vadd.f32 %v1777, %v1785
    %v1788 = vmul.f32 %v1786, 0.7978846
    %v1789 = vmul.f32 %v1787, 0.7978846
    %v1790 = vtanh.pop %v1788
    %v1791 = vtanh.pop %v1789
    %v1792 = vadd.f32 %v1790, 1.0
    %v1793 = vadd.f32 %v1791, 1.0
    %v1794 = vmul.f32 %v1792, 0.5
    %v1795 = vmul.f32 %v1793, 0.5
    %v1796 = vmul.f32 %v1772, %v1794
    %v1797 = vmul.f32 %v1777, %v1795
    %v1798 = vld [vmem:[%s8] sm:$0xff]
    %v1799 = vld [vmem:[%s8 + $0x8] sm:$0xff]
    %v1800 = vld [vmem:[%s8 + $0x10] sm:$0xff]
    %v1801 = vld [vmem:[%s8 + $0x18] sm:$0xff]
    %v1802 = vld [vmem:[%s8 + $0x20] sm:$0xff]
    %v1803 = vld [vmem:[%s8 + $0x28] sm:$0xff]
    %v1804 = vld [vmem:[%s8 + $0x30] sm:$0xff]
    %v1805 = vld [vmem:[%s8 + $0x38] sm:$0xff]
    %v1806 = vlaneseq
    %v1807 = vshrl.u32 %v1806, 7
    %v1808 = vsub.s32 0, %v1807
    %v1809 = vrot.slane %v41, %v1808
    %vm1810 = vcmask 523264
    %v1812 = vsel %vm1810, %v1796, 0
    %v1815 = vsel %vm1810, %v1797, 0
    %1817 = vmatprep.subr.mxu0 0.0
    %1818 = vmatpush1.msra.mxu0 %v1798
    %1819 = vmatprep.subr.mxu0 0.0
    %1820 = vmatpush1.msra.mxu0 %v1799
    %1821 = vmatprep.subr.mxu0 0.0
    %1822 = vmatpush1.msra.mxu0 %v1800
    %1823 = vmatprep.subr.mxu0 0.0
    %1824 = vmatpush1.msra.mxu0 %v1801
    %1825 = vmatprep.subr.mxu0 0.0
    %1826 = vmatpush1.msra.mxu0 %v1802
    %1827 = vmatprep.subr.mxu0 0.0
    %1828 = vmatpush1.msra.mxu0 %v1803
    %1829 = vmatprep.subr.mxu0 0.0
    %1830 = vmatpush1.msra.mxu0 %v1804
    %1831 = vmatprep.subr.mxu0 0.0
    %1832 = vmatpush1.msra.mxu0 %v1805
    %1833 = vmatprep.subr.mxu0 0.0
    %1834 = vmatpush1.msra.mxu0 0.0
    %1835 = vmatprep.subr.mxu0 0.0
    %1836 = vmatpush1.msra.mxu0 0.0
    %1837 = vmatprep.subr.mxu0 0.0
    %1838 = vmatpush1.msra.mxu0 0.0
    %1839 = vmatprep.subr.mxu0 0.0
    %1840 = vmatpush1.msra.mxu0 0.0
    %1841 = vmatprep.subr.mxu0 0.0
    %1842 = vmatpush1.msra.mxu0 0.0
    %1843 = vmatprep.subr.mxu0 0.0
    %1844 = vmatpush1.msra.mxu0 0.0
    %1845 = vmatprep.subr.mxu0 0.0
    %1846 = vmatpush1.msra.mxu0 0.0
    %1847 = vmatprep.subr.mxu0 0.0
    %1848 = vmatpush1.msra.mxu0 0.0
    %1849 = vmatprep.subr.mxu0 0.0
    %1850 = vmatpush1.msra.mxu0 0.0
    %1851 = vmatprep.subr.mxu0 0.0
    %1852 = vmatpush1.msra.mxu0 0.0
    %1853 = vmatprep.subr.mxu0 0.0
    %1854 = vmatpush1.msra.mxu0 0.0
    %1855 = vmatprep.subr.mxu0 0.0
    %1856 = vmatpush1.msra.mxu0 0.0
    %1857 = vmatprep.subr.mxu0 0.0
    %1858 = vmatpush1.msra.mxu0 0.0
    %1859 = vmatprep.subr.mxu0 0.0
    %1860 = vmatpush1.msra.mxu0 0.0
    %1861 = vmatprep.subr.mxu0 0.0
    %1862 = vmatpush1.msra.mxu0 0.0
    %1863 = vmatprep.subr.mxu0 0.0
    %1864 = vmatpush1.msra.mxu0 0.0
    %1865 = vmatprep.subr.mxu0 0.0
    %1866 = vmatpush1.msra.mxu0 0.0
    %1867 = vmatprep.subr.mxu0 0.0
    %1868 = vmatpush1.msra.mxu0 0.0
    %1869 = vmatprep.subr.mxu0 0.0
    %1870 = vmatpush1.msra.mxu0 0.0
    %1871 = vmatprep.subr.mxu0 0.0
    %1872 = vmatpush1.msra.mxu0 0.0
    %1873 = vmatprep.subr.mxu0 0.0
    %1874 = vmatpush1.msra.mxu0 0.0
    %1875 = vmatprep.subr.mxu0 0.0
    %1876 = vmatpush1.msra.mxu0 0.0
    %1877 = vmatprep.subr.mxu0 0.0
    %1878 = vmatpush1.msra.mxu0 0.0
    %1879 = vmatprep.subr.mxu0 0.0
    %1880 = vmatpush1.msra.mxu0 0.0
    %1881 = vmatprep.mubr.f32.mxu0 0.0
    %1882 = vmatmul.mubr.f32.gmra.mrb[0].mxu0 %v1812
    %v1883 = vpop.f32.mrb[0].mxu0
    %v1884 = vadd.f32 %v1809, %v1883
    %v1885 = vpop.f32.mrb[0].mxu0
    %1886 = vmatprep.mubr.f32.mxu0 0.0
    %1887 = vmatmul.mubr.f32.gmra.mrb[0].mxu0 %v1815
    %v1888 = vpop.f32.mrb[0].mxu0
    %v1889 = vadd.f32 %v1809, %v1888
    %v1890 = vpop.f32.mrb[0].mxu0
    %1891 = vdwg.mxu0
    %v1892 = vadd.f32 %v1648, %v1884
    %v1893 = vadd.f32 %v1649, %v1889
    %v1894 = vsel %vm56, %v1892, 0.0
    %1895 = vadd.xlane.f32.xlu0 %v1894
    %v1896 = vpop.xlane.xlu0 %1895
    %v1897 = vsel %vm56, %v1893, 0.0
    %1898 = vadd.xlane.f32.xlu0 %v1897
    %v1899 = vpop.xlane.xlu0 %1898
    %v1900 = vmul.f32 %v1896, %v63
    %v1901 = vmul.f32 %v1899, %v63
    %v1902 = vsub.f32 %v1892, %v1900
    %v1903 = vsub.f32 %v1893, %v1901
    %v1904 = vmul.f32 %v1902, %v1902
    %v1905 = vmul.f32 %v1903, %v1903
    %v1906 = vsel %vm56, %v1904, 0.0
    %1907 = vadd.xlane.f32.xlu0 %v1906
    %v1908 = vpop.xlane.xlu0 %1907
    %v1909 = vsel %vm56, %v1905, 0.0
    %1910 = vadd.xlane.f32.xlu0 %v1909
    %v1911 = vpop.xlane.xlu0 %1910
    %v1912 = vmul.f32 %v1908, %v63
    %v1913 = vmul.f32 %v1911, %v63
    %v1914 = vadd.f32 %v1912, 1e-06
    %v1915 = vadd.f32 %v1913, 1e-06
    %v1916 = vrsqrt.pop %v1914
    %v1917 = vrsqrt.pop %v1915
    %v1918 = vmul.f32 %v1902, %v1916
    %v1919 = vmul.f32 %v1903, %v1917
    %v1920 = vlaneseq
    %v1921 = vshrl.u32 %v1920, 7
    %v1922 = vsub.s32 0, %v1921
    %v1923 = vrot.slane %v42, %v1922
    %v1924 = vmul.f32 %v1918, %v1923
    %v1925 = vmul.f32 %v1919, %v1923
    %v1926 = vlaneseq
    %v1927 = vshrl.u32 %v1926, 7
    %v1928 = vsub.s32 0, %v1927
    %v1929 = vrot.slane %v43, %v1928
    %v1930 = vadd.f32 %v1924, %v1929
    %v1931 = vadd.f32 %v1925, %v1929
    %1932 = vst.msk [vmem:[#allocation4] sm:$0xff] %vm56, %v1930
    %1933 = vst.msk [vmem:[#allocation4 + $0x8] sm:$0xff] %vm56, %v1931
    // Predicated region
    $region38: #{tpu_custom_call.1} parent=1 // pred_check
      _
    $region39: #{tpu_custom_call.1} parent=1 // pred_check_branch
      %1935 = sbr.rel (0) target = $region41
    $region40: #{tpu_custom_call.1} parent=1 // pred_region
      %s1937 = ssub.s32 256, 256
      %1938 = vsyncadd [#allocation5], %s1937
      %s1939 = sshll.u32 [#allocation4], 4
      %s1940 = int_to_ptr.vmem [resolvable:$true] %s1939
      %1945 = dma.vmem_to_hbm [thread:$0]  %s1940, 256, %s9, [#allocation5], 128, 128, 8
    $region41: #{tpu_custom_call.1} parent=1 // pred_fallthru
      _
    // Predicated region
    $region42: #{tpu_custom_call.1} parent=1 // pred_check
      _
    $region43: #{tpu_custom_call.1} parent=1 // pred_check_branch
      %1947 = sbr.rel (0) target = $region45
    $region44: #{tpu_custom_call.1} parent=1 // pred_region
      %s1949 = ssub.s32 1024, 1024
      %1950 = vsyncadd [#allocation7], %s1949
      %s1951 = sshll.u32 [#allocation6], 4
      %s1952 = int_to_ptr.vmem [resolvable:$true] %s1951
      %1957 = dma.vmem_to_hbm [thread:$0]  %s1952, 1024, %s10, [#allocation7], 128, 128, 8
    $region45: #{tpu_custom_call.1} parent=1 // pred_fallthru
      _
    // Predicated region
    $region46: #{tpu_custom_call.1} parent=1 // pred_check
      _
    $region47: #{tpu_custom_call.1} parent=1 // pred_check_branch
      %1959 = sbr.rel (0) target = $region49
    $region48: #{tpu_custom_call.1} parent=1 // pred_region
      %1960 = dma.done [#allocation5], 256
    $region49: #{tpu_custom_call.1} parent=1 // pred_fallthru
      _
    // Predicated region
    $region50: #{tpu_custom_call.1} parent=1 // pred_check
      _
    $region51: #{tpu_custom_call.1} parent=1 // pred_check_branch
      %1962 = sbr.rel (0) target = $region53
    $region52: #{tpu_custom_call.1} parent=1 // pred_region
      %1963 = dma.done [#allocation7], 1024
    $region53: #{tpu_custom_call.1} parent=1 // pred_fallthru
      _
    %1964 = vsyncpa [#allocation5], 1
    %1965 = vsyncpa [#allocation7], 1

</llo_original>
